<compile_context>
chip_gen: v5e
topology: v5e:2x2
jax: 0.10.0
libtpu: 0.0.40
codegen_flags: <defaults>
</compile_context>

<pallas_src>
import functools

import jax
import jax.numpy as jnp
from jax.experimental import pallas as pl
from jax.experimental.pallas import tpu as pltpu


C_IN = 96          # the module fixes channels at 96
C_PAD = 128        # lane-dense channel padding
N_TRUNK = 4
HEAD_COUT = 7      # 1 cls + 6 reg
HEAD_COUT_PAD = 8  # output lanes written by the kernel
N_CONV = N_TRUNK + 1   # total 3x3 conv layers in the header
HALO = N_CONV          # rows of input halo needed per H-tile (1 per conv)
LPAD = 8               # sublane-aligned column offset of the tile interior


# ----------------------------------------------------------------------------
# Fused header kernel: one grid step per (batch image, H-tile).
# ----------------------------------------------------------------------------
def _header_kernel(x_hbm, wt_ref, sh_ref, wh_ref, bh_ref, o_ref,
                   buf_a, buf_b, dma_sem, *, TH, W, Wb):
    C = C_PAD
    R = TH + 2 * HALO            # interior rows held per tile (incl. halo)
    n = pl.program_id(0)
    ti = pl.program_id(1)
    n_th = pl.num_programs(1)

    # Kick off the input DMA for this tile's haloed row window.  The wrapper
    # H-pads the input by HALO zero rows on each side, so the window is always
    # in bounds and the zeros double as the conv padding at the image edges.
    cp = pltpu.make_async_copy(
        x_hbm.at[n, pl.ds(ti * TH, R), :, :],
        buf_a.at[1:1 + R, LPAD:LPAD + W, :],
        dma_sem)
    cp.start()

    # Border-only zeroing (never the full buffers): the interiors are fully
    # overwritten by the DMA / the per-layer stores.  Safe under "parallel"
    # megacore sharding because it is re-done every grid step.
    zrow = jnp.zeros((1, Wb, C), jnp.bfloat16)
    for buf in (buf_a, buf_b):
        buf[0:1, :, :] = zrow
        buf[R + 1:R + 2, :, :] = zrow
        buf[:, 0:LPAD, :] = jnp.zeros((R + 2, LPAD, C), jnp.bfloat16)
        buf[:, LPAD + W:Wb, :] = jnp.zeros((R + 2, Wb - LPAD - W, C),
                                           jnp.bfloat16)
    cp.wait()

    def conv3x3(src, get_w, j0, m):
        """Conv outputs for local rows [j0, j0+m); 3 matmuls with K = 3*C.

        Local row j lives at buffer row j+1; its 3x3 context is buffer rows
        j..j+2 and interior columns shifted by -1/0/+1.
        """
        base = src[j0:j0 + m + 2]                      # (m+2, Wb, C) bf16
        # One width-shifted K-concat per layer, reused for all three dh taps.
        wide = jnp.concatenate(
            [base[:, LPAD - 1 + dw:LPAD - 1 + dw + W, :] for dw in range(3)],
            axis=-1)                                   # (m+2, W, 3C) bf16
        acc = None
        for dh in range(3):
            lhs = wide[dh:dh + m].reshape(m * W, 3 * C)
            t = jnp.dot(lhs, get_w(dh), preferred_element_type=jnp.float32)
            acc = t if acc is None else acc + t
        return acc                                     # (m*W, cout) f32

    # 4 trunk layers: conv + folded-BN shift.  The activation ping-pongs
    # between the two bf16 scratch buffers; the valid row range shrinks by one
    # row per side per layer (erosion), so discarded halo rows are skipped.
    bufs = (buf_a, buf_b)
    zhalo = jnp.zeros((HALO, W, C), jnp.bfloat16)
    for s in range(N_TRUNK):
        src, dst = bufs[s % 2], bufs[(s + 1) % 2]
        j0, m = 1 + s, TH + 2 * (HALO - 1 - s)
        acc = conv3x3(src, lambda dh, s=s: wt_ref[s, dh], j0, m)
        y = (acc + sh_ref[s]).reshape(m, W, C).astype(jnp.bfloat16)
        dst[1 + j0:1 + j0 + m, LPAD:LPAD + W, :] = y

        # True conv zero padding at the image top/bottom: halo rows of this
        # tile that fall outside the image must be zero for the next layer.
        @pl.when(ti == 0)
        def _(dst=dst):
            dst[1:1 + HALO, LPAD:LPAD + W, :] = zhalo

        @pl.when(ti == n_th - 1)
        def _(dst=dst):
            dst[1 + HALO + TH:1 + R, LPAD:LPAD + W, :] = zhalo

    # Merged cls|reg head (Cout padded to 8), computed only for this tile's TH
    # output rows; sigmoid applied to the cls lane only.
    src = bufs[N_TRUNK % 2]
    acc = conv3x3(src, lambda dh: wh_ref[dh], HALO, TH)
    y = acc + bh_ref[...]                              # (TH*W, 8) f32
    lane = jax.lax.broadcasted_iota(jnp.int32, y.shape, 1)
    y = jnp.where(lane == 0, jax.nn.sigmoid(y), y)
    o_ref[...] = y.reshape(1, TH, W, HEAD_COUT_PAD).astype(o_ref.dtype)


def _pick_tile_h(H):
    for t in (64, 56, 48, 40, 32, 28, 24, 20, 16, 12, 10, 8):
        if t <= H and H % t == 0 and t >= HALO:
            return t
    return H


def header_pallas(packed, x_padded, *, H, W, TH):
    """x_padded: (N, H + 2*HALO, W, C_PAD) bf16 NHWC with zero H/C padding."""
    N = x_padded.shape[0]
    n_th = H // TH
    R = TH + 2 * HALO
    Wb = LPAD + ((W + 1 + 7) // 8) * 8     # interior at col LPAD, >=1 right pad

    # Scoped-VMEM budget sized for the chosen tile (raises v5e/v6e defaults,
    # stays under v7x's 64 MiB physical VMEM).
    scratch_b = 2 * (R + 2) * Wb * C_PAD * 2
    wide_b = (R + 2) * W * 3 * C_PAD * 2
    acc_b = R * W * C_PAD * 4
    w_b = 2 * 2 * (N_TRUNK * 3 * 3 * C_PAD * C_PAD
                   + 3 * 3 * C_PAD * HEAD_COUT_PAD)
    out_b = 2 * TH * W * HEAD_COUT_PAD * 4
    est = scratch_b + 2 * wide_b + 2 * acc_b + w_b + out_b
    vmem_limit = int(min(56 * 2 ** 20, max(24 * 2 ** 20, 2 * est)))

    kernel = functools.partial(_header_kernel, TH=TH, W=W, Wb=Wb)
    return pl.pallas_call(
        kernel,
        out_shape=jax.ShapeDtypeStruct((N, H, W, HEAD_COUT_PAD), jnp.float32),
        grid_spec=pltpu.PrefetchScalarGridSpec(
            num_scalar_prefetch=0,
            grid=(N, n_th),
            in_specs=[
                pl.BlockSpec(memory_space=pl.ANY),          # input stays in HBM
                pl.BlockSpec((N_TRUNK, 3, 3 * C_PAD, C_PAD),
                             lambda n, t: (0, 0, 0, 0)),
                pl.BlockSpec((N_TRUNK, 1, C_PAD), lambda n, t: (0, 0, 0)),
                pl.BlockSpec((3, 3 * C_PAD, HEAD_COUT_PAD),
                             lambda n, t: (0, 0, 0)),
                pl.BlockSpec((1, HEAD_COUT_PAD), lambda n, t: (0, 0)),
            ],
            out_specs=pl.BlockSpec((1, TH, W, HEAD_COUT_PAD),
                                   lambda n, t: (n, t, 0, 0)),
            scratch_shapes=[
                pltpu.VMEM((R + 2, Wb, C_PAD), jnp.bfloat16),
                pltpu.VMEM((R + 2, Wb, C_PAD), jnp.bfloat16),
                pltpu.SemaphoreType.DMA(()),
            ],
        ),
        compiler_params=pltpu.CompilerParams(
            dimension_semantics=("parallel", "parallel"),
            vmem_limit_bytes=vmem_limit),
    )(x_padded, packed["wt"], packed["sh"], packed["wh"], packed["bh"])


# ----------------------------------------------------------------------------
# Parameter construction / packing and the Header forward.
# ----------------------------------------------------------------------------
def make_header_params(key, use_bn=True, dtype=jnp.float32):
    eps = 1e-5
    keys = iter(jax.random.split(key, 40))
    nxt = lambda: next(keys)

    def conv_w(cin, cout):
        # PyTorch layout (Cout, Cin, 3, 3) -> HWIO (3, 3, Cin, Cout)
        w = 0.03 * jax.random.normal(nxt(), (cout, cin, 3, 3), dtype)
        return jnp.transpose(w, (2, 3, 1, 0))

    params = {"use_bn": use_bn, "eps": eps, "trunk": []}
    for _ in range(N_TRUNK):
        w = conv_w(C_IN, C_IN)
        gamma = 1.0 + 0.3 * jax.random.normal(nxt(), (C_IN,), dtype)
        beta = 0.4 * jax.random.normal(nxt(), (C_IN,), dtype)
        rmean = 0.3 * jax.random.normal(nxt(), (C_IN,), dtype)
        rvar = jax.random.uniform(nxt(), (C_IN,), dtype, 0.5, 1.5)
        if use_bn:   # eval-mode BN folded into per-channel scale/shift
            scale = gamma / jnp.sqrt(rvar + eps)
            shift = beta - rmean * scale
        else:        # conv with bias, no BN
            scale = jnp.ones((C_IN,), dtype)
            shift = 0.4 * jax.random.normal(nxt(), (C_IN,), dtype)
        params["trunk"].append((w, scale, shift))

    w_cls = conv_w(C_IN, 1)
    b_cls = 0.5 * jax.random.normal(nxt(), (1,), dtype)
    w_reg = conv_w(C_IN, 6)
    b_reg = 0.5 * jax.random.normal(nxt(), (6,), dtype)
    params["cls"] = (w_cls, jnp.ones((1,), dtype), b_cls)
    params["reg"] = (w_reg, jnp.ones((6,), dtype), b_reg)
    return params


def _pack_weight(w_hwio, cout_pad):
    """HWIO (3,3,cin,cout) -> (3, 3*C_PAD, cout_pad) bf16, zero padded.

    Padded lanes stay exactly zero in every activation: K-padding here is
    zero and the per-layer shift / head bias are zero-padded too.
    """
    _, _, cin, cout = w_hwio.shape
    w = jnp.zeros((3, 3, C_PAD, cout_pad), jnp.float32)
    w = w.at[:, :, :cin, :cout].set(w_hwio.astype(jnp.float32))
    return w.reshape(3, 3 * C_PAD, cout_pad).astype(jnp.bfloat16)


def pack_header_params(params):
    """One-time packing: fold BN scale into weights, pad lanes, cast bf16."""
    wt, sh = [], []
    for (w, scale, shift) in params["trunk"]:
        w_folded = (w.astype(jnp.float32)
                    * scale.astype(jnp.float32).reshape(1, 1, 1, -1))
        wt.append(_pack_weight(w_folded, C_PAD))
        sh.append(jnp.zeros((C_PAD,), jnp.float32).at[:C_IN]
                  .set(shift.astype(jnp.float32)))
    wt = jnp.stack(wt)                                   # (4, 3, 384, 128) bf16
    sh = jnp.stack(sh).reshape(N_TRUNK, 1, C_PAD)        # (4, 1, 128) f32

    w_cls, _, b_cls = params["cls"]
    w_reg, _, b_reg = params["reg"]
    w_head = jnp.concatenate([w_cls, w_reg], axis=-1)    # (3,3,96,7)
    wh = _pack_weight(w_head, HEAD_COUT_PAD)             # (3, 384, 8) bf16
    bh = jnp.zeros((1, HEAD_COUT_PAD), jnp.float32).at[0, :HEAD_COUT].set(
        jnp.concatenate([b_cls, b_reg]).astype(jnp.float32))
    return {"wt": wt, "sh": sh, "wh": wh, "bh": bh}


def header_forward(params, x_nchw, packed=None, tile_h=None):
    """Matches Header.forward (eval-mode BN): returns (cls, reg) in NCHW."""
    if packed is None:
        packed = pack_header_params(params)
    N, C, H, W = x_nchw.shape
    assert C == C_IN, "Header is fixed at 96 input channels"
    TH = tile_h if tile_h is not None else _pick_tile_h(H)
    assert H % TH == 0 and (TH >= HALO or H == TH)
    # NCHW -> NHWC, bf16, zero-pad H by the halo and channels to 128 lanes.
    x = jnp.transpose(x_nchw, (0, 2, 3, 1)).astype(jnp.bfloat16)
    x = jnp.pad(x, ((0, 0), (HALO, HALO), (0, 0), (0, C_PAD - C)))
    out = header_pallas(packed, x, H=H, W=W, TH=TH)      # (N, H, W, 8) f32
    cls = jnp.transpose(out[..., 0:1], (0, 3, 1, 2))
    reg = jnp.transpose(out[..., 1:1 + 6], (0, 3, 1, 2))
    return cls, reg


# ----------------------------------------------------------------------------
# Pure-f32 JAX reference for the self-check.
# ----------------------------------------------------------------------------
def _ref_conv(x_nhwc, w_hwio, scale, shift, apply_sigmoid=False):
    y = jax.lax.conv_general_dilated(
        x_nhwc, w_hwio, window_strides=(1, 1), padding="SAME",
        dimension_numbers=("NHWC", "HWIO", "NHWC"),
        precision=jax.lax.Precision.HIGHEST)
    y = y * scale.reshape(1, 1, 1, -1) + shift.reshape(1, 1, 1, -1)
    return jax.nn.sigmoid(y) if apply_sigmoid else y


def _ref_forward(params, x_nchw):
    x = jnp.transpose(x_nchw, (0, 2, 3, 1)).astype(jnp.float32)
    for (w, scale, shift) in params["trunk"]:
        x = _ref_conv(x, w, scale, shift)
    w_c, s_c, b_c = params["cls"]
    cls = _ref_conv(x, w_c, s_c, b_c, apply_sigmoid=True)
    w_r, s_r, b_r = params["reg"]
    reg = _ref_conv(x, w_r, s_r, b_r)
    return (jnp.transpose(cls, (0, 3, 1, 2)),
            jnp.transpose(reg, (0, 3, 1, 2)))


if __name__ == "__main__":
    key = jax.random.PRNGKey(0)
    k_par, k_x = jax.random.split(key)

    # The module fixes channels at 96; keep batch/spatial small.  tile_h=8
    # exercises the multi-tile halo path (2 H-tiles per image).
    N, C, H, W = 2, C_IN, 16, 16
    x = jax.random.normal(k_x, (N, C, H, W), jnp.float32)   # NCHW like PyTorch

    params = make_header_params(k_par, use_bn=True)
    packed = pack_header_params(params)

    cls, reg = header_forward(params, x, packed=packed, tile_h=8)
    cls, reg = jax.block_until_ready(cls), jax.block_until_ready(reg)
    assert cls.shape == (N, 1, H, W) and reg.shape == (N, 6, H, W)

    cls_ref, reg_ref = _ref_forward(params, x)

    # The kernel uses bf16 operands / bf16-resident intermediates with f32
    # accumulation; the reference is pure f32 math, so tolerances are scaled
    # to the bf16 forward-pass error (structural bugs are >10x larger).
    reg_err = float(jnp.max(jnp.abs(reg - reg_ref)))
    reg_tol = 8e-2 + 3e-2 * float(jnp.max(jnp.abs(reg_ref)))
    assert reg_err < reg_tol, (reg_err, reg_tol)
    cls_err = float(jnp.max(jnp.abs(cls - cls_ref)))
    assert cls_err < 4e-2, cls_err

    print("KERNEL_OK")
</pallas_src>

<mosaic_0001>
module attributes {stable_mosaic.version = 11 : i64} {
  func.func @_header_kernel(%arg0: i32, %arg1: i32, %arg2: memref<2x26x16x128xbf16, #tpu.memory_space<any>>, %arg3: memref<4x3x384x128xbf16, #tpu.memory_space<vmem>>, %arg4: memref<4x1x128xf32, #tpu.memory_space<vmem>>, %arg5: memref<3x384x8xbf16, #tpu.memory_space<vmem>>, %arg6: memref<1x8xf32, #tpu.memory_space<vmem>>, %arg7: memref<1x8x16x8xf32, #tpu.memory_space<vmem>>, %arg8: memref<20x32x128xbf16, #tpu.memory_space<vmem>>, %arg9: memref<20x32x128xbf16, #tpu.memory_space<vmem>>, %arg10: memref<!tpu.dma_semaphore, #tpu.memory_space<semaphore_mem>>) attributes {dimension_semantics = [#tpu.dimension_semantics<parallel>, #tpu.dimension_semantics<parallel>], iteration_bounds = array<i64: 2, 2>, scalar_prefetch = 0 : i64, scratch_operands = 3 : i64, tpu.core_type = #tpu.core_type<tc>, window_params = [{}, {pipeline_mode = #tpu.pipeline_mode<synchronous>, transform_indices = @transform_1, window_bounds = array<i64: 4, 3, 384, 128>}, {pipeline_mode = #tpu.pipeline_mode<synchronous>, transform_indices = @transform_2, window_bounds = array<i64: 4, 1, 128>}, {pipeline_mode = #tpu.pipeline_mode<synchronous>, transform_indices = @transform_3, window_bounds = array<i64: 3, 384, 8>}, {pipeline_mode = #tpu.pipeline_mode<synchronous>, transform_indices = @transform_4, window_bounds = array<i64: 1, 8>}, {transform_indices = @transform_5, window_bounds = array<i64: 1, 8, 16, 8>}]} {
    %c8_i32 = arith.constant 8 : i32
    %0 = arith.muli %arg1, %c8_i32 : i32
    %c0_i32 = arith.constant 0 : i32
    %c0_i32_0 = arith.constant 0 : i32
    %1 = tpu.memref_slice %arg2[%arg0, %0, %c0_i32, %c0_i32_0] : memref<2x26x16x128xbf16, #tpu.memory_space<any>> -> memref<1x18x16x128xbf16, #tpu.memory_space<any>>
    %2 = tpu.memref_squeeze %1 : memref<1x18x16x128xbf16, #tpu.memory_space<any>> -> memref<18x16x128xbf16, #tpu.memory_space<any>>
    %c1_i32 = arith.constant 1 : i32
    %c8_i32_1 = arith.constant 8 : i32
    %c0_i32_2 = arith.constant 0 : i32
    %3 = tpu.memref_slice %arg8[%c1_i32, %c8_i32_1, %c0_i32_2] : memref<20x32x128xbf16, #tpu.memory_space<vmem>> -> memref<18x16x128xbf16, #tpu.memory_space<vmem>>
    tpu.enqueue_dma source(%2 : memref<18x16x128xbf16, #tpu.memory_space<any>>) target(%3 : memref<18x16x128xbf16, #tpu.memory_space<vmem>>) target_semaphore(%arg10 : memref<!tpu.dma_semaphore, #tpu.memory_space<semaphore_mem>>)
    %cst = arith.constant 0.000000e+00 : bf16
    %4 = vector.broadcast %cst : bf16 to vector<1x32x128xbf16>
    %c0 = arith.constant 0 : index
    %c0_3 = arith.constant 0 : index
    %c0_4 = arith.constant 0 : index
    %5 = vector.load %arg8[%c0, %c0_3, %c0_4] : memref<20x32x128xbf16, #tpu.memory_space<vmem>>, vector<1x32x128xbf16>
    tpu.vector_store %arg8[%c0, %c0_3, %c0_4], %4 {strides = array<i32>} : memref<20x32x128xbf16, #tpu.memory_space<vmem>>, vector<1x32x128xbf16>,
    %c19 = arith.constant 19 : index
    %c0_5 = arith.constant 0 : index
    %c0_6 = arith.constant 0 : index
    %6 = vector.load %arg8[%c19, %c0_5, %c0_6] : memref<20x32x128xbf16, #tpu.memory_space<vmem>>, vector<1x32x128xbf16>
    tpu.vector_store %arg8[%c19, %c0_5, %c0_6], %4 {strides = array<i32>} : memref<20x32x128xbf16, #tpu.memory_space<vmem>>, vector<1x32x128xbf16>,
    %cst_7 = arith.constant 0.000000e+00 : bf16
    %7 = vector.broadcast %cst_7 : bf16 to vector<20x8x128xbf16>
    %c0_8 = arith.constant 0 : index
    %c0_9 = arith.constant 0 : index
    %c0_10 = arith.constant 0 : index
    %8 = vector.load %arg8[%c0_8, %c0_9, %c0_10] : memref<20x32x128xbf16, #tpu.memory_space<vmem>>, vector<20x8x128xbf16>
    tpu.vector_store %arg8[%c0_8, %c0_9, %c0_10], %7 {strides = array<i32>} : memref<20x32x128xbf16, #tpu.memory_space<vmem>>, vector<20x8x128xbf16>,
    %cst_11 = arith.constant 0.000000e+00 : bf16
    %9 = vector.broadcast %cst_11 : bf16 to vector<20x8x128xbf16>
    %c0_12 = arith.constant 0 : index
    %c24 = arith.constant 24 : index
    %c0_13 = arith.constant 0 : index
    %10 = vector.load %arg8[%c0_12, %c24, %c0_13] : memref<20x32x128xbf16, #tpu.memory_space<vmem>>, vector<20x8x128xbf16>
    tpu.vector_store %arg8[%c0_12, %c24, %c0_13], %9 {strides = array<i32>} : memref<20x32x128xbf16, #tpu.memory_space<vmem>>, vector<20x8x128xbf16>,
    %c0_14 = arith.constant 0 : index
    %c0_15 = arith.constant 0 : index
    %c0_16 = arith.constant 0 : index
    %11 = vector.load %arg9[%c0_14, %c0_15, %c0_16] : memref<20x32x128xbf16, #tpu.memory_space<vmem>>, vector<1x32x128xbf16>
    tpu.vector_store %arg9[%c0_14, %c0_15, %c0_16], %4 {strides = array<i32>} : memref<20x32x128xbf16, #tpu.memory_space<vmem>>, vector<1x32x128xbf16>,
    %c19_17 = arith.constant 19 : index
    %c0_18 = arith.constant 0 : index
    %c0_19 = arith.constant 0 : index
    %12 = vector.load %arg9[%c19_17, %c0_18, %c0_19] : memref<20x32x128xbf16, #tpu.memory_space<vmem>>, vector<1x32x128xbf16>
    tpu.vector_store %arg9[%c19_17, %c0_18, %c0_19], %4 {strides = array<i32>} : memref<20x32x128xbf16, #tpu.memory_space<vmem>>, vector<1x32x128xbf16>,
    %cst_20 = arith.constant 0.000000e+00 : bf16
    %13 = vector.broadcast %cst_20 : bf16 to vector<20x8x128xbf16>
    %c0_21 = arith.constant 0 : index
    %c0_22 = arith.constant 0 : index
    %c0_23 = arith.constant 0 : index
    %14 = vector.load %arg9[%c0_21, %c0_22, %c0_23] : memref<20x32x128xbf16, #tpu.memory_space<vmem>>, vector<20x8x128xbf16>
    tpu.vector_store %arg9[%c0_21, %c0_22, %c0_23], %13 {strides = array<i32>} : memref<20x32x128xbf16, #tpu.memory_space<vmem>>, vector<20x8x128xbf16>,
    %cst_24 = arith.constant 0.000000e+00 : bf16
    %15 = vector.broadcast %cst_24 : bf16 to vector<20x8x128xbf16>
    %c0_25 = arith.constant 0 : index
    %c24_26 = arith.constant 24 : index
    %c0_27 = arith.constant 0 : index
    %16 = vector.load %arg9[%c0_25, %c24_26, %c0_27] : memref<20x32x128xbf16, #tpu.memory_space<vmem>>, vector<20x8x128xbf16>
    tpu.vector_store %arg9[%c0_25, %c24_26, %c0_27], %15 {strides = array<i32>} : memref<20x32x128xbf16, #tpu.memory_space<vmem>>, vector<20x8x128xbf16>,
    %c0_i32_28 = arith.constant 0 : i32
    %c0_i32_29 = arith.constant 0 : i32
    %17 = tpu.memref_slice %arg2[%arg0, %0, %c0_i32_28, %c0_i32_29] : memref<2x26x16x128xbf16, #tpu.memory_space<any>> -> memref<1x18x16x128xbf16, #tpu.memory_space<any>>
    %18 = tpu.memref_squeeze %17 : memref<1x18x16x128xbf16, #tpu.memory_space<any>> -> memref<18x16x128xbf16, #tpu.memory_space<any>>
    %c1_i32_30 = arith.constant 1 : i32
    %c8_i32_31 = arith.constant 8 : i32
    %c0_i32_32 = arith.constant 0 : i32
    %19 = tpu.memref_slice %arg8[%c1_i32_30, %c8_i32_31, %c0_i32_32] : memref<20x32x128xbf16, #tpu.memory_space<vmem>> -> memref<18x16x128xbf16, #tpu.memory_space<vmem>>
    tpu.wait_dma2 semaphore(%arg10 : memref<!tpu.dma_semaphore, #tpu.memory_space<semaphore_mem>>) src(%18 : memref<18x16x128xbf16, #tpu.memory_space<any>>) dst(%19 : memref<18x16x128xbf16, #tpu.memory_space<vmem>>)
    %cst_33 = arith.constant 0.000000e+00 : bf16
    %20 = vector.broadcast %cst_33 : bf16 to vector<5x16x128xbf16>
    %c1 = arith.constant 1 : index
    %c0_34 = arith.constant 0 : index
    %c0_35 = arith.constant 0 : index
    %21 = vector.load %arg8[%c1, %c0_34, %c0_35] : memref<20x32x128xbf16, #tpu.memory_space<vmem>>, vector<18x32x128xbf16>
    %22 = vector.extract_strided_slice %21 {offsets = [0, 7, 0], sizes = [18, 16, 128], strides = [1, 1, 1]} : vector<18x32x128xbf16> to vector<18x16x128xbf16>
    %23 = vector.extract_strided_slice %21 {offsets = [0, 8, 0], sizes = [18, 16, 128], strides = [1, 1, 1]} : vector<18x32x128xbf16> to vector<18x16x128xbf16>
    %24 = vector.extract_strided_slice %21 {offsets = [0, 9, 0], sizes = [18, 16, 128], strides = [1, 1, 1]} : vector<18x32x128xbf16> to vector<18x16x128xbf16>
    %25 = tpu.concatenate %22, %23, %24 in 2 : vector<18x16x128xbf16>, vector<18x16x128xbf16>, vector<18x16x128xbf16> -> vector<18x16x384xbf16>
    %26 = vector.extract_strided_slice %25 {offsets = [0, 0, 0], sizes = [16, 16, 384], strides = [1, 1, 1]} : vector<18x16x384xbf16> to vector<16x16x384xbf16>
    %27 = vector.shape_cast %26 : vector<16x16x384xbf16> to vector<256x384xbf16>
    %c0_36 = arith.constant 0 : index
    %c0_37 = arith.constant 0 : index
    %c0_38 = arith.constant 0 : index
    %c0_39 = arith.constant 0 : index
    %28 = vector.load %arg3[%c0_36, %c0_37, %c0_38, %c0_39] : memref<4x3x384x128xbf16, #tpu.memory_space<vmem>>, vector<1x1x384x128xbf16>
    %29 = vector.shape_cast %28 : vector<1x1x384x128xbf16> to vector<384x128xbf16>
    %cst_40 = arith.constant dense<0.000000e+00> : vector<256x128xf32>
    %30 = tpu.matmul %27, %29, %cst_40 {dimension_numbers = #tpu.dot_dimension_numbers<[1], [0], [0], [1], [0, 0, 1, 1], [], []>} : vector<256x384xbf16>, vector<384x128xbf16>, vector<256x128xf32> -> vector<256x128xf32>
    %31 = vector.extract_strided_slice %25 {offsets = [1, 0, 0], sizes = [16, 16, 384], strides = [1, 1, 1]} : vector<18x16x384xbf16> to vector<16x16x384xbf16>
    %32 = vector.shape_cast %31 : vector<16x16x384xbf16> to vector<256x384xbf16>
    %c0_41 = arith.constant 0 : index
    %c1_42 = arith.constant 1 : index
    %c0_43 = arith.constant 0 : index
    %c0_44 = arith.constant 0 : index
    %33 = vector.load %arg3[%c0_41, %c1_42, %c0_43, %c0_44] : memref<4x3x384x128xbf16, #tpu.memory_space<vmem>>, vector<1x1x384x128xbf16>
    %34 = vector.shape_cast %33 : vector<1x1x384x128xbf16> to vector<384x128xbf16>
    %cst_45 = arith.constant dense<0.000000e+00> : vector<256x128xf32>
    %35 = tpu.matmul %32, %34, %cst_45 {dimension_numbers = #tpu.dot_dimension_numbers<[1], [0], [0], [1], [0, 0, 1, 1], [], []>} : vector<256x384xbf16>, vector<384x128xbf16>, vector<256x128xf32> -> vector<256x128xf32>
    %36 = arith.addf %30, %35 : vector<256x128xf32>
    %37 = vector.extract_strided_slice %25 {offsets = [2, 0, 0], sizes = [16, 16, 384], strides = [1, 1, 1]} : vector<18x16x384xbf16> to vector<16x16x384xbf16>
    %38 = vector.shape_cast %37 : vector<16x16x384xbf16> to vector<256x384xbf16>
    %c0_46 = arith.constant 0 : index
    %c2 = arith.constant 2 : index
    %c0_47 = arith.constant 0 : index
    %c0_48 = arith.constant 0 : index
    %39 = vector.load %arg3[%c0_46, %c2, %c0_47, %c0_48] : memref<4x3x384x128xbf16, #tpu.memory_space<vmem>>, vector<1x1x384x128xbf16>
    %40 = vector.shape_cast %39 : vector<1x1x384x128xbf16> to vector<384x128xbf16>
    %cst_49 = arith.constant dense<0.000000e+00> : vector<256x128xf32>
    %41 = tpu.matmul %38, %40, %cst_49 {dimension_numbers = #tpu.dot_dimension_numbers<[1], [0], [0], [1], [0, 0, 1, 1], [], []>} : vector<256x384xbf16>, vector<384x128xbf16>, vector<256x128xf32> -> vector<256x128xf32>
    %42 = arith.addf %36, %41 : vector<256x128xf32>
    %c0_50 = arith.constant 0 : index
    %c0_51 = arith.constant 0 : index
    %c0_52 = arith.constant 0 : index
    %43 = vector.load %arg4[%c0_50, %c0_51, %c0_52] : memref<4x1x128xf32, #tpu.memory_space<vmem>>, vector<1x1x128xf32>
    %44 = vector.shape_cast %43 : vector<1x1x128xf32> to vector<1x128xf32>
    %45 = vector.broadcast %44 : vector<1x128xf32> to vector<256x128xf32>
    %46 = arith.addf %42, %45 : vector<256x128xf32>
    %47 = vector.shape_cast %46 : vector<256x128xf32> to vector<16x16x128xf32>
    %48 = arith.truncf %47 : vector<16x16x128xf32> to vector<16x16x128xbf16>
    %c2_53 = arith.constant 2 : index
    %c8 = arith.constant 8 : index
    %c0_54 = arith.constant 0 : index
    %49 = vector.load %arg9[%c2_53, %c8, %c0_54] : memref<20x32x128xbf16, #tpu.memory_space<vmem>>, vector<16x16x128xbf16>
    tpu.vector_store %arg9[%c2_53, %c8, %c0_54], %48 {strides = array<i32>} : memref<20x32x128xbf16, #tpu.memory_space<vmem>>, vector<16x16x128xbf16>,
    %c0_i32_55 = arith.constant 0 : i32
    %50 = arith.cmpi eq, %arg1, %c0_i32_55 : i32
    %51 = arith.extui %50 : i1 to i32
    %c0_i32_56 = arith.constant 0 : i32
    %52 = arith.cmpi ne, %51, %c0_i32_56 : i32
    scf.if %52 {
      %c1_163 = arith.constant 1 : index
      %c8_164 = arith.constant 8 : index
      %c0_165 = arith.constant 0 : index
      %197 = vector.load %arg9[%c1_163, %c8_164, %c0_165] : memref<20x32x128xbf16, #tpu.memory_space<vmem>>, vector<5x16x128xbf16>
      tpu.vector_store %arg9[%c1_163, %c8_164, %c0_165], %20 {strides = array<i32>} : memref<20x32x128xbf16, #tpu.memory_space<vmem>>, vector<5x16x128xbf16>,
    } else {
    }
    %c1_i32_57 = arith.constant 1 : i32
    %53 = arith.cmpi eq, %arg1, %c1_i32_57 : i32
    %54 = arith.extui %53 : i1 to i32
    %c0_i32_58 = arith.constant 0 : i32
    %55 = arith.cmpi ne, %54, %c0_i32_58 : i32
    scf.if %55 {
      %c14 = arith.constant 14 : index
      %c8_163 = arith.constant 8 : index
      %c0_164 = arith.constant 0 : index
      %197 = vector.load %arg9[%c14, %c8_163, %c0_164] : memref<20x32x128xbf16, #tpu.memory_space<vmem>>, vector<5x16x128xbf16>
      tpu.vector_store %arg9[%c14, %c8_163, %c0_164], %20 {strides = array<i32>} : memref<20x32x128xbf16, #tpu.memory_space<vmem>>, vector<5x16x128xbf16>,
    } else {
    }
    %c2_59 = arith.constant 2 : index
    %c0_60 = arith.constant 0 : index
    %c0_61 = arith.constant 0 : index
    %56 = vector.load %arg9[%c2_59, %c0_60, %c0_61] : memref<20x32x128xbf16, #tpu.memory_space<vmem>>, vector<16x32x128xbf16>
    %57 = vector.extract_strided_slice %56 {offsets = [0, 7, 0], sizes = [16, 16, 128], strides = [1, 1, 1]} : vector<16x32x128xbf16> to vector<16x16x128xbf16>
    %58 = vector.extract_strided_slice %56 {offsets = [0, 8, 0], sizes = [16, 16, 128], strides = [1, 1, 1]} : vector<16x32x128xbf16> to vector<16x16x128xbf16>
    %59 = vector.extract_strided_slice %56 {offsets = [0, 9, 0], sizes = [16, 16, 128], strides = [1, 1, 1]} : vector<16x32x128xbf16> to vector<16x16x128xbf16>
    %60 = tpu.concatenate %57, %58, %59 in 2 : vector<16x16x128xbf16>, vector<16x16x128xbf16>, vector<16x16x128xbf16> -> vector<16x16x384xbf16>
    %61 = vector.extract_strided_slice %60 {offsets = [0, 0, 0], sizes = [14, 16, 384], strides = [1, 1, 1]} : vector<16x16x384xbf16> to vector<14x16x384xbf16>
    %62 = vector.shape_cast %61 : vector<14x16x384xbf16> to vector<224x384xbf16>
    %c1_62 = arith.constant 1 : index
    %c0_63 = arith.constant 0 : index
    %c0_64 = arith.constant 0 : index
    %c0_65 = arith.constant 0 : index
    %63 = vector.load %arg3[%c1_62, %c0_63, %c0_64, %c0_65] : memref<4x3x384x128xbf16, #tpu.memory_space<vmem>>, vector<1x1x384x128xbf16>
    %64 = vector.shape_cast %63 : vector<1x1x384x128xbf16> to vector<384x128xbf16>
    %cst_66 = arith.constant dense<0.000000e+00> : vector<224x128xf32>
    %65 = tpu.matmul %62, %64, %cst_66 {dimension_numbers = #tpu.dot_dimension_numbers<[1], [0], [0], [1], [0, 0, 1, 1], [], []>} : vector<224x384xbf16>, vector<384x128xbf16>, vector<224x128xf32> -> vector<224x128xf32>
    %66 = vector.extract_strided_slice %60 {offsets = [1, 0, 0], sizes = [14, 16, 384], strides = [1, 1, 1]} : vector<16x16x384xbf16> to vector<14x16x384xbf16>
    %67 = vector.shape_cast %66 : vector<14x16x384xbf16> to vector<224x384xbf16>
    %c1_67 = arith.constant 1 : index
    %c1_68 = arith.constant 1 : index
    %c0_69 = arith.constant 0 : index
    %c0_70 = arith.constant 0 : index
    %68 = vector.load %arg3[%c1_67, %c1_68, %c0_69, %c0_70] : memref<4x3x384x128xbf16, #tpu.memory_space<vmem>>, vector<1x1x384x128xbf16>
    %69 = vector.shape_cast %68 : vector<1x1x384x128xbf16> to vector<384x128xbf16>
    %cst_71 = arith.constant dense<0.000000e+00> : vector<224x128xf32>
    %70 = tpu.matmul %67, %69, %cst_71 {dimension_numbers = #tpu.dot_dimension_numbers<[1], [0], [0], [1], [0, 0, 1, 1], [], []>} : vector<224x384xbf16>, vector<384x128xbf16>, vector<224x128xf32> -> vector<224x128xf32>
    %71 = arith.addf %65, %70 : vector<224x128xf32>
    %72 = vector.extract_strided_slice %60 {offsets = [2, 0, 0], sizes = [14, 16, 384], strides = [1, 1, 1]} : vector<16x16x384xbf16> to vector<14x16x384xbf16>
    %73 = vector.shape_cast %72 : vector<14x16x384xbf16> to vector<224x384xbf16>
    %c1_72 = arith.constant 1 : index
    %c2_73 = arith.constant 2 : index
    %c0_74 = arith.constant 0 : index
    %c0_75 = arith.constant 0 : index
    %74 = vector.load %arg3[%c1_72, %c2_73, %c0_74, %c0_75] : memref<4x3x384x128xbf16, #tpu.memory_space<vmem>>, vector<1x1x384x128xbf16>
    %75 = vector.shape_cast %74 : vector<1x1x384x128xbf16> to vector<384x128xbf16>
    %cst_76 = arith.constant dense<0.000000e+00> : vector<224x128xf32>
    %76 = tpu.matmul %73, %75, %cst_76 {dimension_numbers = #tpu.dot_dimension_numbers<[1], [0], [0], [1], [0, 0, 1, 1], [], []>} : vector<224x384xbf16>, vector<384x128xbf16>, vector<224x128xf32> -> vector<224x128xf32>
    %77 = arith.addf %71, %76 : vector<224x128xf32>
    %c1_77 = arith.constant 1 : index
    %c0_78 = arith.constant 0 : index
    %c0_79 = arith.constant 0 : index
    %78 = vector.load %arg4[%c1_77, %c0_78, %c0_79] : memref<4x1x128xf32, #tpu.memory_space<vmem>>, vector<1x1x128xf32>
    %79 = vector.shape_cast %78 : vector<1x1x128xf32> to vector<1x128xf32>
    %80 = vector.broadcast %79 : vector<1x128xf32> to vector<224x128xf32>
    %81 = arith.addf %77, %80 : vector<224x128xf32>
    %82 = vector.shape_cast %81 : vector<224x128xf32> to vector<14x16x128xf32>
    %83 = arith.truncf %82 : vector<14x16x128xf32> to vector<14x16x128xbf16>
    %c3 = arith.constant 3 : index
    %c8_80 = arith.constant 8 : index
    %c0_81 = arith.constant 0 : index
    %84 = vector.load %arg8[%c3, %c8_80, %c0_81] : memref<20x32x128xbf16, #tpu.memory_space<vmem>>, vector<14x16x128xbf16>
    tpu.vector_store %arg8[%c3, %c8_80, %c0_81], %83 {strides = array<i32>} : memref<20x32x128xbf16, #tpu.memory_space<vmem>>, vector<14x16x128xbf16>,
    %c0_i32_82 = arith.constant 0 : i32
    %85 = arith.cmpi eq, %arg1, %c0_i32_82 : i32
    %86 = arith.extui %85 : i1 to i32
    %c0_i32_83 = arith.constant 0 : i32
    %87 = arith.cmpi ne, %86, %c0_i32_83 : i32
    scf.if %87 {
      %c1_163 = arith.constant 1 : index
      %c8_164 = arith.constant 8 : index
      %c0_165 = arith.constant 0 : index
      %197 = vector.load %arg8[%c1_163, %c8_164, %c0_165] : memref<20x32x128xbf16, #tpu.memory_space<vmem>>, vector<5x16x128xbf16>
      tpu.vector_store %arg8[%c1_163, %c8_164, %c0_165], %20 {strides = array<i32>} : memref<20x32x128xbf16, #tpu.memory_space<vmem>>, vector<5x16x128xbf16>,
    } else {
    }
    %c1_i32_84 = arith.constant 1 : i32
    %88 = arith.cmpi eq, %arg1, %c1_i32_84 : i32
    %89 = arith.extui %88 : i1 to i32
    %c0_i32_85 = arith.constant 0 : i32
    %90 = arith.cmpi ne, %89, %c0_i32_85 : i32
    scf.if %90 {
      %c14 = arith.constant 14 : index
      %c8_163 = arith.constant 8 : index
      %c0_164 = arith.constant 0 : index
      %197 = vector.load %arg8[%c14, %c8_163, %c0_164] : memref<20x32x128xbf16, #tpu.memory_space<vmem>>, vector<5x16x128xbf16>
      tpu.vector_store %arg8[%c14, %c8_163, %c0_164], %20 {strides = array<i32>} : memref<20x32x128xbf16, #tpu.memory_space<vmem>>, vector<5x16x128xbf16>,
    } else {
    }
    %c3_86 = arith.constant 3 : index
    %c0_87 = arith.constant 0 : index
    %c0_88 = arith.constant 0 : index
    %91 = vector.load %arg8[%c3_86, %c0_87, %c0_88] : memref<20x32x128xbf16, #tpu.memory_space<vmem>>, vector<14x32x128xbf16>
    %92 = vector.extract_strided_slice %91 {offsets = [0, 7, 0], sizes = [14, 16, 128], strides = [1, 1, 1]} : vector<14x32x128xbf16> to vector<14x16x128xbf16>
    %93 = vector.extract_strided_slice %91 {offsets = [0, 8, 0], sizes = [14, 16, 128], strides = [1, 1, 1]} : vector<14x32x128xbf16> to vector<14x16x128xbf16>
    %94 = vector.extract_strided_slice %91 {offsets = [0, 9, 0], sizes = [14, 16, 128], strides = [1, 1, 1]} : vector<14x32x128xbf16> to vector<14x16x128xbf16>
    %95 = tpu.concatenate %92, %93, %94 in 2 : vector<14x16x128xbf16>, vector<14x16x128xbf16>, vector<14x16x128xbf16> -> vector<14x16x384xbf16>
    %96 = vector.extract_strided_slice %95 {offsets = [0, 0, 0], sizes = [12, 16, 384], strides = [1, 1, 1]} : vector<14x16x384xbf16> to vector<12x16x384xbf16>
    %97 = vector.shape_cast %96 : vector<12x16x384xbf16> to vector<192x384xbf16>
    %c2_89 = arith.constant 2 : index
    %c0_90 = arith.constant 0 : index
    %c0_91 = arith.constant 0 : index
    %c0_92 = arith.constant 0 : index
    %98 = vector.load %arg3[%c2_89, %c0_90, %c0_91, %c0_92] : memref<4x3x384x128xbf16, #tpu.memory_space<vmem>>, vector<1x1x384x128xbf16>
    %99 = vector.shape_cast %98 : vector<1x1x384x128xbf16> to vector<384x128xbf16>
    %cst_93 = arith.constant dense<0.000000e+00> : vector<192x128xf32>
    %100 = tpu.matmul %97, %99, %cst_93 {dimension_numbers = #tpu.dot_dimension_numbers<[1], [0], [0], [1], [0, 0, 1, 1], [], []>} : vector<192x384xbf16>, vector<384x128xbf16>, vector<192x128xf32> -> vector<192x128xf32>
    %101 = vector.extract_strided_slice %95 {offsets = [1, 0, 0], sizes = [12, 16, 384], strides = [1, 1, 1]} : vector<14x16x384xbf16> to vector<12x16x384xbf16>
    %102 = vector.shape_cast %101 : vector<12x16x384xbf16> to vector<192x384xbf16>
    %c2_94 = arith.constant 2 : index
    %c1_95 = arith.constant 1 : index
    %c0_96 = arith.constant 0 : index
    %c0_97 = arith.constant 0 : index
    %103 = vector.load %arg3[%c2_94, %c1_95, %c0_96, %c0_97] : memref<4x3x384x128xbf16, #tpu.memory_space<vmem>>, vector<1x1x384x128xbf16>
    %104 = vector.shape_cast %103 : vector<1x1x384x128xbf16> to vector<384x128xbf16>
    %cst_98 = arith.constant dense<0.000000e+00> : vector<192x128xf32>
    %105 = tpu.matmul %102, %104, %cst_98 {dimension_numbers = #tpu.dot_dimension_numbers<[1], [0], [0], [1], [0, 0, 1, 1], [], []>} : vector<192x384xbf16>, vector<384x128xbf16>, vector<192x128xf32> -> vector<192x128xf32>
    %106 = arith.addf %100, %105 : vector<192x128xf32>
    %107 = vector.extract_strided_slice %95 {offsets = [2, 0, 0], sizes = [12, 16, 384], strides = [1, 1, 1]} : vector<14x16x384xbf16> to vector<12x16x384xbf16>
    %108 = vector.shape_cast %107 : vector<12x16x384xbf16> to vector<192x384xbf16>
    %c2_99 = arith.constant 2 : index
    %c2_100 = arith.constant 2 : index
    %c0_101 = arith.constant 0 : index
    %c0_102 = arith.constant 0 : index
    %109 = vector.load %arg3[%c2_99, %c2_100, %c0_101, %c0_102] : memref<4x3x384x128xbf16, #tpu.memory_space<vmem>>, vector<1x1x384x128xbf16>
    %110 = vector.shape_cast %109 : vector<1x1x384x128xbf16> to vector<384x128xbf16>
    %cst_103 = arith.constant dense<0.000000e+00> : vector<192x128xf32>
    %111 = tpu.matmul %108, %110, %cst_103 {dimension_numbers = #tpu.dot_dimension_numbers<[1], [0], [0], [1], [0, 0, 1, 1], [], []>} : vector<192x384xbf16>, vector<384x128xbf16>, vector<192x128xf32> -> vector<192x128xf32>
    %112 = arith.addf %106, %111 : vector<192x128xf32>
    %c2_104 = arith.constant 2 : index
    %c0_105 = arith.constant 0 : index
    %c0_106 = arith.constant 0 : index
    %113 = vector.load %arg4[%c2_104, %c0_105, %c0_106] : memref<4x1x128xf32, #tpu.memory_space<vmem>>, vector<1x1x128xf32>
    %114 = vector.shape_cast %113 : vector<1x1x128xf32> to vector<1x128xf32>
    %115 = vector.broadcast %114 : vector<1x128xf32> to vector<192x128xf32>
    %116 = arith.addf %112, %115 : vector<192x128xf32>
    %117 = vector.shape_cast %116 : vector<192x128xf32> to vector<12x16x128xf32>
    %118 = arith.truncf %117 : vector<12x16x128xf32> to vector<12x16x128xbf16>
    %c4 = arith.constant 4 : index
    %c8_107 = arith.constant 8 : index
    %c0_108 = arith.constant 0 : index
    %119 = vector.load %arg9[%c4, %c8_107, %c0_108] : memref<20x32x128xbf16, #tpu.memory_space<vmem>>, vector<12x16x128xbf16>
    tpu.vector_store %arg9[%c4, %c8_107, %c0_108], %118 {strides = array<i32>} : memref<20x32x128xbf16, #tpu.memory_space<vmem>>, vector<12x16x128xbf16>,
    %c0_i32_109 = arith.constant 0 : i32
    %120 = arith.cmpi eq, %arg1, %c0_i32_109 : i32
    %121 = arith.extui %120 : i1 to i32
    %c0_i32_110 = arith.constant 0 : i32
    %122 = arith.cmpi ne, %121, %c0_i32_110 : i32
    scf.if %122 {
      %c1_163 = arith.constant 1 : index
      %c8_164 = arith.constant 8 : index
      %c0_165 = arith.constant 0 : index
      %197 = vector.load %arg9[%c1_163, %c8_164, %c0_165] : memref<20x32x128xbf16, #tpu.memory_space<vmem>>, vector<5x16x128xbf16>
      tpu.vector_store %arg9[%c1_163, %c8_164, %c0_165], %20 {strides = array<i32>} : memref<20x32x128xbf16, #tpu.memory_space<vmem>>, vector<5x16x128xbf16>,
    } else {
    }
    %c1_i32_111 = arith.constant 1 : i32
    %123 = arith.cmpi eq, %arg1, %c1_i32_111 : i32
    %124 = arith.extui %123 : i1 to i32
    %c0_i32_112 = arith.constant 0 : i32
    %125 = arith.cmpi ne, %124, %c0_i32_112 : i32
    scf.if %125 {
      %c14 = arith.constant 14 : index
      %c8_163 = arith.constant 8 : index
      %c0_164 = arith.constant 0 : index
      %197 = vector.load %arg9[%c14, %c8_163, %c0_164] : memref<20x32x128xbf16, #tpu.memory_space<vmem>>, vector<5x16x128xbf16>
      tpu.vector_store %arg9[%c14, %c8_163, %c0_164], %20 {strides = array<i32>} : memref<20x32x128xbf16, #tpu.memory_space<vmem>>, vector<5x16x128xbf16>,
    } else {
    }
    %c4_113 = arith.constant 4 : index
    %c0_114 = arith.constant 0 : index
    %c0_115 = arith.constant 0 : index
    %126 = vector.load %arg9[%c4_113, %c0_114, %c0_115] : memref<20x32x128xbf16, #tpu.memory_space<vmem>>, vector<12x32x128xbf16>
    %127 = vector.extract_strided_slice %126 {offsets = [0, 7, 0], sizes = [12, 16, 128], strides = [1, 1, 1]} : vector<12x32x128xbf16> to vector<12x16x128xbf16>
    %128 = vector.extract_strided_slice %126 {offsets = [0, 8, 0], sizes = [12, 16, 128], strides = [1, 1, 1]} : vector<12x32x128xbf16> to vector<12x16x128xbf16>
    %129 = vector.extract_strided_slice %126 {offsets = [0, 9, 0], sizes = [12, 16, 128], strides = [1, 1, 1]} : vector<12x32x128xbf16> to vector<12x16x128xbf16>
    %130 = tpu.concatenate %127, %128, %129 in 2 : vector<12x16x128xbf16>, vector<12x16x128xbf16>, vector<12x16x128xbf16> -> vector<12x16x384xbf16>
    %131 = vector.extract_strided_slice %130 {offsets = [0, 0, 0], sizes = [10, 16, 384], strides = [1, 1, 1]} : vector<12x16x384xbf16> to vector<10x16x384xbf16>
    %132 = vector.shape_cast %131 : vector<10x16x384xbf16> to vector<160x384xbf16>
    %c3_116 = arith.constant 3 : index
    %c0_117 = arith.constant 0 : index
    %c0_118 = arith.constant 0 : index
    %c0_119 = arith.constant 0 : index
    %133 = vector.load %arg3[%c3_116, %c0_117, %c0_118, %c0_119] : memref<4x3x384x128xbf16, #tpu.memory_space<vmem>>, vector<1x1x384x128xbf16>
    %134 = vector.shape_cast %133 : vector<1x1x384x128xbf16> to vector<384x128xbf16>
    %cst_120 = arith.constant dense<0.000000e+00> : vector<160x128xf32>
    %135 = tpu.matmul %132, %134, %cst_120 {dimension_numbers = #tpu.dot_dimension_numbers<[1], [0], [0], [1], [0, 0, 1, 1], [], []>} : vector<160x384xbf16>, vector<384x128xbf16>, vector<160x128xf32> -> vector<160x128xf32>
    %136 = vector.extract_strided_slice %130 {offsets = [1, 0, 0], sizes = [10, 16, 384], strides = [1, 1, 1]} : vector<12x16x384xbf16> to vector<10x16x384xbf16>
    %137 = vector.shape_cast %136 : vector<10x16x384xbf16> to vector<160x384xbf16>
    %c3_121 = arith.constant 3 : index
    %c1_122 = arith.constant 1 : index
    %c0_123 = arith.constant 0 : index
    %c0_124 = arith.constant 0 : index
    %138 = vector.load %arg3[%c3_121, %c1_122, %c0_123, %c0_124] : memref<4x3x384x128xbf16, #tpu.memory_space<vmem>>, vector<1x1x384x128xbf16>
    %139 = vector.shape_cast %138 : vector<1x1x384x128xbf16> to vector<384x128xbf16>
    %cst_125 = arith.constant dense<0.000000e+00> : vector<160x128xf32>
    %140 = tpu.matmul %137, %139, %cst_125 {dimension_numbers = #tpu.dot_dimension_numbers<[1], [0], [0], [1], [0, 0, 1, 1], [], []>} : vector<160x384xbf16>, vector<384x128xbf16>, vector<160x128xf32> -> vector<160x128xf32>
    %141 = arith.addf %135, %140 : vector<160x128xf32>
    %142 = vector.extract_strided_slice %130 {offsets = [2, 0, 0], sizes = [10, 16, 384], strides = [1, 1, 1]} : vector<12x16x384xbf16> to vector<10x16x384xbf16>
    %143 = vector.shape_cast %142 : vector<10x16x384xbf16> to vector<160x384xbf16>
    %c3_126 = arith.constant 3 : index
    %c2_127 = arith.constant 2 : index
    %c0_128 = arith.constant 0 : index
    %c0_129 = arith.constant 0 : index
    %144 = vector.load %arg3[%c3_126, %c2_127, %c0_128, %c0_129] : memref<4x3x384x128xbf16, #tpu.memory_space<vmem>>, vector<1x1x384x128xbf16>
    %145 = vector.shape_cast %144 : vector<1x1x384x128xbf16> to vector<384x128xbf16>
    %cst_130 = arith.constant dense<0.000000e+00> : vector<160x128xf32>
    %146 = tpu.matmul %143, %145, %cst_130 {dimension_numbers = #tpu.dot_dimension_numbers<[1], [0], [0], [1], [0, 0, 1, 1], [], []>} : vector<160x384xbf16>, vector<384x128xbf16>, vector<160x128xf32> -> vector<160x128xf32>
    %147 = arith.addf %141, %146 : vector<160x128xf32>
    %c3_131 = arith.constant 3 : index
    %c0_132 = arith.constant 0 : index
    %c0_133 = arith.constant 0 : index
    %148 = vector.load %arg4[%c3_131, %c0_132, %c0_133] : memref<4x1x128xf32, #tpu.memory_space<vmem>>, vector<1x1x128xf32>
    %149 = vector.shape_cast %148 : vector<1x1x128xf32> to vector<1x128xf32>
    %150 = vector.broadcast %149 : vector<1x128xf32> to vector<160x128xf32>
    %151 = arith.addf %147, %150 : vector<160x128xf32>
    %152 = vector.shape_cast %151 : vector<160x128xf32> to vector<10x16x128xf32>
    %153 = arith.truncf %152 : vector<10x16x128xf32> to vector<10x16x128xbf16>
    %c5 = arith.constant 5 : index
    %c8_134 = arith.constant 8 : index
    %c0_135 = arith.constant 0 : index
    %154 = vector.load %arg8[%c5, %c8_134, %c0_135] : memref<20x32x128xbf16, #tpu.memory_space<vmem>>, vector<10x16x128xbf16>
    tpu.vector_store %arg8[%c5, %c8_134, %c0_135], %153 {strides = array<i32>} : memref<20x32x128xbf16, #tpu.memory_space<vmem>>, vector<10x16x128xbf16>,
    %c0_i32_136 = arith.constant 0 : i32
    %155 = arith.cmpi eq, %arg1, %c0_i32_136 : i32
    %156 = arith.extui %155 : i1 to i32
    %c0_i32_137 = arith.constant 0 : i32
    %157 = arith.cmpi ne, %156, %c0_i32_137 : i32
    scf.if %157 {
      %c1_163 = arith.constant 1 : index
      %c8_164 = arith.constant 8 : index
      %c0_165 = arith.constant 0 : index
      %197 = vector.load %arg8[%c1_163, %c8_164, %c0_165] : memref<20x32x128xbf16, #tpu.memory_space<vmem>>, vector<5x16x128xbf16>
      tpu.vector_store %arg8[%c1_163, %c8_164, %c0_165], %20 {strides = array<i32>} : memref<20x32x128xbf16, #tpu.memory_space<vmem>>, vector<5x16x128xbf16>,
    } else {
    }
    %c1_i32_138 = arith.constant 1 : i32
    %158 = arith.cmpi eq, %arg1, %c1_i32_138 : i32
    %159 = arith.extui %158 : i1 to i32
    %c0_i32_139 = arith.constant 0 : i32
    %160 = arith.cmpi ne, %159, %c0_i32_139 : i32
    scf.if %160 {
      %c14 = arith.constant 14 : index
      %c8_163 = arith.constant 8 : index
      %c0_164 = arith.constant 0 : index
      %197 = vector.load %arg8[%c14, %c8_163, %c0_164] : memref<20x32x128xbf16, #tpu.memory_space<vmem>>, vector<5x16x128xbf16>
      tpu.vector_store %arg8[%c14, %c8_163, %c0_164], %20 {strides = array<i32>} : memref<20x32x128xbf16, #tpu.memory_space<vmem>>, vector<5x16x128xbf16>,
    } else {
    }
    %c5_140 = arith.constant 5 : index
    %c0_141 = arith.constant 0 : index
    %c0_142 = arith.constant 0 : index
    %161 = vector.load %arg8[%c5_140, %c0_141, %c0_142] : memref<20x32x128xbf16, #tpu.memory_space<vmem>>, vector<10x32x128xbf16>
    %162 = vector.extract_strided_slice %161 {offsets = [0, 7, 0], sizes = [10, 16, 128], strides = [1, 1, 1]} : vector<10x32x128xbf16> to vector<10x16x128xbf16>
    %163 = vector.extract_strided_slice %161 {offsets = [0, 8, 0], sizes = [10, 16, 128], strides = [1, 1, 1]} : vector<10x32x128xbf16> to vector<10x16x128xbf16>
    %164 = vector.extract_strided_slice %161 {offsets = [0, 9, 0], sizes = [10, 16, 128], strides = [1, 1, 1]} : vector<10x32x128xbf16> to vector<10x16x128xbf16>
    %165 = tpu.concatenate %162, %163, %164 in 2 : vector<10x16x128xbf16>, vector<10x16x128xbf16>, vector<10x16x128xbf16> -> vector<10x16x384xbf16>
    %166 = vector.extract_strided_slice %165 {offsets = [0, 0, 0], sizes = [8, 16, 384], strides = [1, 1, 1]} : vector<10x16x384xbf16> to vector<8x16x384xbf16>
    %167 = vector.shape_cast %166 : vector<8x16x384xbf16> to vector<128x384xbf16>
    %c0_143 = arith.constant 0 : index
    %c0_144 = arith.constant 0 : index
    %c0_145 = arith.constant 0 : index
    %168 = vector.load %arg5[%c0_143, %c0_144, %c0_145] : memref<3x384x8xbf16, #tpu.memory_space<vmem>>, vector<1x384x8xbf16>
    %169 = vector.shape_cast %168 : vector<1x384x8xbf16> to vector<384x8xbf16>
    %cst_146 = arith.constant dense<0.000000e+00> : vector<128x8xf32>
    %170 = tpu.matmul %167, %169, %cst_146 {dimension_numbers = #tpu.dot_dimension_numbers<[1], [0], [0], [1], [0, 0, 1, 1], [], []>} : vector<128x384xbf16>, vector<384x8xbf16>, vector<128x8xf32> -> vector<128x8xf32>
    %171 = vector.extract_strided_slice %165 {offsets = [1, 0, 0], sizes = [8, 16, 384], strides = [1, 1, 1]} : vector<10x16x384xbf16> to vector<8x16x384xbf16>
    %172 = vector.shape_cast %171 : vector<8x16x384xbf16> to vector<128x384xbf16>
    %c1_147 = arith.constant 1 : index
    %c0_148 = arith.constant 0 : index
    %c0_149 = arith.constant 0 : index
    %173 = vector.load %arg5[%c1_147, %c0_148, %c0_149] : memref<3x384x8xbf16, #tpu.memory_space<vmem>>, vector<1x384x8xbf16>
    %174 = vector.shape_cast %173 : vector<1x384x8xbf16> to vector<384x8xbf16>
    %cst_150 = arith.constant dense<0.000000e+00> : vector<128x8xf32>
    %175 = tpu.matmul %172, %174, %cst_150 {dimension_numbers = #tpu.dot_dimension_numbers<[1], [0], [0], [1], [0, 0, 1, 1], [], []>} : vector<128x384xbf16>, vector<384x8xbf16>, vector<128x8xf32> -> vector<128x8xf32>
    %176 = arith.addf %170, %175 : vector<128x8xf32>
    %177 = vector.extract_strided_slice %165 {offsets = [2, 0, 0], sizes = [8, 16, 384], strides = [1, 1, 1]} : vector<10x16x384xbf16> to vector<8x16x384xbf16>
    %178 = vector.shape_cast %177 : vector<8x16x384xbf16> to vector<128x384xbf16>
    %c2_151 = arith.constant 2 : index
    %c0_152 = arith.constant 0 : index
    %c0_153 = arith.constant 0 : index
    %179 = vector.load %arg5[%c2_151, %c0_152, %c0_153] : memref<3x384x8xbf16, #tpu.memory_space<vmem>>, vector<1x384x8xbf16>
    %180 = vector.shape_cast %179 : vector<1x384x8xbf16> to vector<384x8xbf16>
    %cst_154 = arith.constant dense<0.000000e+00> : vector<128x8xf32>
    %181 = tpu.matmul %178, %180, %cst_154 {dimension_numbers = #tpu.dot_dimension_numbers<[1], [0], [0], [1], [0, 0, 1, 1], [], []>} : vector<128x384xbf16>, vector<384x8xbf16>, vector<128x8xf32> -> vector<128x8xf32>
    %182 = arith.addf %176, %181 : vector<128x8xf32>
    %c0_155 = arith.constant 0 : index
    %c0_156 = arith.constant 0 : index
    %183 = vector.load %arg6[%c0_155, %c0_156] : memref<1x8xf32, #tpu.memory_space<vmem>>, vector<1x8xf32>
    %184 = vector.broadcast %183 : vector<1x8xf32> to vector<128x8xf32>
    %185 = arith.addf %182, %184 : vector<128x8xf32>
    %186 = tpu.iota {dimensions = array<i32: 1>} : vector<128x8xi32>
    %c0_i32_157 = arith.constant 0 : i32
    %187 = vector.broadcast %c0_i32_157 : i32 to vector<128x8xi32>
    %188 = arith.cmpi eq, %186, %187 : vector<128x8xi32>
    %189 = arith.negf %185 : vector<128x8xf32>
    %190 = math.exp %189 : vector<128x8xf32>
    %cst_158 = arith.constant 1.000000e+00 : f32
    %191 = vector.broadcast %cst_158 : f32 to vector<128x8xf32>
    %192 = arith.addf %191, %190 : vector<128x8xf32>
    %193 = arith.divf %191, %192 : vector<128x8xf32>
    %194 = arith.select %188, %193, %185 : vector<128x8xi1>, vector<128x8xf32>
    %195 = vector.shape_cast %194 : vector<128x8xf32> to vector<1x8x16x8xf32>
    %c0_159 = arith.constant 0 : index
    %c0_160 = arith.constant 0 : index
    %c0_161 = arith.constant 0 : index
    %c0_162 = arith.constant 0 : index
    %196 = vector.load %arg7[%c0_159, %c0_160, %c0_161, %c0_162] : memref<1x8x16x8xf32, #tpu.memory_space<vmem>>, vector<1x8x16x8xf32>
    tpu.vector_store %arg7[%c0_159, %c0_160, %c0_161, %c0_162], %195 {strides = array<i32>} : memref<1x8x16x8xf32, #tpu.memory_space<vmem>>, vector<1x8x16x8xf32>,
    return
  }
  func.func @transform_1(%arg0: i32, %arg1: i32) -> (i32, i32, i32, i32) {
    %c0_i32 = arith.constant 0 : i32
    %c0_i32_0 = arith.constant 0 : i32
    %c0_i32_1 = arith.constant 0 : i32
    %c0_i32_2 = arith.constant 0 : i32
    %c0_i32_3 = arith.constant 0 : i32
    return %c0_i32, %c0_i32_0, %c0_i32_1, %c0_i32_2 : i32, i32, i32, i32
  }
  func.func @transform_2(%arg0: i32, %arg1: i32) -> (i32, i32, i32) {
    %c0_i32 = arith.constant 0 : i32
    %c0_i32_0 = arith.constant 0 : i32
    %c0_i32_1 = arith.constant 0 : i32
    %c0_i32_2 = arith.constant 0 : i32
    return %c0_i32, %c0_i32_0, %c0_i32_1 : i32, i32, i32
  }
  func.func @transform_3(%arg0: i32, %arg1: i32) -> (i32, i32, i32) {
    %c0_i32 = arith.constant 0 : i32
    %c0_i32_0 = arith.constant 0 : i32
    %c0_i32_1 = arith.constant 0 : i32
    %c0_i32_2 = arith.constant 0 : i32
    return %c0_i32, %c0_i32_0, %c0_i32_1 : i32, i32, i32
  }
  func.func @transform_4(%arg0: i32, %arg1: i32) -> (i32, i32) {
    %c0_i32 = arith.constant 0 : i32
    %c0_i32_0 = arith.constant 0 : i32
    %c0_i32_1 = arith.constant 0 : i32
    return %c0_i32, %c0_i32_0 : i32, i32
  }
  func.func @transform_5(%arg0: i32, %arg1: i32) -> (i32, i32, i32, i32) {
    %c0_i32 = arith.constant 0 : i32
    %c0_i32_0 = arith.constant 0 : i32
    %c0_i32_1 = arith.constant 0 : i32
    return %arg0, %arg1, %c0_i32, %c0_i32_0 : i32, i32, i32, i32
  }
}

</mosaic_0001>

<llo_original>
// kernel: tpu_custom_call.1
$region0: #{tpu_custom_call.1}
  #allocation0 [shape = 'u32[]', space=smem, size = 0x4, offset = 0x4, fixed_abs, tag = 'smem constant byte address 0x4 - core index']
  #allocation1 [shape = 'u32[72,128]{1,0:T(1,128)}', space=vmem, size = 0x9000, scoped, tag = 'internal scratch']
  #allocation2 [shape = 'bf16[20,32,128]{2,1,0:T(8,128)(2,1)}', space=vmem, size = 0x28000, scoped, tag = 'scratch operand']
  #allocation3 [shape = 'bf16[20,32,128]{2,1,0:T(8,128)(2,1)}', space=vmem, size = 0x28000, scoped, tag = 'scratch operand']
  #allocation4 [shape = 's32[1]{0}', space=sflag, size = 0x4, scoped, tag = 'scratch operand']
  #allocation10 [shape = 's32[]', space=sflag, size = 0x4, offset = 0, fixed_abs, tag = 'sflag constant byte address 0x0 - dummy sync flag']
  %s0 = inlined_call_operand.hbm [shape: bf16[2,26,16,128], index: 0, kind: input, shape index: {}]
  %s1 = inlined_call_operand.hbm [shape: bf16[4,3,384,128], index: 1, kind: input, shape index: {}]
  %s2 = inlined_call_operand.hbm [shape: f32[4,1,128], index: 2, kind: input, shape index: {}]
  %s3 = inlined_call_operand.vmem [shape: bf16[3,384,8], index: 3, kind: input, shape index: {}]
  %s4 = inlined_call_operand.hbm [shape: f32[1,8], index: 4, kind: input, shape index: {}]
  %s5 = inlined_call_operand.vmem [shape: f32[2,16,16,8], index: 5, kind: output, shape index: {}]
  %s6 = sld [smem:[#allocation0]]
  $region93: #{tpu_custom_call.1} parent=0
    _
  %s8 = ssub.s32 1, %s6
  %s9 = scalar_select 0, %s8, %s6
  $region1: #{tpu_custom_call.1} parent=0
    #allocation5 [shape = 'u8[1179648]{0}', space=vmem, size = 0x120000, scoped, tag = 'input window, operand 1, single buffered']
    #allocation6 [shape = 's32[2]{0}', space=sflag, size = 0x8, scoped, tag = 'scoped memory for tpu_custom_call.1']
    #allocation7 [shape = 'u8[2048]{0}', space=vmem, size = 0x800, scoped, tag = 'input window, operand 2, single buffered']
    #allocation8 [shape = 's32[1]{0}', space=sflag, size = 0x4, scoped, tag = 'scoped memory for tpu_custom_call.1']
    #allocation9 [shape = 'u8[512]{0}', space=vmem, size = 0x400, scoped, tag = 'input window, operand 4, single buffered']
    %10 = vsyncpa [#allocation6], 0
    %11 = vsyncpa [#allocation8], 0
    loop: start=0, step=1, limit=6
    $region2: #{tpu_custom_call.1} parent=1 // loop_pre_header
      _
    $region3: #{tpu_custom_call.1} parent=1 // loop_header
      %s13 = sphi 0, %s17
      %p14 = scmp.ge.s32.totalorder %s13, 6
      %s20 = sphi 0, %s32
      %s21 = sphi 0, %s28
      %s22 = sphi 0, %s20
      %s23 = sphi 0, %s21
      %s24 = sphi 0, %s22
      %s25 = sphi 0, %s23
      %s33 = sphi 0, %s33
      %s35 = sphi 0, %s33
      %s36 = sphi 0, %s35
      %s50 = sphi 0, %s36
      %s54 = sphi 0, %s54
      %s56 = sphi 0, %s54
      %s57 = sphi 0, %s56
      %s71 = sphi 0, %s57
      %s75 = sphi 0, %s75
      %s77 = sphi 0, %s75
      %s78 = sphi 0, %s77
      %s92 = sphi 0, %s78
      %s96 = sphi 0, %s96
      %s98 = sphi 0, %s96
      %s99 = sphi 0, %s98
      %s113 = sphi 0, %s99
      %s121 = sphi 0, %s123
      %s124 = sphi 0, %s121
      %s125 = sphi 0, %s124
      %s141 = sphi 0, %s125
    $region4: #{tpu_custom_call.1} parent=1 // loop_header_branch
      %16 = sbr.rel (%p14) target = $region8
    $region5: #{tpu_custom_call.1} parent=1 // loop_body
      %s18 = ssub.s32 %s13, 1
      %s19 = ssub.s32 %s13, 2
      %s26 = sadd.s32 1, %s21
      %p27 = scmp.ge.s32.totalorder %s26, 2
      %s28 = scalar_select %p27, 0, %s26
      %s29 = sadd.s32 1, %s20
      %s30 = scalar_select %p27, %s29, %s20
      %p31 = scmp.ge.s32.totalorder %s30, 2
      %s32 = scalar_select %p31, 0, %s30
      %s34 = sadd.s32 %s33, 1
      %p37 = scmp.eq.s32.totalorder %s13, 3
      %p38 = scmp.ne.s32.totalorder %s33, %s35
      %p39 = scmp.eq.s32.totalorder %s13, 0
      %p40 = por %p38, %p39
      %p41 = scmp.ne.s32.totalorder %s33, %s35
      %p42 = scmp.eq.s32.totalorder %s18, 3
      %p43 = por %p41, %p42
      %p44 = scmp.ne.s32.totalorder %s35, %s36
      %p45 = scmp.eq.s32.totalorder %s18, 0
      %p46 = por %p44, %p45
      %p47 = scmp.ne.s32.totalorder %s35, %s36
      %p48 = scmp.eq.s32.totalorder %s19, 3
      %p49 = por %p47, %p48
      %p51 = scmp.ne.s32.totalorder %s36, %s50
      %p52 = scmp.eq.s32.totalorder %s19, 0
      %p53 = por %p51, %p52
      %s55 = sadd.s32 %s54, 1
      %p58 = scmp.eq.s32.totalorder %s13, 3
      %p59 = scmp.ne.s32.totalorder %s54, %s56
      %p60 = scmp.eq.s32.totalorder %s13, 0
      %p61 = por %p59, %p60
      %p62 = scmp.ne.s32.totalorder %s54, %s56
      %p63 = scmp.eq.s32.totalorder %s18, 3
      %p64 = por %p62, %p63
      %p65 = scmp.ne.s32.totalorder %s56, %s57
      %p66 = scmp.eq.s32.totalorder %s18, 0
      %p67 = por %p65, %p66
      %p68 = scmp.ne.s32.totalorder %s56, %s57
      %p69 = scmp.eq.s32.totalorder %s19, 3
      %p70 = por %p68, %p69
      %p72 = scmp.ne.s32.totalorder %s57, %s71
      %p73 = scmp.eq.s32.totalorder %s19, 0
      %p74 = por %p72, %p73
      %s76 = sadd.s32 %s75, 1
      %p79 = scmp.eq.s32.totalorder %s13, 3
      %p80 = scmp.ne.s32.totalorder %s75, %s77
      %p81 = scmp.eq.s32.totalorder %s13, 0
      %p82 = por %p80, %p81
      %p83 = scmp.ne.s32.totalorder %s75, %s77
      %p84 = scmp.eq.s32.totalorder %s18, 3
      %p85 = por %p83, %p84
      %p86 = scmp.ne.s32.totalorder %s77, %s78
      %p87 = scmp.eq.s32.totalorder %s18, 0
      %p88 = por %p86, %p87
      %p89 = scmp.ne.s32.totalorder %s77, %s78
      %p90 = scmp.eq.s32.totalorder %s19, 3
      %p91 = por %p89, %p90
      %p93 = scmp.ne.s32.totalorder %s78, %s92
      %p94 = scmp.eq.s32.totalorder %s19, 0
      %p95 = por %p93, %p94
      %s97 = sadd.s32 %s96, 1
      %p100 = scmp.eq.s32.totalorder %s13, 3
      %p101 = scmp.ne.s32.totalorder %s96, %s98
      %p102 = scmp.eq.s32.totalorder %s13, 0
      %p103 = por %p101, %p102
      %p104 = scmp.ne.s32.totalorder %s96, %s98
      %p105 = scmp.eq.s32.totalorder %s18, 3
      %p106 = por %p104, %p105
      %p107 = scmp.ne.s32.totalorder %s98, %s99
      %p108 = scmp.eq.s32.totalorder %s18, 0
      %p109 = por %p107, %p108
      %p110 = scmp.ne.s32.totalorder %s98, %s99
      %p111 = scmp.eq.s32.totalorder %s19, 3
      %p112 = por %p110, %p111
      %p114 = scmp.ne.s32.totalorder %s99, %s113
      %p115 = scmp.eq.s32.totalorder %s19, 0
      %p116 = por %p114, %p115
      %s117 = ssub.s32 %s20, %s32
      %s118 = ssub.s32 %s21, %s28
      %s119 = sor.u32 %s117, %s118
      %p120 = scmp.eq.s32.totalorder %s119, 0
      %s122 = sadd.s32 %s121, 1
      %s123 = scalar_select %p120, %s121, %s122
      %p126 = pneg %p120
      %p127 = scmp.eq.s32.totalorder %s13, 3
      %p128 = por %p126, %p127
      %p129 = scmp.ne.s32.totalorder %s121, %s124
      %p130 = scmp.eq.s32.totalorder %s13, 0
      %p131 = por %p129, %p130
      %p132 = scmp.ne.s32.totalorder %s121, %s124
      %p133 = scmp.eq.s32.totalorder %s18, 3
      %p134 = por %p132, %p133
      %p135 = scmp.ne.s32.totalorder %s124, %s125
      %p136 = scmp.eq.s32.totalorder %s18, 0
      %p137 = por %p135, %p136
      %p138 = scmp.ne.s32.totalorder %s124, %s125
      %p139 = scmp.eq.s32.totalorder %s19, 3
      %p140 = por %p138, %p139
      %p142 = scmp.ne.s32.totalorder %s125, %s141
      %p143 = scmp.eq.s32.totalorder %s19, 0
      %p144 = por %p142, %p143
      %p145 = scmp.le.s32.totalorder 1, %s13
      %p146 = scmp.lt.s32.totalorder %s13, 5
      %p147 = pnand %p145, %p146
      %p148 = pneg %p147
      // Predicated region
      $region9: #{tpu_custom_call.1} parent=5 // pred_check
        _
      $region10: #{tpu_custom_call.1} parent=5 // pred_check_branch
        %150 = sbr.rel (%p147) target = $region12
      $region11: #{tpu_custom_call.1} parent=5 // pred_region
        %s151 = ssub.s32 %s13, 1
        // Predicated region
        $region13: #{tpu_custom_call.1} parent=11 // pred_check
          %p152 = pneg %p46
        $region14: #{tpu_custom_call.1} parent=11 // pred_check_branch
          %154 = sbr.rel (%p152) target = $region16
        $region15: #{tpu_custom_call.1} parent=11 // pred_region
          %156 = vsyncadd [#allocation6], 0
          %s157 = sshll.u32 %s1, 4
          %s158 = int_to_ptr.hbm [resolvable:$true] %s157
          %s159 = sshll.u32 [#allocation5], 4
          %s160 = int_to_ptr.vmem [resolvable:$true] %s159
          %165 = dma.hbm_to_vmem [thread:$0]  %s158, 36864, %s160, [#allocation6], 64, 64, 4
        $region16: #{tpu_custom_call.1} parent=11 // pred_fallthru
          _
        // Predicated region
        $region17: #{tpu_custom_call.1} parent=11 // pred_check
          %p166 = pneg %p67
        $region18: #{tpu_custom_call.1} parent=11 // pred_check_branch
          %168 = sbr.rel (%p166) target = $region20
        $region19: #{tpu_custom_call.1} parent=11 // pred_region
          %170 = vsyncadd [#allocation8], 0
          %s171 = sshll.u32 %s2, 4
          %s172 = int_to_ptr.hbm [resolvable:$true] %s171
          %s173 = sshll.u32 [#allocation7], 4
          %s174 = int_to_ptr.vmem [resolvable:$true] %s173
          %179 = dma.hbm_to_vmem [thread:$0]  %s172, 64, %s174, [#allocation8], 16, 16, 1
        $region20: #{tpu_custom_call.1} parent=11 // pred_fallthru
          _
        // Predicated region
        $region21: #{tpu_custom_call.1} parent=11 // pred_check
          %p180 = pneg %p88
        $region22: #{tpu_custom_call.1} parent=11 // pred_check_branch
          %182 = sbr.rel (%p180) target = $region24
        $region23: #{tpu_custom_call.1} parent=11 // pred_region
          _
        $region24: #{tpu_custom_call.1} parent=11 // pred_fallthru
          _
        // Predicated region
        $region25: #{tpu_custom_call.1} parent=11 // pred_check
          %p183 = pneg %p109
        $region26: #{tpu_custom_call.1} parent=11 // pred_check_branch
          %185 = sbr.rel (%p183) target = $region28
        $region27: #{tpu_custom_call.1} parent=11 // pred_region
          %187 = vsyncadd [#allocation8], 0
          %s189 = sshll.u32 %s4, 4
          %s190 = int_to_ptr.hbm [resolvable:$true] %s189
          %s191 = sshll.u32 [#allocation9], 4
          %s192 = int_to_ptr.vmem [resolvable:$true] %s191
          %194 = dma.hbm_to_vmem [thread:$0]  %s190, 16, %s192, [#allocation8]
        $region28: #{tpu_custom_call.1} parent=11 // pred_fallthru
          _
      $region12: #{tpu_custom_call.1} parent=5 // pred_fallthru
        _
      %p195 = scmp.lt.s32.totalorder %s13, 4
      // Predicated region
      $region29: #{tpu_custom_call.1} parent=5 // pred_check
        %p196 = pneg %p195
      $region30: #{tpu_custom_call.1} parent=5 // pred_check_branch
        %198 = sbr.rel (%p196) target = $region32
      $region31: #{tpu_custom_call.1} parent=5 // pred_region
        _
      $region32: #{tpu_custom_call.1} parent=5 // pred_fallthru
        _
      %p199 = scmp.le.s32.totalorder 1, %s13
      %p200 = scmp.lt.s32.totalorder %s13, 5
      %p201 = pnand %p199, %p200
      %p202 = pneg %p201
      // Predicated region
      $region33: #{tpu_custom_call.1} parent=5 // pred_check
        _
      $region34: #{tpu_custom_call.1} parent=5 // pred_check_branch
        %204 = sbr.rel (%p201) target = $region36
      $region35: #{tpu_custom_call.1} parent=5 // pred_region
        %s205 = ssub.s32 %s13, 1
        // Predicated region
        $region37: #{tpu_custom_call.1} parent=35 // pred_check
          %p206 = pneg %p46
        $region38: #{tpu_custom_call.1} parent=35 // pred_check_branch
          %208 = sbr.rel (%p206) target = $region40
        $region39: #{tpu_custom_call.1} parent=35 // pred_region
          %210 = dma.done [#allocation6], 36864
        $region40: #{tpu_custom_call.1} parent=35 // pred_fallthru
          _
        // Predicated region
        $region41: #{tpu_custom_call.1} parent=35 // pred_check
          %p211 = pneg %p67
        $region42: #{tpu_custom_call.1} parent=35 // pred_check_branch
          %213 = sbr.rel (%p211) target = $region44
        $region43: #{tpu_custom_call.1} parent=35 // pred_region
          %215 = dma.done [#allocation8], 64
        $region44: #{tpu_custom_call.1} parent=35 // pred_fallthru
          _
        // Predicated region
        $region45: #{tpu_custom_call.1} parent=35 // pred_check
          %p216 = pneg %p109
        $region46: #{tpu_custom_call.1} parent=35 // pred_check_branch
          %218 = sbr.rel (%p216) target = $region48
        $region47: #{tpu_custom_call.1} parent=35 // pred_region
          %220 = dma.done [#allocation8], 16
        $region48: #{tpu_custom_call.1} parent=35 // pred_fallthru
          _
        %p221 = pneg %p46
        %p222 = pneg %p43
        %p223 = pneg %p67
        %p224 = pneg %p64
        %p225 = pneg %p88
        %p226 = pneg %p85
        %p227 = pneg %p109
        %p228 = pneg %p106
        %p229 = pneg %p137
        %p230 = pneg %p134
        %s231 = smul.u32 8, %s23
        %p232 = scmp.lt.s32.totalorder %s22, 1
        %s233 = scalar_select %p232, %s22, 1
        %p234 = scmp.lt.s32.totalorder %s231, 15
        %s235 = scalar_select %p234, %s231, 15
        %s236 = smul.addr %s235, 2
        %s237 = smul.addr %s233, 32
        %s238 = sadd.s32 %s236, %s237
        %s239 = smul.addr %s238, 8
        %s240 = scalar_lea.vmem %s5, %s239
        %s241 = smul.u32 8, %s23
        %p242 = scmp.lt.s32.totalorder %s22, 1
        %s243 = scalar_select %p242, %s22, 1
        %p244 = scmp.lt.s32.totalorder %s241, 15
        %s245 = scalar_select %p244, %s241, 15
        %s246 = smul.addr %s245, 2
        %s247 = smul.addr %s243, 32
        %s248 = sadd.s32 %s246, %s247
        %s249 = smul.addr %s248, 8
        %s250 = scalar_lea.vmem %s5, %s249
        %s251 = smul.u32 8, %s23
        %s253 = smul.u32 %s23, 8
        %s254 = smul.u32 %s253, 2
        %s255 = smul.u32 %s22, 52
        %s256 = sadd.s32 %s254, %s255
        %s257 = smul.addr %s256, 4
        %s258 = scalar_lea.hbm %s0, %s257
        %s259 = scalar_lea.vmem [#allocation2], 20
        %s260 = sshll.u32 %s258, 4
        %s261 = int_to_ptr.hbm [resolvable:$true] %s260
        %s262 = sshll.u32 %s259, 4
        %s263 = int_to_ptr.vmem [resolvable:$true] %s262
        %267 = dma.hbm_to_vmem [thread:$0]  %s261, 2304, %s263, [#allocation4], 128, 256, 8
        %268 = vst [vmem:[#allocation2] sm:$0xf] 0
        %269 = vst [vmem:[#allocation2 + $0x4] sm:$0xf] 0
        %270 = vst [vmem:[#allocation2 + $0x8] sm:$0xf] 0
        %271 = vst [vmem:[#allocation2 + $0xc] sm:$0xf] 0
        %s272 = scalar_lea.vmem [#allocation2], 304
        %273 = vst [vmem:[%s272] sm:$0xf] 0
        %274 = vst [vmem:[%s272 + $0x4] sm:$0xf] 0
        %275 = vst [vmem:[%s272 + $0x8] sm:$0xf] 0
        %276 = vst [vmem:[%s272 + $0xc] sm:$0xf] 0
        %277 = vst [vmem:[#allocation2] sm:$0xf] 0
        %278 = vst [vmem:[#allocation2 + $0x10] sm:$0xf] 0
        %279 = vst [vmem:[#allocation2 + $0x20] sm:$0xf] 0
        %280 = vst [vmem:[#allocation2 + $0x30] sm:$0xf] 0
        %281 = vst [vmem:[#allocation2 + $0x40] sm:$0xf] 0
        %282 = vst [vmem:[#allocation2 + $0x50] sm:$0xf] 0
        %283 = vst [vmem:[#allocation2 + $0x60] sm:$0xf] 0
        %284 = vst [vmem:[#allocation2 + $0x70] sm:$0xf] 0
        %285 = vst [vmem:[#allocation2 + $0x80] sm:$0xf] 0
        %286 = vst [vmem:[#allocation2 + $0x90] sm:$0xf] 0
        %287 = vst [vmem:[#allocation2 + $0xa0] sm:$0xf] 0
        %288 = vst [vmem:[#allocation2 + $0xb0] sm:$0xf] 0
        %289 = vst [vmem:[#allocation2 + $0xc0] sm:$0xf] 0
        %290 = vst [vmem:[#allocation2 + $0xd0] sm:$0xf] 0
        %291 = vst [vmem:[#allocation2 + $0xe0] sm:$0xf] 0
        %292 = vst [vmem:[#allocation2 + $0xf0] sm:$0xf] 0
        %293 = vst [vmem:[#allocation2 + $0x100] sm:$0xf] 0
        %294 = vst [vmem:[#allocation2 + $0x110] sm:$0xf] 0
        %295 = vst [vmem:[#allocation2 + $0x120] sm:$0xf] 0
        %296 = vst [vmem:[#allocation2 + $0x130] sm:$0xf] 0
        %297 = vst [vmem:[#allocation2 + $0xc] sm:$0xf] 0
        %298 = vst [vmem:[#allocation2 + $0x1c] sm:$0xf] 0
        %299 = vst [vmem:[#allocation2 + $0x2c] sm:$0xf] 0
        %300 = vst [vmem:[#allocation2 + $0x3c] sm:$0xf] 0
        %301 = vst [vmem:[#allocation2 + $0x4c] sm:$0xf] 0
        %302 = vst [vmem:[#allocation2 + $0x5c] sm:$0xf] 0
        %303 = vst [vmem:[#allocation2 + $0x6c] sm:$0xf] 0
        %304 = vst [vmem:[#allocation2 + $0x7c] sm:$0xf] 0
        %305 = vst [vmem:[#allocation2 + $0x8c] sm:$0xf] 0
        %306 = vst [vmem:[#allocation2 + $0x9c] sm:$0xf] 0
        %307 = vst [vmem:[#allocation2 + $0xac] sm:$0xf] 0
        %308 = vst [vmem:[#allocation2 + $0xbc] sm:$0xf] 0
        %309 = vst [vmem:[#allocation2 + $0xcc] sm:$0xf] 0
        %310 = vst [vmem:[#allocation2 + $0xdc] sm:$0xf] 0
        %311 = vst [vmem:[#allocation2 + $0xec] sm:$0xf] 0
        %312 = vst [vmem:[#allocation2 + $0xfc] sm:$0xf] 0
        %313 = vst [vmem:[#allocation2 + $0x10c] sm:$0xf] 0
        %314 = vst [vmem:[#allocation2 + $0x11c] sm:$0xf] 0
        %315 = vst [vmem:[#allocation2 + $0x12c] sm:$0xf] 0
        %316 = vst [vmem:[#allocation2 + $0x13c] sm:$0xf] 0
        %317 = vst [vmem:[#allocation3] sm:$0xf] 0
        %318 = vst [vmem:[#allocation3 + $0x4] sm:$0xf] 0
        %319 = vst [vmem:[#allocation3 + $0x8] sm:$0xf] 0
        %320 = vst [vmem:[#allocation3 + $0xc] sm:$0xf] 0
        %s321 = scalar_lea.vmem [#allocation3], 304
        %322 = vst [vmem:[%s321] sm:$0xf] 0
        %323 = vst [vmem:[%s321 + $0x4] sm:$0xf] 0
        %324 = vst [vmem:[%s321 + $0x8] sm:$0xf] 0
        %325 = vst [vmem:[%s321 + $0xc] sm:$0xf] 0
        %326 = vst [vmem:[#allocation3] sm:$0xf] 0
        %327 = vst [vmem:[#allocation3 + $0x10] sm:$0xf] 0
        %328 = vst [vmem:[#allocation3 + $0x20] sm:$0xf] 0
        %329 = vst [vmem:[#allocation3 + $0x30] sm:$0xf] 0
        %330 = vst [vmem:[#allocation3 + $0x40] sm:$0xf] 0
        %331 = vst [vmem:[#allocation3 + $0x50] sm:$0xf] 0
        %332 = vst [vmem:[#allocation3 + $0x60] sm:$0xf] 0
        %333 = vst [vmem:[#allocation3 + $0x70] sm:$0xf] 0
        %334 = vst [vmem:[#allocation3 + $0x80] sm:$0xf] 0
        %335 = vst [vmem:[#allocation3 + $0x90] sm:$0xf] 0
        %336 = vst [vmem:[#allocation3 + $0xa0] sm:$0xf] 0
        %337 = vst [vmem:[#allocation3 + $0xb0] sm:$0xf] 0
        %338 = vst [vmem:[#allocation3 + $0xc0] sm:$0xf] 0
        %339 = vst [vmem:[#allocation3 + $0xd0] sm:$0xf] 0
        %340 = vst [vmem:[#allocation3 + $0xe0] sm:$0xf] 0
        %341 = vst [vmem:[#allocation3 + $0xf0] sm:$0xf] 0
        %342 = vst [vmem:[#allocation3 + $0x100] sm:$0xf] 0
        %343 = vst [vmem:[#allocation3 + $0x110] sm:$0xf] 0
        %344 = vst [vmem:[#allocation3 + $0x120] sm:$0xf] 0
        %345 = vst [vmem:[#allocation3 + $0x130] sm:$0xf] 0
        %346 = vst [vmem:[#allocation3 + $0xc] sm:$0xf] 0
        %347 = vst [vmem:[#allocation3 + $0x1c] sm:$0xf] 0
        %348 = vst [vmem:[#allocation3 + $0x2c] sm:$0xf] 0
        %349 = vst [vmem:[#allocation3 + $0x3c] sm:$0xf] 0
        %350 = vst [vmem:[#allocation3 + $0x4c] sm:$0xf] 0
        %351 = vst [vmem:[#allocation3 + $0x5c] sm:$0xf] 0
        %352 = vst [vmem:[#allocation3 + $0x6c] sm:$0xf] 0
        %353 = vst [vmem:[#allocation3 + $0x7c] sm:$0xf] 0
        %354 = vst [vmem:[#allocation3 + $0x8c] sm:$0xf] 0
        %355 = vst [vmem:[#allocation3 + $0x9c] sm:$0xf] 0
        %356 = vst [vmem:[#allocation3 + $0xac] sm:$0xf] 0
        %357 = vst [vmem:[#allocation3 + $0xbc] sm:$0xf] 0
        %358 = vst [vmem:[#allocation3 + $0xcc] sm:$0xf] 0
        %359 = vst [vmem:[#allocation3 + $0xdc] sm:$0xf] 0
        %360 = vst [vmem:[#allocation3 + $0xec] sm:$0xf] 0
        %361 = vst [vmem:[#allocation3 + $0xfc] sm:$0xf] 0
        %362 = vst [vmem:[#allocation3 + $0x10c] sm:$0xf] 0
        %363 = vst [vmem:[#allocation3 + $0x11c] sm:$0xf] 0
        %364 = vst [vmem:[#allocation3 + $0x12c] sm:$0xf] 0
        %365 = vst [vmem:[#allocation3 + $0x13c] sm:$0xf] 0
        %s366 = smul.u32 4, 18
        %s367 = smul.u32 %s366, 2
        %s368 = smul.u32 %s367, 1
        %s369 = sshll.u32 %s368, 4
        %370 = dma.done [#allocation4], %s369
        %s371 = scalar_lea.vmem [#allocation2], 16
        %v372 = vld [vmem:[%s371] sm:$0xf]
        %v373 = vld [vmem:[%s371 + $0x4] sm:$0xf]
        %v374 = vld [vmem:[%s371 + $0x8] sm:$0xf]
        %v375 = vld [vmem:[%s371 + $0xc] sm:$0xf]
        %v376 = vld [vmem:[%s371 + $0x10] sm:$0xf]
        %v377 = vld [vmem:[%s371 + $0x14] sm:$0xf]
        %v378 = vld [vmem:[%s371 + $0x18] sm:$0xf]
        %v379 = vld [vmem:[%s371 + $0x1c] sm:$0xf]
        %v380 = vld [vmem:[%s371 + $0x20] sm:$0xf]
        %v381 = vld [vmem:[%s371 + $0x24] sm:$0xf]
        %v382 = vld [vmem:[%s371 + $0x28] sm:$0xf]
        %v383 = vld [vmem:[%s371 + $0x2c] sm:$0xf]
        %v384 = vld [vmem:[%s371 + $0x30] sm:$0xf]
        %v385 = vld [vmem:[%s371 + $0x34] sm:$0xf]
        %v386 = vld [vmem:[%s371 + $0x38] sm:$0xf]
        %v387 = vld [vmem:[%s371 + $0x3c] sm:$0xf]
        %v388 = vld [vmem:[%s371 + $0x40] sm:$0xf]
        %v389 = vld [vmem:[%s371 + $0x44] sm:$0xf]
        %v390 = vld [vmem:[%s371 + $0x48] sm:$0xf]
        %v391 = vld [vmem:[%s371 + $0x4c] sm:$0xf]
        %v392 = vld [vmem:[%s371 + $0x50] sm:$0xf]
        %v393 = vld [vmem:[%s371 + $0x54] sm:$0xf]
        %v394 = vld [vmem:[%s371 + $0x58] sm:$0xf]
        %v395 = vld [vmem:[%s371 + $0x5c] sm:$0xf]
        %v396 = vld [vmem:[%s371 + $0x60] sm:$0xf]
        %v397 = vld [vmem:[%s371 + $0x64] sm:$0xf]
        %v398 = vld [vmem:[%s371 + $0x68] sm:$0xf]
        %v399 = vld [vmem:[%s371 + $0x6c] sm:$0xf]
        %v400 = vld [vmem:[%s371 + $0x70] sm:$0xf]
        %v401 = vld [vmem:[%s371 + $0x74] sm:$0xf]
        %v402 = vld [vmem:[%s371 + $0x78] sm:$0xf]
        %v403 = vld [vmem:[%s371 + $0x7c] sm:$0xf]
        %v404 = vld [vmem:[%s371 + $0x80] sm:$0xf]
        %v405 = vld [vmem:[%s371 + $0x84] sm:$0xf]
        %v406 = vld [vmem:[%s371 + $0x88] sm:$0xf]
        %v407 = vld [vmem:[%s371 + $0x8c] sm:$0xf]
        %v408 = vld [vmem:[%s371 + $0x90] sm:$0xf]
        %v409 = vld [vmem:[%s371 + $0x94] sm:$0xf]
        %v410 = vld [vmem:[%s371 + $0x98] sm:$0xf]
        %v411 = vld [vmem:[%s371 + $0x9c] sm:$0xf]
        %v412 = vld [vmem:[%s371 + $0xa0] sm:$0xf]
        %v413 = vld [vmem:[%s371 + $0xa4] sm:$0xf]
        %v414 = vld [vmem:[%s371 + $0xa8] sm:$0xf]
        %v415 = vld [vmem:[%s371 + $0xac] sm:$0xf]
        %v416 = vld [vmem:[%s371 + $0xb0] sm:$0xf]
        %v417 = vld [vmem:[%s371 + $0xb4] sm:$0xf]
        %v418 = vld [vmem:[%s371 + $0xb8] sm:$0xf]
        %v419 = vld [vmem:[%s371 + $0xbc] sm:$0xf]
        %v420 = vld [vmem:[%s371 + $0xc0] sm:$0xf]
        %v421 = vld [vmem:[%s371 + $0xc4] sm:$0xf]
        %v422 = vld [vmem:[%s371 + $0xc8] sm:$0xf]
        %v423 = vld [vmem:[%s371 + $0xcc] sm:$0xf]
        %v424 = vld [vmem:[%s371 + $0xd0] sm:$0xf]
        %v425 = vld [vmem:[%s371 + $0xd4] sm:$0xf]
        %v426 = vld [vmem:[%s371 + $0xd8] sm:$0xf]
        %v427 = vld [vmem:[%s371 + $0xdc] sm:$0xf]
        %v428 = vld [vmem:[%s371 + $0xe0] sm:$0xf]
        %v429 = vld [vmem:[%s371 + $0xe4] sm:$0xf]
        %v430 = vld [vmem:[%s371 + $0xe8] sm:$0xf]
        %v431 = vld [vmem:[%s371 + $0xec] sm:$0xf]
        %v432 = vld [vmem:[%s371 + $0xf0] sm:$0xf]
        %v433 = vld [vmem:[%s371 + $0xf4] sm:$0xf]
        %v434 = vld [vmem:[%s371 + $0xf8] sm:$0xf]
        %v435 = vld [vmem:[%s371 + $0xfc] sm:$0xf]
        %v436 = vld [vmem:[%s371 + $0x100] sm:$0xf]
        %v437 = vld [vmem:[%s371 + $0x104] sm:$0xf]
        %v438 = vld [vmem:[%s371 + $0x108] sm:$0xf]
        %v439 = vld [vmem:[%s371 + $0x10c] sm:$0xf]
        %v440 = vld [vmem:[%s371 + $0x110] sm:$0xf]
        %v441 = vld [vmem:[%s371 + $0x114] sm:$0xf]
        %v442 = vld [vmem:[%s371 + $0x118] sm:$0xf]
        %v443 = vld [vmem:[%s371 + $0x11c] sm:$0xf]
        %v498 = vunpack.c.l.b16 %v372
        %v499 = vunpack.c.l.b16 %v373
        %v500 = vunpack.c.l.b16 %v374
        %v501 = vunpack.c.l.b16 %v376
        %v502 = vunpack.c.l.b16 %v377
        %v503 = vunpack.c.l.b16 %v378
        %v504 = vunpack.c.l.b16 %v380
        %v505 = vunpack.c.l.b16 %v381
        %v506 = vunpack.c.l.b16 %v382
        %v507 = vunpack.c.l.b16 %v384
        %v508 = vunpack.c.l.b16 %v385
        %v509 = vunpack.c.l.b16 %v386
        %v510 = vunpack.c.l.b16 %v388
        %v511 = vunpack.c.l.b16 %v389
        %v512 = vunpack.c.l.b16 %v390
        %v513 = vunpack.c.l.b16 %v392
        %v514 = vunpack.c.l.b16 %v393
        %v515 = vunpack.c.l.b16 %v394
        %v516 = vunpack.c.l.b16 %v396
        %v517 = vunpack.c.l.b16 %v397
        %v518 = vunpack.c.l.b16 %v398
        %v519 = vunpack.c.l.b16 %v400
        %v520 = vunpack.c.l.b16 %v401
        %v521 = vunpack.c.l.b16 %v402
        %v522 = vunpack.c.l.b16 %v404
        %v523 = vunpack.c.l.b16 %v405
        %v524 = vunpack.c.l.b16 %v406
        %v525 = vunpack.c.l.b16 %v408
        %v526 = vunpack.c.l.b16 %v409
        %v527 = vunpack.c.l.b16 %v410
        %v528 = vunpack.c.l.b16 %v412
        %v529 = vunpack.c.l.b16 %v413
        %v530 = vunpack.c.l.b16 %v414
        %v531 = vunpack.c.l.b16 %v416
        %v532 = vunpack.c.l.b16 %v417
        %v533 = vunpack.c.l.b16 %v418
        %v534 = vunpack.c.l.b16 %v420
        %v535 = vunpack.c.l.b16 %v421
        %v536 = vunpack.c.l.b16 %v422
        %v537 = vunpack.c.l.b16 %v424
        %v538 = vunpack.c.l.b16 %v425
        %v539 = vunpack.c.l.b16 %v426
        %v540 = vunpack.c.l.b16 %v428
        %v541 = vunpack.c.l.b16 %v429
        %v542 = vunpack.c.l.b16 %v430
        %v543 = vunpack.c.l.b16 %v432
        %v544 = vunpack.c.l.b16 %v433
        %v545 = vunpack.c.l.b16 %v434
        %v546 = vunpack.c.l.b16 %v436
        %v547 = vunpack.c.l.b16 %v437
        %v548 = vunpack.c.l.b16 %v438
        %v549 = vunpack.c.l.b16 %v440
        %v550 = vunpack.c.l.b16 %v441
        %v551 = vunpack.c.l.b16 %v442
        %v552 = vpack.c.b16 %v499, %v498
        %v553 = vpack.c.b16 %v500, %v500
        %v554 = vpack.c.b16 %v502, %v501
        %v555 = vpack.c.b16 %v503, %v503
        %v556 = vpack.c.b16 %v505, %v504
        %v557 = vpack.c.b16 %v506, %v506
        %v558 = vpack.c.b16 %v508, %v507
        %v559 = vpack.c.b16 %v509, %v509
        %v560 = vpack.c.b16 %v511, %v510
        %v561 = vpack.c.b16 %v512, %v512
        %v562 = vpack.c.b16 %v514, %v513
        %v563 = vpack.c.b16 %v515, %v515
        %v564 = vpack.c.b16 %v517, %v516
        %v565 = vpack.c.b16 %v518, %v518
        %v566 = vpack.c.b16 %v520, %v519
        %v567 = vpack.c.b16 %v521, %v521
        %v568 = vpack.c.b16 %v523, %v522
        %v569 = vpack.c.b16 %v524, %v524
        %v570 = vpack.c.b16 %v526, %v525
        %v571 = vpack.c.b16 %v527, %v527
        %v572 = vpack.c.b16 %v529, %v528
        %v573 = vpack.c.b16 %v530, %v530
        %v574 = vpack.c.b16 %v532, %v531
        %v575 = vpack.c.b16 %v533, %v533
        %v576 = vpack.c.b16 %v535, %v534
        %v577 = vpack.c.b16 %v536, %v536
        %v578 = vpack.c.b16 %v538, %v537
        %v579 = vpack.c.b16 %v539, %v539
        %v580 = vpack.c.b16 %v541, %v540
        %v581 = vpack.c.b16 %v542, %v542
        %v582 = vpack.c.b16 %v544, %v543
        %v583 = vpack.c.b16 %v545, %v545
        %v584 = vpack.c.b16 %v547, %v546
        %v585 = vpack.c.b16 %v548, %v548
        %v586 = vpack.c.b16 %v550, %v549
        %v587 = vpack.c.b16 %v551, %v551
        %v588 = vpack.c.b16 %v500, %v499
        %v589 = vpack.c.b16 %v503, %v502
        %v590 = vpack.c.b16 %v506, %v505
        %v591 = vpack.c.b16 %v509, %v508
        %v592 = vpack.c.b16 %v512, %v511
        %v593 = vpack.c.b16 %v515, %v514
        %v594 = vpack.c.b16 %v518, %v517
        %v595 = vpack.c.b16 %v521, %v520
        %v596 = vpack.c.b16 %v524, %v523
        %v597 = vpack.c.b16 %v527, %v526
        %v598 = vpack.c.b16 %v530, %v529
        %v599 = vpack.c.b16 %v533, %v532
        %v600 = vpack.c.b16 %v536, %v535
        %v601 = vpack.c.b16 %v539, %v538
        %v602 = vpack.c.b16 %v542, %v541
        %v603 = vpack.c.b16 %v545, %v544
        %v604 = vpack.c.b16 %v548, %v547
        %v605 = vpack.c.b16 %v551, %v550
        %v607 = vshrl.u32 %v588, 16
        %v609 = vrot.slane %v607, 4
        %v610 = vshll.u32 %v588, 16
        %v612 = vrot.slane %v610, 5
        %v613 = vor.u32 %v609, %v612
        %v615 = vshrl.u32 %v589, 16
        %v617 = vrot.slane %v615, 4
        %v618 = vshll.u32 %v589, 16
        %v620 = vrot.slane %v618, 5
        %v621 = vor.u32 %v617, %v620
        %v623 = vshrl.u32 %v590, 16
        %v625 = vrot.slane %v623, 4
        %v626 = vshll.u32 %v590, 16
        %v628 = vrot.slane %v626, 5
        %v629 = vor.u32 %v625, %v628
        %v631 = vshrl.u32 %v591, 16
        %v633 = vrot.slane %v631, 4
        %v634 = vshll.u32 %v591, 16
        %v636 = vrot.slane %v634, 5
        %v637 = vor.u32 %v633, %v636
        %v639 = vshrl.u32 %v592, 16
        %v641 = vrot.slane %v639, 4
        %v642 = vshll.u32 %v592, 16
        %v644 = vrot.slane %v642, 5
        %v645 = vor.u32 %v641, %v644
        %v647 = vshrl.u32 %v593, 16
        %v649 = vrot.slane %v647, 4
        %v650 = vshll.u32 %v593, 16
        %v652 = vrot.slane %v650, 5
        %v653 = vor.u32 %v649, %v652
        %v655 = vshrl.u32 %v594, 16
        %v657 = vrot.slane %v655, 4
        %v658 = vshll.u32 %v594, 16
        %v660 = vrot.slane %v658, 5
        %v661 = vor.u32 %v657, %v660
        %v663 = vshrl.u32 %v595, 16
        %v665 = vrot.slane %v663, 4
        %v666 = vshll.u32 %v595, 16
        %v668 = vrot.slane %v666, 5
        %v669 = vor.u32 %v665, %v668
        %v671 = vshrl.u32 %v596, 16
        %v673 = vrot.slane %v671, 4
        %v674 = vshll.u32 %v596, 16
        %v676 = vrot.slane %v674, 5
        %v677 = vor.u32 %v673, %v676
        %v679 = vshrl.u32 %v597, 16
        %v681 = vrot.slane %v679, 4
        %v682 = vshll.u32 %v597, 16
        %v684 = vrot.slane %v682, 5
        %v685 = vor.u32 %v681, %v684
        %v687 = vshrl.u32 %v598, 16
        %v689 = vrot.slane %v687, 4
        %v690 = vshll.u32 %v598, 16
        %v692 = vrot.slane %v690, 5
        %v693 = vor.u32 %v689, %v692
        %v695 = vshrl.u32 %v599, 16
        %v697 = vrot.slane %v695, 4
        %v698 = vshll.u32 %v599, 16
        %v700 = vrot.slane %v698, 5
        %v701 = vor.u32 %v697, %v700
        %v703 = vshrl.u32 %v600, 16
        %v705 = vrot.slane %v703, 4
        %v706 = vshll.u32 %v600, 16
        %v708 = vrot.slane %v706, 5
        %v709 = vor.u32 %v705, %v708
        %v711 = vshrl.u32 %v601, 16
        %v713 = vrot.slane %v711, 4
        %v714 = vshll.u32 %v601, 16
        %v716 = vrot.slane %v714, 5
        %v717 = vor.u32 %v713, %v716
        %v719 = vshrl.u32 %v602, 16
        %v721 = vrot.slane %v719, 4
        %v722 = vshll.u32 %v602, 16
        %v724 = vrot.slane %v722, 5
        %v725 = vor.u32 %v721, %v724
        %v727 = vshrl.u32 %v603, 16
        %v729 = vrot.slane %v727, 4
        %v730 = vshll.u32 %v603, 16
        %v732 = vrot.slane %v730, 5
        %v733 = vor.u32 %v729, %v732
        %v735 = vshrl.u32 %v604, 16
        %v737 = vrot.slane %v735, 4
        %v738 = vshll.u32 %v604, 16
        %v740 = vrot.slane %v738, 5
        %v741 = vor.u32 %v737, %v740
        %v743 = vshrl.u32 %v605, 16
        %v745 = vrot.slane %v743, 4
        %v746 = vshll.u32 %v605, 16
        %v748 = vrot.slane %v746, 5
        %v749 = vor.u32 %v745, %v748
        %v768 = vunpack.c.l.b16 %v375
        %v769 = vunpack.c.l.b16 %v379
        %v770 = vunpack.c.l.b16 %v383
        %v771 = vunpack.c.l.b16 %v387
        %v772 = vunpack.c.l.b16 %v391
        %v773 = vunpack.c.l.b16 %v395
        %v774 = vunpack.c.l.b16 %v399
        %v775 = vunpack.c.l.b16 %v403
        %v776 = vunpack.c.l.b16 %v407
        %v777 = vunpack.c.l.b16 %v411
        %v778 = vunpack.c.l.b16 %v415
        %v779 = vunpack.c.l.b16 %v419
        %v780 = vunpack.c.l.b16 %v423
        %v781 = vunpack.c.l.b16 %v427
        %v782 = vunpack.c.l.b16 %v431
        %v783 = vunpack.c.l.b16 %v435
        %v784 = vunpack.c.l.b16 %v439
        %v785 = vunpack.c.l.b16 %v443
        %v786 = vpack.c.b16 %v768, %v768
        %v787 = vpack.c.b16 %v769, %v769
        %v788 = vpack.c.b16 %v770, %v770
        %v789 = vpack.c.b16 %v771, %v771
        %v790 = vpack.c.b16 %v772, %v772
        %v791 = vpack.c.b16 %v773, %v773
        %v792 = vpack.c.b16 %v774, %v774
        %v793 = vpack.c.b16 %v775, %v775
        %v794 = vpack.c.b16 %v776, %v776
        %v795 = vpack.c.b16 %v777, %v777
        %v796 = vpack.c.b16 %v778, %v778
        %v797 = vpack.c.b16 %v779, %v779
        %v798 = vpack.c.b16 %v780, %v780
        %v799 = vpack.c.b16 %v781, %v781
        %v800 = vpack.c.b16 %v782, %v782
        %v801 = vpack.c.b16 %v783, %v783
        %v802 = vpack.c.b16 %v784, %v784
        %v803 = vpack.c.b16 %v785, %v785
        %vm804 = vcmask 1042432
        %v805 = vrot.slane %v588, 5
        %v806 = vrot.slane %v786, 5
        %v807 = vsel %vm804, %v805, %v806
        %v808 = vrot.slane %v589, 5
        %v809 = vrot.slane %v787, 5
        %v810 = vsel %vm804, %v808, %v809
        %v811 = vrot.slane %v590, 5
        %v812 = vrot.slane %v788, 5
        %v813 = vsel %vm804, %v811, %v812
        %v814 = vrot.slane %v591, 5
        %v815 = vrot.slane %v789, 5
        %v816 = vsel %vm804, %v814, %v815
        %v817 = vrot.slane %v592, 5
        %v818 = vrot.slane %v790, 5
        %v819 = vsel %vm804, %v817, %v818
        %v820 = vrot.slane %v593, 5
        %v821 = vrot.slane %v791, 5
        %v822 = vsel %vm804, %v820, %v821
        %v823 = vrot.slane %v594, 5
        %v824 = vrot.slane %v792, 5
        %v825 = vsel %vm804, %v823, %v824
        %v826 = vrot.slane %v595, 5
        %v827 = vrot.slane %v793, 5
        %v828 = vsel %vm804, %v826, %v827
        %v829 = vrot.slane %v596, 5
        %v830 = vrot.slane %v794, 5
        %v831 = vsel %vm804, %v829, %v830
        %v832 = vrot.slane %v597, 5
        %v833 = vrot.slane %v795, 5
        %v834 = vsel %vm804, %v832, %v833
        %v835 = vrot.slane %v598, 5
        %v836 = vrot.slane %v796, 5
        %v837 = vsel %vm804, %v835, %v836
        %v838 = vrot.slane %v599, 5
        %v839 = vrot.slane %v797, 5
        %v840 = vsel %vm804, %v838, %v839
        %v841 = vrot.slane %v600, 5
        %v842 = vrot.slane %v798, 5
        %v843 = vsel %vm804, %v841, %v842
        %v844 = vrot.slane %v601, 5
        %v845 = vrot.slane %v799, 5
        %v846 = vsel %vm804, %v844, %v845
        %v847 = vrot.slane %v602, 5
        %v848 = vrot.slane %v800, 5
        %v849 = vsel %vm804, %v847, %v848
        %v850 = vrot.slane %v603, 5
        %v851 = vrot.slane %v801, 5
        %v852 = vsel %vm804, %v850, %v851
        %v853 = vrot.slane %v604, 5
        %v854 = vrot.slane %v802, 5
        %v855 = vsel %vm804, %v853, %v854
        %v856 = vrot.slane %v605, 5
        %v857 = vrot.slane %v803, 5
        %v858 = vsel %vm804, %v856, %v857
        %vm859 = vsmask.f32 4352
        %v861 = vshrl.u32 %v552, 16
        %v863 = vrot.slane %v861, 3
        %v864 = vshll.u32 %v552, 16
        %v866 = vrot.slane %v864, 4
        %v867 = vor.u32 %v863, %v866
        %v869 = vshrl.u32 %v553, 16
        %v871 = vrot.slane %v869, 3
        %v872 = vshll.u32 %v553, 16
        %v874 = vrot.slane %v872, 4
        %v875 = vor.u32 %v871, %v874
        %v876 = vsel %vm859, %v867, %v875
        %v878 = vshrl.u32 %v613, 16
        %v880 = vrot.slane %v878, 3
        %v881 = vshll.u32 %v613, 16
        %v883 = vrot.slane %v881, 4
        %v884 = vor.u32 %v880, %v883
        %v885 = vsel %vm859, %v884, %v884
        %v887 = vshrl.u32 %v805, 16
        %v889 = vrot.slane %v887, 3
        %v890 = vshll.u32 %v805, 16
        %v892 = vrot.slane %v890, 4
        %v893 = vor.u32 %v889, %v892
        %v895 = vshrl.u32 %v807, 16
        %v897 = vrot.slane %v895, 3
        %v898 = vshll.u32 %v807, 16
        %v900 = vrot.slane %v898, 4
        %v901 = vor.u32 %v897, %v900
        %v902 = vsel %vm859, %v893, %v901
        %v904 = vshrl.u32 %v554, 16
        %v906 = vrot.slane %v904, 3
        %v907 = vshll.u32 %v554, 16
        %v909 = vrot.slane %v907, 4
        %v910 = vor.u32 %v906, %v909
        %v912 = vshrl.u32 %v555, 16
        %v914 = vrot.slane %v912, 3
        %v915 = vshll.u32 %v555, 16
        %v917 = vrot.slane %v915, 4
        %v918 = vor.u32 %v914, %v917
        %v919 = vsel %vm859, %v910, %v918
        %v921 = vshrl.u32 %v621, 16
        %v923 = vrot.slane %v921, 3
        %v924 = vshll.u32 %v621, 16
        %v926 = vrot.slane %v924, 4
        %v927 = vor.u32 %v923, %v926
        %v928 = vsel %vm859, %v927, %v927
        %v930 = vshrl.u32 %v808, 16
        %v932 = vrot.slane %v930, 3
        %v933 = vshll.u32 %v808, 16
        %v935 = vrot.slane %v933, 4
        %v936 = vor.u32 %v932, %v935
        %v938 = vshrl.u32 %v810, 16
        %v940 = vrot.slane %v938, 3
        %v941 = vshll.u32 %v810, 16
        %v943 = vrot.slane %v941, 4
        %v944 = vor.u32 %v940, %v943
        %v945 = vsel %vm859, %v936, %v944
        %v947 = vshrl.u32 %v556, 16
        %v949 = vrot.slane %v947, 3
        %v950 = vshll.u32 %v556, 16
        %v952 = vrot.slane %v950, 4
        %v953 = vor.u32 %v949, %v952
        %v955 = vshrl.u32 %v557, 16
        %v957 = vrot.slane %v955, 3
        %v958 = vshll.u32 %v557, 16
        %v960 = vrot.slane %v958, 4
        %v961 = vor.u32 %v957, %v960
        %v962 = vsel %vm859, %v953, %v961
        %v964 = vshrl.u32 %v629, 16
        %v966 = vrot.slane %v964, 3
        %v967 = vshll.u32 %v629, 16
        %v969 = vrot.slane %v967, 4
        %v970 = vor.u32 %v966, %v969
        %v971 = vsel %vm859, %v970, %v970
        %v973 = vshrl.u32 %v811, 16
        %v975 = vrot.slane %v973, 3
        %v976 = vshll.u32 %v811, 16
        %v978 = vrot.slane %v976, 4
        %v979 = vor.u32 %v975, %v978
        %v981 = vshrl.u32 %v813, 16
        %v983 = vrot.slane %v981, 3
        %v984 = vshll.u32 %v813, 16
        %v986 = vrot.slane %v984, 4
        %v987 = vor.u32 %v983, %v986
        %v988 = vsel %vm859, %v979, %v987
        %v990 = vshrl.u32 %v558, 16
        %v992 = vrot.slane %v990, 3
        %v993 = vshll.u32 %v558, 16
        %v995 = vrot.slane %v993, 4
        %v996 = vor.u32 %v992, %v995
        %v998 = vshrl.u32 %v559, 16
        %v1000 = vrot.slane %v998, 3
        %v1001 = vshll.u32 %v559, 16
        %v1003 = vrot.slane %v1001, 4
        %v1004 = vor.u32 %v1000, %v1003
        %v1005 = vsel %vm859, %v996, %v1004
        %v1007 = vshrl.u32 %v637, 16
        %v1009 = vrot.slane %v1007, 3
        %v1010 = vshll.u32 %v637, 16
        %v1012 = vrot.slane %v1010, 4
        %v1013 = vor.u32 %v1009, %v1012
        %v1014 = vsel %vm859, %v1013, %v1013
        %v1016 = vshrl.u32 %v814, 16
        %v1018 = vrot.slane %v1016, 3
        %v1019 = vshll.u32 %v814, 16
        %v1021 = vrot.slane %v1019, 4
        %v1022 = vor.u32 %v1018, %v1021
        %v1024 = vshrl.u32 %v816, 16
        %v1026 = vrot.slane %v1024, 3
        %v1027 = vshll.u32 %v816, 16
        %v1029 = vrot.slane %v1027, 4
        %v1030 = vor.u32 %v1026, %v1029
        %v1031 = vsel %vm859, %v1022, %v1030
        %v1033 = vshrl.u32 %v560, 16
        %v1035 = vrot.slane %v1033, 3
        %v1036 = vshll.u32 %v560, 16
        %v1038 = vrot.slane %v1036, 4
        %v1039 = vor.u32 %v1035, %v1038
        %v1041 = vshrl.u32 %v561, 16
        %v1043 = vrot.slane %v1041, 3
        %v1044 = vshll.u32 %v561, 16
        %v1046 = vrot.slane %v1044, 4
        %v1047 = vor.u32 %v1043, %v1046
        %v1048 = vsel %vm859, %v1039, %v1047
        %v1050 = vshrl.u32 %v645, 16
        %v1052 = vrot.slane %v1050, 3
        %v1053 = vshll.u32 %v645, 16
        %v1055 = vrot.slane %v1053, 4
        %v1056 = vor.u32 %v1052, %v1055
        %v1057 = vsel %vm859, %v1056, %v1056
        %v1059 = vshrl.u32 %v817, 16
        %v1061 = vrot.slane %v1059, 3
        %v1062 = vshll.u32 %v817, 16
        %v1064 = vrot.slane %v1062, 4
        %v1065 = vor.u32 %v1061, %v1064
        %v1067 = vshrl.u32 %v819, 16
        %v1069 = vrot.slane %v1067, 3
        %v1070 = vshll.u32 %v819, 16
        %v1072 = vrot.slane %v1070, 4
        %v1073 = vor.u32 %v1069, %v1072
        %v1074 = vsel %vm859, %v1065, %v1073
        %v1076 = vshrl.u32 %v562, 16
        %v1078 = vrot.slane %v1076, 3
        %v1079 = vshll.u32 %v562, 16
        %v1081 = vrot.slane %v1079, 4
        %v1082 = vor.u32 %v1078, %v1081
        %v1084 = vshrl.u32 %v563, 16
        %v1086 = vrot.slane %v1084, 3
        %v1087 = vshll.u32 %v563, 16
        %v1089 = vrot.slane %v1087, 4
        %v1090 = vor.u32 %v1086, %v1089
        %v1091 = vsel %vm859, %v1082, %v1090
        %v1093 = vshrl.u32 %v653, 16
        %v1095 = vrot.slane %v1093, 3
        %v1096 = vshll.u32 %v653, 16
        %v1098 = vrot.slane %v1096, 4
        %v1099 = vor.u32 %v1095, %v1098
        %v1100 = vsel %vm859, %v1099, %v1099
        %v1102 = vshrl.u32 %v820, 16
        %v1104 = vrot.slane %v1102, 3
        %v1105 = vshll.u32 %v820, 16
        %v1107 = vrot.slane %v1105, 4
        %v1108 = vor.u32 %v1104, %v1107
        %v1110 = vshrl.u32 %v822, 16
        %v1112 = vrot.slane %v1110, 3
        %v1113 = vshll.u32 %v822, 16
        %v1115 = vrot.slane %v1113, 4
        %v1116 = vor.u32 %v1112, %v1115
        %v1117 = vsel %vm859, %v1108, %v1116
        %v1119 = vshrl.u32 %v564, 16
        %v1121 = vrot.slane %v1119, 3
        %v1122 = vshll.u32 %v564, 16
        %v1124 = vrot.slane %v1122, 4
        %v1125 = vor.u32 %v1121, %v1124
        %v1127 = vshrl.u32 %v565, 16
        %v1129 = vrot.slane %v1127, 3
        %v1130 = vshll.u32 %v565, 16
        %v1132 = vrot.slane %v1130, 4
        %v1133 = vor.u32 %v1129, %v1132
        %v1134 = vsel %vm859, %v1125, %v1133
        %v1136 = vshrl.u32 %v661, 16
        %v1138 = vrot.slane %v1136, 3
        %v1139 = vshll.u32 %v661, 16
        %v1141 = vrot.slane %v1139, 4
        %v1142 = vor.u32 %v1138, %v1141
        %v1143 = vsel %vm859, %v1142, %v1142
        %v1145 = vshrl.u32 %v823, 16
        %v1147 = vrot.slane %v1145, 3
        %v1148 = vshll.u32 %v823, 16
        %v1150 = vrot.slane %v1148, 4
        %v1151 = vor.u32 %v1147, %v1150
        %v1153 = vshrl.u32 %v825, 16
        %v1155 = vrot.slane %v1153, 3
        %v1156 = vshll.u32 %v825, 16
        %v1158 = vrot.slane %v1156, 4
        %v1159 = vor.u32 %v1155, %v1158
        %v1160 = vsel %vm859, %v1151, %v1159
        %v1162 = vshrl.u32 %v566, 16
        %v1164 = vrot.slane %v1162, 3
        %v1165 = vshll.u32 %v566, 16
        %v1167 = vrot.slane %v1165, 4
        %v1168 = vor.u32 %v1164, %v1167
        %v1170 = vshrl.u32 %v567, 16
        %v1172 = vrot.slane %v1170, 3
        %v1173 = vshll.u32 %v567, 16
        %v1175 = vrot.slane %v1173, 4
        %v1176 = vor.u32 %v1172, %v1175
        %v1177 = vsel %vm859, %v1168, %v1176
        %v1179 = vshrl.u32 %v669, 16
        %v1181 = vrot.slane %v1179, 3
        %v1182 = vshll.u32 %v669, 16
        %v1184 = vrot.slane %v1182, 4
        %v1185 = vor.u32 %v1181, %v1184
        %v1186 = vsel %vm859, %v1185, %v1185
        %v1188 = vshrl.u32 %v826, 16
        %v1190 = vrot.slane %v1188, 3
        %v1191 = vshll.u32 %v826, 16
        %v1193 = vrot.slane %v1191, 4
        %v1194 = vor.u32 %v1190, %v1193
        %v1196 = vshrl.u32 %v828, 16
        %v1198 = vrot.slane %v1196, 3
        %v1199 = vshll.u32 %v828, 16
        %v1201 = vrot.slane %v1199, 4
        %v1202 = vor.u32 %v1198, %v1201
        %v1203 = vsel %vm859, %v1194, %v1202
        %v1205 = vshrl.u32 %v568, 16
        %v1207 = vrot.slane %v1205, 3
        %v1208 = vshll.u32 %v568, 16
        %v1210 = vrot.slane %v1208, 4
        %v1211 = vor.u32 %v1207, %v1210
        %v1213 = vshrl.u32 %v569, 16
        %v1215 = vrot.slane %v1213, 3
        %v1216 = vshll.u32 %v569, 16
        %v1218 = vrot.slane %v1216, 4
        %v1219 = vor.u32 %v1215, %v1218
        %v1220 = vsel %vm859, %v1211, %v1219
        %v1222 = vshrl.u32 %v677, 16
        %v1224 = vrot.slane %v1222, 3
        %v1225 = vshll.u32 %v677, 16
        %v1227 = vrot.slane %v1225, 4
        %v1228 = vor.u32 %v1224, %v1227
        %v1229 = vsel %vm859, %v1228, %v1228
        %v1231 = vshrl.u32 %v829, 16
        %v1233 = vrot.slane %v1231, 3
        %v1234 = vshll.u32 %v829, 16
        %v1236 = vrot.slane %v1234, 4
        %v1237 = vor.u32 %v1233, %v1236
        %v1239 = vshrl.u32 %v831, 16
        %v1241 = vrot.slane %v1239, 3
        %v1242 = vshll.u32 %v831, 16
        %v1244 = vrot.slane %v1242, 4
        %v1245 = vor.u32 %v1241, %v1244
        %v1246 = vsel %vm859, %v1237, %v1245
        %v1248 = vshrl.u32 %v570, 16
        %v1250 = vrot.slane %v1248, 3
        %v1251 = vshll.u32 %v570, 16
        %v1253 = vrot.slane %v1251, 4
        %v1254 = vor.u32 %v1250, %v1253
        %v1256 = vshrl.u32 %v571, 16
        %v1258 = vrot.slane %v1256, 3
        %v1259 = vshll.u32 %v571, 16
        %v1261 = vrot.slane %v1259, 4
        %v1262 = vor.u32 %v1258, %v1261
        %v1263 = vsel %vm859, %v1254, %v1262
        %v1265 = vshrl.u32 %v685, 16
        %v1267 = vrot.slane %v1265, 3
        %v1268 = vshll.u32 %v685, 16
        %v1270 = vrot.slane %v1268, 4
        %v1271 = vor.u32 %v1267, %v1270
        %v1272 = vsel %vm859, %v1271, %v1271
        %v1274 = vshrl.u32 %v832, 16
        %v1276 = vrot.slane %v1274, 3
        %v1277 = vshll.u32 %v832, 16
        %v1279 = vrot.slane %v1277, 4
        %v1280 = vor.u32 %v1276, %v1279
        %v1282 = vshrl.u32 %v834, 16
        %v1284 = vrot.slane %v1282, 3
        %v1285 = vshll.u32 %v834, 16
        %v1287 = vrot.slane %v1285, 4
        %v1288 = vor.u32 %v1284, %v1287
        %v1289 = vsel %vm859, %v1280, %v1288
        %v1291 = vshrl.u32 %v572, 16
        %v1293 = vrot.slane %v1291, 3
        %v1294 = vshll.u32 %v572, 16
        %v1296 = vrot.slane %v1294, 4
        %v1297 = vor.u32 %v1293, %v1296
        %v1299 = vshrl.u32 %v573, 16
        %v1301 = vrot.slane %v1299, 3
        %v1302 = vshll.u32 %v573, 16
        %v1304 = vrot.slane %v1302, 4
        %v1305 = vor.u32 %v1301, %v1304
        %v1306 = vsel %vm859, %v1297, %v1305
        %v1308 = vshrl.u32 %v693, 16
        %v1310 = vrot.slane %v1308, 3
        %v1311 = vshll.u32 %v693, 16
        %v1313 = vrot.slane %v1311, 4
        %v1314 = vor.u32 %v1310, %v1313
        %v1315 = vsel %vm859, %v1314, %v1314
        %v1317 = vshrl.u32 %v835, 16
        %v1319 = vrot.slane %v1317, 3
        %v1320 = vshll.u32 %v835, 16
        %v1322 = vrot.slane %v1320, 4
        %v1323 = vor.u32 %v1319, %v1322
        %v1325 = vshrl.u32 %v837, 16
        %v1327 = vrot.slane %v1325, 3
        %v1328 = vshll.u32 %v837, 16
        %v1330 = vrot.slane %v1328, 4
        %v1331 = vor.u32 %v1327, %v1330
        %v1332 = vsel %vm859, %v1323, %v1331
        %v1334 = vshrl.u32 %v574, 16
        %v1336 = vrot.slane %v1334, 3
        %v1337 = vshll.u32 %v574, 16
        %v1339 = vrot.slane %v1337, 4
        %v1340 = vor.u32 %v1336, %v1339
        %v1342 = vshrl.u32 %v575, 16
        %v1344 = vrot.slane %v1342, 3
        %v1345 = vshll.u32 %v575, 16
        %v1347 = vrot.slane %v1345, 4
        %v1348 = vor.u32 %v1344, %v1347
        %v1349 = vsel %vm859, %v1340, %v1348
        %v1351 = vshrl.u32 %v701, 16
        %v1353 = vrot.slane %v1351, 3
        %v1354 = vshll.u32 %v701, 16
        %v1356 = vrot.slane %v1354, 4
        %v1357 = vor.u32 %v1353, %v1356
        %v1358 = vsel %vm859, %v1357, %v1357
        %v1360 = vshrl.u32 %v838, 16
        %v1362 = vrot.slane %v1360, 3
        %v1363 = vshll.u32 %v838, 16
        %v1365 = vrot.slane %v1363, 4
        %v1366 = vor.u32 %v1362, %v1365
        %v1368 = vshrl.u32 %v840, 16
        %v1370 = vrot.slane %v1368, 3
        %v1371 = vshll.u32 %v840, 16
        %v1373 = vrot.slane %v1371, 4
        %v1374 = vor.u32 %v1370, %v1373
        %v1375 = vsel %vm859, %v1366, %v1374
        %v1377 = vshrl.u32 %v576, 16
        %v1379 = vrot.slane %v1377, 3
        %v1380 = vshll.u32 %v576, 16
        %v1382 = vrot.slane %v1380, 4
        %v1383 = vor.u32 %v1379, %v1382
        %v1385 = vshrl.u32 %v577, 16
        %v1387 = vrot.slane %v1385, 3
        %v1388 = vshll.u32 %v577, 16
        %v1390 = vrot.slane %v1388, 4
        %v1391 = vor.u32 %v1387, %v1390
        %v1392 = vsel %vm859, %v1383, %v1391
        %v1394 = vshrl.u32 %v709, 16
        %v1396 = vrot.slane %v1394, 3
        %v1397 = vshll.u32 %v709, 16
        %v1399 = vrot.slane %v1397, 4
        %v1400 = vor.u32 %v1396, %v1399
        %v1401 = vsel %vm859, %v1400, %v1400
        %v1403 = vshrl.u32 %v841, 16
        %v1405 = vrot.slane %v1403, 3
        %v1406 = vshll.u32 %v841, 16
        %v1408 = vrot.slane %v1406, 4
        %v1409 = vor.u32 %v1405, %v1408
        %v1411 = vshrl.u32 %v843, 16
        %v1413 = vrot.slane %v1411, 3
        %v1414 = vshll.u32 %v843, 16
        %v1416 = vrot.slane %v1414, 4
        %v1417 = vor.u32 %v1413, %v1416
        %v1418 = vsel %vm859, %v1409, %v1417
        %v1420 = vshrl.u32 %v578, 16
        %v1422 = vrot.slane %v1420, 3
        %v1423 = vshll.u32 %v578, 16
        %v1425 = vrot.slane %v1423, 4
        %v1426 = vor.u32 %v1422, %v1425
        %v1428 = vshrl.u32 %v579, 16
        %v1430 = vrot.slane %v1428, 3
        %v1431 = vshll.u32 %v579, 16
        %v1433 = vrot.slane %v1431, 4
        %v1434 = vor.u32 %v1430, %v1433
        %v1435 = vsel %vm859, %v1426, %v1434
        %v1437 = vshrl.u32 %v717, 16
        %v1439 = vrot.slane %v1437, 3
        %v1440 = vshll.u32 %v717, 16
        %v1442 = vrot.slane %v1440, 4
        %v1443 = vor.u32 %v1439, %v1442
        %v1444 = vsel %vm859, %v1443, %v1443
        %v1446 = vshrl.u32 %v844, 16
        %v1448 = vrot.slane %v1446, 3
        %v1449 = vshll.u32 %v844, 16
        %v1451 = vrot.slane %v1449, 4
        %v1452 = vor.u32 %v1448, %v1451
        %v1454 = vshrl.u32 %v846, 16
        %v1456 = vrot.slane %v1454, 3
        %v1457 = vshll.u32 %v846, 16
        %v1459 = vrot.slane %v1457, 4
        %v1460 = vor.u32 %v1456, %v1459
        %v1461 = vsel %vm859, %v1452, %v1460
        %v1463 = vshrl.u32 %v580, 16
        %v1465 = vrot.slane %v1463, 3
        %v1466 = vshll.u32 %v580, 16
        %v1468 = vrot.slane %v1466, 4
        %v1469 = vor.u32 %v1465, %v1468
        %v1471 = vshrl.u32 %v581, 16
        %v1473 = vrot.slane %v1471, 3
        %v1474 = vshll.u32 %v581, 16
        %v1476 = vrot.slane %v1474, 4
        %v1477 = vor.u32 %v1473, %v1476
        %v1478 = vsel %vm859, %v1469, %v1477
        %v1480 = vshrl.u32 %v725, 16
        %v1482 = vrot.slane %v1480, 3
        %v1483 = vshll.u32 %v725, 16
        %v1485 = vrot.slane %v1483, 4
        %v1486 = vor.u32 %v1482, %v1485
        %v1487 = vsel %vm859, %v1486, %v1486
        %v1489 = vshrl.u32 %v847, 16
        %v1491 = vrot.slane %v1489, 3
        %v1492 = vshll.u32 %v847, 16
        %v1494 = vrot.slane %v1492, 4
        %v1495 = vor.u32 %v1491, %v1494
        %v1497 = vshrl.u32 %v849, 16
        %v1499 = vrot.slane %v1497, 3
        %v1500 = vshll.u32 %v849, 16
        %v1502 = vrot.slane %v1500, 4
        %v1503 = vor.u32 %v1499, %v1502
        %v1504 = vsel %vm859, %v1495, %v1503
        %v1506 = vshrl.u32 %v582, 16
        %v1508 = vrot.slane %v1506, 3
        %v1509 = vshll.u32 %v582, 16
        %v1511 = vrot.slane %v1509, 4
        %v1512 = vor.u32 %v1508, %v1511
        %v1514 = vshrl.u32 %v583, 16
        %v1516 = vrot.slane %v1514, 3
        %v1517 = vshll.u32 %v583, 16
        %v1519 = vrot.slane %v1517, 4
        %v1520 = vor.u32 %v1516, %v1519
        %v1521 = vsel %vm859, %v1512, %v1520
        %v1523 = vshrl.u32 %v733, 16
        %v1525 = vrot.slane %v1523, 3
        %v1526 = vshll.u32 %v733, 16
        %v1528 = vrot.slane %v1526, 4
        %v1529 = vor.u32 %v1525, %v1528
        %v1530 = vsel %vm859, %v1529, %v1529
        %v1532 = vshrl.u32 %v850, 16
        %v1534 = vrot.slane %v1532, 3
        %v1535 = vshll.u32 %v850, 16
        %v1537 = vrot.slane %v1535, 4
        %v1538 = vor.u32 %v1534, %v1537
        %v1540 = vshrl.u32 %v852, 16
        %v1542 = vrot.slane %v1540, 3
        %v1543 = vshll.u32 %v852, 16
        %v1545 = vrot.slane %v1543, 4
        %v1546 = vor.u32 %v1542, %v1545
        %v1547 = vsel %vm859, %v1538, %v1546
        %v1596 = vld [vmem:[#allocation5] sm:$0xf]
        %v1597 = vld [vmem:[#allocation5 + $0x4] sm:$0xf]
        %v1598 = vld [vmem:[#allocation5 + $0x8] sm:$0xf]
        %v1599 = vld [vmem:[#allocation5 + $0xc] sm:$0xf]
        %v1600 = vld [vmem:[#allocation5 + $0x10] sm:$0xf]
        %v1601 = vld [vmem:[#allocation5 + $0x14] sm:$0xf]
        %v1602 = vld [vmem:[#allocation5 + $0x18] sm:$0xf]
        %v1603 = vld [vmem:[#allocation5 + $0x1c] sm:$0xf]
        %v1604 = vld [vmem:[#allocation5 + $0x20] sm:$0xf]
        %v1605 = vld [vmem:[#allocation5 + $0x24] sm:$0xf]
        %v1606 = vld [vmem:[#allocation5 + $0x28] sm:$0xf]
        %v1607 = vld [vmem:[#allocation5 + $0x2c] sm:$0xf]
        %v1608 = vld [vmem:[#allocation5 + $0x30] sm:$0xf]
        %v1609 = vld [vmem:[#allocation5 + $0x34] sm:$0xf]
        %v1610 = vld [vmem:[#allocation5 + $0x38] sm:$0xf]
        %v1611 = vld [vmem:[#allocation5 + $0x3c] sm:$0xf]
        %v1612 = vld [vmem:[#allocation5 + $0x40] sm:$0xf]
        %v1613 = vld [vmem:[#allocation5 + $0x44] sm:$0xf]
        %v1614 = vld [vmem:[#allocation5 + $0x48] sm:$0xf]
        %v1615 = vld [vmem:[#allocation5 + $0x4c] sm:$0xf]
        %v1616 = vld [vmem:[#allocation5 + $0x50] sm:$0xf]
        %v1617 = vld [vmem:[#allocation5 + $0x54] sm:$0xf]
        %v1618 = vld [vmem:[#allocation5 + $0x58] sm:$0xf]
        %v1619 = vld [vmem:[#allocation5 + $0x5c] sm:$0xf]
        %v1620 = vld [vmem:[#allocation5 + $0x60] sm:$0xf]
        %v1621 = vld [vmem:[#allocation5 + $0x64] sm:$0xf]
        %v1622 = vld [vmem:[#allocation5 + $0x68] sm:$0xf]
        %v1623 = vld [vmem:[#allocation5 + $0x6c] sm:$0xf]
        %v1624 = vld [vmem:[#allocation5 + $0x70] sm:$0xf]
        %v1625 = vld [vmem:[#allocation5 + $0x74] sm:$0xf]
        %v1626 = vld [vmem:[#allocation5 + $0x78] sm:$0xf]
        %v1627 = vld [vmem:[#allocation5 + $0x7c] sm:$0xf]
        %v1628 = vld [vmem:[#allocation5 + $0x80] sm:$0xf]
        %v1629 = vld [vmem:[#allocation5 + $0x84] sm:$0xf]
        %v1630 = vld [vmem:[#allocation5 + $0x88] sm:$0xf]
        %v1631 = vld [vmem:[#allocation5 + $0x8c] sm:$0xf]
        %v1632 = vld [vmem:[#allocation5 + $0x90] sm:$0xf]
        %v1633 = vld [vmem:[#allocation5 + $0x94] sm:$0xf]
        %v1634 = vld [vmem:[#allocation5 + $0x98] sm:$0xf]
        %v1635 = vld [vmem:[#allocation5 + $0x9c] sm:$0xf]
        %v1636 = vld [vmem:[#allocation5 + $0xa0] sm:$0xf]
        %v1637 = vld [vmem:[#allocation5 + $0xa4] sm:$0xf]
        %v1638 = vld [vmem:[#allocation5 + $0xa8] sm:$0xf]
        %v1639 = vld [vmem:[#allocation5 + $0xac] sm:$0xf]
        %v1640 = vld [vmem:[#allocation5 + $0xb0] sm:$0xf]
        %v1641 = vld [vmem:[#allocation5 + $0xb4] sm:$0xf]
        %v1642 = vld [vmem:[#allocation5 + $0xb8] sm:$0xf]
        %v1643 = vld [vmem:[#allocation5 + $0xbc] sm:$0xf]
        %v1645 = vshrl.u32 %v584, 16
        %v1647 = vrot.slane %v1645, 3
        %v1648 = vshll.u32 %v584, 16
        %v1650 = vrot.slane %v1648, 4
        %v1651 = vor.u32 %v1647, %v1650
        %v1653 = vshrl.u32 %v585, 16
        %v1655 = vrot.slane %v1653, 3
        %v1656 = vshll.u32 %v585, 16
        %v1658 = vrot.slane %v1656, 4
        %v1659 = vor.u32 %v1655, %v1658
        %v1660 = vsel %vm859, %v1651, %v1659
        %v1662 = vshrl.u32 %v741, 16
        %v1664 = vrot.slane %v1662, 3
        %v1665 = vshll.u32 %v741, 16
        %v1667 = vrot.slane %v1665, 4
        %v1668 = vor.u32 %v1664, %v1667
        %v1669 = vsel %vm859, %v1668, %v1668
        %v1671 = vshrl.u32 %v853, 16
        %v1673 = vrot.slane %v1671, 3
        %v1674 = vshll.u32 %v853, 16
        %v1676 = vrot.slane %v1674, 4
        %v1677 = vor.u32 %v1673, %v1676
        %v1679 = vshrl.u32 %v855, 16
        %v1681 = vrot.slane %v1679, 3
        %v1682 = vshll.u32 %v855, 16
        %v1684 = vrot.slane %v1682, 4
        %v1685 = vor.u32 %v1681, %v1684
        %v1686 = vsel %vm859, %v1677, %v1685
        %s1690 = scalar_lea.vmem [#allocation5], 192
        %v1691 = vld [vmem:[%s1690] sm:$0xf]
        %v1692 = vld [vmem:[%s1690 + $0x4] sm:$0xf]
        %v1693 = vld [vmem:[%s1690 + $0x8] sm:$0xf]
        %v1694 = vld [vmem:[%s1690 + $0xc] sm:$0xf]
        %v1695 = vld [vmem:[%s1690 + $0x10] sm:$0xf]
        %v1696 = vld [vmem:[%s1690 + $0x14] sm:$0xf]
        %v1697 = vld [vmem:[%s1690 + $0x18] sm:$0xf]
        %v1698 = vld [vmem:[%s1690 + $0x1c] sm:$0xf]
        %v1699 = vld [vmem:[%s1690 + $0x20] sm:$0xf]
        %v1700 = vld [vmem:[%s1690 + $0x24] sm:$0xf]
        %v1701 = vld [vmem:[%s1690 + $0x28] sm:$0xf]
        %v1702 = vld [vmem:[%s1690 + $0x2c] sm:$0xf]
        %v1703 = vld [vmem:[%s1690 + $0x30] sm:$0xf]
        %v1704 = vld [vmem:[%s1690 + $0x34] sm:$0xf]
        %v1705 = vld [vmem:[%s1690 + $0x38] sm:$0xf]
        %v1706 = vld [vmem:[%s1690 + $0x3c] sm:$0xf]
        %v1707 = vld [vmem:[%s1690 + $0x40] sm:$0xf]
        %v1708 = vld [vmem:[%s1690 + $0x44] sm:$0xf]
        %v1709 = vld [vmem:[%s1690 + $0x48] sm:$0xf]
        %v1710 = vld [vmem:[%s1690 + $0x4c] sm:$0xf]
        %v1711 = vld [vmem:[%s1690 + $0x50] sm:$0xf]
        %v1712 = vld [vmem:[%s1690 + $0x54] sm:$0xf]
        %v1713 = vld [vmem:[%s1690 + $0x58] sm:$0xf]
        %v1714 = vld [vmem:[%s1690 + $0x5c] sm:$0xf]
        %v1715 = vld [vmem:[%s1690 + $0x60] sm:$0xf]
        %v1716 = vld [vmem:[%s1690 + $0x64] sm:$0xf]
        %v1717 = vld [vmem:[%s1690 + $0x68] sm:$0xf]
        %v1718 = vld [vmem:[%s1690 + $0x6c] sm:$0xf]
        %v1719 = vld [vmem:[%s1690 + $0x70] sm:$0xf]
        %v1720 = vld [vmem:[%s1690 + $0x74] sm:$0xf]
        %v1721 = vld [vmem:[%s1690 + $0x78] sm:$0xf]
        %v1722 = vld [vmem:[%s1690 + $0x7c] sm:$0xf]
        %v1723 = vld [vmem:[%s1690 + $0x80] sm:$0xf]
        %v1724 = vld [vmem:[%s1690 + $0x84] sm:$0xf]
        %v1725 = vld [vmem:[%s1690 + $0x88] sm:$0xf]
        %v1726 = vld [vmem:[%s1690 + $0x8c] sm:$0xf]
        %v1727 = vld [vmem:[%s1690 + $0x90] sm:$0xf]
        %v1728 = vld [vmem:[%s1690 + $0x94] sm:$0xf]
        %v1729 = vld [vmem:[%s1690 + $0x98] sm:$0xf]
        %v1730 = vld [vmem:[%s1690 + $0x9c] sm:$0xf]
        %v1731 = vld [vmem:[%s1690 + $0xa0] sm:$0xf]
        %v1732 = vld [vmem:[%s1690 + $0xa4] sm:$0xf]
        %v1733 = vld [vmem:[%s1690 + $0xa8] sm:$0xf]
        %v1734 = vld [vmem:[%s1690 + $0xac] sm:$0xf]
        %v1735 = vld [vmem:[%s1690 + $0xb0] sm:$0xf]
        %v1736 = vld [vmem:[%s1690 + $0xb4] sm:$0xf]
        %v1737 = vld [vmem:[%s1690 + $0xb8] sm:$0xf]
        %v1738 = vld [vmem:[%s1690 + $0xbc] sm:$0xf]
        %v1787 = vunpack.c.l.b16 %v1691
        %v1788 = vunpack.c.l.b16 %v1692
        %v1789 = vunpack.c.l.b16 %v1693
        %v1790 = vunpack.c.l.b16 %v1694
        %v1791 = vunpack.c.l.b16 %v1695
        %v1792 = vunpack.c.l.b16 %v1696
        %v1793 = vunpack.c.l.b16 %v1697
        %v1794 = vunpack.c.l.b16 %v1698
        %v1795 = vunpack.c.l.b16 %v1699
        %v1796 = vunpack.c.l.b16 %v1700
        %v1797 = vunpack.c.l.b16 %v1701
        %v1798 = vunpack.c.l.b16 %v1702
        %v1799 = vunpack.c.l.b16 %v1703
        %v1800 = vunpack.c.l.b16 %v1704
        %v1801 = vunpack.c.l.b16 %v1705
        %v1802 = vunpack.c.l.b16 %v1706
        %v1803 = vunpack.c.l.b16 %v1707
        %v1804 = vunpack.c.l.b16 %v1708
        %v1805 = vunpack.c.l.b16 %v1709
        %v1806 = vunpack.c.l.b16 %v1710
        %v1807 = vunpack.c.l.b16 %v1711
        %v1808 = vunpack.c.l.b16 %v1712
        %v1809 = vunpack.c.l.b16 %v1713
        %v1810 = vunpack.c.l.b16 %v1714
        %v1811 = vunpack.c.l.b16 %v1715
        %v1812 = vunpack.c.l.b16 %v1716
        %v1813 = vunpack.c.l.b16 %v1717
        %v1814 = vunpack.c.l.b16 %v1718
        %v1815 = vunpack.c.l.b16 %v1719
        %v1816 = vunpack.c.l.b16 %v1720
        %v1817 = vunpack.c.l.b16 %v1721
        %v1818 = vunpack.c.l.b16 %v1722
        %v1819 = vunpack.c.l.b16 %v1723
        %v1820 = vunpack.c.l.b16 %v1724
        %v1821 = vunpack.c.l.b16 %v1725
        %v1822 = vunpack.c.l.b16 %v1726
        %v1823 = vunpack.c.l.b16 %v1727
        %v1824 = vunpack.c.l.b16 %v1728
        %v1825 = vunpack.c.l.b16 %v1729
        %v1826 = vunpack.c.l.b16 %v1730
        %v1827 = vunpack.c.l.b16 %v1731
        %v1828 = vunpack.c.l.b16 %v1732
        %v1829 = vunpack.c.l.b16 %v1733
        %v1830 = vunpack.c.l.b16 %v1734
        %v1831 = vunpack.c.l.b16 %v1735
        %v1832 = vunpack.c.l.b16 %v1736
        %v1833 = vunpack.c.l.b16 %v1737
        %v1834 = vunpack.c.l.b16 %v1738
        %v1835 = vpack.c.b16 %v1788, %v1787
        %v1836 = vpack.c.b16 %v1790, %v1789
        %v1837 = vpack.c.b16 %v1792, %v1791
        %v1838 = vpack.c.b16 %v1794, %v1793
        %v1839 = vpack.c.b16 %v1796, %v1795
        %v1840 = vpack.c.b16 %v1798, %v1797
        %v1841 = vpack.c.b16 %v1800, %v1799
        %v1842 = vpack.c.b16 %v1802, %v1801
        %v1843 = vpack.c.b16 %v1804, %v1803
        %v1844 = vpack.c.b16 %v1806, %v1805
        %v1845 = vpack.c.b16 %v1808, %v1807
        %v1846 = vpack.c.b16 %v1810, %v1809
        %v1847 = vpack.c.b16 %v1812, %v1811
        %v1848 = vpack.c.b16 %v1814, %v1813
        %v1849 = vpack.c.b16 %v1816, %v1815
        %v1850 = vpack.c.b16 %v1818, %v1817
        %v1851 = vpack.c.b16 %v1820, %v1819
        %v1852 = vpack.c.b16 %v1822, %v1821
        %v1853 = vpack.c.b16 %v1824, %v1823
        %v1854 = vpack.c.b16 %v1826, %v1825
        %v1855 = vpack.c.b16 %v1828, %v1827
        %v1856 = vpack.c.b16 %v1830, %v1829
        %v1857 = vpack.c.b16 %v1832, %v1831
        %v1858 = vpack.c.b16 %v1834, %v1833
        %1883 = vmatpush.bf16.msra.mxu0 %v1842
        %1884 = vmatpush.bf16.msra.mxu0 %v1841
        %1885 = vmatpush.bf16.msra.mxu0 %v1840
        %1886 = vmatpush.bf16.msra.mxu0 %v1839
        %1887 = vmatpush.bf16.msra.mxu0 %v1838
        %1888 = vmatpush.bf16.msra.mxu0 %v1837
        %1889 = vmatpush.bf16.msra.mxu0 %v1836
        %1890 = vmatpush.bf16.msra.mxu0 %v1835
        %1891 = vmatmul.bf16.gmra.mxu0 %v919
        %v1892 = vpop.f32.mrf.mxu0
        %v1893 = vadd.f32 0.0, %v1892
        %v1894 = vpop.f32.mrf.mxu0
        %v1895 = vadd.f32 0.0, %v1894
        %1896 = vmatmul.bf16.gmra.mxu0 %v962
        %v1897 = vpop.f32.mrf.mxu0
        %v1898 = vadd.f32 0.0, %v1897
        %v1899 = vpop.f32.mrf.mxu0
        %v1900 = vadd.f32 0.0, %v1899
        %1901 = vmatmul.bf16.gmra.mxu0 %v1005
        %v1902 = vpop.f32.mrf.mxu0
        %v1903 = vadd.f32 0.0, %v1902
        %v1904 = vpop.f32.mrf.mxu0
        %v1905 = vadd.f32 0.0, %v1904
        %1906 = vmatmul.bf16.gmra.mxu0 %v1048
        %v1907 = vpop.f32.mrf.mxu0
        %v1908 = vadd.f32 0.0, %v1907
        %v1909 = vpop.f32.mrf.mxu0
        %v1910 = vadd.f32 0.0, %v1909
        %1911 = vmatmul.bf16.gmra.mxu0 %v1091
        %v1912 = vpop.f32.mrf.mxu0
        %v1913 = vadd.f32 0.0, %v1912
        %v1914 = vpop.f32.mrf.mxu0
        %v1915 = vadd.f32 0.0, %v1914
        %1916 = vmatmul.bf16.gmra.mxu0 %v1134
        %v1917 = vpop.f32.mrf.mxu0
        %v1918 = vadd.f32 0.0, %v1917
        %v1919 = vpop.f32.mrf.mxu0
        %v1920 = vadd.f32 0.0, %v1919
        %1921 = vmatmul.bf16.gmra.mxu0 %v1177
        %v1922 = vpop.f32.mrf.mxu0
        %v1923 = vadd.f32 0.0, %v1922
        %v1924 = vpop.f32.mrf.mxu0
        %v1925 = vadd.f32 0.0, %v1924
        %1926 = vmatmul.bf16.gmra.mxu0 %v1220
        %v1927 = vpop.f32.mrf.mxu0
        %v1928 = vadd.f32 0.0, %v1927
        %v1929 = vpop.f32.mrf.mxu0
        %v1930 = vadd.f32 0.0, %v1929
        %1931 = vmatmul.bf16.gmra.mxu0 %v1263
        %v1932 = vpop.f32.mrf.mxu0
        %v1933 = vadd.f32 0.0, %v1932
        %v1934 = vpop.f32.mrf.mxu0
        %v1935 = vadd.f32 0.0, %v1934
        %1936 = vmatmul.bf16.gmra.mxu0 %v1306
        %v1937 = vpop.f32.mrf.mxu0
        %v1938 = vadd.f32 0.0, %v1937
        %v1939 = vpop.f32.mrf.mxu0
        %v1940 = vadd.f32 0.0, %v1939
        %1941 = vmatmul.bf16.gmra.mxu0 %v1349
        %v1942 = vpop.f32.mrf.mxu0
        %v1943 = vadd.f32 0.0, %v1942
        %v1944 = vpop.f32.mrf.mxu0
        %v1945 = vadd.f32 0.0, %v1944
        %1946 = vmatmul.bf16.gmra.mxu0 %v1392
        %v1947 = vpop.f32.mrf.mxu0
        %v1948 = vadd.f32 0.0, %v1947
        %v1949 = vpop.f32.mrf.mxu0
        %v1950 = vadd.f32 0.0, %v1949
        %1951 = vmatmul.bf16.gmra.mxu0 %v1435
        %v1952 = vpop.f32.mrf.mxu0
        %v1953 = vadd.f32 0.0, %v1952
        %v1954 = vpop.f32.mrf.mxu0
        %v1955 = vadd.f32 0.0, %v1954
        %1956 = vmatmul.bf16.gmra.mxu0 %v1478
        %v1957 = vpop.f32.mrf.mxu0
        %v1958 = vadd.f32 0.0, %v1957
        %v1959 = vpop.f32.mrf.mxu0
        %v1960 = vadd.f32 0.0, %v1959
        %1961 = vmatmul.bf16.gmra.mxu0 %v1521
        %v1962 = vpop.f32.mrf.mxu0
        %v1963 = vadd.f32 0.0, %v1962
        %v1964 = vpop.f32.mrf.mxu0
        %v1965 = vadd.f32 0.0, %v1964
        %1966 = vmatmul.bf16.gmra.mxu0 %v1660
        %v1967 = vpop.f32.mrf.mxu0
        %v1968 = vadd.f32 0.0, %v1967
        %v1969 = vpop.f32.mrf.mxu0
        %v1970 = vadd.f32 0.0, %v1969
        %1971 = vdwg.mxu0
        %1972 = vmatpush.bf16.msra.mxu0 %v1850
        %1973 = vmatpush.bf16.msra.mxu0 %v1849
        %1974 = vmatpush.bf16.msra.mxu0 %v1848
        %1975 = vmatpush.bf16.msra.mxu0 %v1847
        %1976 = vmatpush.bf16.msra.mxu0 %v1846
        %1977 = vmatpush.bf16.msra.mxu0 %v1845
        %1978 = vmatpush.bf16.msra.mxu0 %v1844
        %1979 = vmatpush.bf16.msra.mxu0 %v1843
        %1980 = vmatmul.bf16.gmra.mxu0 %v928
        %v1981 = vpop.f32.mrf.mxu0
        %v1982 = vadd.f32 %v1893, %v1981
        %v1983 = vpop.f32.mrf.mxu0
        %v1984 = vadd.f32 %v1895, %v1983
        %1985 = vmatmul.bf16.gmra.mxu0 %v971
        %v1986 = vpop.f32.mrf.mxu0
        %v1987 = vadd.f32 %v1898, %v1986
        %v1988 = vpop.f32.mrf.mxu0
        %v1989 = vadd.f32 %v1900, %v1988
        %1990 = vmatmul.bf16.gmra.mxu0 %v1014
        %v1991 = vpop.f32.mrf.mxu0
        %v1992 = vadd.f32 %v1903, %v1991
        %v1993 = vpop.f32.mrf.mxu0
        %v1994 = vadd.f32 %v1905, %v1993
        %1995 = vmatmul.bf16.gmra.mxu0 %v1057
        %v1996 = vpop.f32.mrf.mxu0
        %v1997 = vadd.f32 %v1908, %v1996
        %v1998 = vpop.f32.mrf.mxu0
        %v1999 = vadd.f32 %v1910, %v1998
        %2000 = vmatmul.bf16.gmra.mxu0 %v1100
        %v2001 = vpop.f32.mrf.mxu0
        %v2002 = vadd.f32 %v1913, %v2001
        %v2003 = vpop.f32.mrf.mxu0
        %v2004 = vadd.f32 %v1915, %v2003
        %2005 = vmatmul.bf16.gmra.mxu0 %v1143
        %v2006 = vpop.f32.mrf.mxu0
        %v2007 = vadd.f32 %v1918, %v2006
        %v2008 = vpop.f32.mrf.mxu0
        %v2009 = vadd.f32 %v1920, %v2008
        %2010 = vmatmul.bf16.gmra.mxu0 %v1186
        %v2011 = vpop.f32.mrf.mxu0
        %v2012 = vadd.f32 %v1923, %v2011
        %v2013 = vpop.f32.mrf.mxu0
        %v2014 = vadd.f32 %v1925, %v2013
        %2015 = vmatmul.bf16.gmra.mxu0 %v1229
        %v2016 = vpop.f32.mrf.mxu0
        %v2017 = vadd.f32 %v1928, %v2016
        %v2018 = vpop.f32.mrf.mxu0
        %v2019 = vadd.f32 %v1930, %v2018
        %2020 = vmatmul.bf16.gmra.mxu0 %v1272
        %v2021 = vpop.f32.mrf.mxu0
        %v2022 = vadd.f32 %v1933, %v2021
        %v2023 = vpop.f32.mrf.mxu0
        %v2024 = vadd.f32 %v1935, %v2023
        %2025 = vmatmul.bf16.gmra.mxu0 %v1315
        %v2026 = vpop.f32.mrf.mxu0
        %v2027 = vadd.f32 %v1938, %v2026
        %v2028 = vpop.f32.mrf.mxu0
        %v2029 = vadd.f32 %v1940, %v2028
        %2030 = vmatmul.bf16.gmra.mxu0 %v1358
        %v2031 = vpop.f32.mrf.mxu0
        %v2032 = vadd.f32 %v1943, %v2031
        %v2033 = vpop.f32.mrf.mxu0
        %v2034 = vadd.f32 %v1945, %v2033
        %2035 = vmatmul.bf16.gmra.mxu0 %v1401
        %v2036 = vpop.f32.mrf.mxu0
        %v2037 = vadd.f32 %v1948, %v2036
        %v2038 = vpop.f32.mrf.mxu0
        %v2039 = vadd.f32 %v1950, %v2038
        %2040 = vmatmul.bf16.gmra.mxu0 %v1444
        %v2041 = vpop.f32.mrf.mxu0
        %v2042 = vadd.f32 %v1953, %v2041
        %v2043 = vpop.f32.mrf.mxu0
        %v2044 = vadd.f32 %v1955, %v2043
        %2045 = vmatmul.bf16.gmra.mxu0 %v1487
        %v2046 = vpop.f32.mrf.mxu0
        %v2047 = vadd.f32 %v1958, %v2046
        %v2048 = vpop.f32.mrf.mxu0
        %v2049 = vadd.f32 %v1960, %v2048
        %2050 = vmatmul.bf16.gmra.mxu0 %v1530
        %v2051 = vpop.f32.mrf.mxu0
        %v2052 = vadd.f32 %v1963, %v2051
        %v2053 = vpop.f32.mrf.mxu0
        %v2054 = vadd.f32 %v1965, %v2053
        %2055 = vmatmul.bf16.gmra.mxu0 %v1669
        %v2056 = vpop.f32.mrf.mxu0
        %v2057 = vadd.f32 %v1968, %v2056
        %v2058 = vpop.f32.mrf.mxu0
        %v2059 = vadd.f32 %v1970, %v2058
        %2060 = vdwg.mxu0
        %2061 = vmatpush.bf16.msra.mxu0 %v1858
        %2062 = vmatpush.bf16.msra.mxu0 %v1857
        %2063 = vmatpush.bf16.msra.mxu0 %v1856
        %2064 = vmatpush.bf16.msra.mxu0 %v1855
        %2065 = vmatpush.bf16.msra.mxu0 %v1854
        %2066 = vmatpush.bf16.msra.mxu0 %v1853
        %2067 = vmatpush.bf16.msra.mxu0 %v1852
        %2068 = vmatpush.bf16.msra.mxu0 %v1851
        %2069 = vmatmul.bf16.gmra.mxu0 %v945
        %v2070 = vpop.f32.mrf.mxu0
        %v2071 = vadd.f32 %v1982, %v2070
        %v2072 = vpop.f32.mrf.mxu0
        %v2073 = vadd.f32 %v1984, %v2072
        %2074 = vmatmul.bf16.gmra.mxu0 %v988
        %v2075 = vpop.f32.mrf.mxu0
        %v2076 = vadd.f32 %v1987, %v2075
        %v2077 = vpop.f32.mrf.mxu0
        %v2078 = vadd.f32 %v1989, %v2077
        %2079 = vmatmul.bf16.gmra.mxu0 %v1031
        %v2080 = vpop.f32.mrf.mxu0
        %v2081 = vadd.f32 %v1992, %v2080
        %v2082 = vpop.f32.mrf.mxu0
        %v2083 = vadd.f32 %v1994, %v2082
        %2084 = vmatmul.bf16.gmra.mxu0 %v1074
        %v2085 = vpop.f32.mrf.mxu0
        %v2086 = vadd.f32 %v1997, %v2085
        %v2087 = vpop.f32.mrf.mxu0
        %v2088 = vadd.f32 %v1999, %v2087
        %2089 = vmatmul.bf16.gmra.mxu0 %v1117
        %v2090 = vpop.f32.mrf.mxu0
        %v2091 = vadd.f32 %v2002, %v2090
        %v2092 = vpop.f32.mrf.mxu0
        %v2093 = vadd.f32 %v2004, %v2092
        %2094 = vmatmul.bf16.gmra.mxu0 %v1160
        %v2095 = vpop.f32.mrf.mxu0
        %v2096 = vadd.f32 %v2007, %v2095
        %v2097 = vpop.f32.mrf.mxu0
        %v2098 = vadd.f32 %v2009, %v2097
        %2099 = vmatmul.bf16.gmra.mxu0 %v1203
        %v2100 = vpop.f32.mrf.mxu0
        %v2101 = vadd.f32 %v2012, %v2100
        %v2102 = vpop.f32.mrf.mxu0
        %v2103 = vadd.f32 %v2014, %v2102
        %2104 = vmatmul.bf16.gmra.mxu0 %v1246
        %v2105 = vpop.f32.mrf.mxu0
        %v2106 = vadd.f32 %v2017, %v2105
        %v2107 = vpop.f32.mrf.mxu0
        %v2108 = vadd.f32 %v2019, %v2107
        %2109 = vmatmul.bf16.gmra.mxu0 %v1289
        %v2110 = vpop.f32.mrf.mxu0
        %v2111 = vadd.f32 %v2022, %v2110
        %v2112 = vpop.f32.mrf.mxu0
        %v2113 = vadd.f32 %v2024, %v2112
        %2114 = vmatmul.bf16.gmra.mxu0 %v1332
        %v2115 = vpop.f32.mrf.mxu0
        %v2116 = vadd.f32 %v2027, %v2115
        %v2117 = vpop.f32.mrf.mxu0
        %v2118 = vadd.f32 %v2029, %v2117
        %2119 = vmatmul.bf16.gmra.mxu0 %v1375
        %v2120 = vpop.f32.mrf.mxu0
        %v2121 = vadd.f32 %v2032, %v2120
        %v2122 = vpop.f32.mrf.mxu0
        %v2123 = vadd.f32 %v2034, %v2122
        %2124 = vmatmul.bf16.gmra.mxu0 %v1418
        %v2125 = vpop.f32.mrf.mxu0
        %v2126 = vadd.f32 %v2037, %v2125
        %v2127 = vpop.f32.mrf.mxu0
        %v2128 = vadd.f32 %v2039, %v2127
        %2129 = vmatmul.bf16.gmra.mxu0 %v1461
        %v2130 = vpop.f32.mrf.mxu0
        %v2131 = vadd.f32 %v2042, %v2130
        %v2132 = vpop.f32.mrf.mxu0
        %v2133 = vadd.f32 %v2044, %v2132
        %2134 = vmatmul.bf16.gmra.mxu0 %v1504
        %v2135 = vpop.f32.mrf.mxu0
        %v2136 = vadd.f32 %v2047, %v2135
        %v2137 = vpop.f32.mrf.mxu0
        %v2138 = vadd.f32 %v2049, %v2137
        %2139 = vmatmul.bf16.gmra.mxu0 %v1547
        %v2140 = vpop.f32.mrf.mxu0
        %v2141 = vadd.f32 %v2052, %v2140
        %v2142 = vpop.f32.mrf.mxu0
        %v2143 = vadd.f32 %v2054, %v2142
        %2144 = vmatmul.bf16.gmra.mxu0 %v1686
        %v2145 = vpop.f32.mrf.mxu0
        %v2146 = vadd.f32 %v2057, %v2145
        %v2147 = vpop.f32.mrf.mxu0
        %v2148 = vadd.f32 %v2059, %v2147
        %2149 = vdwg.mxu0
        %v2198 = vunpack.c.l.b16 %v1596
        %v2199 = vunpack.c.l.b16 %v1597
        %v2200 = vunpack.c.l.b16 %v1598
        %v2201 = vunpack.c.l.b16 %v1599
        %v2202 = vunpack.c.l.b16 %v1600
        %v2203 = vunpack.c.l.b16 %v1601
        %v2204 = vunpack.c.l.b16 %v1602
        %v2205 = vunpack.c.l.b16 %v1603
        %v2206 = vunpack.c.l.b16 %v1604
        %v2207 = vunpack.c.l.b16 %v1605
        %v2208 = vunpack.c.l.b16 %v1606
        %v2209 = vunpack.c.l.b16 %v1607
        %v2210 = vunpack.c.l.b16 %v1608
        %v2211 = vunpack.c.l.b16 %v1609
        %v2212 = vunpack.c.l.b16 %v1610
        %v2213 = vunpack.c.l.b16 %v1611
        %v2214 = vunpack.c.l.b16 %v1612
        %v2215 = vunpack.c.l.b16 %v1613
        %v2216 = vunpack.c.l.b16 %v1614
        %v2217 = vunpack.c.l.b16 %v1615
        %v2218 = vunpack.c.l.b16 %v1616
        %v2219 = vunpack.c.l.b16 %v1617
        %v2220 = vunpack.c.l.b16 %v1618
        %v2221 = vunpack.c.l.b16 %v1619
        %v2222 = vunpack.c.l.b16 %v1620
        %v2223 = vunpack.c.l.b16 %v1621
        %v2224 = vunpack.c.l.b16 %v1622
        %v2225 = vunpack.c.l.b16 %v1623
        %v2226 = vunpack.c.l.b16 %v1624
        %v2227 = vunpack.c.l.b16 %v1625
        %v2228 = vunpack.c.l.b16 %v1626
        %v2229 = vunpack.c.l.b16 %v1627
        %v2230 = vunpack.c.l.b16 %v1628
        %v2231 = vunpack.c.l.b16 %v1629
        %v2232 = vunpack.c.l.b16 %v1630
        %v2233 = vunpack.c.l.b16 %v1631
        %v2234 = vunpack.c.l.b16 %v1632
        %v2235 = vunpack.c.l.b16 %v1633
        %v2236 = vunpack.c.l.b16 %v1634
        %v2237 = vunpack.c.l.b16 %v1635
        %v2238 = vunpack.c.l.b16 %v1636
        %v2239 = vunpack.c.l.b16 %v1637
        %v2240 = vunpack.c.l.b16 %v1638
        %v2241 = vunpack.c.l.b16 %v1639
        %v2242 = vunpack.c.l.b16 %v1640
        %v2243 = vunpack.c.l.b16 %v1641
        %v2244 = vunpack.c.l.b16 %v1642
        %v2245 = vunpack.c.l.b16 %v1643
        %v2246 = vpack.c.b16 %v2199, %v2198
        %v2247 = vpack.c.b16 %v2201, %v2200
        %v2248 = vpack.c.b16 %v2203, %v2202
        %v2249 = vpack.c.b16 %v2205, %v2204
        %v2250 = vpack.c.b16 %v2207, %v2206
        %v2251 = vpack.c.b16 %v2209, %v2208
        %v2252 = vpack.c.b16 %v2211, %v2210
        %v2253 = vpack.c.b16 %v2213, %v2212
        %v2254 = vpack.c.b16 %v2215, %v2214
        %v2255 = vpack.c.b16 %v2217, %v2216
        %v2256 = vpack.c.b16 %v2219, %v2218
        %v2257 = vpack.c.b16 %v2221, %v2220
        %v2258 = vpack.c.b16 %v2223, %v2222
        %v2259 = vpack.c.b16 %v2225, %v2224
        %v2260 = vpack.c.b16 %v2227, %v2226
        %v2261 = vpack.c.b16 %v2229, %v2228
        %v2262 = vpack.c.b16 %v2231, %v2230
        %v2263 = vpack.c.b16 %v2233, %v2232
        %v2264 = vpack.c.b16 %v2235, %v2234
        %v2265 = vpack.c.b16 %v2237, %v2236
        %v2266 = vpack.c.b16 %v2239, %v2238
        %v2267 = vpack.c.b16 %v2241, %v2240
        %v2268 = vpack.c.b16 %v2243, %v2242
        %v2269 = vpack.c.b16 %v2245, %v2244
        %2294 = vmatpush.bf16.msra.mxu0 %v2253
        %2295 = vmatpush.bf16.msra.mxu0 %v2252
        %2296 = vmatpush.bf16.msra.mxu0 %v2251
        %2297 = vmatpush.bf16.msra.mxu0 %v2250
        %2298 = vmatpush.bf16.msra.mxu0 %v2249
        %2299 = vmatpush.bf16.msra.mxu0 %v2248
        %2300 = vmatpush.bf16.msra.mxu0 %v2247
        %2301 = vmatpush.bf16.msra.mxu0 %v2246
        %2302 = vmatmul.bf16.gmra.mxu0 %v876
        %v2303 = vpop.f32.mrf.mxu0
        %v2304 = vadd.f32 %v2071, %v2303
        %v2305 = vpop.f32.mrf.mxu0
        %v2306 = vadd.f32 %v2073, %v2305
        %2307 = vmatmul.bf16.gmra.mxu0 %v919
        %v2308 = vpop.f32.mrf.mxu0
        %v2309 = vadd.f32 %v2076, %v2308
        %v2310 = vpop.f32.mrf.mxu0
        %v2311 = vadd.f32 %v2078, %v2310
        %2312 = vmatmul.bf16.gmra.mxu0 %v962
        %v2313 = vpop.f32.mrf.mxu0
        %v2314 = vadd.f32 %v2081, %v2313
        %v2315 = vpop.f32.mrf.mxu0
        %v2316 = vadd.f32 %v2083, %v2315
        %2317 = vmatmul.bf16.gmra.mxu0 %v1005
        %v2318 = vpop.f32.mrf.mxu0
        %v2319 = vadd.f32 %v2086, %v2318
        %v2320 = vpop.f32.mrf.mxu0
        %v2321 = vadd.f32 %v2088, %v2320
        %2322 = vmatmul.bf16.gmra.mxu0 %v1048
        %v2323 = vpop.f32.mrf.mxu0
        %v2324 = vadd.f32 %v2091, %v2323
        %v2325 = vpop.f32.mrf.mxu0
        %v2326 = vadd.f32 %v2093, %v2325
        %2327 = vmatmul.bf16.gmra.mxu0 %v1091
        %v2328 = vpop.f32.mrf.mxu0
        %v2329 = vadd.f32 %v2096, %v2328
        %v2330 = vpop.f32.mrf.mxu0
        %v2331 = vadd.f32 %v2098, %v2330
        %2332 = vmatmul.bf16.gmra.mxu0 %v1134
        %v2333 = vpop.f32.mrf.mxu0
        %v2334 = vadd.f32 %v2101, %v2333
        %v2335 = vpop.f32.mrf.mxu0
        %v2336 = vadd.f32 %v2103, %v2335
        %2337 = vmatmul.bf16.gmra.mxu0 %v1177
        %v2338 = vpop.f32.mrf.mxu0
        %v2339 = vadd.f32 %v2106, %v2338
        %v2340 = vpop.f32.mrf.mxu0
        %v2341 = vadd.f32 %v2108, %v2340
        %2342 = vmatmul.bf16.gmra.mxu0 %v1220
        %v2343 = vpop.f32.mrf.mxu0
        %v2344 = vadd.f32 %v2111, %v2343
        %v2345 = vpop.f32.mrf.mxu0
        %v2346 = vadd.f32 %v2113, %v2345
        %2347 = vmatmul.bf16.gmra.mxu0 %v1263
        %v2348 = vpop.f32.mrf.mxu0
        %v2349 = vadd.f32 %v2116, %v2348
        %v2350 = vpop.f32.mrf.mxu0
        %v2351 = vadd.f32 %v2118, %v2350
        %2352 = vmatmul.bf16.gmra.mxu0 %v1306
        %v2353 = vpop.f32.mrf.mxu0
        %v2354 = vadd.f32 %v2121, %v2353
        %v2355 = vpop.f32.mrf.mxu0
        %v2356 = vadd.f32 %v2123, %v2355
        %2357 = vmatmul.bf16.gmra.mxu0 %v1349
        %v2358 = vpop.f32.mrf.mxu0
        %v2359 = vadd.f32 %v2126, %v2358
        %v2360 = vpop.f32.mrf.mxu0
        %v2361 = vadd.f32 %v2128, %v2360
        %2362 = vmatmul.bf16.gmra.mxu0 %v1392
        %v2363 = vpop.f32.mrf.mxu0
        %v2364 = vadd.f32 %v2131, %v2363
        %v2365 = vpop.f32.mrf.mxu0
        %v2366 = vadd.f32 %v2133, %v2365
        %2367 = vmatmul.bf16.gmra.mxu0 %v1435
        %v2368 = vpop.f32.mrf.mxu0
        %v2369 = vadd.f32 %v2136, %v2368
        %v2370 = vpop.f32.mrf.mxu0
        %v2371 = vadd.f32 %v2138, %v2370
        %2372 = vmatmul.bf16.gmra.mxu0 %v1478
        %v2373 = vpop.f32.mrf.mxu0
        %v2374 = vadd.f32 %v2141, %v2373
        %v2375 = vpop.f32.mrf.mxu0
        %v2376 = vadd.f32 %v2143, %v2375
        %2377 = vmatmul.bf16.gmra.mxu0 %v1521
        %v2378 = vpop.f32.mrf.mxu0
        %v2379 = vadd.f32 %v2146, %v2378
        %v2380 = vpop.f32.mrf.mxu0
        %v2381 = vadd.f32 %v2148, %v2380
        %2382 = vdwg.mxu0
        %2383 = vmatpush.bf16.msra.mxu0 %v2261
        %2384 = vmatpush.bf16.msra.mxu0 %v2260
        %2385 = vmatpush.bf16.msra.mxu0 %v2259
        %2386 = vmatpush.bf16.msra.mxu0 %v2258
        %2387 = vmatpush.bf16.msra.mxu0 %v2257
        %2388 = vmatpush.bf16.msra.mxu0 %v2256
        %2389 = vmatpush.bf16.msra.mxu0 %v2255
        %2390 = vmatpush.bf16.msra.mxu0 %v2254
        %2391 = vmatmul.bf16.gmra.mxu0 %v885
        %v2392 = vpop.f32.mrf.mxu0
        %v2393 = vadd.f32 %v2304, %v2392
        %v2394 = vpop.f32.mrf.mxu0
        %v2395 = vadd.f32 %v2306, %v2394
        %2396 = vmatmul.bf16.gmra.mxu0 %v928
        %v2397 = vpop.f32.mrf.mxu0
        %v2398 = vadd.f32 %v2309, %v2397
        %v2399 = vpop.f32.mrf.mxu0
        %v2400 = vadd.f32 %v2311, %v2399
        %2401 = vmatmul.bf16.gmra.mxu0 %v971
        %v2402 = vpop.f32.mrf.mxu0
        %v2403 = vadd.f32 %v2314, %v2402
        %v2404 = vpop.f32.mrf.mxu0
        %v2405 = vadd.f32 %v2316, %v2404
        %2406 = vmatmul.bf16.gmra.mxu0 %v1014
        %v2407 = vpop.f32.mrf.mxu0
        %v2408 = vadd.f32 %v2319, %v2407
        %v2409 = vpop.f32.mrf.mxu0
        %v2410 = vadd.f32 %v2321, %v2409
        %2411 = vmatmul.bf16.gmra.mxu0 %v1057
        %v2412 = vpop.f32.mrf.mxu0
        %v2413 = vadd.f32 %v2324, %v2412
        %v2414 = vpop.f32.mrf.mxu0
        %v2415 = vadd.f32 %v2326, %v2414
        %2416 = vmatmul.bf16.gmra.mxu0 %v1100
        %v2417 = vpop.f32.mrf.mxu0
        %v2418 = vadd.f32 %v2329, %v2417
        %v2419 = vpop.f32.mrf.mxu0
        %v2420 = vadd.f32 %v2331, %v2419
        %2421 = vmatmul.bf16.gmra.mxu0 %v1143
        %v2422 = vpop.f32.mrf.mxu0
        %v2423 = vadd.f32 %v2334, %v2422
        %v2424 = vpop.f32.mrf.mxu0
        %v2425 = vadd.f32 %v2336, %v2424
        %2426 = vmatmul.bf16.gmra.mxu0 %v1186
        %v2427 = vpop.f32.mrf.mxu0
        %v2428 = vadd.f32 %v2339, %v2427
        %v2429 = vpop.f32.mrf.mxu0
        %v2430 = vadd.f32 %v2341, %v2429
        %2431 = vmatmul.bf16.gmra.mxu0 %v1229
        %v2432 = vpop.f32.mrf.mxu0
        %v2433 = vadd.f32 %v2344, %v2432
        %v2434 = vpop.f32.mrf.mxu0
        %v2435 = vadd.f32 %v2346, %v2434
        %2436 = vmatmul.bf16.gmra.mxu0 %v1272
        %v2437 = vpop.f32.mrf.mxu0
        %v2438 = vadd.f32 %v2349, %v2437
        %v2439 = vpop.f32.mrf.mxu0
        %v2440 = vadd.f32 %v2351, %v2439
        %2441 = vmatmul.bf16.gmra.mxu0 %v1315
        %v2442 = vpop.f32.mrf.mxu0
        %v2443 = vadd.f32 %v2354, %v2442
        %v2444 = vpop.f32.mrf.mxu0
        %v2445 = vadd.f32 %v2356, %v2444
        %2446 = vmatmul.bf16.gmra.mxu0 %v1358
        %v2447 = vpop.f32.mrf.mxu0
        %v2448 = vadd.f32 %v2359, %v2447
        %v2449 = vpop.f32.mrf.mxu0
        %v2450 = vadd.f32 %v2361, %v2449
        %2451 = vmatmul.bf16.gmra.mxu0 %v1401
        %v2452 = vpop.f32.mrf.mxu0
        %v2453 = vadd.f32 %v2364, %v2452
        %v2454 = vpop.f32.mrf.mxu0
        %v2455 = vadd.f32 %v2366, %v2454
        %2456 = vmatmul.bf16.gmra.mxu0 %v1444
        %v2457 = vpop.f32.mrf.mxu0
        %v2458 = vadd.f32 %v2369, %v2457
        %v2459 = vpop.f32.mrf.mxu0
        %v2460 = vadd.f32 %v2371, %v2459
        %2461 = vmatmul.bf16.gmra.mxu0 %v1487
        %v2462 = vpop.f32.mrf.mxu0
        %v2463 = vadd.f32 %v2374, %v2462
        %v2464 = vpop.f32.mrf.mxu0
        %v2465 = vadd.f32 %v2376, %v2464
        %2466 = vmatmul.bf16.gmra.mxu0 %v1530
        %v2467 = vpop.f32.mrf.mxu0
        %v2468 = vadd.f32 %v2379, %v2467
        %v2469 = vpop.f32.mrf.mxu0
        %v2470 = vadd.f32 %v2381, %v2469
        %2471 = vdwg.mxu0
        %2472 = vmatpush.bf16.msra.mxu0 %v2269
        %2473 = vmatpush.bf16.msra.mxu0 %v2268
        %2474 = vmatpush.bf16.msra.mxu0 %v2267
        %2475 = vmatpush.bf16.msra.mxu0 %v2266
        %2476 = vmatpush.bf16.msra.mxu0 %v2265
        %2477 = vmatpush.bf16.msra.mxu0 %v2264
        %2478 = vmatpush.bf16.msra.mxu0 %v2263
        %2479 = vmatpush.bf16.msra.mxu0 %v2262
        %2480 = vmatmul.bf16.gmra.mxu0 %v902
        %v2481 = vpop.f32.mrf.mxu0
        %v2482 = vadd.f32 %v2393, %v2481
        %v2483 = vpop.f32.mrf.mxu0
        %v2484 = vadd.f32 %v2395, %v2483
        %2485 = vmatmul.bf16.gmra.mxu0 %v945
        %v2486 = vpop.f32.mrf.mxu0
        %v2487 = vadd.f32 %v2398, %v2486
        %v2488 = vpop.f32.mrf.mxu0
        %v2489 = vadd.f32 %v2400, %v2488
        %2490 = vmatmul.bf16.gmra.mxu0 %v988
        %v2491 = vpop.f32.mrf.mxu0
        %v2492 = vadd.f32 %v2403, %v2491
        %v2493 = vpop.f32.mrf.mxu0
        %v2494 = vadd.f32 %v2405, %v2493
        %2495 = vmatmul.bf16.gmra.mxu0 %v1031
        %v2496 = vpop.f32.mrf.mxu0
        %v2497 = vadd.f32 %v2408, %v2496
        %v2498 = vpop.f32.mrf.mxu0
        %v2499 = vadd.f32 %v2410, %v2498
        %2500 = vmatmul.bf16.gmra.mxu0 %v1074
        %v2501 = vpop.f32.mrf.mxu0
        %v2502 = vadd.f32 %v2413, %v2501
        %v2503 = vpop.f32.mrf.mxu0
        %v2504 = vadd.f32 %v2415, %v2503
        %2505 = vmatmul.bf16.gmra.mxu0 %v1117
        %v2506 = vpop.f32.mrf.mxu0
        %v2507 = vadd.f32 %v2418, %v2506
        %v2508 = vpop.f32.mrf.mxu0
        %v2509 = vadd.f32 %v2420, %v2508
        %2510 = vmatmul.bf16.gmra.mxu0 %v1160
        %v2511 = vpop.f32.mrf.mxu0
        %v2512 = vadd.f32 %v2423, %v2511
        %v2513 = vpop.f32.mrf.mxu0
        %v2514 = vadd.f32 %v2425, %v2513
        %2515 = vmatmul.bf16.gmra.mxu0 %v1203
        %v2516 = vpop.f32.mrf.mxu0
        %v2517 = vadd.f32 %v2428, %v2516
        %v2518 = vpop.f32.mrf.mxu0
        %v2519 = vadd.f32 %v2430, %v2518
        %2520 = vmatmul.bf16.gmra.mxu0 %v1246
        %v2521 = vpop.f32.mrf.mxu0
        %v2522 = vadd.f32 %v2433, %v2521
        %v2523 = vpop.f32.mrf.mxu0
        %v2524 = vadd.f32 %v2435, %v2523
        %2525 = vmatmul.bf16.gmra.mxu0 %v1289
        %v2526 = vpop.f32.mrf.mxu0
        %v2527 = vadd.f32 %v2438, %v2526
        %v2528 = vpop.f32.mrf.mxu0
        %v2529 = vadd.f32 %v2440, %v2528
        %2530 = vmatmul.bf16.gmra.mxu0 %v1332
        %v2531 = vpop.f32.mrf.mxu0
        %v2532 = vadd.f32 %v2443, %v2531
        %v2533 = vpop.f32.mrf.mxu0
        %v2534 = vadd.f32 %v2445, %v2533
        %2535 = vmatmul.bf16.gmra.mxu0 %v1375
        %v2536 = vpop.f32.mrf.mxu0
        %v2537 = vadd.f32 %v2448, %v2536
        %v2538 = vpop.f32.mrf.mxu0
        %v2539 = vadd.f32 %v2450, %v2538
        %2540 = vmatmul.bf16.gmra.mxu0 %v1418
        %v2541 = vpop.f32.mrf.mxu0
        %v2542 = vadd.f32 %v2453, %v2541
        %v2543 = vpop.f32.mrf.mxu0
        %v2544 = vadd.f32 %v2455, %v2543
        %2545 = vmatmul.bf16.gmra.mxu0 %v1461
        %v2546 = vpop.f32.mrf.mxu0
        %v2547 = vadd.f32 %v2458, %v2546
        %v2548 = vpop.f32.mrf.mxu0
        %v2549 = vadd.f32 %v2460, %v2548
        %2550 = vmatmul.bf16.gmra.mxu0 %v1504
        %v2551 = vpop.f32.mrf.mxu0
        %v2552 = vadd.f32 %v2463, %v2551
        %v2553 = vpop.f32.mrf.mxu0
        %v2554 = vadd.f32 %v2465, %v2553
        %2555 = vmatmul.bf16.gmra.mxu0 %v1547
        %v2556 = vpop.f32.mrf.mxu0
        %v2557 = vadd.f32 %v2468, %v2556
        %v2558 = vpop.f32.mrf.mxu0
        %v2559 = vadd.f32 %v2470, %v2558
        %2560 = vdwg.mxu0
        %v2562 = vshrl.u32 %v586, 16
        %v2564 = vrot.slane %v2562, 3
        %v2565 = vshll.u32 %v586, 16
        %v2567 = vrot.slane %v2565, 4
        %v2568 = vor.u32 %v2564, %v2567
        %v2570 = vshrl.u32 %v587, 16
        %v2572 = vrot.slane %v2570, 3
        %v2573 = vshll.u32 %v587, 16
        %v2575 = vrot.slane %v2573, 4
        %v2576 = vor.u32 %v2572, %v2575
        %v2577 = vsel %vm859, %v2568, %v2576
        %v2579 = vshrl.u32 %v749, 16
        %v2581 = vrot.slane %v2579, 3
        %v2582 = vshll.u32 %v749, 16
        %v2584 = vrot.slane %v2582, 4
        %v2585 = vor.u32 %v2581, %v2584
        %v2586 = vsel %vm859, %v2585, %v2585
        %v2588 = vshrl.u32 %v856, 16
        %v2590 = vrot.slane %v2588, 3
        %v2591 = vshll.u32 %v856, 16
        %v2593 = vrot.slane %v2591, 4
        %v2594 = vor.u32 %v2590, %v2593
        %v2596 = vshrl.u32 %v858, 16
        %v2598 = vrot.slane %v2596, 3
        %v2599 = vshll.u32 %v858, 16
        %v2601 = vrot.slane %v2599, 4
        %v2602 = vor.u32 %v2598, %v2601
        %v2603 = vsel %vm859, %v2594, %v2602
        %s2607 = scalar_lea.vmem [#allocation5], 384
        %v2608 = vld [vmem:[%s2607] sm:$0xf]
        %v2609 = vld [vmem:[%s2607 + $0x4] sm:$0xf]
        %v2610 = vld [vmem:[%s2607 + $0x8] sm:$0xf]
        %v2611 = vld [vmem:[%s2607 + $0xc] sm:$0xf]
        %v2612 = vld [vmem:[%s2607 + $0x10] sm:$0xf]
        %v2613 = vld [vmem:[%s2607 + $0x14] sm:$0xf]
        %v2614 = vld [vmem:[%s2607 + $0x18] sm:$0xf]
        %v2615 = vld [vmem:[%s2607 + $0x1c] sm:$0xf]
        %v2616 = vld [vmem:[%s2607 + $0x20] sm:$0xf]
        %v2617 = vld [vmem:[%s2607 + $0x24] sm:$0xf]
        %v2618 = vld [vmem:[%s2607 + $0x28] sm:$0xf]
        %v2619 = vld [vmem:[%s2607 + $0x2c] sm:$0xf]
        %v2620 = vld [vmem:[%s2607 + $0x30] sm:$0xf]
        %v2621 = vld [vmem:[%s2607 + $0x34] sm:$0xf]
        %v2622 = vld [vmem:[%s2607 + $0x38] sm:$0xf]
        %v2623 = vld [vmem:[%s2607 + $0x3c] sm:$0xf]
        %v2624 = vld [vmem:[%s2607 + $0x40] sm:$0xf]
        %v2625 = vld [vmem:[%s2607 + $0x44] sm:$0xf]
        %v2626 = vld [vmem:[%s2607 + $0x48] sm:$0xf]
        %v2627 = vld [vmem:[%s2607 + $0x4c] sm:$0xf]
        %v2628 = vld [vmem:[%s2607 + $0x50] sm:$0xf]
        %v2629 = vld [vmem:[%s2607 + $0x54] sm:$0xf]
        %v2630 = vld [vmem:[%s2607 + $0x58] sm:$0xf]
        %v2631 = vld [vmem:[%s2607 + $0x5c] sm:$0xf]
        %v2632 = vld [vmem:[%s2607 + $0x60] sm:$0xf]
        %v2633 = vld [vmem:[%s2607 + $0x64] sm:$0xf]
        %v2634 = vld [vmem:[%s2607 + $0x68] sm:$0xf]
        %v2635 = vld [vmem:[%s2607 + $0x6c] sm:$0xf]
        %v2636 = vld [vmem:[%s2607 + $0x70] sm:$0xf]
        %v2637 = vld [vmem:[%s2607 + $0x74] sm:$0xf]
        %v2638 = vld [vmem:[%s2607 + $0x78] sm:$0xf]
        %v2639 = vld [vmem:[%s2607 + $0x7c] sm:$0xf]
        %v2640 = vld [vmem:[%s2607 + $0x80] sm:$0xf]
        %v2641 = vld [vmem:[%s2607 + $0x84] sm:$0xf]
        %v2642 = vld [vmem:[%s2607 + $0x88] sm:$0xf]
        %v2643 = vld [vmem:[%s2607 + $0x8c] sm:$0xf]
        %v2644 = vld [vmem:[%s2607 + $0x90] sm:$0xf]
        %v2645 = vld [vmem:[%s2607 + $0x94] sm:$0xf]
        %v2646 = vld [vmem:[%s2607 + $0x98] sm:$0xf]
        %v2647 = vld [vmem:[%s2607 + $0x9c] sm:$0xf]
        %v2648 = vld [vmem:[%s2607 + $0xa0] sm:$0xf]
        %v2649 = vld [vmem:[%s2607 + $0xa4] sm:$0xf]
        %v2650 = vld [vmem:[%s2607 + $0xa8] sm:$0xf]
        %v2651 = vld [vmem:[%s2607 + $0xac] sm:$0xf]
        %v2652 = vld [vmem:[%s2607 + $0xb0] sm:$0xf]
        %v2653 = vld [vmem:[%s2607 + $0xb4] sm:$0xf]
        %v2654 = vld [vmem:[%s2607 + $0xb8] sm:$0xf]
        %v2655 = vld [vmem:[%s2607 + $0xbc] sm:$0xf]
        %v2704 = vunpack.c.l.b16 %v2608
        %v2705 = vunpack.c.l.b16 %v2609
        %v2706 = vunpack.c.l.b16 %v2610
        %v2707 = vunpack.c.l.b16 %v2611
        %v2708 = vunpack.c.l.b16 %v2612
        %v2709 = vunpack.c.l.b16 %v2613
        %v2710 = vunpack.c.l.b16 %v2614
        %v2711 = vunpack.c.l.b16 %v2615
        %v2712 = vunpack.c.l.b16 %v2616
        %v2713 = vunpack.c.l.b16 %v2617
        %v2714 = vunpack.c.l.b16 %v2618
        %v2715 = vunpack.c.l.b16 %v2619
        %v2716 = vunpack.c.l.b16 %v2620
        %v2717 = vunpack.c.l.b16 %v2621
        %v2718 = vunpack.c.l.b16 %v2622
        %v2719 = vunpack.c.l.b16 %v2623
        %v2720 = vunpack.c.l.b16 %v2624
        %v2721 = vunpack.c.l.b16 %v2625
        %v2722 = vunpack.c.l.b16 %v2626
        %v2723 = vunpack.c.l.b16 %v2627
        %v2724 = vunpack.c.l.b16 %v2628
        %v2725 = vunpack.c.l.b16 %v2629
        %v2726 = vunpack.c.l.b16 %v2630
        %v2727 = vunpack.c.l.b16 %v2631
        %v2728 = vunpack.c.l.b16 %v2632
        %v2729 = vunpack.c.l.b16 %v2633
        %v2730 = vunpack.c.l.b16 %v2634
        %v2731 = vunpack.c.l.b16 %v2635
        %v2732 = vunpack.c.l.b16 %v2636
        %v2733 = vunpack.c.l.b16 %v2637
        %v2734 = vunpack.c.l.b16 %v2638
        %v2735 = vunpack.c.l.b16 %v2639
        %v2736 = vunpack.c.l.b16 %v2640
        %v2737 = vunpack.c.l.b16 %v2641
        %v2738 = vunpack.c.l.b16 %v2642
        %v2739 = vunpack.c.l.b16 %v2643
        %v2740 = vunpack.c.l.b16 %v2644
        %v2741 = vunpack.c.l.b16 %v2645
        %v2742 = vunpack.c.l.b16 %v2646
        %v2743 = vunpack.c.l.b16 %v2647
        %v2744 = vunpack.c.l.b16 %v2648
        %v2745 = vunpack.c.l.b16 %v2649
        %v2746 = vunpack.c.l.b16 %v2650
        %v2747 = vunpack.c.l.b16 %v2651
        %v2748 = vunpack.c.l.b16 %v2652
        %v2749 = vunpack.c.l.b16 %v2653
        %v2750 = vunpack.c.l.b16 %v2654
        %v2751 = vunpack.c.l.b16 %v2655
        %v2752 = vpack.c.b16 %v2705, %v2704
        %v2753 = vpack.c.b16 %v2707, %v2706
        %v2754 = vpack.c.b16 %v2709, %v2708
        %v2755 = vpack.c.b16 %v2711, %v2710
        %v2756 = vpack.c.b16 %v2713, %v2712
        %v2757 = vpack.c.b16 %v2715, %v2714
        %v2758 = vpack.c.b16 %v2717, %v2716
        %v2759 = vpack.c.b16 %v2719, %v2718
        %v2760 = vpack.c.b16 %v2721, %v2720
        %v2761 = vpack.c.b16 %v2723, %v2722
        %v2762 = vpack.c.b16 %v2725, %v2724
        %v2763 = vpack.c.b16 %v2727, %v2726
        %v2764 = vpack.c.b16 %v2729, %v2728
        %v2765 = vpack.c.b16 %v2731, %v2730
        %v2766 = vpack.c.b16 %v2733, %v2732
        %v2767 = vpack.c.b16 %v2735, %v2734
        %v2768 = vpack.c.b16 %v2737, %v2736
        %v2769 = vpack.c.b16 %v2739, %v2738
        %v2770 = vpack.c.b16 %v2741, %v2740
        %v2771 = vpack.c.b16 %v2743, %v2742
        %v2772 = vpack.c.b16 %v2745, %v2744
        %v2773 = vpack.c.b16 %v2747, %v2746
        %v2774 = vpack.c.b16 %v2749, %v2748
        %v2775 = vpack.c.b16 %v2751, %v2750
        %2800 = vmatpush.bf16.msra.mxu0 %v2759
        %2801 = vmatpush.bf16.msra.mxu0 %v2758
        %2802 = vmatpush.bf16.msra.mxu0 %v2757
        %2803 = vmatpush.bf16.msra.mxu0 %v2756
        %2804 = vmatpush.bf16.msra.mxu0 %v2755
        %2805 = vmatpush.bf16.msra.mxu0 %v2754
        %2806 = vmatpush.bf16.msra.mxu0 %v2753
        %2807 = vmatpush.bf16.msra.mxu0 %v2752
        %2808 = vmatmul.bf16.gmra.mxu0 %v962
        %v2809 = vpop.f32.mrf.mxu0
        %v2810 = vadd.f32 0.0, %v2809
        %v2811 = vpop.f32.mrf.mxu0
        %v2812 = vadd.f32 0.0, %v2811
        %2813 = vmatmul.bf16.gmra.mxu0 %v1005
        %v2814 = vpop.f32.mrf.mxu0
        %v2815 = vadd.f32 0.0, %v2814
        %v2816 = vpop.f32.mrf.mxu0
        %v2817 = vadd.f32 0.0, %v2816
        %2818 = vmatmul.bf16.gmra.mxu0 %v1048
        %v2819 = vpop.f32.mrf.mxu0
        %v2820 = vadd.f32 0.0, %v2819
        %v2821 = vpop.f32.mrf.mxu0
        %v2822 = vadd.f32 0.0, %v2821
        %2823 = vmatmul.bf16.gmra.mxu0 %v1091
        %v2824 = vpop.f32.mrf.mxu0
        %v2825 = vadd.f32 0.0, %v2824
        %v2826 = vpop.f32.mrf.mxu0
        %v2827 = vadd.f32 0.0, %v2826
        %2828 = vmatmul.bf16.gmra.mxu0 %v1134
        %v2829 = vpop.f32.mrf.mxu0
        %v2830 = vadd.f32 0.0, %v2829
        %v2831 = vpop.f32.mrf.mxu0
        %v2832 = vadd.f32 0.0, %v2831
        %2833 = vmatmul.bf16.gmra.mxu0 %v1177
        %v2834 = vpop.f32.mrf.mxu0
        %v2835 = vadd.f32 0.0, %v2834
        %v2836 = vpop.f32.mrf.mxu0
        %v2837 = vadd.f32 0.0, %v2836
        %2838 = vmatmul.bf16.gmra.mxu0 %v1220
        %v2839 = vpop.f32.mrf.mxu0
        %v2840 = vadd.f32 0.0, %v2839
        %v2841 = vpop.f32.mrf.mxu0
        %v2842 = vadd.f32 0.0, %v2841
        %2843 = vmatmul.bf16.gmra.mxu0 %v1263
        %v2844 = vpop.f32.mrf.mxu0
        %v2845 = vadd.f32 0.0, %v2844
        %v2846 = vpop.f32.mrf.mxu0
        %v2847 = vadd.f32 0.0, %v2846
        %2848 = vmatmul.bf16.gmra.mxu0 %v1306
        %v2849 = vpop.f32.mrf.mxu0
        %v2850 = vadd.f32 0.0, %v2849
        %v2851 = vpop.f32.mrf.mxu0
        %v2852 = vadd.f32 0.0, %v2851
        %2853 = vmatmul.bf16.gmra.mxu0 %v1349
        %v2854 = vpop.f32.mrf.mxu0
        %v2855 = vadd.f32 0.0, %v2854
        %v2856 = vpop.f32.mrf.mxu0
        %v2857 = vadd.f32 0.0, %v2856
        %2858 = vmatmul.bf16.gmra.mxu0 %v1392
        %v2859 = vpop.f32.mrf.mxu0
        %v2860 = vadd.f32 0.0, %v2859
        %v2861 = vpop.f32.mrf.mxu0
        %v2862 = vadd.f32 0.0, %v2861
        %2863 = vmatmul.bf16.gmra.mxu0 %v1435
        %v2864 = vpop.f32.mrf.mxu0
        %v2865 = vadd.f32 0.0, %v2864
        %v2866 = vpop.f32.mrf.mxu0
        %v2867 = vadd.f32 0.0, %v2866
        %2868 = vmatmul.bf16.gmra.mxu0 %v1478
        %v2869 = vpop.f32.mrf.mxu0
        %v2870 = vadd.f32 0.0, %v2869
        %v2871 = vpop.f32.mrf.mxu0
        %v2872 = vadd.f32 0.0, %v2871
        %2873 = vmatmul.bf16.gmra.mxu0 %v1521
        %v2874 = vpop.f32.mrf.mxu0
        %v2875 = vadd.f32 0.0, %v2874
        %v2876 = vpop.f32.mrf.mxu0
        %v2877 = vadd.f32 0.0, %v2876
        %2878 = vmatmul.bf16.gmra.mxu0 %v1660
        %v2879 = vpop.f32.mrf.mxu0
        %v2880 = vadd.f32 0.0, %v2879
        %v2881 = vpop.f32.mrf.mxu0
        %v2882 = vadd.f32 0.0, %v2881
        %2883 = vmatmul.bf16.gmra.mxu0 %v2577
        %v2884 = vpop.f32.mrf.mxu0
        %v2885 = vadd.f32 0.0, %v2884
        %v2886 = vpop.f32.mrf.mxu0
        %v2887 = vadd.f32 0.0, %v2886
        %2888 = vdwg.mxu0
        %2889 = vmatpush.bf16.msra.mxu0 %v2767
        %2890 = vmatpush.bf16.msra.mxu0 %v2766
        %2891 = vmatpush.bf16.msra.mxu0 %v2765
        %2892 = vmatpush.bf16.msra.mxu0 %v2764
        %2893 = vmatpush.bf16.msra.mxu0 %v2763
        %2894 = vmatpush.bf16.msra.mxu0 %v2762
        %2895 = vmatpush.bf16.msra.mxu0 %v2761
        %2896 = vmatpush.bf16.msra.mxu0 %v2760
        %2897 = vmatmul.bf16.gmra.mxu0 %v971
        %v2898 = vpop.f32.mrf.mxu0
        %v2899 = vadd.f32 %v2810, %v2898
        %v2900 = vpop.f32.mrf.mxu0
        %v2901 = vadd.f32 %v2812, %v2900
        %2902 = vmatmul.bf16.gmra.mxu0 %v1014
        %v2903 = vpop.f32.mrf.mxu0
        %v2904 = vadd.f32 %v2815, %v2903
        %v2905 = vpop.f32.mrf.mxu0
        %v2906 = vadd.f32 %v2817, %v2905
        %2907 = vmatmul.bf16.gmra.mxu0 %v1057
        %v2908 = vpop.f32.mrf.mxu0
        %v2909 = vadd.f32 %v2820, %v2908
        %v2910 = vpop.f32.mrf.mxu0
        %v2911 = vadd.f32 %v2822, %v2910
        %2912 = vmatmul.bf16.gmra.mxu0 %v1100
        %v2913 = vpop.f32.mrf.mxu0
        %v2914 = vadd.f32 %v2825, %v2913
        %v2915 = vpop.f32.mrf.mxu0
        %v2916 = vadd.f32 %v2827, %v2915
        %2917 = vmatmul.bf16.gmra.mxu0 %v1143
        %v2918 = vpop.f32.mrf.mxu0
        %v2919 = vadd.f32 %v2830, %v2918
        %v2920 = vpop.f32.mrf.mxu0
        %v2921 = vadd.f32 %v2832, %v2920
        %2922 = vmatmul.bf16.gmra.mxu0 %v1186
        %v2923 = vpop.f32.mrf.mxu0
        %v2924 = vadd.f32 %v2835, %v2923
        %v2925 = vpop.f32.mrf.mxu0
        %v2926 = vadd.f32 %v2837, %v2925
        %2927 = vmatmul.bf16.gmra.mxu0 %v1229
        %v2928 = vpop.f32.mrf.mxu0
        %v2929 = vadd.f32 %v2840, %v2928
        %v2930 = vpop.f32.mrf.mxu0
        %v2931 = vadd.f32 %v2842, %v2930
        %2932 = vmatmul.bf16.gmra.mxu0 %v1272
        %v2933 = vpop.f32.mrf.mxu0
        %v2934 = vadd.f32 %v2845, %v2933
        %v2935 = vpop.f32.mrf.mxu0
        %v2936 = vadd.f32 %v2847, %v2935
        %2937 = vmatmul.bf16.gmra.mxu0 %v1315
        %v2938 = vpop.f32.mrf.mxu0
        %v2939 = vadd.f32 %v2850, %v2938
        %v2940 = vpop.f32.mrf.mxu0
        %v2941 = vadd.f32 %v2852, %v2940
        %2942 = vmatmul.bf16.gmra.mxu0 %v1358
        %v2943 = vpop.f32.mrf.mxu0
        %v2944 = vadd.f32 %v2855, %v2943
        %v2945 = vpop.f32.mrf.mxu0
        %v2946 = vadd.f32 %v2857, %v2945
        %2947 = vmatmul.bf16.gmra.mxu0 %v1401
        %v2948 = vpop.f32.mrf.mxu0
        %v2949 = vadd.f32 %v2860, %v2948
        %v2950 = vpop.f32.mrf.mxu0
        %v2951 = vadd.f32 %v2862, %v2950
        %2952 = vmatmul.bf16.gmra.mxu0 %v1444
        %v2953 = vpop.f32.mrf.mxu0
        %v2954 = vadd.f32 %v2865, %v2953
        %v2955 = vpop.f32.mrf.mxu0
        %v2956 = vadd.f32 %v2867, %v2955
        %2957 = vmatmul.bf16.gmra.mxu0 %v1487
        %v2958 = vpop.f32.mrf.mxu0
        %v2959 = vadd.f32 %v2870, %v2958
        %v2960 = vpop.f32.mrf.mxu0
        %v2961 = vadd.f32 %v2872, %v2960
        %2962 = vmatmul.bf16.gmra.mxu0 %v1530
        %v2963 = vpop.f32.mrf.mxu0
        %v2964 = vadd.f32 %v2875, %v2963
        %v2965 = vpop.f32.mrf.mxu0
        %v2966 = vadd.f32 %v2877, %v2965
        %2967 = vmatmul.bf16.gmra.mxu0 %v1669
        %v2968 = vpop.f32.mrf.mxu0
        %v2969 = vadd.f32 %v2880, %v2968
        %v2970 = vpop.f32.mrf.mxu0
        %v2971 = vadd.f32 %v2882, %v2970
        %2972 = vmatmul.bf16.gmra.mxu0 %v2586
        %v2973 = vpop.f32.mrf.mxu0
        %v2974 = vadd.f32 %v2885, %v2973
        %v2975 = vpop.f32.mrf.mxu0
        %v2976 = vadd.f32 %v2887, %v2975
        %2977 = vdwg.mxu0
        %2978 = vmatpush.bf16.msra.mxu0 %v2775
        %2979 = vmatpush.bf16.msra.mxu0 %v2774
        %2980 = vmatpush.bf16.msra.mxu0 %v2773
        %2981 = vmatpush.bf16.msra.mxu0 %v2772
        %2982 = vmatpush.bf16.msra.mxu0 %v2771
        %2983 = vmatpush.bf16.msra.mxu0 %v2770
        %2984 = vmatpush.bf16.msra.mxu0 %v2769
        %2985 = vmatpush.bf16.msra.mxu0 %v2768
        %2986 = vmatmul.bf16.gmra.mxu0 %v988
        %v2987 = vpop.f32.mrf.mxu0
        %v2988 = vadd.f32 %v2899, %v2987
        %v2989 = vpop.f32.mrf.mxu0
        %v2990 = vadd.f32 %v2901, %v2989
        %2991 = vmatmul.bf16.gmra.mxu0 %v1031
        %v2992 = vpop.f32.mrf.mxu0
        %v2993 = vadd.f32 %v2904, %v2992
        %v2994 = vpop.f32.mrf.mxu0
        %v2995 = vadd.f32 %v2906, %v2994
        %2996 = vmatmul.bf16.gmra.mxu0 %v1074
        %v2997 = vpop.f32.mrf.mxu0
        %v2998 = vadd.f32 %v2909, %v2997
        %v2999 = vpop.f32.mrf.mxu0
        %v3000 = vadd.f32 %v2911, %v2999
        %3001 = vmatmul.bf16.gmra.mxu0 %v1117
        %v3002 = vpop.f32.mrf.mxu0
        %v3003 = vadd.f32 %v2914, %v3002
        %v3004 = vpop.f32.mrf.mxu0
        %v3005 = vadd.f32 %v2916, %v3004
        %3006 = vmatmul.bf16.gmra.mxu0 %v1160
        %v3007 = vpop.f32.mrf.mxu0
        %v3008 = vadd.f32 %v2919, %v3007
        %v3009 = vpop.f32.mrf.mxu0
        %v3010 = vadd.f32 %v2921, %v3009
        %3011 = vmatmul.bf16.gmra.mxu0 %v1203
        %v3012 = vpop.f32.mrf.mxu0
        %v3013 = vadd.f32 %v2924, %v3012
        %v3014 = vpop.f32.mrf.mxu0
        %v3015 = vadd.f32 %v2926, %v3014
        %3016 = vmatmul.bf16.gmra.mxu0 %v1246
        %v3017 = vpop.f32.mrf.mxu0
        %v3018 = vadd.f32 %v2929, %v3017
        %v3019 = vpop.f32.mrf.mxu0
        %v3020 = vadd.f32 %v2931, %v3019
        %3021 = vmatmul.bf16.gmra.mxu0 %v1289
        %v3022 = vpop.f32.mrf.mxu0
        %v3023 = vadd.f32 %v2934, %v3022
        %v3024 = vpop.f32.mrf.mxu0
        %v3025 = vadd.f32 %v2936, %v3024
        %3026 = vmatmul.bf16.gmra.mxu0 %v1332
        %v3027 = vpop.f32.mrf.mxu0
        %v3028 = vadd.f32 %v2939, %v3027
        %v3029 = vpop.f32.mrf.mxu0
        %v3030 = vadd.f32 %v2941, %v3029
        %3031 = vmatmul.bf16.gmra.mxu0 %v1375
        %v3032 = vpop.f32.mrf.mxu0
        %v3033 = vadd.f32 %v2944, %v3032
        %v3034 = vpop.f32.mrf.mxu0
        %v3035 = vadd.f32 %v2946, %v3034
        %3036 = vmatmul.bf16.gmra.mxu0 %v1418
        %v3037 = vpop.f32.mrf.mxu0
        %v3038 = vadd.f32 %v2949, %v3037
        %v3039 = vpop.f32.mrf.mxu0
        %v3040 = vadd.f32 %v2951, %v3039
        %3041 = vmatmul.bf16.gmra.mxu0 %v1461
        %v3042 = vpop.f32.mrf.mxu0
        %v3043 = vadd.f32 %v2954, %v3042
        %v3044 = vpop.f32.mrf.mxu0
        %v3045 = vadd.f32 %v2956, %v3044
        %3046 = vmatmul.bf16.gmra.mxu0 %v1504
        %v3047 = vpop.f32.mrf.mxu0
        %v3048 = vadd.f32 %v2959, %v3047
        %v3049 = vpop.f32.mrf.mxu0
        %v3050 = vadd.f32 %v2961, %v3049
        %3051 = vmatmul.bf16.gmra.mxu0 %v1547
        %v3052 = vpop.f32.mrf.mxu0
        %v3053 = vadd.f32 %v2964, %v3052
        %v3054 = vpop.f32.mrf.mxu0
        %v3055 = vadd.f32 %v2966, %v3054
        %3056 = vmatmul.bf16.gmra.mxu0 %v1686
        %v3057 = vpop.f32.mrf.mxu0
        %v3058 = vadd.f32 %v2969, %v3057
        %v3059 = vpop.f32.mrf.mxu0
        %v3060 = vadd.f32 %v2971, %v3059
        %3061 = vmatmul.bf16.gmra.mxu0 %v2603
        %v3062 = vpop.f32.mrf.mxu0
        %v3063 = vadd.f32 %v2974, %v3062
        %v3064 = vpop.f32.mrf.mxu0
        %v3065 = vadd.f32 %v2976, %v3064
        %3066 = vdwg.mxu0
        %v3067 = vadd.f32 %v2482, %v2988
        %v3068 = vadd.f32 %v2484, %v2990
        %v3069 = vadd.f32 %v2487, %v2993
        %v3070 = vadd.f32 %v2489, %v2995
        %v3071 = vadd.f32 %v2492, %v2998
        %v3072 = vadd.f32 %v2494, %v3000
        %v3073 = vadd.f32 %v2497, %v3003
        %v3074 = vadd.f32 %v2499, %v3005
        %v3075 = vadd.f32 %v2502, %v3008
        %v3076 = vadd.f32 %v2504, %v3010
        %v3077 = vadd.f32 %v2507, %v3013
        %v3078 = vadd.f32 %v2509, %v3015
        %v3079 = vadd.f32 %v2512, %v3018
        %v3080 = vadd.f32 %v2514, %v3020
        %v3081 = vadd.f32 %v2517, %v3023
        %v3082 = vadd.f32 %v2519, %v3025
        %v3083 = vadd.f32 %v2522, %v3028
        %v3084 = vadd.f32 %v2524, %v3030
        %v3085 = vadd.f32 %v2527, %v3033
        %v3086 = vadd.f32 %v2529, %v3035
        %v3087 = vadd.f32 %v2532, %v3038
        %v3088 = vadd.f32 %v2534, %v3040
        %v3089 = vadd.f32 %v2537, %v3043
        %v3090 = vadd.f32 %v2539, %v3045
        %v3091 = vadd.f32 %v2542, %v3048
        %v3092 = vadd.f32 %v2544, %v3050
        %v3093 = vadd.f32 %v2547, %v3053
        %v3094 = vadd.f32 %v2549, %v3055
        %v3095 = vadd.f32 %v2552, %v3058
        %v3096 = vadd.f32 %v2554, %v3060
        %v3097 = vadd.f32 %v2557, %v3063
        %v3098 = vadd.f32 %v2559, %v3065
        %v3099 = vld [vmem:[#allocation7] sm:$0x1]
        %v3101 = vperm.slane %v3099, 0
        %v3103 = vadd.f32 %v3067, %v3101
        %v3104 = vadd.f32 %v3068, %v3101
        %v3105 = vadd.f32 %v3069, %v3101
        %v3106 = vadd.f32 %v3070, %v3101
        %v3107 = vadd.f32 %v3071, %v3101
        %v3108 = vadd.f32 %v3072, %v3101
        %v3109 = vadd.f32 %v3073, %v3101
        %v3110 = vadd.f32 %v3074, %v3101
        %v3111 = vadd.f32 %v3075, %v3101
        %v3112 = vadd.f32 %v3076, %v3101
        %v3113 = vadd.f32 %v3077, %v3101
        %v3114 = vadd.f32 %v3078, %v3101
        %v3115 = vadd.f32 %v3079, %v3101
        %v3116 = vadd.f32 %v3080, %v3101
        %v3117 = vadd.f32 %v3081, %v3101
        %v3118 = vadd.f32 %v3082, %v3101
        %v3119 = vadd.f32 %v3083, %v3101
        %v3120 = vadd.f32 %v3084, %v3101
        %v3121 = vadd.f32 %v3085, %v3101
        %v3122 = vadd.f32 %v3086, %v3101
        %v3123 = vadd.f32 %v3087, %v3101
        %v3124 = vadd.f32 %v3088, %v3101
        %v3125 = vadd.f32 %v3089, %v3101
        %v3126 = vadd.f32 %v3090, %v3101
        %v3127 = vadd.f32 %v3091, %v3101
        %v3128 = vadd.f32 %v3092, %v3101
        %v3129 = vadd.f32 %v3093, %v3101
        %v3130 = vadd.f32 %v3094, %v3101
        %v3131 = vadd.f32 %v3095, %v3101
        %v3132 = vadd.f32 %v3096, %v3101
        %v3133 = vadd.f32 %v3097, %v3101
        %v3134 = vadd.f32 %v3098, %v3101
        %v3135 = vpack.c.bf16 %v3103, %v3103
        %v3136 = vpack.c.bf16 %v3104, %v3104
        %v3137 = vpack.c.bf16 %v3105, %v3105
        %v3138 = vpack.c.bf16 %v3106, %v3106
        %v3139 = vpack.c.bf16 %v3107, %v3107
        %v3140 = vpack.c.bf16 %v3108, %v3108
        %v3141 = vpack.c.bf16 %v3109, %v3109
        %v3142 = vpack.c.bf16 %v3110, %v3110
        %v3143 = vpack.c.bf16 %v3111, %v3111
        %v3144 = vpack.c.bf16 %v3112, %v3112
        %v3145 = vpack.c.bf16 %v3113, %v3113
        %v3146 = vpack.c.bf16 %v3114, %v3114
        %v3147 = vpack.c.bf16 %v3115, %v3115
        %v3148 = vpack.c.bf16 %v3116, %v3116
        %v3149 = vpack.c.bf16 %v3117, %v3117
        %v3150 = vpack.c.bf16 %v3118, %v3118
        %v3151 = vpack.c.bf16 %v3119, %v3119
        %v3152 = vpack.c.bf16 %v3120, %v3120
        %v3153 = vpack.c.bf16 %v3121, %v3121
        %v3154 = vpack.c.bf16 %v3122, %v3122
        %v3155 = vpack.c.bf16 %v3123, %v3123
        %v3156 = vpack.c.bf16 %v3124, %v3124
        %v3157 = vpack.c.bf16 %v3125, %v3125
        %v3158 = vpack.c.bf16 %v3126, %v3126
        %v3159 = vpack.c.bf16 %v3127, %v3127
        %v3160 = vpack.c.bf16 %v3128, %v3128
        %v3161 = vpack.c.bf16 %v3129, %v3129
        %v3162 = vpack.c.bf16 %v3130, %v3130
        %v3163 = vpack.c.bf16 %v3131, %v3131
        %v3164 = vpack.c.bf16 %v3132, %v3132
        %v3165 = vpack.c.bf16 %v3133, %v3133
        %v3166 = vpack.c.bf16 %v3134, %v3134
        %s3167 = scalar_lea.vmem [#allocation3], 32
        %3168 = vst [vmem:[%s3167 + $0x4] sm:$0xf] %v3135
        %3169 = vst [vmem:[%s3167 + $0x8] sm:$0xf] %v3136
        %3170 = vst [vmem:[%s3167 + $0x14] sm:$0xf] %v3137
        %3171 = vst [vmem:[%s3167 + $0x18] sm:$0xf] %v3138
        %3172 = vst [vmem:[%s3167 + $0x24] sm:$0xf] %v3139
        %3173 = vst [vmem:[%s3167 + $0x28] sm:$0xf] %v3140
        %3174 = vst [vmem:[%s3167 + $0x34] sm:$0xf] %v3141
        %3175 = vst [vmem:[%s3167 + $0x38] sm:$0xf] %v3142
        %3176 = vst [vmem:[%s3167 + $0x44] sm:$0xf] %v3143
        %3177 = vst [vmem:[%s3167 + $0x48] sm:$0xf] %v3144
        %3178 = vst [vmem:[%s3167 + $0x54] sm:$0xf] %v3145
        %3179 = vst [vmem:[%s3167 + $0x58] sm:$0xf] %v3146
        %3180 = vst [vmem:[%s3167 + $0x64] sm:$0xf] %v3147
        %3181 = vst [vmem:[%s3167 + $0x68] sm:$0xf] %v3148
        %3182 = vst [vmem:[%s3167 + $0x74] sm:$0xf] %v3149
        %3183 = vst [vmem:[%s3167 + $0x78] sm:$0xf] %v3150
        %3184 = vst [vmem:[%s3167 + $0x84] sm:$0xf] %v3151
        %3185 = vst [vmem:[%s3167 + $0x88] sm:$0xf] %v3152
        %3186 = vst [vmem:[%s3167 + $0x94] sm:$0xf] %v3153
        %3187 = vst [vmem:[%s3167 + $0x98] sm:$0xf] %v3154
        %3188 = vst [vmem:[%s3167 + $0xa4] sm:$0xf] %v3155
        %3189 = vst [vmem:[%s3167 + $0xa8] sm:$0xf] %v3156
        %3190 = vst [vmem:[%s3167 + $0xb4] sm:$0xf] %v3157
        %3191 = vst [vmem:[%s3167 + $0xb8] sm:$0xf] %v3158
        %3192 = vst [vmem:[%s3167 + $0xc4] sm:$0xf] %v3159
        %3193 = vst [vmem:[%s3167 + $0xc8] sm:$0xf] %v3160
        %3194 = vst [vmem:[%s3167 + $0xd4] sm:$0xf] %v3161
        %3195 = vst [vmem:[%s3167 + $0xd8] sm:$0xf] %v3162
        %3196 = vst [vmem:[%s3167 + $0xe4] sm:$0xf] %v3163
        %3197 = vst [vmem:[%s3167 + $0xe8] sm:$0xf] %v3164
        %3198 = vst [vmem:[%s3167 + $0xf4] sm:$0xf] %v3165
        %3199 = vst [vmem:[%s3167 + $0xf8] sm:$0xf] %v3166
        %p3200 = scmp.eq.s32.totalorder %s23, 0
        // Predicated region
        $region49: #{tpu_custom_call.1} parent=35 // pred_check
          %p3201 = pneg %p3200
        $region50: #{tpu_custom_call.1} parent=35 // pred_check_branch
          %3203 = sbr.rel (%p3201) target = $region52
        $region51: #{tpu_custom_call.1} parent=35 // pred_region
          %s3204 = scalar_lea.vmem [#allocation3], 16
          %3205 = vst [vmem:[%s3204 + $0x4] sm:$0xf] 0
          %3206 = vst [vmem:[%s3204 + $0x8] sm:$0xf] 0
          %3207 = vst [vmem:[%s3204 + $0x14] sm:$0xf] 0
          %3208 = vst [vmem:[%s3204 + $0x18] sm:$0xf] 0
          %3209 = vst [vmem:[%s3204 + $0x24] sm:$0xf] 0
          %3210 = vst [vmem:[%s3204 + $0x28] sm:$0xf] 0
          %3211 = vst [vmem:[%s3204 + $0x34] sm:$0xf] 0
          %3212 = vst [vmem:[%s3204 + $0x38] sm:$0xf] 0
          %3213 = vst [vmem:[%s3204 + $0x44] sm:$0xf] 0
          %3214 = vst [vmem:[%s3204 + $0x48] sm:$0xf] 0
        $region52: #{tpu_custom_call.1} parent=35 // pred_fallthru
          _
        %p3215 = scmp.eq.s32.totalorder %s23, 1
        // Predicated region
        $region53: #{tpu_custom_call.1} parent=35 // pred_check
          %p3216 = pneg %p3215
        $region54: #{tpu_custom_call.1} parent=35 // pred_check_branch
          %3218 = sbr.rel (%p3216) target = $region56
        $region55: #{tpu_custom_call.1} parent=35 // pred_region
          %s3219 = scalar_lea.vmem [#allocation3], 224
          %3220 = vst [vmem:[%s3219 + $0x4] sm:$0xf] 0
          %3221 = vst [vmem:[%s3219 + $0x8] sm:$0xf] 0
          %3222 = vst [vmem:[%s3219 + $0x14] sm:$0xf] 0
          %3223 = vst [vmem:[%s3219 + $0x18] sm:$0xf] 0
          %3224 = vst [vmem:[%s3219 + $0x24] sm:$0xf] 0
          %3225 = vst [vmem:[%s3219 + $0x28] sm:$0xf] 0
          %3226 = vst [vmem:[%s3219 + $0x34] sm:$0xf] 0
          %3227 = vst [vmem:[%s3219 + $0x38] sm:$0xf] 0
          %3228 = vst [vmem:[%s3219 + $0x44] sm:$0xf] 0
          %3229 = vst [vmem:[%s3219 + $0x48] sm:$0xf] 0
        $region56: #{tpu_custom_call.1} parent=35 // pred_fallthru
          _
        %v3230 = vld [vmem:[%s3167] sm:$0xf]
        %v3231 = vld [vmem:[%s3167 + $0x4] sm:$0xf]
        %v3232 = vld [vmem:[%s3167 + $0x8] sm:$0xf]
        %v3233 = vld [vmem:[%s3167 + $0xc] sm:$0xf]
        %v3234 = vld [vmem:[%s3167 + $0x10] sm:$0xf]
        %v3235 = vld [vmem:[%s3167 + $0x14] sm:$0xf]
        %v3236 = vld [vmem:[%s3167 + $0x18] sm:$0xf]
        %v3237 = vld [vmem:[%s3167 + $0x1c] sm:$0xf]
        %v3238 = vld [vmem:[%s3167 + $0x20] sm:$0xf]
        %v3239 = vld [vmem:[%s3167 + $0x24] sm:$0xf]
        %v3240 = vld [vmem:[%s3167 + $0x28] sm:$0xf]
        %v3241 = vld [vmem:[%s3167 + $0x2c] sm:$0xf]
        %v3242 = vld [vmem:[%s3167 + $0x30] sm:$0xf]
        %v3243 = vld [vmem:[%s3167 + $0x34] sm:$0xf]
        %v3244 = vld [vmem:[%s3167 + $0x38] sm:$0xf]
        %v3245 = vld [vmem:[%s3167 + $0x3c] sm:$0xf]
        %v3246 = vld [vmem:[%s3167 + $0x40] sm:$0xf]
        %v3247 = vld [vmem:[%s3167 + $0x44] sm:$0xf]
        %v3248 = vld [vmem:[%s3167 + $0x48] sm:$0xf]
        %v3249 = vld [vmem:[%s3167 + $0x4c] sm:$0xf]
        %v3250 = vld [vmem:[%s3167 + $0x50] sm:$0xf]
        %v3251 = vld [vmem:[%s3167 + $0x54] sm:$0xf]
        %v3252 = vld [vmem:[%s3167 + $0x58] sm:$0xf]
        %v3253 = vld [vmem:[%s3167 + $0x5c] sm:$0xf]
        %v3254 = vld [vmem:[%s3167 + $0x60] sm:$0xf]
        %v3255 = vld [vmem:[%s3167 + $0x64] sm:$0xf]
        %v3256 = vld [vmem:[%s3167 + $0x68] sm:$0xf]
        %v3257 = vld [vmem:[%s3167 + $0x6c] sm:$0xf]
        %v3258 = vld [vmem:[%s3167 + $0x70] sm:$0xf]
        %v3259 = vld [vmem:[%s3167 + $0x74] sm:$0xf]
        %v3260 = vld [vmem:[%s3167 + $0x78] sm:$0xf]
        %v3261 = vld [vmem:[%s3167 + $0x7c] sm:$0xf]
        %v3262 = vld [vmem:[%s3167 + $0x80] sm:$0xf]
        %v3263 = vld [vmem:[%s3167 + $0x84] sm:$0xf]
        %v3264 = vld [vmem:[%s3167 + $0x88] sm:$0xf]
        %v3265 = vld [vmem:[%s3167 + $0x8c] sm:$0xf]
        %v3266 = vld [vmem:[%s3167 + $0x90] sm:$0xf]
        %v3267 = vld [vmem:[%s3167 + $0x94] sm:$0xf]
        %v3268 = vld [vmem:[%s3167 + $0x98] sm:$0xf]
        %v3269 = vld [vmem:[%s3167 + $0x9c] sm:$0xf]
        %v3270 = vld [vmem:[%s3167 + $0xa0] sm:$0xf]
        %v3271 = vld [vmem:[%s3167 + $0xa4] sm:$0xf]
        %v3272 = vld [vmem:[%s3167 + $0xa8] sm:$0xf]
        %v3273 = vld [vmem:[%s3167 + $0xac] sm:$0xf]
        %v3274 = vld [vmem:[%s3167 + $0xb0] sm:$0xf]
        %v3275 = vld [vmem:[%s3167 + $0xb4] sm:$0xf]
        %v3276 = vld [vmem:[%s3167 + $0xb8] sm:$0xf]
        %v3277 = vld [vmem:[%s3167 + $0xbc] sm:$0xf]
        %v3278 = vld [vmem:[%s3167 + $0xc0] sm:$0xf]
        %v3279 = vld [vmem:[%s3167 + $0xc4] sm:$0xf]
        %v3280 = vld [vmem:[%s3167 + $0xc8] sm:$0xf]
        %v3281 = vld [vmem:[%s3167 + $0xcc] sm:$0xf]
        %v3282 = vld [vmem:[%s3167 + $0xd0] sm:$0xf]
        %v3283 = vld [vmem:[%s3167 + $0xd4] sm:$0xf]
        %v3284 = vld [vmem:[%s3167 + $0xd8] sm:$0xf]
        %v3285 = vld [vmem:[%s3167 + $0xdc] sm:$0xf]
        %v3286 = vld [vmem:[%s3167 + $0xe0] sm:$0xf]
        %v3287 = vld [vmem:[%s3167 + $0xe4] sm:$0xf]
        %v3288 = vld [vmem:[%s3167 + $0xe8] sm:$0xf]
        %v3289 = vld [vmem:[%s3167 + $0xec] sm:$0xf]
        %v3290 = vld [vmem:[%s3167 + $0xf0] sm:$0xf]
        %v3291 = vld [vmem:[%s3167 + $0xf4] sm:$0xf]
        %v3292 = vld [vmem:[%s3167 + $0xf8] sm:$0xf]
        %v3293 = vld [vmem:[%s3167 + $0xfc] sm:$0xf]
        %v3342 = vunpack.c.l.b16 %v3230
        %v3343 = vunpack.c.l.b16 %v3231
        %v3344 = vunpack.c.l.b16 %v3232
        %v3345 = vunpack.c.l.b16 %v3234
        %v3346 = vunpack.c.l.b16 %v3235
        %v3347 = vunpack.c.l.b16 %v3236
        %v3348 = vunpack.c.l.b16 %v3238
        %v3349 = vunpack.c.l.b16 %v3239
        %v3350 = vunpack.c.l.b16 %v3240
        %v3351 = vunpack.c.l.b16 %v3242
        %v3352 = vunpack.c.l.b16 %v3243
        %v3353 = vunpack.c.l.b16 %v3244
        %v3354 = vunpack.c.l.b16 %v3246
        %v3355 = vunpack.c.l.b16 %v3247
        %v3356 = vunpack.c.l.b16 %v3248
        %v3357 = vunpack.c.l.b16 %v3250
        %v3358 = vunpack.c.l.b16 %v3251
        %v3359 = vunpack.c.l.b16 %v3252
        %v3360 = vunpack.c.l.b16 %v3254
        %v3361 = vunpack.c.l.b16 %v3255
        %v3362 = vunpack.c.l.b16 %v3256
        %v3363 = vunpack.c.l.b16 %v3258
        %v3364 = vunpack.c.l.b16 %v3259
        %v3365 = vunpack.c.l.b16 %v3260
        %v3366 = vunpack.c.l.b16 %v3262
        %v3367 = vunpack.c.l.b16 %v3263
        %v3368 = vunpack.c.l.b16 %v3264
        %v3369 = vunpack.c.l.b16 %v3266
        %v3370 = vunpack.c.l.b16 %v3267
        %v3371 = vunpack.c.l.b16 %v3268
        %v3372 = vunpack.c.l.b16 %v3270
        %v3373 = vunpack.c.l.b16 %v3271
        %v3374 = vunpack.c.l.b16 %v3272
        %v3375 = vunpack.c.l.b16 %v3274
        %v3376 = vunpack.c.l.b16 %v3275
        %v3377 = vunpack.c.l.b16 %v3276
        %v3378 = vunpack.c.l.b16 %v3278
        %v3379 = vunpack.c.l.b16 %v3279
        %v3380 = vunpack.c.l.b16 %v3280
        %v3381 = vunpack.c.l.b16 %v3282
        %v3382 = vunpack.c.l.b16 %v3283
        %v3383 = vunpack.c.l.b16 %v3284
        %v3384 = vunpack.c.l.b16 %v3286
        %v3385 = vunpack.c.l.b16 %v3287
        %v3386 = vunpack.c.l.b16 %v3288
        %v3387 = vunpack.c.l.b16 %v3290
        %v3388 = vunpack.c.l.b16 %v3291
        %v3389 = vunpack.c.l.b16 %v3292
        %v3390 = vpack.c.b16 %v3343, %v3342
        %v3391 = vpack.c.b16 %v3344, %v3344
        %v3392 = vpack.c.b16 %v3346, %v3345
        %v3393 = vpack.c.b16 %v3347, %v3347
        %v3394 = vpack.c.b16 %v3349, %v3348
        %v3395 = vpack.c.b16 %v3350, %v3350
        %v3396 = vpack.c.b16 %v3352, %v3351
        %v3397 = vpack.c.b16 %v3353, %v3353
        %v3398 = vpack.c.b16 %v3355, %v3354
        %v3399 = vpack.c.b16 %v3356, %v3356
        %v3400 = vpack.c.b16 %v3358, %v3357
        %v3401 = vpack.c.b16 %v3359, %v3359
        %v3402 = vpack.c.b16 %v3361, %v3360
        %v3403 = vpack.c.b16 %v3362, %v3362
        %v3404 = vpack.c.b16 %v3364, %v3363
        %v3405 = vpack.c.b16 %v3365, %v3365
        %v3406 = vpack.c.b16 %v3367, %v3366
        %v3407 = vpack.c.b16 %v3368, %v3368
        %v3408 = vpack.c.b16 %v3370, %v3369
        %v3409 = vpack.c.b16 %v3371, %v3371
        %v3410 = vpack.c.b16 %v3373, %v3372
        %v3411 = vpack.c.b16 %v3374, %v3374
        %v3412 = vpack.c.b16 %v3376, %v3375
        %v3413 = vpack.c.b16 %v3377, %v3377
        %v3414 = vpack.c.b16 %v3379, %v3378
        %v3415 = vpack.c.b16 %v3380, %v3380
        %v3416 = vpack.c.b16 %v3382, %v3381
        %v3417 = vpack.c.b16 %v3383, %v3383
        %v3418 = vpack.c.b16 %v3385, %v3384
        %v3419 = vpack.c.b16 %v3386, %v3386
        %v3420 = vpack.c.b16 %v3388, %v3387
        %v3421 = vpack.c.b16 %v3389, %v3389
        %v3422 = vpack.c.b16 %v3344, %v3343
        %v3423 = vpack.c.b16 %v3347, %v3346
        %v3424 = vpack.c.b16 %v3350, %v3349
        %v3425 = vpack.c.b16 %v3353, %v3352
        %v3426 = vpack.c.b16 %v3356, %v3355
        %v3427 = vpack.c.b16 %v3359, %v3358
        %v3428 = vpack.c.b16 %v3362, %v3361
        %v3429 = vpack.c.b16 %v3365, %v3364
        %v3430 = vpack.c.b16 %v3368, %v3367
        %v3431 = vpack.c.b16 %v3371, %v3370
        %v3432 = vpack.c.b16 %v3374, %v3373
        %v3433 = vpack.c.b16 %v3377, %v3376
        %v3434 = vpack.c.b16 %v3380, %v3379
        %v3435 = vpack.c.b16 %v3383, %v3382
        %v3436 = vpack.c.b16 %v3386, %v3385
        %v3437 = vpack.c.b16 %v3389, %v3388
        %v3439 = vshrl.u32 %v3422, 16
        %v3441 = vrot.slane %v3439, 4
        %v3442 = vshll.u32 %v3422, 16
        %v3444 = vrot.slane %v3442, 5
        %v3445 = vor.u32 %v3441, %v3444
        %v3447 = vshrl.u32 %v3423, 16
        %v3449 = vrot.slane %v3447, 4
        %v3450 = vshll.u32 %v3423, 16
        %v3452 = vrot.slane %v3450, 5
        %v3453 = vor.u32 %v3449, %v3452
        %v3455 = vshrl.u32 %v3424, 16
        %v3457 = vrot.slane %v3455, 4
        %v3458 = vshll.u32 %v3424, 16
        %v3460 = vrot.slane %v3458, 5
        %v3461 = vor.u32 %v3457, %v3460
        %v3463 = vshrl.u32 %v3425, 16
        %v3465 = vrot.slane %v3463, 4
        %v3466 = vshll.u32 %v3425, 16
        %v3468 = vrot.slane %v3466, 5
        %v3469 = vor.u32 %v3465, %v3468
        %v3471 = vshrl.u32 %v3426, 16
        %v3473 = vrot.slane %v3471, 4
        %v3474 = vshll.u32 %v3426, 16
        %v3476 = vrot.slane %v3474, 5
        %v3477 = vor.u32 %v3473, %v3476
        %v3479 = vshrl.u32 %v3427, 16
        %v3481 = vrot.slane %v3479, 4
        %v3482 = vshll.u32 %v3427, 16
        %v3484 = vrot.slane %v3482, 5
        %v3485 = vor.u32 %v3481, %v3484
        %v3487 = vshrl.u32 %v3428, 16
        %v3489 = vrot.slane %v3487, 4
        %v3490 = vshll.u32 %v3428, 16
        %v3492 = vrot.slane %v3490, 5
        %v3493 = vor.u32 %v3489, %v3492
        %v3495 = vshrl.u32 %v3429, 16
        %v3497 = vrot.slane %v3495, 4
        %v3498 = vshll.u32 %v3429, 16
        %v3500 = vrot.slane %v3498, 5
        %v3501 = vor.u32 %v3497, %v3500
        %v3503 = vshrl.u32 %v3430, 16
        %v3505 = vrot.slane %v3503, 4
        %v3506 = vshll.u32 %v3430, 16
        %v3508 = vrot.slane %v3506, 5
        %v3509 = vor.u32 %v3505, %v3508
        %v3511 = vshrl.u32 %v3431, 16
        %v3513 = vrot.slane %v3511, 4
        %v3514 = vshll.u32 %v3431, 16
        %v3516 = vrot.slane %v3514, 5
        %v3517 = vor.u32 %v3513, %v3516
        %v3519 = vshrl.u32 %v3432, 16
        %v3521 = vrot.slane %v3519, 4
        %v3522 = vshll.u32 %v3432, 16
        %v3524 = vrot.slane %v3522, 5
        %v3525 = vor.u32 %v3521, %v3524
        %v3527 = vshrl.u32 %v3433, 16
        %v3529 = vrot.slane %v3527, 4
        %v3530 = vshll.u32 %v3433, 16
        %v3532 = vrot.slane %v3530, 5
        %v3533 = vor.u32 %v3529, %v3532
        %v3535 = vshrl.u32 %v3434, 16
        %v3537 = vrot.slane %v3535, 4
        %v3538 = vshll.u32 %v3434, 16
        %v3540 = vrot.slane %v3538, 5
        %v3541 = vor.u32 %v3537, %v3540
        %v3543 = vshrl.u32 %v3435, 16
        %v3545 = vrot.slane %v3543, 4
        %v3546 = vshll.u32 %v3435, 16
        %v3548 = vrot.slane %v3546, 5
        %v3549 = vor.u32 %v3545, %v3548
        %v3551 = vshrl.u32 %v3436, 16
        %v3553 = vrot.slane %v3551, 4
        %v3554 = vshll.u32 %v3436, 16
        %v3556 = vrot.slane %v3554, 5
        %v3557 = vor.u32 %v3553, %v3556
        %v3559 = vshrl.u32 %v3437, 16
        %v3561 = vrot.slane %v3559, 4
        %v3562 = vshll.u32 %v3437, 16
        %v3564 = vrot.slane %v3562, 5
        %v3565 = vor.u32 %v3561, %v3564
        %v3582 = vunpack.c.l.b16 %v3233
        %v3583 = vunpack.c.l.b16 %v3237
        %v3584 = vunpack.c.l.b16 %v3241
        %v3585 = vunpack.c.l.b16 %v3245
        %v3586 = vunpack.c.l.b16 %v3249
        %v3587 = vunpack.c.l.b16 %v3253
        %v3588 = vunpack.c.l.b16 %v3257
        %v3589 = vunpack.c.l.b16 %v3261
        %v3590 = vunpack.c.l.b16 %v3265
        %v3591 = vunpack.c.l.b16 %v3269
        %v3592 = vunpack.c.l.b16 %v3273
        %v3593 = vunpack.c.l.b16 %v3277
        %v3594 = vunpack.c.l.b16 %v3281
        %v3595 = vunpack.c.l.b16 %v3285
        %v3596 = vunpack.c.l.b16 %v3289
        %v3597 = vunpack.c.l.b16 %v3293
        %v3598 = vpack.c.b16 %v3582, %v3582
        %v3599 = vpack.c.b16 %v3583, %v3583
        %v3600 = vpack.c.b16 %v3584, %v3584
        %v3601 = vpack.c.b16 %v3585, %v3585
        %v3602 = vpack.c.b16 %v3586, %v3586
        %v3603 = vpack.c.b16 %v3587, %v3587
        %v3604 = vpack.c.b16 %v3588, %v3588
        %v3605 = vpack.c.b16 %v3589, %v3589
        %v3606 = vpack.c.b16 %v3590, %v3590
        %v3607 = vpack.c.b16 %v3591, %v3591
        %v3608 = vpack.c.b16 %v3592, %v3592
        %v3609 = vpack.c.b16 %v3593, %v3593
        %v3610 = vpack.c.b16 %v3594, %v3594
        %v3611 = vpack.c.b16 %v3595, %v3595
        %v3612 = vpack.c.b16 %v3596, %v3596
        %v3613 = vpack.c.b16 %v3597, %v3597
        %v3614 = vrot.slane %v3422, 5
        %v3615 = vrot.slane %v3598, 5
        %v3616 = vsel %vm804, %v3614, %v3615
        %v3617 = vrot.slane %v3423, 5
        %v3618 = vrot.slane %v3599, 5
        %v3619 = vsel %vm804, %v3617, %v3618
        %v3620 = vrot.slane %v3424, 5
        %v3621 = vrot.slane %v3600, 5
        %v3622 = vsel %vm804, %v3620, %v3621
        %v3623 = vrot.slane %v3425, 5
        %v3624 = vrot.slane %v3601, 5
        %v3625 = vsel %vm804, %v3623, %v3624
        %v3626 = vrot.slane %v3426, 5
        %v3627 = vrot.slane %v3602, 5
        %v3628 = vsel %vm804, %v3626, %v3627
        %v3629 = vrot.slane %v3427, 5
        %v3630 = vrot.slane %v3603, 5
        %v3631 = vsel %vm804, %v3629, %v3630
        %v3632 = vrot.slane %v3428, 5
        %v3633 = vrot.slane %v3604, 5
        %v3634 = vsel %vm804, %v3632, %v3633
        %v3635 = vrot.slane %v3429, 5
        %v3636 = vrot.slane %v3605, 5
        %v3637 = vsel %vm804, %v3635, %v3636
        %v3638 = vrot.slane %v3430, 5
        %v3639 = vrot.slane %v3606, 5
        %v3640 = vsel %vm804, %v3638, %v3639
        %v3641 = vrot.slane %v3431, 5
        %v3642 = vrot.slane %v3607, 5
        %v3643 = vsel %vm804, %v3641, %v3642
        %v3644 = vrot.slane %v3432, 5
        %v3645 = vrot.slane %v3608, 5
        %v3646 = vsel %vm804, %v3644, %v3645
        %v3647 = vrot.slane %v3433, 5
        %v3648 = vrot.slane %v3609, 5
        %v3649 = vsel %vm804, %v3647, %v3648
        %v3650 = vrot.slane %v3434, 5
        %v3651 = vrot.slane %v3610, 5
        %v3652 = vsel %vm804, %v3650, %v3651
        %v3653 = vrot.slane %v3435, 5
        %v3654 = vrot.slane %v3611, 5
        %v3655 = vsel %vm804, %v3653, %v3654
        %v3656 = vrot.slane %v3436, 5
        %v3657 = vrot.slane %v3612, 5
        %v3658 = vsel %vm804, %v3656, %v3657
        %v3659 = vrot.slane %v3437, 5
        %v3660 = vrot.slane %v3613, 5
        %v3661 = vsel %vm804, %v3659, %v3660
        %v3663 = vshrl.u32 %v3390, 16
        %v3665 = vrot.slane %v3663, 3
        %v3666 = vshll.u32 %v3390, 16
        %v3668 = vrot.slane %v3666, 4
        %v3669 = vor.u32 %v3665, %v3668
        %v3671 = vshrl.u32 %v3391, 16
        %v3673 = vrot.slane %v3671, 3
        %v3674 = vshll.u32 %v3391, 16
        %v3676 = vrot.slane %v3674, 4
        %v3677 = vor.u32 %v3673, %v3676
        %v3678 = vsel %vm859, %v3669, %v3677
        %v3680 = vshrl.u32 %v3445, 16
        %v3682 = vrot.slane %v3680, 3
        %v3683 = vshll.u32 %v3445, 16
        %v3685 = vrot.slane %v3683, 4
        %v3686 = vor.u32 %v3682, %v3685
        %v3687 = vsel %vm859, %v3686, %v3686
        %v3689 = vshrl.u32 %v3614, 16
        %v3691 = vrot.slane %v3689, 3
        %v3692 = vshll.u32 %v3614, 16
        %v3694 = vrot.slane %v3692, 4
        %v3695 = vor.u32 %v3691, %v3694
        %v3697 = vshrl.u32 %v3616, 16
        %v3699 = vrot.slane %v3697, 3
        %v3700 = vshll.u32 %v3616, 16
        %v3702 = vrot.slane %v3700, 4
        %v3703 = vor.u32 %v3699, %v3702
        %v3704 = vsel %vm859, %v3695, %v3703
        %v3706 = vshrl.u32 %v3392, 16
        %v3708 = vrot.slane %v3706, 3
        %v3709 = vshll.u32 %v3392, 16
        %v3711 = vrot.slane %v3709, 4
        %v3712 = vor.u32 %v3708, %v3711
        %v3714 = vshrl.u32 %v3393, 16
        %v3716 = vrot.slane %v3714, 3
        %v3717 = vshll.u32 %v3393, 16
        %v3719 = vrot.slane %v3717, 4
        %v3720 = vor.u32 %v3716, %v3719
        %v3721 = vsel %vm859, %v3712, %v3720
        %v3723 = vshrl.u32 %v3453, 16
        %v3725 = vrot.slane %v3723, 3
        %v3726 = vshll.u32 %v3453, 16
        %v3728 = vrot.slane %v3726, 4
        %v3729 = vor.u32 %v3725, %v3728
        %v3730 = vsel %vm859, %v3729, %v3729
        %v3732 = vshrl.u32 %v3617, 16
        %v3734 = vrot.slane %v3732, 3
        %v3735 = vshll.u32 %v3617, 16
        %v3737 = vrot.slane %v3735, 4
        %v3738 = vor.u32 %v3734, %v3737
        %v3740 = vshrl.u32 %v3619, 16
        %v3742 = vrot.slane %v3740, 3
        %v3743 = vshll.u32 %v3619, 16
        %v3745 = vrot.slane %v3743, 4
        %v3746 = vor.u32 %v3742, %v3745
        %v3747 = vsel %vm859, %v3738, %v3746
        %v3749 = vshrl.u32 %v3394, 16
        %v3751 = vrot.slane %v3749, 3
        %v3752 = vshll.u32 %v3394, 16
        %v3754 = vrot.slane %v3752, 4
        %v3755 = vor.u32 %v3751, %v3754
        %v3757 = vshrl.u32 %v3395, 16
        %v3759 = vrot.slane %v3757, 3
        %v3760 = vshll.u32 %v3395, 16
        %v3762 = vrot.slane %v3760, 4
        %v3763 = vor.u32 %v3759, %v3762
        %v3764 = vsel %vm859, %v3755, %v3763
        %v3766 = vshrl.u32 %v3461, 16
        %v3768 = vrot.slane %v3766, 3
        %v3769 = vshll.u32 %v3461, 16
        %v3771 = vrot.slane %v3769, 4
        %v3772 = vor.u32 %v3768, %v3771
        %v3773 = vsel %vm859, %v3772, %v3772
        %v3775 = vshrl.u32 %v3620, 16
        %v3777 = vrot.slane %v3775, 3
        %v3778 = vshll.u32 %v3620, 16
        %v3780 = vrot.slane %v3778, 4
        %v3781 = vor.u32 %v3777, %v3780
        %v3783 = vshrl.u32 %v3622, 16
        %v3785 = vrot.slane %v3783, 3
        %v3786 = vshll.u32 %v3622, 16
        %v3788 = vrot.slane %v3786, 4
        %v3789 = vor.u32 %v3785, %v3788
        %v3790 = vsel %vm859, %v3781, %v3789
        %v3792 = vshrl.u32 %v3396, 16
        %v3794 = vrot.slane %v3792, 3
        %v3795 = vshll.u32 %v3396, 16
        %v3797 = vrot.slane %v3795, 4
        %v3798 = vor.u32 %v3794, %v3797
        %v3800 = vshrl.u32 %v3397, 16
        %v3802 = vrot.slane %v3800, 3
        %v3803 = vshll.u32 %v3397, 16
        %v3805 = vrot.slane %v3803, 4
        %v3806 = vor.u32 %v3802, %v3805
        %v3807 = vsel %vm859, %v3798, %v3806
        %v3809 = vshrl.u32 %v3469, 16
        %v3811 = vrot.slane %v3809, 3
        %v3812 = vshll.u32 %v3469, 16
        %v3814 = vrot.slane %v3812, 4
        %v3815 = vor.u32 %v3811, %v3814
        %v3816 = vsel %vm859, %v3815, %v3815
        %v3818 = vshrl.u32 %v3623, 16
        %v3820 = vrot.slane %v3818, 3
        %v3821 = vshll.u32 %v3623, 16
        %v3823 = vrot.slane %v3821, 4
        %v3824 = vor.u32 %v3820, %v3823
        %v3826 = vshrl.u32 %v3625, 16
        %v3828 = vrot.slane %v3826, 3
        %v3829 = vshll.u32 %v3625, 16
        %v3831 = vrot.slane %v3829, 4
        %v3832 = vor.u32 %v3828, %v3831
        %v3833 = vsel %vm859, %v3824, %v3832
        %v3835 = vshrl.u32 %v3398, 16
        %v3837 = vrot.slane %v3835, 3
        %v3838 = vshll.u32 %v3398, 16
        %v3840 = vrot.slane %v3838, 4
        %v3841 = vor.u32 %v3837, %v3840
        %v3843 = vshrl.u32 %v3399, 16
        %v3845 = vrot.slane %v3843, 3
        %v3846 = vshll.u32 %v3399, 16
        %v3848 = vrot.slane %v3846, 4
        %v3849 = vor.u32 %v3845, %v3848
        %v3850 = vsel %vm859, %v3841, %v3849
        %v3852 = vshrl.u32 %v3477, 16
        %v3854 = vrot.slane %v3852, 3
        %v3855 = vshll.u32 %v3477, 16
        %v3857 = vrot.slane %v3855, 4
        %v3858 = vor.u32 %v3854, %v3857
        %v3859 = vsel %vm859, %v3858, %v3858
        %v3861 = vshrl.u32 %v3626, 16
        %v3863 = vrot.slane %v3861, 3
        %v3864 = vshll.u32 %v3626, 16
        %v3866 = vrot.slane %v3864, 4
        %v3867 = vor.u32 %v3863, %v3866
        %v3869 = vshrl.u32 %v3628, 16
        %v3871 = vrot.slane %v3869, 3
        %v3872 = vshll.u32 %v3628, 16
        %v3874 = vrot.slane %v3872, 4
        %v3875 = vor.u32 %v3871, %v3874
        %v3876 = vsel %vm859, %v3867, %v3875
        %v3878 = vshrl.u32 %v3400, 16
        %v3880 = vrot.slane %v3878, 3
        %v3881 = vshll.u32 %v3400, 16
        %v3883 = vrot.slane %v3881, 4
        %v3884 = vor.u32 %v3880, %v3883
        %v3886 = vshrl.u32 %v3401, 16
        %v3888 = vrot.slane %v3886, 3
        %v3889 = vshll.u32 %v3401, 16
        %v3891 = vrot.slane %v3889, 4
        %v3892 = vor.u32 %v3888, %v3891
        %v3893 = vsel %vm859, %v3884, %v3892
        %v3895 = vshrl.u32 %v3485, 16
        %v3897 = vrot.slane %v3895, 3
        %v3898 = vshll.u32 %v3485, 16
        %v3900 = vrot.slane %v3898, 4
        %v3901 = vor.u32 %v3897, %v3900
        %v3902 = vsel %vm859, %v3901, %v3901
        %v3904 = vshrl.u32 %v3629, 16
        %v3906 = vrot.slane %v3904, 3
        %v3907 = vshll.u32 %v3629, 16
        %v3909 = vrot.slane %v3907, 4
        %v3910 = vor.u32 %v3906, %v3909
        %v3912 = vshrl.u32 %v3631, 16
        %v3914 = vrot.slane %v3912, 3
        %v3915 = vshll.u32 %v3631, 16
        %v3917 = vrot.slane %v3915, 4
        %v3918 = vor.u32 %v3914, %v3917
        %v3919 = vsel %vm859, %v3910, %v3918
        %v3921 = vshrl.u32 %v3402, 16
        %v3923 = vrot.slane %v3921, 3
        %v3924 = vshll.u32 %v3402, 16
        %v3926 = vrot.slane %v3924, 4
        %v3927 = vor.u32 %v3923, %v3926
        %v3929 = vshrl.u32 %v3403, 16
        %v3931 = vrot.slane %v3929, 3
        %v3932 = vshll.u32 %v3403, 16
        %v3934 = vrot.slane %v3932, 4
        %v3935 = vor.u32 %v3931, %v3934
        %v3936 = vsel %vm859, %v3927, %v3935
        %v3938 = vshrl.u32 %v3493, 16
        %v3940 = vrot.slane %v3938, 3
        %v3941 = vshll.u32 %v3493, 16
        %v3943 = vrot.slane %v3941, 4
        %v3944 = vor.u32 %v3940, %v3943
        %v3945 = vsel %vm859, %v3944, %v3944
        %v3947 = vshrl.u32 %v3632, 16
        %v3949 = vrot.slane %v3947, 3
        %v3950 = vshll.u32 %v3632, 16
        %v3952 = vrot.slane %v3950, 4
        %v3953 = vor.u32 %v3949, %v3952
        %v3955 = vshrl.u32 %v3634, 16
        %v3957 = vrot.slane %v3955, 3
        %v3958 = vshll.u32 %v3634, 16
        %v3960 = vrot.slane %v3958, 4
        %v3961 = vor.u32 %v3957, %v3960
        %v3962 = vsel %vm859, %v3953, %v3961
        %v3964 = vshrl.u32 %v3404, 16
        %v3966 = vrot.slane %v3964, 3
        %v3967 = vshll.u32 %v3404, 16
        %v3969 = vrot.slane %v3967, 4
        %v3970 = vor.u32 %v3966, %v3969
        %v3972 = vshrl.u32 %v3405, 16
        %v3974 = vrot.slane %v3972, 3
        %v3975 = vshll.u32 %v3405, 16
        %v3977 = vrot.slane %v3975, 4
        %v3978 = vor.u32 %v3974, %v3977
        %v3979 = vsel %vm859, %v3970, %v3978
        %v3981 = vshrl.u32 %v3501, 16
        %v3983 = vrot.slane %v3981, 3
        %v3984 = vshll.u32 %v3501, 16
        %v3986 = vrot.slane %v3984, 4
        %v3987 = vor.u32 %v3983, %v3986
        %v3988 = vsel %vm859, %v3987, %v3987
        %v3990 = vshrl.u32 %v3635, 16
        %v3992 = vrot.slane %v3990, 3
        %v3993 = vshll.u32 %v3635, 16
        %v3995 = vrot.slane %v3993, 4
        %v3996 = vor.u32 %v3992, %v3995
        %v3998 = vshrl.u32 %v3637, 16
        %v4000 = vrot.slane %v3998, 3
        %v4001 = vshll.u32 %v3637, 16
        %v4003 = vrot.slane %v4001, 4
        %v4004 = vor.u32 %v4000, %v4003
        %v4005 = vsel %vm859, %v3996, %v4004
        %v4007 = vshrl.u32 %v3406, 16
        %v4009 = vrot.slane %v4007, 3
        %v4010 = vshll.u32 %v3406, 16
        %v4012 = vrot.slane %v4010, 4
        %v4013 = vor.u32 %v4009, %v4012
        %v4015 = vshrl.u32 %v3407, 16
        %v4017 = vrot.slane %v4015, 3
        %v4018 = vshll.u32 %v3407, 16
        %v4020 = vrot.slane %v4018, 4
        %v4021 = vor.u32 %v4017, %v4020
        %v4022 = vsel %vm859, %v4013, %v4021
        %v4024 = vshrl.u32 %v3509, 16
        %v4026 = vrot.slane %v4024, 3
        %v4027 = vshll.u32 %v3509, 16
        %v4029 = vrot.slane %v4027, 4
        %v4030 = vor.u32 %v4026, %v4029
        %v4031 = vsel %vm859, %v4030, %v4030
        %v4033 = vshrl.u32 %v3638, 16
        %v4035 = vrot.slane %v4033, 3
        %v4036 = vshll.u32 %v3638, 16
        %v4038 = vrot.slane %v4036, 4
        %v4039 = vor.u32 %v4035, %v4038
        %v4041 = vshrl.u32 %v3640, 16
        %v4043 = vrot.slane %v4041, 3
        %v4044 = vshll.u32 %v3640, 16
        %v4046 = vrot.slane %v4044, 4
        %v4047 = vor.u32 %v4043, %v4046
        %v4048 = vsel %vm859, %v4039, %v4047
        %v4050 = vshrl.u32 %v3408, 16
        %v4052 = vrot.slane %v4050, 3
        %v4053 = vshll.u32 %v3408, 16
        %v4055 = vrot.slane %v4053, 4
        %v4056 = vor.u32 %v4052, %v4055
        %v4058 = vshrl.u32 %v3409, 16
        %v4060 = vrot.slane %v4058, 3
        %v4061 = vshll.u32 %v3409, 16
        %v4063 = vrot.slane %v4061, 4
        %v4064 = vor.u32 %v4060, %v4063
        %v4065 = vsel %vm859, %v4056, %v4064
        %v4067 = vshrl.u32 %v3517, 16
        %v4069 = vrot.slane %v4067, 3
        %v4070 = vshll.u32 %v3517, 16
        %v4072 = vrot.slane %v4070, 4
        %v4073 = vor.u32 %v4069, %v4072
        %v4074 = vsel %vm859, %v4073, %v4073
        %v4076 = vshrl.u32 %v3641, 16
        %v4078 = vrot.slane %v4076, 3
        %v4079 = vshll.u32 %v3641, 16
        %v4081 = vrot.slane %v4079, 4
        %v4082 = vor.u32 %v4078, %v4081
        %v4084 = vshrl.u32 %v3643, 16
        %v4086 = vrot.slane %v4084, 3
        %v4087 = vshll.u32 %v3643, 16
        %v4089 = vrot.slane %v4087, 4
        %v4090 = vor.u32 %v4086, %v4089
        %v4091 = vsel %vm859, %v4082, %v4090
        %v4093 = vshrl.u32 %v3410, 16
        %v4095 = vrot.slane %v4093, 3
        %v4096 = vshll.u32 %v3410, 16
        %v4098 = vrot.slane %v4096, 4
        %v4099 = vor.u32 %v4095, %v4098
        %v4101 = vshrl.u32 %v3411, 16
        %v4103 = vrot.slane %v4101, 3
        %v4104 = vshll.u32 %v3411, 16
        %v4106 = vrot.slane %v4104, 4
        %v4107 = vor.u32 %v4103, %v4106
        %v4108 = vsel %vm859, %v4099, %v4107
        %v4110 = vshrl.u32 %v3525, 16
        %v4112 = vrot.slane %v4110, 3
        %v4113 = vshll.u32 %v3525, 16
        %v4115 = vrot.slane %v4113, 4
        %v4116 = vor.u32 %v4112, %v4115
        %v4117 = vsel %vm859, %v4116, %v4116
        %v4119 = vshrl.u32 %v3644, 16
        %v4121 = vrot.slane %v4119, 3
        %v4122 = vshll.u32 %v3644, 16
        %v4124 = vrot.slane %v4122, 4
        %v4125 = vor.u32 %v4121, %v4124
        %v4127 = vshrl.u32 %v3646, 16
        %v4129 = vrot.slane %v4127, 3
        %v4130 = vshll.u32 %v3646, 16
        %v4132 = vrot.slane %v4130, 4
        %v4133 = vor.u32 %v4129, %v4132
        %v4134 = vsel %vm859, %v4125, %v4133
        %v4136 = vshrl.u32 %v3412, 16
        %v4138 = vrot.slane %v4136, 3
        %v4139 = vshll.u32 %v3412, 16
        %v4141 = vrot.slane %v4139, 4
        %v4142 = vor.u32 %v4138, %v4141
        %v4144 = vshrl.u32 %v3413, 16
        %v4146 = vrot.slane %v4144, 3
        %v4147 = vshll.u32 %v3413, 16
        %v4149 = vrot.slane %v4147, 4
        %v4150 = vor.u32 %v4146, %v4149
        %v4151 = vsel %vm859, %v4142, %v4150
        %v4153 = vshrl.u32 %v3533, 16
        %v4155 = vrot.slane %v4153, 3
        %v4156 = vshll.u32 %v3533, 16
        %v4158 = vrot.slane %v4156, 4
        %v4159 = vor.u32 %v4155, %v4158
        %v4160 = vsel %vm859, %v4159, %v4159
        %v4162 = vshrl.u32 %v3647, 16
        %v4164 = vrot.slane %v4162, 3
        %v4165 = vshll.u32 %v3647, 16
        %v4167 = vrot.slane %v4165, 4
        %v4168 = vor.u32 %v4164, %v4167
        %v4170 = vshrl.u32 %v3649, 16
        %v4172 = vrot.slane %v4170, 3
        %v4173 = vshll.u32 %v3649, 16
        %v4175 = vrot.slane %v4173, 4
        %v4176 = vor.u32 %v4172, %v4175
        %v4177 = vsel %vm859, %v4168, %v4176
        %v4179 = vshrl.u32 %v3414, 16
        %v4181 = vrot.slane %v4179, 3
        %v4182 = vshll.u32 %v3414, 16
        %v4184 = vrot.slane %v4182, 4
        %v4185 = vor.u32 %v4181, %v4184
        %v4187 = vshrl.u32 %v3415, 16
        %v4189 = vrot.slane %v4187, 3
        %v4190 = vshll.u32 %v3415, 16
        %v4192 = vrot.slane %v4190, 4
        %v4193 = vor.u32 %v4189, %v4192
        %v4194 = vsel %vm859, %v4185, %v4193
        %v4196 = vshrl.u32 %v3541, 16
        %v4198 = vrot.slane %v4196, 3
        %v4199 = vshll.u32 %v3541, 16
        %v4201 = vrot.slane %v4199, 4
        %v4202 = vor.u32 %v4198, %v4201
        %v4203 = vsel %vm859, %v4202, %v4202
        %v4205 = vshrl.u32 %v3650, 16
        %v4207 = vrot.slane %v4205, 3
        %v4208 = vshll.u32 %v3650, 16
        %v4210 = vrot.slane %v4208, 4
        %v4211 = vor.u32 %v4207, %v4210
        %v4213 = vshrl.u32 %v3652, 16
        %v4215 = vrot.slane %v4213, 3
        %v4216 = vshll.u32 %v3652, 16
        %v4218 = vrot.slane %v4216, 4
        %v4219 = vor.u32 %v4215, %v4218
        %v4220 = vsel %vm859, %v4211, %v4219
        %v4222 = vshrl.u32 %v3416, 16
        %v4224 = vrot.slane %v4222, 3
        %v4225 = vshll.u32 %v3416, 16
        %v4227 = vrot.slane %v4225, 4
        %v4228 = vor.u32 %v4224, %v4227
        %v4230 = vshrl.u32 %v3417, 16
        %v4232 = vrot.slane %v4230, 3
        %v4233 = vshll.u32 %v3417, 16
        %v4235 = vrot.slane %v4233, 4
        %v4236 = vor.u32 %v4232, %v4235
        %v4237 = vsel %vm859, %v4228, %v4236
        %v4239 = vshrl.u32 %v3549, 16
        %v4241 = vrot.slane %v4239, 3
        %v4242 = vshll.u32 %v3549, 16
        %v4244 = vrot.slane %v4242, 4
        %v4245 = vor.u32 %v4241, %v4244
        %v4246 = vsel %vm859, %v4245, %v4245
        %v4248 = vshrl.u32 %v3653, 16
        %v4250 = vrot.slane %v4248, 3
        %v4251 = vshll.u32 %v3653, 16
        %v4253 = vrot.slane %v4251, 4
        %v4254 = vor.u32 %v4250, %v4253
        %v4256 = vshrl.u32 %v3655, 16
        %v4258 = vrot.slane %v4256, 3
        %v4259 = vshll.u32 %v3655, 16
        %v4261 = vrot.slane %v4259, 4
        %v4262 = vor.u32 %v4258, %v4261
        %v4263 = vsel %vm859, %v4254, %v4262
        %s4306 = scalar_lea.vmem [#allocation5], 576
        %v4307 = vld [vmem:[%s4306] sm:$0xf]
        %v4308 = vld [vmem:[%s4306 + $0x4] sm:$0xf]
        %v4309 = vld [vmem:[%s4306 + $0x8] sm:$0xf]
        %v4310 = vld [vmem:[%s4306 + $0xc] sm:$0xf]
        %v4311 = vld [vmem:[%s4306 + $0x10] sm:$0xf]
        %v4312 = vld [vmem:[%s4306 + $0x14] sm:$0xf]
        %v4313 = vld [vmem:[%s4306 + $0x18] sm:$0xf]
        %v4314 = vld [vmem:[%s4306 + $0x1c] sm:$0xf]
        %v4315 = vld [vmem:[%s4306 + $0x20] sm:$0xf]
        %v4316 = vld [vmem:[%s4306 + $0x24] sm:$0xf]
        %v4317 = vld [vmem:[%s4306 + $0x28] sm:$0xf]
        %v4318 = vld [vmem:[%s4306 + $0x2c] sm:$0xf]
        %v4319 = vld [vmem:[%s4306 + $0x30] sm:$0xf]
        %v4320 = vld [vmem:[%s4306 + $0x34] sm:$0xf]
        %v4321 = vld [vmem:[%s4306 + $0x38] sm:$0xf]
        %v4322 = vld [vmem:[%s4306 + $0x3c] sm:$0xf]
        %v4323 = vld [vmem:[%s4306 + $0x40] sm:$0xf]
        %v4324 = vld [vmem:[%s4306 + $0x44] sm:$0xf]
        %v4325 = vld [vmem:[%s4306 + $0x48] sm:$0xf]
        %v4326 = vld [vmem:[%s4306 + $0x4c] sm:$0xf]
        %v4327 = vld [vmem:[%s4306 + $0x50] sm:$0xf]
        %v4328 = vld [vmem:[%s4306 + $0x54] sm:$0xf]
        %v4329 = vld [vmem:[%s4306 + $0x58] sm:$0xf]
        %v4330 = vld [vmem:[%s4306 + $0x5c] sm:$0xf]
        %v4331 = vld [vmem:[%s4306 + $0x60] sm:$0xf]
        %v4332 = vld [vmem:[%s4306 + $0x64] sm:$0xf]
        %v4333 = vld [vmem:[%s4306 + $0x68] sm:$0xf]
        %v4334 = vld [vmem:[%s4306 + $0x6c] sm:$0xf]
        %v4335 = vld [vmem:[%s4306 + $0x70] sm:$0xf]
        %v4336 = vld [vmem:[%s4306 + $0x74] sm:$0xf]
        %v4337 = vld [vmem:[%s4306 + $0x78] sm:$0xf]
        %v4338 = vld [vmem:[%s4306 + $0x7c] sm:$0xf]
        %v4339 = vld [vmem:[%s4306 + $0x80] sm:$0xf]
        %v4340 = vld [vmem:[%s4306 + $0x84] sm:$0xf]
        %v4341 = vld [vmem:[%s4306 + $0x88] sm:$0xf]
        %v4342 = vld [vmem:[%s4306 + $0x8c] sm:$0xf]
        %v4343 = vld [vmem:[%s4306 + $0x90] sm:$0xf]
        %v4344 = vld [vmem:[%s4306 + $0x94] sm:$0xf]
        %v4345 = vld [vmem:[%s4306 + $0x98] sm:$0xf]
        %v4346 = vld [vmem:[%s4306 + $0x9c] sm:$0xf]
        %v4347 = vld [vmem:[%s4306 + $0xa0] sm:$0xf]
        %v4348 = vld [vmem:[%s4306 + $0xa4] sm:$0xf]
        %v4349 = vld [vmem:[%s4306 + $0xa8] sm:$0xf]
        %v4350 = vld [vmem:[%s4306 + $0xac] sm:$0xf]
        %v4351 = vld [vmem:[%s4306 + $0xb0] sm:$0xf]
        %v4352 = vld [vmem:[%s4306 + $0xb4] sm:$0xf]
        %v4353 = vld [vmem:[%s4306 + $0xb8] sm:$0xf]
        %v4354 = vld [vmem:[%s4306 + $0xbc] sm:$0xf]
        %v4356 = vshrl.u32 %v3418, 16
        %v4358 = vrot.slane %v4356, 3
        %v4359 = vshll.u32 %v3418, 16
        %v4361 = vrot.slane %v4359, 4
        %v4362 = vor.u32 %v4358, %v4361
        %v4364 = vshrl.u32 %v3419, 16
        %v4366 = vrot.slane %v4364, 3
        %v4367 = vshll.u32 %v3419, 16
        %v4369 = vrot.slane %v4367, 4
        %v4370 = vor.u32 %v4366, %v4369
        %v4371 = vsel %vm859, %v4362, %v4370
        %v4373 = vshrl.u32 %v3557, 16
        %v4375 = vrot.slane %v4373, 3
        %v4376 = vshll.u32 %v3557, 16
        %v4378 = vrot.slane %v4376, 4
        %v4379 = vor.u32 %v4375, %v4378
        %v4380 = vsel %vm859, %v4379, %v4379
        %v4382 = vshrl.u32 %v3656, 16
        %v4384 = vrot.slane %v4382, 3
        %v4385 = vshll.u32 %v3656, 16
        %v4387 = vrot.slane %v4385, 4
        %v4388 = vor.u32 %v4384, %v4387
        %v4390 = vshrl.u32 %v3658, 16
        %v4392 = vrot.slane %v4390, 3
        %v4393 = vshll.u32 %v3658, 16
        %v4395 = vrot.slane %v4393, 4
        %v4396 = vor.u32 %v4392, %v4395
        %v4397 = vsel %vm859, %v4388, %v4396
        %s4401 = scalar_lea.vmem [#allocation5], 768
        %v4402 = vld [vmem:[%s4401] sm:$0xf]
        %v4403 = vld [vmem:[%s4401 + $0x4] sm:$0xf]
        %v4404 = vld [vmem:[%s4401 + $0x8] sm:$0xf]
        %v4405 = vld [vmem:[%s4401 + $0xc] sm:$0xf]
        %v4406 = vld [vmem:[%s4401 + $0x10] sm:$0xf]
        %v4407 = vld [vmem:[%s4401 + $0x14] sm:$0xf]
        %v4408 = vld [vmem:[%s4401 + $0x18] sm:$0xf]
        %v4409 = vld [vmem:[%s4401 + $0x1c] sm:$0xf]
        %v4410 = vld [vmem:[%s4401 + $0x20] sm:$0xf]
        %v4411 = vld [vmem:[%s4401 + $0x24] sm:$0xf]
        %v4412 = vld [vmem:[%s4401 + $0x28] sm:$0xf]
        %v4413 = vld [vmem:[%s4401 + $0x2c] sm:$0xf]
        %v4414 = vld [vmem:[%s4401 + $0x30] sm:$0xf]
        %v4415 = vld [vmem:[%s4401 + $0x34] sm:$0xf]
        %v4416 = vld [vmem:[%s4401 + $0x38] sm:$0xf]
        %v4417 = vld [vmem:[%s4401 + $0x3c] sm:$0xf]
        %v4418 = vld [vmem:[%s4401 + $0x40] sm:$0xf]
        %v4419 = vld [vmem:[%s4401 + $0x44] sm:$0xf]
        %v4420 = vld [vmem:[%s4401 + $0x48] sm:$0xf]
        %v4421 = vld [vmem:[%s4401 + $0x4c] sm:$0xf]
        %v4422 = vld [vmem:[%s4401 + $0x50] sm:$0xf]
        %v4423 = vld [vmem:[%s4401 + $0x54] sm:$0xf]
        %v4424 = vld [vmem:[%s4401 + $0x58] sm:$0xf]
        %v4425 = vld [vmem:[%s4401 + $0x5c] sm:$0xf]
        %v4426 = vld [vmem:[%s4401 + $0x60] sm:$0xf]
        %v4427 = vld [vmem:[%s4401 + $0x64] sm:$0xf]
        %v4428 = vld [vmem:[%s4401 + $0x68] sm:$0xf]
        %v4429 = vld [vmem:[%s4401 + $0x6c] sm:$0xf]
        %v4430 = vld [vmem:[%s4401 + $0x70] sm:$0xf]
        %v4431 = vld [vmem:[%s4401 + $0x74] sm:$0xf]
        %v4432 = vld [vmem:[%s4401 + $0x78] sm:$0xf]
        %v4433 = vld [vmem:[%s4401 + $0x7c] sm:$0xf]
        %v4434 = vld [vmem:[%s4401 + $0x80] sm:$0xf]
        %v4435 = vld [vmem:[%s4401 + $0x84] sm:$0xf]
        %v4436 = vld [vmem:[%s4401 + $0x88] sm:$0xf]
        %v4437 = vld [vmem:[%s4401 + $0x8c] sm:$0xf]
        %v4438 = vld [vmem:[%s4401 + $0x90] sm:$0xf]
        %v4439 = vld [vmem:[%s4401 + $0x94] sm:$0xf]
        %v4440 = vld [vmem:[%s4401 + $0x98] sm:$0xf]
        %v4441 = vld [vmem:[%s4401 + $0x9c] sm:$0xf]
        %v4442 = vld [vmem:[%s4401 + $0xa0] sm:$0xf]
        %v4443 = vld [vmem:[%s4401 + $0xa4] sm:$0xf]
        %v4444 = vld [vmem:[%s4401 + $0xa8] sm:$0xf]
        %v4445 = vld [vmem:[%s4401 + $0xac] sm:$0xf]
        %v4446 = vld [vmem:[%s4401 + $0xb0] sm:$0xf]
        %v4447 = vld [vmem:[%s4401 + $0xb4] sm:$0xf]
        %v4448 = vld [vmem:[%s4401 + $0xb8] sm:$0xf]
        %v4449 = vld [vmem:[%s4401 + $0xbc] sm:$0xf]
        %v4498 = vunpack.c.l.b16 %v4402
        %v4499 = vunpack.c.l.b16 %v4403
        %v4500 = vunpack.c.l.b16 %v4404
        %v4501 = vunpack.c.l.b16 %v4405
        %v4502 = vunpack.c.l.b16 %v4406
        %v4503 = vunpack.c.l.b16 %v4407
        %v4504 = vunpack.c.l.b16 %v4408
        %v4505 = vunpack.c.l.b16 %v4409
        %v4506 = vunpack.c.l.b16 %v4410
        %v4507 = vunpack.c.l.b16 %v4411
        %v4508 = vunpack.c.l.b16 %v4412
        %v4509 = vunpack.c.l.b16 %v4413
        %v4510 = vunpack.c.l.b16 %v4414
        %v4511 = vunpack.c.l.b16 %v4415
        %v4512 = vunpack.c.l.b16 %v4416
        %v4513 = vunpack.c.l.b16 %v4417
        %v4514 = vunpack.c.l.b16 %v4418
        %v4515 = vunpack.c.l.b16 %v4419
        %v4516 = vunpack.c.l.b16 %v4420
        %v4517 = vunpack.c.l.b16 %v4421
        %v4518 = vunpack.c.l.b16 %v4422
        %v4519 = vunpack.c.l.b16 %v4423
        %v4520 = vunpack.c.l.b16 %v4424
        %v4521 = vunpack.c.l.b16 %v4425
        %v4522 = vunpack.c.l.b16 %v4426
        %v4523 = vunpack.c.l.b16 %v4427
        %v4524 = vunpack.c.l.b16 %v4428
        %v4525 = vunpack.c.l.b16 %v4429
        %v4526 = vunpack.c.l.b16 %v4430
        %v4527 = vunpack.c.l.b16 %v4431
        %v4528 = vunpack.c.l.b16 %v4432
        %v4529 = vunpack.c.l.b16 %v4433
        %v4530 = vunpack.c.l.b16 %v4434
        %v4531 = vunpack.c.l.b16 %v4435
        %v4532 = vunpack.c.l.b16 %v4436
        %v4533 = vunpack.c.l.b16 %v4437
        %v4534 = vunpack.c.l.b16 %v4438
        %v4535 = vunpack.c.l.b16 %v4439
        %v4536 = vunpack.c.l.b16 %v4440
        %v4537 = vunpack.c.l.b16 %v4441
        %v4538 = vunpack.c.l.b16 %v4442
        %v4539 = vunpack.c.l.b16 %v4443
        %v4540 = vunpack.c.l.b16 %v4444
        %v4541 = vunpack.c.l.b16 %v4445
        %v4542 = vunpack.c.l.b16 %v4446
        %v4543 = vunpack.c.l.b16 %v4447
        %v4544 = vunpack.c.l.b16 %v4448
        %v4545 = vunpack.c.l.b16 %v4449
        %v4546 = vpack.c.b16 %v4499, %v4498
        %v4547 = vpack.c.b16 %v4501, %v4500
        %v4548 = vpack.c.b16 %v4503, %v4502
        %v4549 = vpack.c.b16 %v4505, %v4504
        %v4550 = vpack.c.b16 %v4507, %v4506
        %v4551 = vpack.c.b16 %v4509, %v4508
        %v4552 = vpack.c.b16 %v4511, %v4510
        %v4553 = vpack.c.b16 %v4513, %v4512
        %v4554 = vpack.c.b16 %v4515, %v4514
        %v4555 = vpack.c.b16 %v4517, %v4516
        %v4556 = vpack.c.b16 %v4519, %v4518
        %v4557 = vpack.c.b16 %v4521, %v4520
        %v4558 = vpack.c.b16 %v4523, %v4522
        %v4559 = vpack.c.b16 %v4525, %v4524
        %v4560 = vpack.c.b16 %v4527, %v4526
        %v4561 = vpack.c.b16 %v4529, %v4528
        %v4562 = vpack.c.b16 %v4531, %v4530
        %v4563 = vpack.c.b16 %v4533, %v4532
        %v4564 = vpack.c.b16 %v4535, %v4534
        %v4565 = vpack.c.b16 %v4537, %v4536
        %v4566 = vpack.c.b16 %v4539, %v4538
        %v4567 = vpack.c.b16 %v4541, %v4540
        %v4568 = vpack.c.b16 %v4543, %v4542
        %v4569 = vpack.c.b16 %v4545, %v4544
        %4594 = vmatpush.bf16.msra.mxu0 %v4553
        %4595 = vmatpush.bf16.msra.mxu0 %v4552
        %4596 = vmatpush.bf16.msra.mxu0 %v4551
        %4597 = vmatpush.bf16.msra.mxu0 %v4550
        %4598 = vmatpush.bf16.msra.mxu0 %v4549
        %4599 = vmatpush.bf16.msra.mxu0 %v4548
        %4600 = vmatpush.bf16.msra.mxu0 %v4547
        %4601 = vmatpush.bf16.msra.mxu0 %v4546
        %4602 = vmatmul.bf16.gmra.mxu0 %v3721
        %v4603 = vpop.f32.mrf.mxu0
        %v4604 = vadd.f32 0.0, %v4603
        %v4605 = vpop.f32.mrf.mxu0
        %v4606 = vadd.f32 0.0, %v4605
        %4607 = vmatmul.bf16.gmra.mxu0 %v3764
        %v4608 = vpop.f32.mrf.mxu0
        %v4609 = vadd.f32 0.0, %v4608
        %v4610 = vpop.f32.mrf.mxu0
        %v4611 = vadd.f32 0.0, %v4610
        %4612 = vmatmul.bf16.gmra.mxu0 %v3807
        %v4613 = vpop.f32.mrf.mxu0
        %v4614 = vadd.f32 0.0, %v4613
        %v4615 = vpop.f32.mrf.mxu0
        %v4616 = vadd.f32 0.0, %v4615
        %4617 = vmatmul.bf16.gmra.mxu0 %v3850
        %v4618 = vpop.f32.mrf.mxu0
        %v4619 = vadd.f32 0.0, %v4618
        %v4620 = vpop.f32.mrf.mxu0
        %v4621 = vadd.f32 0.0, %v4620
        %4622 = vmatmul.bf16.gmra.mxu0 %v3893
        %v4623 = vpop.f32.mrf.mxu0
        %v4624 = vadd.f32 0.0, %v4623
        %v4625 = vpop.f32.mrf.mxu0
        %v4626 = vadd.f32 0.0, %v4625
        %4627 = vmatmul.bf16.gmra.mxu0 %v3936
        %v4628 = vpop.f32.mrf.mxu0
        %v4629 = vadd.f32 0.0, %v4628
        %v4630 = vpop.f32.mrf.mxu0
        %v4631 = vadd.f32 0.0, %v4630
        %4632 = vmatmul.bf16.gmra.mxu0 %v3979
        %v4633 = vpop.f32.mrf.mxu0
        %v4634 = vadd.f32 0.0, %v4633
        %v4635 = vpop.f32.mrf.mxu0
        %v4636 = vadd.f32 0.0, %v4635
        %4637 = vmatmul.bf16.gmra.mxu0 %v4022
        %v4638 = vpop.f32.mrf.mxu0
        %v4639 = vadd.f32 0.0, %v4638
        %v4640 = vpop.f32.mrf.mxu0
        %v4641 = vadd.f32 0.0, %v4640
        %4642 = vmatmul.bf16.gmra.mxu0 %v4065
        %v4643 = vpop.f32.mrf.mxu0
        %v4644 = vadd.f32 0.0, %v4643
        %v4645 = vpop.f32.mrf.mxu0
        %v4646 = vadd.f32 0.0, %v4645
        %4647 = vmatmul.bf16.gmra.mxu0 %v4108
        %v4648 = vpop.f32.mrf.mxu0
        %v4649 = vadd.f32 0.0, %v4648
        %v4650 = vpop.f32.mrf.mxu0
        %v4651 = vadd.f32 0.0, %v4650
        %4652 = vmatmul.bf16.gmra.mxu0 %v4151
        %v4653 = vpop.f32.mrf.mxu0
        %v4654 = vadd.f32 0.0, %v4653
        %v4655 = vpop.f32.mrf.mxu0
        %v4656 = vadd.f32 0.0, %v4655
        %4657 = vmatmul.bf16.gmra.mxu0 %v4194
        %v4658 = vpop.f32.mrf.mxu0
        %v4659 = vadd.f32 0.0, %v4658
        %v4660 = vpop.f32.mrf.mxu0
        %v4661 = vadd.f32 0.0, %v4660
        %4662 = vmatmul.bf16.gmra.mxu0 %v4237
        %v4663 = vpop.f32.mrf.mxu0
        %v4664 = vadd.f32 0.0, %v4663
        %v4665 = vpop.f32.mrf.mxu0
        %v4666 = vadd.f32 0.0, %v4665
        %4667 = vmatmul.bf16.gmra.mxu0 %v4371
        %v4668 = vpop.f32.mrf.mxu0
        %v4669 = vadd.f32 0.0, %v4668
        %v4670 = vpop.f32.mrf.mxu0
        %v4671 = vadd.f32 0.0, %v4670
        %4672 = vdwg.mxu0
        %4673 = vmatpush.bf16.msra.mxu0 %v4561
        %4674 = vmatpush.bf16.msra.mxu0 %v4560
        %4675 = vmatpush.bf16.msra.mxu0 %v4559
        %4676 = vmatpush.bf16.msra.mxu0 %v4558
        %4677 = vmatpush.bf16.msra.mxu0 %v4557
        %4678 = vmatpush.bf16.msra.mxu0 %v4556
        %4679 = vmatpush.bf16.msra.mxu0 %v4555
        %4680 = vmatpush.bf16.msra.mxu0 %v4554
        %4681 = vmatmul.bf16.gmra.mxu0 %v3730
        %v4682 = vpop.f32.mrf.mxu0
        %v4683 = vadd.f32 %v4604, %v4682
        %v4684 = vpop.f32.mrf.mxu0
        %v4685 = vadd.f32 %v4606, %v4684
        %4686 = vmatmul.bf16.gmra.mxu0 %v3773
        %v4687 = vpop.f32.mrf.mxu0
        %v4688 = vadd.f32 %v4609, %v4687
        %v4689 = vpop.f32.mrf.mxu0
        %v4690 = vadd.f32 %v4611, %v4689
        %4691 = vmatmul.bf16.gmra.mxu0 %v3816
        %v4692 = vpop.f32.mrf.mxu0
        %v4693 = vadd.f32 %v4614, %v4692
        %v4694 = vpop.f32.mrf.mxu0
        %v4695 = vadd.f32 %v4616, %v4694
        %4696 = vmatmul.bf16.gmra.mxu0 %v3859
        %v4697 = vpop.f32.mrf.mxu0
        %v4698 = vadd.f32 %v4619, %v4697
        %v4699 = vpop.f32.mrf.mxu0
        %v4700 = vadd.f32 %v4621, %v4699
        %4701 = vmatmul.bf16.gmra.mxu0 %v3902
        %v4702 = vpop.f32.mrf.mxu0
        %v4703 = vadd.f32 %v4624, %v4702
        %v4704 = vpop.f32.mrf.mxu0
        %v4705 = vadd.f32 %v4626, %v4704
        %4706 = vmatmul.bf16.gmra.mxu0 %v3945
        %v4707 = vpop.f32.mrf.mxu0
        %v4708 = vadd.f32 %v4629, %v4707
        %v4709 = vpop.f32.mrf.mxu0
        %v4710 = vadd.f32 %v4631, %v4709
        %4711 = vmatmul.bf16.gmra.mxu0 %v3988
        %v4712 = vpop.f32.mrf.mxu0
        %v4713 = vadd.f32 %v4634, %v4712
        %v4714 = vpop.f32.mrf.mxu0
        %v4715 = vadd.f32 %v4636, %v4714
        %4716 = vmatmul.bf16.gmra.mxu0 %v4031
        %v4717 = vpop.f32.mrf.mxu0
        %v4718 = vadd.f32 %v4639, %v4717
        %v4719 = vpop.f32.mrf.mxu0
        %v4720 = vadd.f32 %v4641, %v4719
        %4721 = vmatmul.bf16.gmra.mxu0 %v4074
        %v4722 = vpop.f32.mrf.mxu0
        %v4723 = vadd.f32 %v4644, %v4722
        %v4724 = vpop.f32.mrf.mxu0
        %v4725 = vadd.f32 %v4646, %v4724
        %4726 = vmatmul.bf16.gmra.mxu0 %v4117
        %v4727 = vpop.f32.mrf.mxu0
        %v4728 = vadd.f32 %v4649, %v4727
        %v4729 = vpop.f32.mrf.mxu0
        %v4730 = vadd.f32 %v4651, %v4729
        %4731 = vmatmul.bf16.gmra.mxu0 %v4160
        %v4732 = vpop.f32.mrf.mxu0
        %v4733 = vadd.f32 %v4654, %v4732
        %v4734 = vpop.f32.mrf.mxu0
        %v4735 = vadd.f32 %v4656, %v4734
        %4736 = vmatmul.bf16.gmra.mxu0 %v4203
        %v4737 = vpop.f32.mrf.mxu0
        %v4738 = vadd.f32 %v4659, %v4737
        %v4739 = vpop.f32.mrf.mxu0
        %v4740 = vadd.f32 %v4661, %v4739
        %4741 = vmatmul.bf16.gmra.mxu0 %v4246
        %v4742 = vpop.f32.mrf.mxu0
        %v4743 = vadd.f32 %v4664, %v4742
        %v4744 = vpop.f32.mrf.mxu0
        %v4745 = vadd.f32 %v4666, %v4744
        %4746 = vmatmul.bf16.gmra.mxu0 %v4380
        %v4747 = vpop.f32.mrf.mxu0
        %v4748 = vadd.f32 %v4669, %v4747
        %v4749 = vpop.f32.mrf.mxu0
        %v4750 = vadd.f32 %v4671, %v4749
        %4751 = vdwg.mxu0
        %4752 = vmatpush.bf16.msra.mxu0 %v4569
        %4753 = vmatpush.bf16.msra.mxu0 %v4568
        %4754 = vmatpush.bf16.msra.mxu0 %v4567
        %4755 = vmatpush.bf16.msra.mxu0 %v4566
        %4756 = vmatpush.bf16.msra.mxu0 %v4565
        %4757 = vmatpush.bf16.msra.mxu0 %v4564
        %4758 = vmatpush.bf16.msra.mxu0 %v4563
        %4759 = vmatpush.bf16.msra.mxu0 %v4562
        %4760 = vmatmul.bf16.gmra.mxu0 %v3747
        %v4761 = vpop.f32.mrf.mxu0
        %v4762 = vadd.f32 %v4683, %v4761
        %v4763 = vpop.f32.mrf.mxu0
        %v4764 = vadd.f32 %v4685, %v4763
        %4765 = vmatmul.bf16.gmra.mxu0 %v3790
        %v4766 = vpop.f32.mrf.mxu0
        %v4767 = vadd.f32 %v4688, %v4766
        %v4768 = vpop.f32.mrf.mxu0
        %v4769 = vadd.f32 %v4690, %v4768
        %4770 = vmatmul.bf16.gmra.mxu0 %v3833
        %v4771 = vpop.f32.mrf.mxu0
        %v4772 = vadd.f32 %v4693, %v4771
        %v4773 = vpop.f32.mrf.mxu0
        %v4774 = vadd.f32 %v4695, %v4773
        %4775 = vmatmul.bf16.gmra.mxu0 %v3876
        %v4776 = vpop.f32.mrf.mxu0
        %v4777 = vadd.f32 %v4698, %v4776
        %v4778 = vpop.f32.mrf.mxu0
        %v4779 = vadd.f32 %v4700, %v4778
        %4780 = vmatmul.bf16.gmra.mxu0 %v3919
        %v4781 = vpop.f32.mrf.mxu0
        %v4782 = vadd.f32 %v4703, %v4781
        %v4783 = vpop.f32.mrf.mxu0
        %v4784 = vadd.f32 %v4705, %v4783
        %4785 = vmatmul.bf16.gmra.mxu0 %v3962
        %v4786 = vpop.f32.mrf.mxu0
        %v4787 = vadd.f32 %v4708, %v4786
        %v4788 = vpop.f32.mrf.mxu0
        %v4789 = vadd.f32 %v4710, %v4788
        %4790 = vmatmul.bf16.gmra.mxu0 %v4005
        %v4791 = vpop.f32.mrf.mxu0
        %v4792 = vadd.f32 %v4713, %v4791
        %v4793 = vpop.f32.mrf.mxu0
        %v4794 = vadd.f32 %v4715, %v4793
        %4795 = vmatmul.bf16.gmra.mxu0 %v4048
        %v4796 = vpop.f32.mrf.mxu0
        %v4797 = vadd.f32 %v4718, %v4796
        %v4798 = vpop.f32.mrf.mxu0
        %v4799 = vadd.f32 %v4720, %v4798
        %4800 = vmatmul.bf16.gmra.mxu0 %v4091
        %v4801 = vpop.f32.mrf.mxu0
        %v4802 = vadd.f32 %v4723, %v4801
        %v4803 = vpop.f32.mrf.mxu0
        %v4804 = vadd.f32 %v4725, %v4803
        %4805 = vmatmul.bf16.gmra.mxu0 %v4134
        %v4806 = vpop.f32.mrf.mxu0
        %v4807 = vadd.f32 %v4728, %v4806
        %v4808 = vpop.f32.mrf.mxu0
        %v4809 = vadd.f32 %v4730, %v4808
        %4810 = vmatmul.bf16.gmra.mxu0 %v4177
        %v4811 = vpop.f32.mrf.mxu0
        %v4812 = vadd.f32 %v4733, %v4811
        %v4813 = vpop.f32.mrf.mxu0
        %v4814 = vadd.f32 %v4735, %v4813
        %4815 = vmatmul.bf16.gmra.mxu0 %v4220
        %v4816 = vpop.f32.mrf.mxu0
        %v4817 = vadd.f32 %v4738, %v4816
        %v4818 = vpop.f32.mrf.mxu0
        %v4819 = vadd.f32 %v4740, %v4818
        %4820 = vmatmul.bf16.gmra.mxu0 %v4263
        %v4821 = vpop.f32.mrf.mxu0
        %v4822 = vadd.f32 %v4743, %v4821
        %v4823 = vpop.f32.mrf.mxu0
        %v4824 = vadd.f32 %v4745, %v4823
        %4825 = vmatmul.bf16.gmra.mxu0 %v4397
        %v4826 = vpop.f32.mrf.mxu0
        %v4827 = vadd.f32 %v4748, %v4826
        %v4828 = vpop.f32.mrf.mxu0
        %v4829 = vadd.f32 %v4750, %v4828
        %4830 = vdwg.mxu0
        %v4879 = vunpack.c.l.b16 %v4307
        %v4880 = vunpack.c.l.b16 %v4308
        %v4881 = vunpack.c.l.b16 %v4309
        %v4882 = vunpack.c.l.b16 %v4310
        %v4883 = vunpack.c.l.b16 %v4311
        %v4884 = vunpack.c.l.b16 %v4312
        %v4885 = vunpack.c.l.b16 %v4313
        %v4886 = vunpack.c.l.b16 %v4314
        %v4887 = vunpack.c.l.b16 %v4315
        %v4888 = vunpack.c.l.b16 %v4316
        %v4889 = vunpack.c.l.b16 %v4317
        %v4890 = vunpack.c.l.b16 %v4318
        %v4891 = vunpack.c.l.b16 %v4319
        %v4892 = vunpack.c.l.b16 %v4320
        %v4893 = vunpack.c.l.b16 %v4321
        %v4894 = vunpack.c.l.b16 %v4322
        %v4895 = vunpack.c.l.b16 %v4323
        %v4896 = vunpack.c.l.b16 %v4324
        %v4897 = vunpack.c.l.b16 %v4325
        %v4898 = vunpack.c.l.b16 %v4326
        %v4899 = vunpack.c.l.b16 %v4327
        %v4900 = vunpack.c.l.b16 %v4328
        %v4901 = vunpack.c.l.b16 %v4329
        %v4902 = vunpack.c.l.b16 %v4330
        %v4903 = vunpack.c.l.b16 %v4331
        %v4904 = vunpack.c.l.b16 %v4332
        %v4905 = vunpack.c.l.b16 %v4333
        %v4906 = vunpack.c.l.b16 %v4334
        %v4907 = vunpack.c.l.b16 %v4335
        %v4908 = vunpack.c.l.b16 %v4336
        %v4909 = vunpack.c.l.b16 %v4337
        %v4910 = vunpack.c.l.b16 %v4338
        %v4911 = vunpack.c.l.b16 %v4339
        %v4912 = vunpack.c.l.b16 %v4340
        %v4913 = vunpack.c.l.b16 %v4341
        %v4914 = vunpack.c.l.b16 %v4342
        %v4915 = vunpack.c.l.b16 %v4343
        %v4916 = vunpack.c.l.b16 %v4344
        %v4917 = vunpack.c.l.b16 %v4345
        %v4918 = vunpack.c.l.b16 %v4346
        %v4919 = vunpack.c.l.b16 %v4347
        %v4920 = vunpack.c.l.b16 %v4348
        %v4921 = vunpack.c.l.b16 %v4349
        %v4922 = vunpack.c.l.b16 %v4350
        %v4923 = vunpack.c.l.b16 %v4351
        %v4924 = vunpack.c.l.b16 %v4352
        %v4925 = vunpack.c.l.b16 %v4353
        %v4926 = vunpack.c.l.b16 %v4354
        %v4927 = vpack.c.b16 %v4880, %v4879
        %v4928 = vpack.c.b16 %v4882, %v4881
        %v4929 = vpack.c.b16 %v4884, %v4883
        %v4930 = vpack.c.b16 %v4886, %v4885
        %v4931 = vpack.c.b16 %v4888, %v4887
        %v4932 = vpack.c.b16 %v4890, %v4889
        %v4933 = vpack.c.b16 %v4892, %v4891
        %v4934 = vpack.c.b16 %v4894, %v4893
        %v4935 = vpack.c.b16 %v4896, %v4895
        %v4936 = vpack.c.b16 %v4898, %v4897
        %v4937 = vpack.c.b16 %v4900, %v4899
        %v4938 = vpack.c.b16 %v4902, %v4901
        %v4939 = vpack.c.b16 %v4904, %v4903
        %v4940 = vpack.c.b16 %v4906, %v4905
        %v4941 = vpack.c.b16 %v4908, %v4907
        %v4942 = vpack.c.b16 %v4910, %v4909
        %v4943 = vpack.c.b16 %v4912, %v4911
        %v4944 = vpack.c.b16 %v4914, %v4913
        %v4945 = vpack.c.b16 %v4916, %v4915
        %v4946 = vpack.c.b16 %v4918, %v4917
        %v4947 = vpack.c.b16 %v4920, %v4919
        %v4948 = vpack.c.b16 %v4922, %v4921
        %v4949 = vpack.c.b16 %v4924, %v4923
        %v4950 = vpack.c.b16 %v4926, %v4925
        %4975 = vmatpush.bf16.msra.mxu0 %v4934
        %4976 = vmatpush.bf16.msra.mxu0 %v4933
        %4977 = vmatpush.bf16.msra.mxu0 %v4932
        %4978 = vmatpush.bf16.msra.mxu0 %v4931
        %4979 = vmatpush.bf16.msra.mxu0 %v4930
        %4980 = vmatpush.bf16.msra.mxu0 %v4929
        %4981 = vmatpush.bf16.msra.mxu0 %v4928
        %4982 = vmatpush.bf16.msra.mxu0 %v4927
        %4983 = vmatmul.bf16.gmra.mxu0 %v3678
        %v4984 = vpop.f32.mrf.mxu0
        %v4985 = vadd.f32 %v4762, %v4984
        %v4986 = vpop.f32.mrf.mxu0
        %v4987 = vadd.f32 %v4764, %v4986
        %4988 = vmatmul.bf16.gmra.mxu0 %v3721
        %v4989 = vpop.f32.mrf.mxu0
        %v4990 = vadd.f32 %v4767, %v4989
        %v4991 = vpop.f32.mrf.mxu0
        %v4992 = vadd.f32 %v4769, %v4991
        %4993 = vmatmul.bf16.gmra.mxu0 %v3764
        %v4994 = vpop.f32.mrf.mxu0
        %v4995 = vadd.f32 %v4772, %v4994
        %v4996 = vpop.f32.mrf.mxu0
        %v4997 = vadd.f32 %v4774, %v4996
        %4998 = vmatmul.bf16.gmra.mxu0 %v3807
        %v4999 = vpop.f32.mrf.mxu0
        %v5000 = vadd.f32 %v4777, %v4999
        %v5001 = vpop.f32.mrf.mxu0
        %v5002 = vadd.f32 %v4779, %v5001
        %5003 = vmatmul.bf16.gmra.mxu0 %v3850
        %v5004 = vpop.f32.mrf.mxu0
        %v5005 = vadd.f32 %v4782, %v5004
        %v5006 = vpop.f32.mrf.mxu0
        %v5007 = vadd.f32 %v4784, %v5006
        %5008 = vmatmul.bf16.gmra.mxu0 %v3893
        %v5009 = vpop.f32.mrf.mxu0
        %v5010 = vadd.f32 %v4787, %v5009
        %v5011 = vpop.f32.mrf.mxu0
        %v5012 = vadd.f32 %v4789, %v5011
        %5013 = vmatmul.bf16.gmra.mxu0 %v3936
        %v5014 = vpop.f32.mrf.mxu0
        %v5015 = vadd.f32 %v4792, %v5014
        %v5016 = vpop.f32.mrf.mxu0
        %v5017 = vadd.f32 %v4794, %v5016
        %5018 = vmatmul.bf16.gmra.mxu0 %v3979
        %v5019 = vpop.f32.mrf.mxu0
        %v5020 = vadd.f32 %v4797, %v5019
        %v5021 = vpop.f32.mrf.mxu0
        %v5022 = vadd.f32 %v4799, %v5021
        %5023 = vmatmul.bf16.gmra.mxu0 %v4022
        %v5024 = vpop.f32.mrf.mxu0
        %v5025 = vadd.f32 %v4802, %v5024
        %v5026 = vpop.f32.mrf.mxu0
        %v5027 = vadd.f32 %v4804, %v5026
        %5028 = vmatmul.bf16.gmra.mxu0 %v4065
        %v5029 = vpop.f32.mrf.mxu0
        %v5030 = vadd.f32 %v4807, %v5029
        %v5031 = vpop.f32.mrf.mxu0
        %v5032 = vadd.f32 %v4809, %v5031
        %5033 = vmatmul.bf16.gmra.mxu0 %v4108
        %v5034 = vpop.f32.mrf.mxu0
        %v5035 = vadd.f32 %v4812, %v5034
        %v5036 = vpop.f32.mrf.mxu0
        %v5037 = vadd.f32 %v4814, %v5036
        %5038 = vmatmul.bf16.gmra.mxu0 %v4151
        %v5039 = vpop.f32.mrf.mxu0
        %v5040 = vadd.f32 %v4817, %v5039
        %v5041 = vpop.f32.mrf.mxu0
        %v5042 = vadd.f32 %v4819, %v5041
        %5043 = vmatmul.bf16.gmra.mxu0 %v4194
        %v5044 = vpop.f32.mrf.mxu0
        %v5045 = vadd.f32 %v4822, %v5044
        %v5046 = vpop.f32.mrf.mxu0
        %v5047 = vadd.f32 %v4824, %v5046
        %5048 = vmatmul.bf16.gmra.mxu0 %v4237
        %v5049 = vpop.f32.mrf.mxu0
        %v5050 = vadd.f32 %v4827, %v5049
        %v5051 = vpop.f32.mrf.mxu0
        %v5052 = vadd.f32 %v4829, %v5051
        %5053 = vdwg.mxu0
        %5054 = vmatpush.bf16.msra.mxu0 %v4942
        %5055 = vmatpush.bf16.msra.mxu0 %v4941
        %5056 = vmatpush.bf16.msra.mxu0 %v4940
        %5057 = vmatpush.bf16.msra.mxu0 %v4939
        %5058 = vmatpush.bf16.msra.mxu0 %v4938
        %5059 = vmatpush.bf16.msra.mxu0 %v4937
        %5060 = vmatpush.bf16.msra.mxu0 %v4936
        %5061 = vmatpush.bf16.msra.mxu0 %v4935
        %5062 = vmatmul.bf16.gmra.mxu0 %v3687
        %v5063 = vpop.f32.mrf.mxu0
        %v5064 = vadd.f32 %v4985, %v5063
        %v5065 = vpop.f32.mrf.mxu0
        %v5066 = vadd.f32 %v4987, %v5065
        %5067 = vmatmul.bf16.gmra.mxu0 %v3730
        %v5068 = vpop.f32.mrf.mxu0
        %v5069 = vadd.f32 %v4990, %v5068
        %v5070 = vpop.f32.mrf.mxu0
        %v5071 = vadd.f32 %v4992, %v5070
        %5072 = vmatmul.bf16.gmra.mxu0 %v3773
        %v5073 = vpop.f32.mrf.mxu0
        %v5074 = vadd.f32 %v4995, %v5073
        %v5075 = vpop.f32.mrf.mxu0
        %v5076 = vadd.f32 %v4997, %v5075
        %5077 = vmatmul.bf16.gmra.mxu0 %v3816
        %v5078 = vpop.f32.mrf.mxu0
        %v5079 = vadd.f32 %v5000, %v5078
        %v5080 = vpop.f32.mrf.mxu0
        %v5081 = vadd.f32 %v5002, %v5080
        %5082 = vmatmul.bf16.gmra.mxu0 %v3859
        %v5083 = vpop.f32.mrf.mxu0
        %v5084 = vadd.f32 %v5005, %v5083
        %v5085 = vpop.f32.mrf.mxu0
        %v5086 = vadd.f32 %v5007, %v5085
        %5087 = vmatmul.bf16.gmra.mxu0 %v3902
        %v5088 = vpop.f32.mrf.mxu0
        %v5089 = vadd.f32 %v5010, %v5088
        %v5090 = vpop.f32.mrf.mxu0
        %v5091 = vadd.f32 %v5012, %v5090
        %5092 = vmatmul.bf16.gmra.mxu0 %v3945
        %v5093 = vpop.f32.mrf.mxu0
        %v5094 = vadd.f32 %v5015, %v5093
        %v5095 = vpop.f32.mrf.mxu0
        %v5096 = vadd.f32 %v5017, %v5095
        %5097 = vmatmul.bf16.gmra.mxu0 %v3988
        %v5098 = vpop.f32.mrf.mxu0
        %v5099 = vadd.f32 %v5020, %v5098
        %v5100 = vpop.f32.mrf.mxu0
        %v5101 = vadd.f32 %v5022, %v5100
        %5102 = vmatmul.bf16.gmra.mxu0 %v4031
        %v5103 = vpop.f32.mrf.mxu0
        %v5104 = vadd.f32 %v5025, %v5103
        %v5105 = vpop.f32.mrf.mxu0
        %v5106 = vadd.f32 %v5027, %v5105
        %5107 = vmatmul.bf16.gmra.mxu0 %v4074
        %v5108 = vpop.f32.mrf.mxu0
        %v5109 = vadd.f32 %v5030, %v5108
        %v5110 = vpop.f32.mrf.mxu0
        %v5111 = vadd.f32 %v5032, %v5110
        %5112 = vmatmul.bf16.gmra.mxu0 %v4117
        %v5113 = vpop.f32.mrf.mxu0
        %v5114 = vadd.f32 %v5035, %v5113
        %v5115 = vpop.f32.mrf.mxu0
        %v5116 = vadd.f32 %v5037, %v5115
        %5117 = vmatmul.bf16.gmra.mxu0 %v4160
        %v5118 = vpop.f32.mrf.mxu0
        %v5119 = vadd.f32 %v5040, %v5118
        %v5120 = vpop.f32.mrf.mxu0
        %v5121 = vadd.f32 %v5042, %v5120
        %5122 = vmatmul.bf16.gmra.mxu0 %v4203
        %v5123 = vpop.f32.mrf.mxu0
        %v5124 = vadd.f32 %v5045, %v5123
        %v5125 = vpop.f32.mrf.mxu0
        %v5126 = vadd.f32 %v5047, %v5125
        %5127 = vmatmul.bf16.gmra.mxu0 %v4246
        %v5128 = vpop.f32.mrf.mxu0
        %v5129 = vadd.f32 %v5050, %v5128
        %v5130 = vpop.f32.mrf.mxu0
        %v5131 = vadd.f32 %v5052, %v5130
        %5132 = vdwg.mxu0
        %5133 = vmatpush.bf16.msra.mxu0 %v4950
        %5134 = vmatpush.bf16.msra.mxu0 %v4949
        %5135 = vmatpush.bf16.msra.mxu0 %v4948
        %5136 = vmatpush.bf16.msra.mxu0 %v4947
        %5137 = vmatpush.bf16.msra.mxu0 %v4946
        %5138 = vmatpush.bf16.msra.mxu0 %v4945
        %5139 = vmatpush.bf16.msra.mxu0 %v4944
        %5140 = vmatpush.bf16.msra.mxu0 %v4943
        %5141 = vmatmul.bf16.gmra.mxu0 %v3704
        %v5142 = vpop.f32.mrf.mxu0
        %v5143 = vadd.f32 %v5064, %v5142
        %v5144 = vpop.f32.mrf.mxu0
        %v5145 = vadd.f32 %v5066, %v5144
        %5146 = vmatmul.bf16.gmra.mxu0 %v3747
        %v5147 = vpop.f32.mrf.mxu0
        %v5148 = vadd.f32 %v5069, %v5147
        %v5149 = vpop.f32.mrf.mxu0
        %v5150 = vadd.f32 %v5071, %v5149
        %5151 = vmatmul.bf16.gmra.mxu0 %v3790
        %v5152 = vpop.f32.mrf.mxu0
        %v5153 = vadd.f32 %v5074, %v5152
        %v5154 = vpop.f32.mrf.mxu0
        %v5155 = vadd.f32 %v5076, %v5154
        %5156 = vmatmul.bf16.gmra.mxu0 %v3833
        %v5157 = vpop.f32.mrf.mxu0
        %v5158 = vadd.f32 %v5079, %v5157
        %v5159 = vpop.f32.mrf.mxu0
        %v5160 = vadd.f32 %v5081, %v5159
        %5161 = vmatmul.bf16.gmra.mxu0 %v3876
        %v5162 = vpop.f32.mrf.mxu0
        %v5163 = vadd.f32 %v5084, %v5162
        %v5164 = vpop.f32.mrf.mxu0
        %v5165 = vadd.f32 %v5086, %v5164
        %5166 = vmatmul.bf16.gmra.mxu0 %v3919
        %v5167 = vpop.f32.mrf.mxu0
        %v5168 = vadd.f32 %v5089, %v5167
        %v5169 = vpop.f32.mrf.mxu0
        %v5170 = vadd.f32 %v5091, %v5169
        %5171 = vmatmul.bf16.gmra.mxu0 %v3962
        %v5172 = vpop.f32.mrf.mxu0
        %v5173 = vadd.f32 %v5094, %v5172
        %v5174 = vpop.f32.mrf.mxu0
        %v5175 = vadd.f32 %v5096, %v5174
        %5176 = vmatmul.bf16.gmra.mxu0 %v4005
        %v5177 = vpop.f32.mrf.mxu0
        %v5178 = vadd.f32 %v5099, %v5177
        %v5179 = vpop.f32.mrf.mxu0
        %v5180 = vadd.f32 %v5101, %v5179
        %5181 = vmatmul.bf16.gmra.mxu0 %v4048
        %v5182 = vpop.f32.mrf.mxu0
        %v5183 = vadd.f32 %v5104, %v5182
        %v5184 = vpop.f32.mrf.mxu0
        %v5185 = vadd.f32 %v5106, %v5184
        %5186 = vmatmul.bf16.gmra.mxu0 %v4091
        %v5187 = vpop.f32.mrf.mxu0
        %v5188 = vadd.f32 %v5109, %v5187
        %v5189 = vpop.f32.mrf.mxu0
        %v5190 = vadd.f32 %v5111, %v5189
        %5191 = vmatmul.bf16.gmra.mxu0 %v4134
        %v5192 = vpop.f32.mrf.mxu0
        %v5193 = vadd.f32 %v5114, %v5192
        %v5194 = vpop.f32.mrf.mxu0
        %v5195 = vadd.f32 %v5116, %v5194
        %5196 = vmatmul.bf16.gmra.mxu0 %v4177
        %v5197 = vpop.f32.mrf.mxu0
        %v5198 = vadd.f32 %v5119, %v5197
        %v5199 = vpop.f32.mrf.mxu0
        %v5200 = vadd.f32 %v5121, %v5199
        %5201 = vmatmul.bf16.gmra.mxu0 %v4220
        %v5202 = vpop.f32.mrf.mxu0
        %v5203 = vadd.f32 %v5124, %v5202
        %v5204 = vpop.f32.mrf.mxu0
        %v5205 = vadd.f32 %v5126, %v5204
        %5206 = vmatmul.bf16.gmra.mxu0 %v4263
        %v5207 = vpop.f32.mrf.mxu0
        %v5208 = vadd.f32 %v5129, %v5207
        %v5209 = vpop.f32.mrf.mxu0
        %v5210 = vadd.f32 %v5131, %v5209
        %5211 = vdwg.mxu0
        %v5213 = vshrl.u32 %v3420, 16
        %v5215 = vrot.slane %v5213, 3
        %v5216 = vshll.u32 %v3420, 16
        %v5218 = vrot.slane %v5216, 4
        %v5219 = vor.u32 %v5215, %v5218
        %v5221 = vshrl.u32 %v3421, 16
        %v5223 = vrot.slane %v5221, 3
        %v5224 = vshll.u32 %v3421, 16
        %v5226 = vrot.slane %v5224, 4
        %v5227 = vor.u32 %v5223, %v5226
        %v5228 = vsel %vm859, %v5219, %v5227
        %v5230 = vshrl.u32 %v3565, 16
        %v5232 = vrot.slane %v5230, 3
        %v5233 = vshll.u32 %v3565, 16
        %v5235 = vrot.slane %v5233, 4
        %v5236 = vor.u32 %v5232, %v5235
        %v5237 = vsel %vm859, %v5236, %v5236
        %v5239 = vshrl.u32 %v3659, 16
        %v5241 = vrot.slane %v5239, 3
        %v5242 = vshll.u32 %v3659, 16
        %v5244 = vrot.slane %v5242, 4
        %v5245 = vor.u32 %v5241, %v5244
        %v5247 = vshrl.u32 %v3661, 16
        %v5249 = vrot.slane %v5247, 3
        %v5250 = vshll.u32 %v3661, 16
        %v5252 = vrot.slane %v5250, 4
        %v5253 = vor.u32 %v5249, %v5252
        %v5254 = vsel %vm859, %v5245, %v5253
        %s5258 = scalar_lea.vmem [#allocation5], 960
        %v5259 = vld [vmem:[%s5258] sm:$0xf]
        %v5260 = vld [vmem:[%s5258 + $0x4] sm:$0xf]
        %v5261 = vld [vmem:[%s5258 + $0x8] sm:$0xf]
        %v5262 = vld [vmem:[%s5258 + $0xc] sm:$0xf]
        %v5263 = vld [vmem:[%s5258 + $0x10] sm:$0xf]
        %v5264 = vld [vmem:[%s5258 + $0x14] sm:$0xf]
        %v5265 = vld [vmem:[%s5258 + $0x18] sm:$0xf]
        %v5266 = vld [vmem:[%s5258 + $0x1c] sm:$0xf]
        %v5267 = vld [vmem:[%s5258 + $0x20] sm:$0xf]
        %v5268 = vld [vmem:[%s5258 + $0x24] sm:$0xf]
        %v5269 = vld [vmem:[%s5258 + $0x28] sm:$0xf]
        %v5270 = vld [vmem:[%s5258 + $0x2c] sm:$0xf]
        %v5271 = vld [vmem:[%s5258 + $0x30] sm:$0xf]
        %v5272 = vld [vmem:[%s5258 + $0x34] sm:$0xf]
        %v5273 = vld [vmem:[%s5258 + $0x38] sm:$0xf]
        %v5274 = vld [vmem:[%s5258 + $0x3c] sm:$0xf]
        %v5275 = vld [vmem:[%s5258 + $0x40] sm:$0xf]
        %v5276 = vld [vmem:[%s5258 + $0x44] sm:$0xf]
        %v5277 = vld [vmem:[%s5258 + $0x48] sm:$0xf]
        %v5278 = vld [vmem:[%s5258 + $0x4c] sm:$0xf]
        %v5279 = vld [vmem:[%s5258 + $0x50] sm:$0xf]
        %v5280 = vld [vmem:[%s5258 + $0x54] sm:$0xf]
        %v5281 = vld [vmem:[%s5258 + $0x58] sm:$0xf]
        %v5282 = vld [vmem:[%s5258 + $0x5c] sm:$0xf]
        %v5283 = vld [vmem:[%s5258 + $0x60] sm:$0xf]
        %v5284 = vld [vmem:[%s5258 + $0x64] sm:$0xf]
        %v5285 = vld [vmem:[%s5258 + $0x68] sm:$0xf]
        %v5286 = vld [vmem:[%s5258 + $0x6c] sm:$0xf]
        %v5287 = vld [vmem:[%s5258 + $0x70] sm:$0xf]
        %v5288 = vld [vmem:[%s5258 + $0x74] sm:$0xf]
        %v5289 = vld [vmem:[%s5258 + $0x78] sm:$0xf]
        %v5290 = vld [vmem:[%s5258 + $0x7c] sm:$0xf]
        %v5291 = vld [vmem:[%s5258 + $0x80] sm:$0xf]
        %v5292 = vld [vmem:[%s5258 + $0x84] sm:$0xf]
        %v5293 = vld [vmem:[%s5258 + $0x88] sm:$0xf]
        %v5294 = vld [vmem:[%s5258 + $0x8c] sm:$0xf]
        %v5295 = vld [vmem:[%s5258 + $0x90] sm:$0xf]
        %v5296 = vld [vmem:[%s5258 + $0x94] sm:$0xf]
        %v5297 = vld [vmem:[%s5258 + $0x98] sm:$0xf]
        %v5298 = vld [vmem:[%s5258 + $0x9c] sm:$0xf]
        %v5299 = vld [vmem:[%s5258 + $0xa0] sm:$0xf]
        %v5300 = vld [vmem:[%s5258 + $0xa4] sm:$0xf]
        %v5301 = vld [vmem:[%s5258 + $0xa8] sm:$0xf]
        %v5302 = vld [vmem:[%s5258 + $0xac] sm:$0xf]
        %v5303 = vld [vmem:[%s5258 + $0xb0] sm:$0xf]
        %v5304 = vld [vmem:[%s5258 + $0xb4] sm:$0xf]
        %v5305 = vld [vmem:[%s5258 + $0xb8] sm:$0xf]
        %v5306 = vld [vmem:[%s5258 + $0xbc] sm:$0xf]
        %v5355 = vunpack.c.l.b16 %v5259
        %v5356 = vunpack.c.l.b16 %v5260
        %v5357 = vunpack.c.l.b16 %v5261
        %v5358 = vunpack.c.l.b16 %v5262
        %v5359 = vunpack.c.l.b16 %v5263
        %v5360 = vunpack.c.l.b16 %v5264
        %v5361 = vunpack.c.l.b16 %v5265
        %v5362 = vunpack.c.l.b16 %v5266
        %v5363 = vunpack.c.l.b16 %v5267
        %v5364 = vunpack.c.l.b16 %v5268
        %v5365 = vunpack.c.l.b16 %v5269
        %v5366 = vunpack.c.l.b16 %v5270
        %v5367 = vunpack.c.l.b16 %v5271
        %v5368 = vunpack.c.l.b16 %v5272
        %v5369 = vunpack.c.l.b16 %v5273
        %v5370 = vunpack.c.l.b16 %v5274
        %v5371 = vunpack.c.l.b16 %v5275
        %v5372 = vunpack.c.l.b16 %v5276
        %v5373 = vunpack.c.l.b16 %v5277
        %v5374 = vunpack.c.l.b16 %v5278
        %v5375 = vunpack.c.l.b16 %v5279
        %v5376 = vunpack.c.l.b16 %v5280
        %v5377 = vunpack.c.l.b16 %v5281
        %v5378 = vunpack.c.l.b16 %v5282
        %v5379 = vunpack.c.l.b16 %v5283
        %v5380 = vunpack.c.l.b16 %v5284
        %v5381 = vunpack.c.l.b16 %v5285
        %v5382 = vunpack.c.l.b16 %v5286
        %v5383 = vunpack.c.l.b16 %v5287
        %v5384 = vunpack.c.l.b16 %v5288
        %v5385 = vunpack.c.l.b16 %v5289
        %v5386 = vunpack.c.l.b16 %v5290
        %v5387 = vunpack.c.l.b16 %v5291
        %v5388 = vunpack.c.l.b16 %v5292
        %v5389 = vunpack.c.l.b16 %v5293
        %v5390 = vunpack.c.l.b16 %v5294
        %v5391 = vunpack.c.l.b16 %v5295
        %v5392 = vunpack.c.l.b16 %v5296
        %v5393 = vunpack.c.l.b16 %v5297
        %v5394 = vunpack.c.l.b16 %v5298
        %v5395 = vunpack.c.l.b16 %v5299
        %v5396 = vunpack.c.l.b16 %v5300
        %v5397 = vunpack.c.l.b16 %v5301
        %v5398 = vunpack.c.l.b16 %v5302
        %v5399 = vunpack.c.l.b16 %v5303
        %v5400 = vunpack.c.l.b16 %v5304
        %v5401 = vunpack.c.l.b16 %v5305
        %v5402 = vunpack.c.l.b16 %v5306
        %v5403 = vpack.c.b16 %v5356, %v5355
        %v5404 = vpack.c.b16 %v5358, %v5357
        %v5405 = vpack.c.b16 %v5360, %v5359
        %v5406 = vpack.c.b16 %v5362, %v5361
        %v5407 = vpack.c.b16 %v5364, %v5363
        %v5408 = vpack.c.b16 %v5366, %v5365
        %v5409 = vpack.c.b16 %v5368, %v5367
        %v5410 = vpack.c.b16 %v5370, %v5369
        %v5411 = vpack.c.b16 %v5372, %v5371
        %v5412 = vpack.c.b16 %v5374, %v5373
        %v5413 = vpack.c.b16 %v5376, %v5375
        %v5414 = vpack.c.b16 %v5378, %v5377
        %v5415 = vpack.c.b16 %v5380, %v5379
        %v5416 = vpack.c.b16 %v5382, %v5381
        %v5417 = vpack.c.b16 %v5384, %v5383
        %v5418 = vpack.c.b16 %v5386, %v5385
        %v5419 = vpack.c.b16 %v5388, %v5387
        %v5420 = vpack.c.b16 %v5390, %v5389
        %v5421 = vpack.c.b16 %v5392, %v5391
        %v5422 = vpack.c.b16 %v5394, %v5393
        %v5423 = vpack.c.b16 %v5396, %v5395
        %v5424 = vpack.c.b16 %v5398, %v5397
        %v5425 = vpack.c.b16 %v5400, %v5399
        %v5426 = vpack.c.b16 %v5402, %v5401
        %5451 = vmatpush.bf16.msra.mxu0 %v5410
        %5452 = vmatpush.bf16.msra.mxu0 %v5409
        %5453 = vmatpush.bf16.msra.mxu0 %v5408
        %5454 = vmatpush.bf16.msra.mxu0 %v5407
        %5455 = vmatpush.bf16.msra.mxu0 %v5406
        %5456 = vmatpush.bf16.msra.mxu0 %v5405
        %5457 = vmatpush.bf16.msra.mxu0 %v5404
        %5458 = vmatpush.bf16.msra.mxu0 %v5403
        %5459 = vmatmul.bf16.gmra.mxu0 %v3764
        %v5460 = vpop.f32.mrf.mxu0
        %v5461 = vadd.f32 0.0, %v5460
        %v5462 = vpop.f32.mrf.mxu0
        %v5463 = vadd.f32 0.0, %v5462
        %5464 = vmatmul.bf16.gmra.mxu0 %v3807
        %v5465 = vpop.f32.mrf.mxu0
        %v5466 = vadd.f32 0.0, %v5465
        %v5467 = vpop.f32.mrf.mxu0
        %v5468 = vadd.f32 0.0, %v5467
        %5469 = vmatmul.bf16.gmra.mxu0 %v3850
        %v5470 = vpop.f32.mrf.mxu0
        %v5471 = vadd.f32 0.0, %v5470
        %v5472 = vpop.f32.mrf.mxu0
        %v5473 = vadd.f32 0.0, %v5472
        %5474 = vmatmul.bf16.gmra.mxu0 %v3893
        %v5475 = vpop.f32.mrf.mxu0
        %v5476 = vadd.f32 0.0, %v5475
        %v5477 = vpop.f32.mrf.mxu0
        %v5478 = vadd.f32 0.0, %v5477
        %5479 = vmatmul.bf16.gmra.mxu0 %v3936
        %v5480 = vpop.f32.mrf.mxu0
        %v5481 = vadd.f32 0.0, %v5480
        %v5482 = vpop.f32.mrf.mxu0
        %v5483 = vadd.f32 0.0, %v5482
        %5484 = vmatmul.bf16.gmra.mxu0 %v3979
        %v5485 = vpop.f32.mrf.mxu0
        %v5486 = vadd.f32 0.0, %v5485
        %v5487 = vpop.f32.mrf.mxu0
        %v5488 = vadd.f32 0.0, %v5487
        %5489 = vmatmul.bf16.gmra.mxu0 %v4022
        %v5490 = vpop.f32.mrf.mxu0
        %v5491 = vadd.f32 0.0, %v5490
        %v5492 = vpop.f32.mrf.mxu0
        %v5493 = vadd.f32 0.0, %v5492
        %5494 = vmatmul.bf16.gmra.mxu0 %v4065
        %v5495 = vpop.f32.mrf.mxu0
        %v5496 = vadd.f32 0.0, %v5495
        %v5497 = vpop.f32.mrf.mxu0
        %v5498 = vadd.f32 0.0, %v5497
        %5499 = vmatmul.bf16.gmra.mxu0 %v4108
        %v5500 = vpop.f32.mrf.mxu0
        %v5501 = vadd.f32 0.0, %v5500
        %v5502 = vpop.f32.mrf.mxu0
        %v5503 = vadd.f32 0.0, %v5502
        %5504 = vmatmul.bf16.gmra.mxu0 %v4151
        %v5505 = vpop.f32.mrf.mxu0
        %v5506 = vadd.f32 0.0, %v5505
        %v5507 = vpop.f32.mrf.mxu0
        %v5508 = vadd.f32 0.0, %v5507
        %5509 = vmatmul.bf16.gmra.mxu0 %v4194
        %v5510 = vpop.f32.mrf.mxu0
        %v5511 = vadd.f32 0.0, %v5510
        %v5512 = vpop.f32.mrf.mxu0
        %v5513 = vadd.f32 0.0, %v5512
        %5514 = vmatmul.bf16.gmra.mxu0 %v4237
        %v5515 = vpop.f32.mrf.mxu0
        %v5516 = vadd.f32 0.0, %v5515
        %v5517 = vpop.f32.mrf.mxu0
        %v5518 = vadd.f32 0.0, %v5517
        %5519 = vmatmul.bf16.gmra.mxu0 %v4371
        %v5520 = vpop.f32.mrf.mxu0
        %v5521 = vadd.f32 0.0, %v5520
        %v5522 = vpop.f32.mrf.mxu0
        %v5523 = vadd.f32 0.0, %v5522
        %5524 = vmatmul.bf16.gmra.mxu0 %v5228
        %v5525 = vpop.f32.mrf.mxu0
        %v5526 = vadd.f32 0.0, %v5525
        %v5527 = vpop.f32.mrf.mxu0
        %v5528 = vadd.f32 0.0, %v5527
        %5529 = vdwg.mxu0
        %5530 = vmatpush.bf16.msra.mxu0 %v5418
        %5531 = vmatpush.bf16.msra.mxu0 %v5417
        %5532 = vmatpush.bf16.msra.mxu0 %v5416
        %5533 = vmatpush.bf16.msra.mxu0 %v5415
        %5534 = vmatpush.bf16.msra.mxu0 %v5414
        %5535 = vmatpush.bf16.msra.mxu0 %v5413
        %5536 = vmatpush.bf16.msra.mxu0 %v5412
        %5537 = vmatpush.bf16.msra.mxu0 %v5411
        %5538 = vmatmul.bf16.gmra.mxu0 %v3773
        %v5539 = vpop.f32.mrf.mxu0
        %v5540 = vadd.f32 %v5461, %v5539
        %v5541 = vpop.f32.mrf.mxu0
        %v5542 = vadd.f32 %v5463, %v5541
        %5543 = vmatmul.bf16.gmra.mxu0 %v3816
        %v5544 = vpop.f32.mrf.mxu0
        %v5545 = vadd.f32 %v5466, %v5544
        %v5546 = vpop.f32.mrf.mxu0
        %v5547 = vadd.f32 %v5468, %v5546
        %5548 = vmatmul.bf16.gmra.mxu0 %v3859
        %v5549 = vpop.f32.mrf.mxu0
        %v5550 = vadd.f32 %v5471, %v5549
        %v5551 = vpop.f32.mrf.mxu0
        %v5552 = vadd.f32 %v5473, %v5551
        %5553 = vmatmul.bf16.gmra.mxu0 %v3902
        %v5554 = vpop.f32.mrf.mxu0
        %v5555 = vadd.f32 %v5476, %v5554
        %v5556 = vpop.f32.mrf.mxu0
        %v5557 = vadd.f32 %v5478, %v5556
        %5558 = vmatmul.bf16.gmra.mxu0 %v3945
        %v5559 = vpop.f32.mrf.mxu0
        %v5560 = vadd.f32 %v5481, %v5559
        %v5561 = vpop.f32.mrf.mxu0
        %v5562 = vadd.f32 %v5483, %v5561
        %5563 = vmatmul.bf16.gmra.mxu0 %v3988
        %v5564 = vpop.f32.mrf.mxu0
        %v5565 = vadd.f32 %v5486, %v5564
        %v5566 = vpop.f32.mrf.mxu0
        %v5567 = vadd.f32 %v5488, %v5566
        %5568 = vmatmul.bf16.gmra.mxu0 %v4031
        %v5569 = vpop.f32.mrf.mxu0
        %v5570 = vadd.f32 %v5491, %v5569
        %v5571 = vpop.f32.mrf.mxu0
        %v5572 = vadd.f32 %v5493, %v5571
        %5573 = vmatmul.bf16.gmra.mxu0 %v4074
        %v5574 = vpop.f32.mrf.mxu0
        %v5575 = vadd.f32 %v5496, %v5574
        %v5576 = vpop.f32.mrf.mxu0
        %v5577 = vadd.f32 %v5498, %v5576
        %5578 = vmatmul.bf16.gmra.mxu0 %v4117
        %v5579 = vpop.f32.mrf.mxu0
        %v5580 = vadd.f32 %v5501, %v5579
        %v5581 = vpop.f32.mrf.mxu0
        %v5582 = vadd.f32 %v5503, %v5581
        %5583 = vmatmul.bf16.gmra.mxu0 %v4160
        %v5584 = vpop.f32.mrf.mxu0
        %v5585 = vadd.f32 %v5506, %v5584
        %v5586 = vpop.f32.mrf.mxu0
        %v5587 = vadd.f32 %v5508, %v5586
        %5588 = vmatmul.bf16.gmra.mxu0 %v4203
        %v5589 = vpop.f32.mrf.mxu0
        %v5590 = vadd.f32 %v5511, %v5589
        %v5591 = vpop.f32.mrf.mxu0
        %v5592 = vadd.f32 %v5513, %v5591
        %5593 = vmatmul.bf16.gmra.mxu0 %v4246
        %v5594 = vpop.f32.mrf.mxu0
        %v5595 = vadd.f32 %v5516, %v5594
        %v5596 = vpop.f32.mrf.mxu0
        %v5597 = vadd.f32 %v5518, %v5596
        %5598 = vmatmul.bf16.gmra.mxu0 %v4380
        %v5599 = vpop.f32.mrf.mxu0
        %v5600 = vadd.f32 %v5521, %v5599
        %v5601 = vpop.f32.mrf.mxu0
        %v5602 = vadd.f32 %v5523, %v5601
        %5603 = vmatmul.bf16.gmra.mxu0 %v5237
        %v5604 = vpop.f32.mrf.mxu0
        %v5605 = vadd.f32 %v5526, %v5604
        %v5606 = vpop.f32.mrf.mxu0
        %v5607 = vadd.f32 %v5528, %v5606
        %5608 = vdwg.mxu0
        %5609 = vmatpush.bf16.msra.mxu0 %v5426
        %5610 = vmatpush.bf16.msra.mxu0 %v5425
        %5611 = vmatpush.bf16.msra.mxu0 %v5424
        %5612 = vmatpush.bf16.msra.mxu0 %v5423
        %5613 = vmatpush.bf16.msra.mxu0 %v5422
        %5614 = vmatpush.bf16.msra.mxu0 %v5421
        %5615 = vmatpush.bf16.msra.mxu0 %v5420
        %5616 = vmatpush.bf16.msra.mxu0 %v5419
        %5617 = vmatmul.bf16.gmra.mxu0 %v3790
        %v5618 = vpop.f32.mrf.mxu0
        %v5619 = vadd.f32 %v5540, %v5618
        %v5620 = vpop.f32.mrf.mxu0
        %v5621 = vadd.f32 %v5542, %v5620
        %5622 = vmatmul.bf16.gmra.mxu0 %v3833
        %v5623 = vpop.f32.mrf.mxu0
        %v5624 = vadd.f32 %v5545, %v5623
        %v5625 = vpop.f32.mrf.mxu0
        %v5626 = vadd.f32 %v5547, %v5625
        %5627 = vmatmul.bf16.gmra.mxu0 %v3876
        %v5628 = vpop.f32.mrf.mxu0
        %v5629 = vadd.f32 %v5550, %v5628
        %v5630 = vpop.f32.mrf.mxu0
        %v5631 = vadd.f32 %v5552, %v5630
        %5632 = vmatmul.bf16.gmra.mxu0 %v3919
        %v5633 = vpop.f32.mrf.mxu0
        %v5634 = vadd.f32 %v5555, %v5633
        %v5635 = vpop.f32.mrf.mxu0
        %v5636 = vadd.f32 %v5557, %v5635
        %5637 = vmatmul.bf16.gmra.mxu0 %v3962
        %v5638 = vpop.f32.mrf.mxu0
        %v5639 = vadd.f32 %v5560, %v5638
        %v5640 = vpop.f32.mrf.mxu0
        %v5641 = vadd.f32 %v5562, %v5640
        %5642 = vmatmul.bf16.gmra.mxu0 %v4005
        %v5643 = vpop.f32.mrf.mxu0
        %v5644 = vadd.f32 %v5565, %v5643
        %v5645 = vpop.f32.mrf.mxu0
        %v5646 = vadd.f32 %v5567, %v5645
        %5647 = vmatmul.bf16.gmra.mxu0 %v4048
        %v5648 = vpop.f32.mrf.mxu0
        %v5649 = vadd.f32 %v5570, %v5648
        %v5650 = vpop.f32.mrf.mxu0
        %v5651 = vadd.f32 %v5572, %v5650
        %5652 = vmatmul.bf16.gmra.mxu0 %v4091
        %v5653 = vpop.f32.mrf.mxu0
        %v5654 = vadd.f32 %v5575, %v5653
        %v5655 = vpop.f32.mrf.mxu0
        %v5656 = vadd.f32 %v5577, %v5655
        %5657 = vmatmul.bf16.gmra.mxu0 %v4134
        %v5658 = vpop.f32.mrf.mxu0
        %v5659 = vadd.f32 %v5580, %v5658
        %v5660 = vpop.f32.mrf.mxu0
        %v5661 = vadd.f32 %v5582, %v5660
        %5662 = vmatmul.bf16.gmra.mxu0 %v4177
        %v5663 = vpop.f32.mrf.mxu0
        %v5664 = vadd.f32 %v5585, %v5663
        %v5665 = vpop.f32.mrf.mxu0
        %v5666 = vadd.f32 %v5587, %v5665
        %5667 = vmatmul.bf16.gmra.mxu0 %v4220
        %v5668 = vpop.f32.mrf.mxu0
        %v5669 = vadd.f32 %v5590, %v5668
        %v5670 = vpop.f32.mrf.mxu0
        %v5671 = vadd.f32 %v5592, %v5670
        %5672 = vmatmul.bf16.gmra.mxu0 %v4263
        %v5673 = vpop.f32.mrf.mxu0
        %v5674 = vadd.f32 %v5595, %v5673
        %v5675 = vpop.f32.mrf.mxu0
        %v5676 = vadd.f32 %v5597, %v5675
        %5677 = vmatmul.bf16.gmra.mxu0 %v4397
        %v5678 = vpop.f32.mrf.mxu0
        %v5679 = vadd.f32 %v5600, %v5678
        %v5680 = vpop.f32.mrf.mxu0
        %v5681 = vadd.f32 %v5602, %v5680
        %5682 = vmatmul.bf16.gmra.mxu0 %v5254
        %v5683 = vpop.f32.mrf.mxu0
        %v5684 = vadd.f32 %v5605, %v5683
        %v5685 = vpop.f32.mrf.mxu0
        %v5686 = vadd.f32 %v5607, %v5685
        %5687 = vdwg.mxu0
        %v5688 = vadd.f32 %v5143, %v5619
        %v5689 = vadd.f32 %v5145, %v5621
        %v5690 = vadd.f32 %v5148, %v5624
        %v5691 = vadd.f32 %v5150, %v5626
        %v5692 = vadd.f32 %v5153, %v5629
        %v5693 = vadd.f32 %v5155, %v5631
        %v5694 = vadd.f32 %v5158, %v5634
        %v5695 = vadd.f32 %v5160, %v5636
        %v5696 = vadd.f32 %v5163, %v5639
        %v5697 = vadd.f32 %v5165, %v5641
        %v5698 = vadd.f32 %v5168, %v5644
        %v5699 = vadd.f32 %v5170, %v5646
        %v5700 = vadd.f32 %v5173, %v5649
        %v5701 = vadd.f32 %v5175, %v5651
        %v5702 = vadd.f32 %v5178, %v5654
        %v5703 = vadd.f32 %v5180, %v5656
        %v5704 = vadd.f32 %v5183, %v5659
        %v5705 = vadd.f32 %v5185, %v5661
        %v5706 = vadd.f32 %v5188, %v5664
        %v5707 = vadd.f32 %v5190, %v5666
        %v5708 = vadd.f32 %v5193, %v5669
        %v5709 = vadd.f32 %v5195, %v5671
        %v5710 = vadd.f32 %v5198, %v5674
        %v5711 = vadd.f32 %v5200, %v5676
        %v5712 = vadd.f32 %v5203, %v5679
        %v5713 = vadd.f32 %v5205, %v5681
        %v5714 = vadd.f32 %v5208, %v5684
        %v5715 = vadd.f32 %v5210, %v5686
        %s5716 = scalar_lea.vmem [#allocation7], 1
        %v5717 = vld [vmem:[%s5716] sm:$0x1]
        %v5719 = vperm.slane %v5717, 0
        %v5721 = vadd.f32 %v5688, %v5719
        %v5722 = vadd.f32 %v5689, %v5719
        %v5723 = vadd.f32 %v5690, %v5719
        %v5724 = vadd.f32 %v5691, %v5719
        %v5725 = vadd.f32 %v5692, %v5719
        %v5726 = vadd.f32 %v5693, %v5719
        %v5727 = vadd.f32 %v5694, %v5719
        %v5728 = vadd.f32 %v5695, %v5719
        %v5729 = vadd.f32 %v5696, %v5719
        %v5730 = vadd.f32 %v5697, %v5719
        %v5731 = vadd.f32 %v5698, %v5719
        %v5732 = vadd.f32 %v5699, %v5719
        %v5733 = vadd.f32 %v5700, %v5719
        %v5734 = vadd.f32 %v5701, %v5719
        %v5735 = vadd.f32 %v5702, %v5719
        %v5736 = vadd.f32 %v5703, %v5719
        %v5737 = vadd.f32 %v5704, %v5719
        %v5738 = vadd.f32 %v5705, %v5719
        %v5739 = vadd.f32 %v5706, %v5719
        %v5740 = vadd.f32 %v5707, %v5719
        %v5741 = vadd.f32 %v5708, %v5719
        %v5742 = vadd.f32 %v5709, %v5719
        %v5743 = vadd.f32 %v5710, %v5719
        %v5744 = vadd.f32 %v5711, %v5719
        %v5745 = vadd.f32 %v5712, %v5719
        %v5746 = vadd.f32 %v5713, %v5719
        %v5747 = vadd.f32 %v5714, %v5719
        %v5748 = vadd.f32 %v5715, %v5719
        %v5749 = vpack.c.bf16 %v5721, %v5721
        %v5750 = vpack.c.bf16 %v5722, %v5722
        %v5751 = vpack.c.bf16 %v5723, %v5723
        %v5752 = vpack.c.bf16 %v5724, %v5724
        %v5753 = vpack.c.bf16 %v5725, %v5725
        %v5754 = vpack.c.bf16 %v5726, %v5726
        %v5755 = vpack.c.bf16 %v5727, %v5727
        %v5756 = vpack.c.bf16 %v5728, %v5728
        %v5757 = vpack.c.bf16 %v5729, %v5729
        %v5758 = vpack.c.bf16 %v5730, %v5730
        %v5759 = vpack.c.bf16 %v5731, %v5731
        %v5760 = vpack.c.bf16 %v5732, %v5732
        %v5761 = vpack.c.bf16 %v5733, %v5733
        %v5762 = vpack.c.bf16 %v5734, %v5734
        %v5763 = vpack.c.bf16 %v5735, %v5735
        %v5764 = vpack.c.bf16 %v5736, %v5736
        %v5765 = vpack.c.bf16 %v5737, %v5737
        %v5766 = vpack.c.bf16 %v5738, %v5738
        %v5767 = vpack.c.bf16 %v5739, %v5739
        %v5768 = vpack.c.bf16 %v5740, %v5740
        %v5769 = vpack.c.bf16 %v5741, %v5741
        %v5770 = vpack.c.bf16 %v5742, %v5742
        %v5771 = vpack.c.bf16 %v5743, %v5743
        %v5772 = vpack.c.bf16 %v5744, %v5744
        %v5773 = vpack.c.bf16 %v5745, %v5745
        %v5774 = vpack.c.bf16 %v5746, %v5746
        %v5775 = vpack.c.bf16 %v5747, %v5747
        %v5776 = vpack.c.bf16 %v5748, %v5748
        %s5777 = scalar_lea.vmem [#allocation2], 48
        %5778 = vst [vmem:[%s5777 + $0x4] sm:$0xf] %v5749
        %5779 = vst [vmem:[%s5777 + $0x8] sm:$0xf] %v5750
        %5780 = vst [vmem:[%s5777 + $0x14] sm:$0xf] %v5751
        %5781 = vst [vmem:[%s5777 + $0x18] sm:$0xf] %v5752
        %5782 = vst [vmem:[%s5777 + $0x24] sm:$0xf] %v5753
        %5783 = vst [vmem:[%s5777 + $0x28] sm:$0xf] %v5754
        %5784 = vst [vmem:[%s5777 + $0x34] sm:$0xf] %v5755
        %5785 = vst [vmem:[%s5777 + $0x38] sm:$0xf] %v5756
        %5786 = vst [vmem:[%s5777 + $0x44] sm:$0xf] %v5757
        %5787 = vst [vmem:[%s5777 + $0x48] sm:$0xf] %v5758
        %5788 = vst [vmem:[%s5777 + $0x54] sm:$0xf] %v5759
        %5789 = vst [vmem:[%s5777 + $0x58] sm:$0xf] %v5760
        %5790 = vst [vmem:[%s5777 + $0x64] sm:$0xf] %v5761
        %5791 = vst [vmem:[%s5777 + $0x68] sm:$0xf] %v5762
        %5792 = vst [vmem:[%s5777 + $0x74] sm:$0xf] %v5763
        %5793 = vst [vmem:[%s5777 + $0x78] sm:$0xf] %v5764
        %5794 = vst [vmem:[%s5777 + $0x84] sm:$0xf] %v5765
        %5795 = vst [vmem:[%s5777 + $0x88] sm:$0xf] %v5766
        %5796 = vst [vmem:[%s5777 + $0x94] sm:$0xf] %v5767
        %5797 = vst [vmem:[%s5777 + $0x98] sm:$0xf] %v5768
        %5798 = vst [vmem:[%s5777 + $0xa4] sm:$0xf] %v5769
        %5799 = vst [vmem:[%s5777 + $0xa8] sm:$0xf] %v5770
        %5800 = vst [vmem:[%s5777 + $0xb4] sm:$0xf] %v5771
        %5801 = vst [vmem:[%s5777 + $0xb8] sm:$0xf] %v5772
        %5802 = vst [vmem:[%s5777 + $0xc4] sm:$0xf] %v5773
        %5803 = vst [vmem:[%s5777 + $0xc8] sm:$0xf] %v5774
        %5804 = vst [vmem:[%s5777 + $0xd4] sm:$0xf] %v5775
        %5805 = vst [vmem:[%s5777 + $0xd8] sm:$0xf] %v5776
        // Predicated region
        $region57: #{tpu_custom_call.1} parent=35 // pred_check
          %p5806 = pneg %p3200
        $region58: #{tpu_custom_call.1} parent=35 // pred_check_branch
          %5808 = sbr.rel (%p5806) target = $region60
        $region59: #{tpu_custom_call.1} parent=35 // pred_region
          %5809 = vst [vmem:[%s371 + $0x4] sm:$0xf] 0
          %5810 = vst [vmem:[%s371 + $0x8] sm:$0xf] 0
          %5811 = vst [vmem:[%s371 + $0x14] sm:$0xf] 0
          %5812 = vst [vmem:[%s371 + $0x18] sm:$0xf] 0
          %5813 = vst [vmem:[%s371 + $0x24] sm:$0xf] 0
          %5814 = vst [vmem:[%s371 + $0x28] sm:$0xf] 0
          %5815 = vst [vmem:[%s371 + $0x34] sm:$0xf] 0
          %5816 = vst [vmem:[%s371 + $0x38] sm:$0xf] 0
          %5817 = vst [vmem:[%s371 + $0x44] sm:$0xf] 0
          %5818 = vst [vmem:[%s371 + $0x48] sm:$0xf] 0
        $region60: #{tpu_custom_call.1} parent=35 // pred_fallthru
          _
        // Predicated region
        $region61: #{tpu_custom_call.1} parent=35 // pred_check
          %p5819 = pneg %p3215
        $region62: #{tpu_custom_call.1} parent=35 // pred_check_branch
          %5821 = sbr.rel (%p5819) target = $region64
        $region63: #{tpu_custom_call.1} parent=35 // pred_region
          %s5822 = scalar_lea.vmem [#allocation2], 224
          %5823 = vst [vmem:[%s5822 + $0x4] sm:$0xf] 0
          %5824 = vst [vmem:[%s5822 + $0x8] sm:$0xf] 0
          %5825 = vst [vmem:[%s5822 + $0x14] sm:$0xf] 0
          %5826 = vst [vmem:[%s5822 + $0x18] sm:$0xf] 0
          %5827 = vst [vmem:[%s5822 + $0x24] sm:$0xf] 0
          %5828 = vst [vmem:[%s5822 + $0x28] sm:$0xf] 0
          %5829 = vst [vmem:[%s5822 + $0x34] sm:$0xf] 0
          %5830 = vst [vmem:[%s5822 + $0x38] sm:$0xf] 0
          %5831 = vst [vmem:[%s5822 + $0x44] sm:$0xf] 0
          %5832 = vst [vmem:[%s5822 + $0x48] sm:$0xf] 0
        $region64: #{tpu_custom_call.1} parent=35 // pred_fallthru
          _
        %v5833 = vld [vmem:[%s5777] sm:$0xf]
        %v5834 = vld [vmem:[%s5777 + $0x4] sm:$0xf]
        %v5835 = vld [vmem:[%s5777 + $0x8] sm:$0xf]
        %v5836 = vld [vmem:[%s5777 + $0xc] sm:$0xf]
        %v5837 = vld [vmem:[%s5777 + $0x10] sm:$0xf]
        %v5838 = vld [vmem:[%s5777 + $0x14] sm:$0xf]
        %v5839 = vld [vmem:[%s5777 + $0x18] sm:$0xf]
        %v5840 = vld [vmem:[%s5777 + $0x1c] sm:$0xf]
        %v5841 = vld [vmem:[%s5777 + $0x20] sm:$0xf]
        %v5842 = vld [vmem:[%s5777 + $0x24] sm:$0xf]
        %v5843 = vld [vmem:[%s5777 + $0x28] sm:$0xf]
        %v5844 = vld [vmem:[%s5777 + $0x2c] sm:$0xf]
        %v5845 = vld [vmem:[%s5777 + $0x30] sm:$0xf]
        %v5846 = vld [vmem:[%s5777 + $0x34] sm:$0xf]
        %v5847 = vld [vmem:[%s5777 + $0x38] sm:$0xf]
        %v5848 = vld [vmem:[%s5777 + $0x3c] sm:$0xf]
        %v5849 = vld [vmem:[%s5777 + $0x40] sm:$0xf]
        %v5850 = vld [vmem:[%s5777 + $0x44] sm:$0xf]
        %v5851 = vld [vmem:[%s5777 + $0x48] sm:$0xf]
        %v5852 = vld [vmem:[%s5777 + $0x4c] sm:$0xf]
        %v5853 = vld [vmem:[%s5777 + $0x50] sm:$0xf]
        %v5854 = vld [vmem:[%s5777 + $0x54] sm:$0xf]
        %v5855 = vld [vmem:[%s5777 + $0x58] sm:$0xf]
        %v5856 = vld [vmem:[%s5777 + $0x5c] sm:$0xf]
        %v5857 = vld [vmem:[%s5777 + $0x60] sm:$0xf]
        %v5858 = vld [vmem:[%s5777 + $0x64] sm:$0xf]
        %v5859 = vld [vmem:[%s5777 + $0x68] sm:$0xf]
        %v5860 = vld [vmem:[%s5777 + $0x6c] sm:$0xf]
        %v5861 = vld [vmem:[%s5777 + $0x70] sm:$0xf]
        %v5862 = vld [vmem:[%s5777 + $0x74] sm:$0xf]
        %v5863 = vld [vmem:[%s5777 + $0x78] sm:$0xf]
        %v5864 = vld [vmem:[%s5777 + $0x7c] sm:$0xf]
        %v5865 = vld [vmem:[%s5777 + $0x80] sm:$0xf]
        %v5866 = vld [vmem:[%s5777 + $0x84] sm:$0xf]
        %v5867 = vld [vmem:[%s5777 + $0x88] sm:$0xf]
        %v5868 = vld [vmem:[%s5777 + $0x8c] sm:$0xf]
        %v5869 = vld [vmem:[%s5777 + $0x90] sm:$0xf]
        %v5870 = vld [vmem:[%s5777 + $0x94] sm:$0xf]
        %v5871 = vld [vmem:[%s5777 + $0x98] sm:$0xf]
        %v5872 = vld [vmem:[%s5777 + $0x9c] sm:$0xf]
        %v5873 = vld [vmem:[%s5777 + $0xa0] sm:$0xf]
        %v5874 = vld [vmem:[%s5777 + $0xa4] sm:$0xf]
        %v5875 = vld [vmem:[%s5777 + $0xa8] sm:$0xf]
        %v5876 = vld [vmem:[%s5777 + $0xac] sm:$0xf]
        %v5877 = vld [vmem:[%s5777 + $0xb0] sm:$0xf]
        %v5878 = vld [vmem:[%s5777 + $0xb4] sm:$0xf]
        %v5879 = vld [vmem:[%s5777 + $0xb8] sm:$0xf]
        %v5880 = vld [vmem:[%s5777 + $0xbc] sm:$0xf]
        %v5881 = vld [vmem:[%s5777 + $0xc0] sm:$0xf]
        %v5882 = vld [vmem:[%s5777 + $0xc4] sm:$0xf]
        %v5883 = vld [vmem:[%s5777 + $0xc8] sm:$0xf]
        %v5884 = vld [vmem:[%s5777 + $0xcc] sm:$0xf]
        %v5885 = vld [vmem:[%s5777 + $0xd0] sm:$0xf]
        %v5886 = vld [vmem:[%s5777 + $0xd4] sm:$0xf]
        %v5887 = vld [vmem:[%s5777 + $0xd8] sm:$0xf]
        %v5888 = vld [vmem:[%s5777 + $0xdc] sm:$0xf]
        %v5931 = vunpack.c.l.b16 %v5833
        %v5932 = vunpack.c.l.b16 %v5834
        %v5933 = vunpack.c.l.b16 %v5835
        %v5934 = vunpack.c.l.b16 %v5837
        %v5935 = vunpack.c.l.b16 %v5838
        %v5936 = vunpack.c.l.b16 %v5839
        %v5937 = vunpack.c.l.b16 %v5841
        %v5938 = vunpack.c.l.b16 %v5842
        %v5939 = vunpack.c.l.b16 %v5843
        %v5940 = vunpack.c.l.b16 %v5845
        %v5941 = vunpack.c.l.b16 %v5846
        %v5942 = vunpack.c.l.b16 %v5847
        %v5943 = vunpack.c.l.b16 %v5849
        %v5944 = vunpack.c.l.b16 %v5850
        %v5945 = vunpack.c.l.b16 %v5851
        %v5946 = vunpack.c.l.b16 %v5853
        %v5947 = vunpack.c.l.b16 %v5854
        %v5948 = vunpack.c.l.b16 %v5855
        %v5949 = vunpack.c.l.b16 %v5857
        %v5950 = vunpack.c.l.b16 %v5858
        %v5951 = vunpack.c.l.b16 %v5859
        %v5952 = vunpack.c.l.b16 %v5861
        %v5953 = vunpack.c.l.b16 %v5862
        %v5954 = vunpack.c.l.b16 %v5863
        %v5955 = vunpack.c.l.b16 %v5865
        %v5956 = vunpack.c.l.b16 %v5866
        %v5957 = vunpack.c.l.b16 %v5867
        %v5958 = vunpack.c.l.b16 %v5869
        %v5959 = vunpack.c.l.b16 %v5870
        %v5960 = vunpack.c.l.b16 %v5871
        %v5961 = vunpack.c.l.b16 %v5873
        %v5962 = vunpack.c.l.b16 %v5874
        %v5963 = vunpack.c.l.b16 %v5875
        %v5964 = vunpack.c.l.b16 %v5877
        %v5965 = vunpack.c.l.b16 %v5878
        %v5966 = vunpack.c.l.b16 %v5879
        %v5967 = vunpack.c.l.b16 %v5881
        %v5968 = vunpack.c.l.b16 %v5882
        %v5969 = vunpack.c.l.b16 %v5883
        %v5970 = vunpack.c.l.b16 %v5885
        %v5971 = vunpack.c.l.b16 %v5886
        %v5972 = vunpack.c.l.b16 %v5887
        %v5973 = vpack.c.b16 %v5932, %v5931
        %v5974 = vpack.c.b16 %v5933, %v5933
        %v5975 = vpack.c.b16 %v5935, %v5934
        %v5976 = vpack.c.b16 %v5936, %v5936
        %v5977 = vpack.c.b16 %v5938, %v5937
        %v5978 = vpack.c.b16 %v5939, %v5939
        %v5979 = vpack.c.b16 %v5941, %v5940
        %v5980 = vpack.c.b16 %v5942, %v5942
        %v5981 = vpack.c.b16 %v5944, %v5943
        %v5982 = vpack.c.b16 %v5945, %v5945
        %v5983 = vpack.c.b16 %v5947, %v5946
        %v5984 = vpack.c.b16 %v5948, %v5948
        %v5985 = vpack.c.b16 %v5950, %v5949
        %v5986 = vpack.c.b16 %v5951, %v5951
        %v5987 = vpack.c.b16 %v5953, %v5952
        %v5988 = vpack.c.b16 %v5954, %v5954
        %v5989 = vpack.c.b16 %v5956, %v5955
        %v5990 = vpack.c.b16 %v5957, %v5957
        %v5991 = vpack.c.b16 %v5959, %v5958
        %v5992 = vpack.c.b16 %v5960, %v5960
        %v5993 = vpack.c.b16 %v5962, %v5961
        %v5994 = vpack.c.b16 %v5963, %v5963
        %v5995 = vpack.c.b16 %v5965, %v5964
        %v5996 = vpack.c.b16 %v5966, %v5966
        %v5997 = vpack.c.b16 %v5968, %v5967
        %v5998 = vpack.c.b16 %v5969, %v5969
        %v5999 = vpack.c.b16 %v5971, %v5970
        %v6000 = vpack.c.b16 %v5972, %v5972
        %v6001 = vpack.c.b16 %v5933, %v5932
        %v6002 = vpack.c.b16 %v5936, %v5935
        %v6003 = vpack.c.b16 %v5939, %v5938
        %v6004 = vpack.c.b16 %v5942, %v5941
        %v6005 = vpack.c.b16 %v5945, %v5944
        %v6006 = vpack.c.b16 %v5948, %v5947
        %v6007 = vpack.c.b16 %v5951, %v5950
        %v6008 = vpack.c.b16 %v5954, %v5953
        %v6009 = vpack.c.b16 %v5957, %v5956
        %v6010 = vpack.c.b16 %v5960, %v5959
        %v6011 = vpack.c.b16 %v5963, %v5962
        %v6012 = vpack.c.b16 %v5966, %v5965
        %v6013 = vpack.c.b16 %v5969, %v5968
        %v6014 = vpack.c.b16 %v5972, %v5971
        %v6016 = vshrl.u32 %v6001, 16
        %v6018 = vrot.slane %v6016, 4
        %v6019 = vshll.u32 %v6001, 16
        %v6021 = vrot.slane %v6019, 5
        %v6022 = vor.u32 %v6018, %v6021
        %v6024 = vshrl.u32 %v6002, 16
        %v6026 = vrot.slane %v6024, 4
        %v6027 = vshll.u32 %v6002, 16
        %v6029 = vrot.slane %v6027, 5
        %v6030 = vor.u32 %v6026, %v6029
        %v6032 = vshrl.u32 %v6003, 16
        %v6034 = vrot.slane %v6032, 4
        %v6035 = vshll.u32 %v6003, 16
        %v6037 = vrot.slane %v6035, 5
        %v6038 = vor.u32 %v6034, %v6037
        %v6040 = vshrl.u32 %v6004, 16
        %v6042 = vrot.slane %v6040, 4
        %v6043 = vshll.u32 %v6004, 16
        %v6045 = vrot.slane %v6043, 5
        %v6046 = vor.u32 %v6042, %v6045
        %v6048 = vshrl.u32 %v6005, 16
        %v6050 = vrot.slane %v6048, 4
        %v6051 = vshll.u32 %v6005, 16
        %v6053 = vrot.slane %v6051, 5
        %v6054 = vor.u32 %v6050, %v6053
        %v6056 = vshrl.u32 %v6006, 16
        %v6058 = vrot.slane %v6056, 4
        %v6059 = vshll.u32 %v6006, 16
        %v6061 = vrot.slane %v6059, 5
        %v6062 = vor.u32 %v6058, %v6061
        %v6064 = vshrl.u32 %v6007, 16
        %v6066 = vrot.slane %v6064, 4
        %v6067 = vshll.u32 %v6007, 16
        %v6069 = vrot.slane %v6067, 5
        %v6070 = vor.u32 %v6066, %v6069
        %v6072 = vshrl.u32 %v6008, 16
        %v6074 = vrot.slane %v6072, 4
        %v6075 = vshll.u32 %v6008, 16
        %v6077 = vrot.slane %v6075, 5
        %v6078 = vor.u32 %v6074, %v6077
        %v6080 = vshrl.u32 %v6009, 16
        %v6082 = vrot.slane %v6080, 4
        %v6083 = vshll.u32 %v6009, 16
        %v6085 = vrot.slane %v6083, 5
        %v6086 = vor.u32 %v6082, %v6085
        %v6088 = vshrl.u32 %v6010, 16
        %v6090 = vrot.slane %v6088, 4
        %v6091 = vshll.u32 %v6010, 16
        %v6093 = vrot.slane %v6091, 5
        %v6094 = vor.u32 %v6090, %v6093
        %v6096 = vshrl.u32 %v6011, 16
        %v6098 = vrot.slane %v6096, 4
        %v6099 = vshll.u32 %v6011, 16
        %v6101 = vrot.slane %v6099, 5
        %v6102 = vor.u32 %v6098, %v6101
        %v6104 = vshrl.u32 %v6012, 16
        %v6106 = vrot.slane %v6104, 4
        %v6107 = vshll.u32 %v6012, 16
        %v6109 = vrot.slane %v6107, 5
        %v6110 = vor.u32 %v6106, %v6109
        %v6112 = vshrl.u32 %v6013, 16
        %v6114 = vrot.slane %v6112, 4
        %v6115 = vshll.u32 %v6013, 16
        %v6117 = vrot.slane %v6115, 5
        %v6118 = vor.u32 %v6114, %v6117
        %v6120 = vshrl.u32 %v6014, 16
        %v6122 = vrot.slane %v6120, 4
        %v6123 = vshll.u32 %v6014, 16
        %v6125 = vrot.slane %v6123, 5
        %v6126 = vor.u32 %v6122, %v6125
        %v6141 = vunpack.c.l.b16 %v5836
        %v6142 = vunpack.c.l.b16 %v5840
        %v6143 = vunpack.c.l.b16 %v5844
        %v6144 = vunpack.c.l.b16 %v5848
        %v6145 = vunpack.c.l.b16 %v5852
        %v6146 = vunpack.c.l.b16 %v5856
        %v6147 = vunpack.c.l.b16 %v5860
        %v6148 = vunpack.c.l.b16 %v5864
        %v6149 = vunpack.c.l.b16 %v5868
        %v6150 = vunpack.c.l.b16 %v5872
        %v6151 = vunpack.c.l.b16 %v5876
        %v6152 = vunpack.c.l.b16 %v5880
        %v6153 = vunpack.c.l.b16 %v5884
        %v6154 = vunpack.c.l.b16 %v5888
        %v6155 = vpack.c.b16 %v6141, %v6141
        %v6156 = vpack.c.b16 %v6142, %v6142
        %v6157 = vpack.c.b16 %v6143, %v6143
        %v6158 = vpack.c.b16 %v6144, %v6144
        %v6159 = vpack.c.b16 %v6145, %v6145
        %v6160 = vpack.c.b16 %v6146, %v6146
        %v6161 = vpack.c.b16 %v6147, %v6147
        %v6162 = vpack.c.b16 %v6148, %v6148
        %v6163 = vpack.c.b16 %v6149, %v6149
        %v6164 = vpack.c.b16 %v6150, %v6150
        %v6165 = vpack.c.b16 %v6151, %v6151
        %v6166 = vpack.c.b16 %v6152, %v6152
        %v6167 = vpack.c.b16 %v6153, %v6153
        %v6168 = vpack.c.b16 %v6154, %v6154
        %v6169 = vrot.slane %v6001, 5
        %v6170 = vrot.slane %v6155, 5
        %v6171 = vsel %vm804, %v6169, %v6170
        %v6172 = vrot.slane %v6002, 5
        %v6173 = vrot.slane %v6156, 5
        %v6174 = vsel %vm804, %v6172, %v6173
        %v6175 = vrot.slane %v6003, 5
        %v6176 = vrot.slane %v6157, 5
        %v6177 = vsel %vm804, %v6175, %v6176
        %v6178 = vrot.slane %v6004, 5
        %v6179 = vrot.slane %v6158, 5
        %v6180 = vsel %vm804, %v6178, %v6179
        %v6181 = vrot.slane %v6005, 5
        %v6182 = vrot.slane %v6159, 5
        %v6183 = vsel %vm804, %v6181, %v6182
        %v6184 = vrot.slane %v6006, 5
        %v6185 = vrot.slane %v6160, 5
        %v6186 = vsel %vm804, %v6184, %v6185
        %v6187 = vrot.slane %v6007, 5
        %v6188 = vrot.slane %v6161, 5
        %v6189 = vsel %vm804, %v6187, %v6188
        %v6190 = vrot.slane %v6008, 5
        %v6191 = vrot.slane %v6162, 5
        %v6192 = vsel %vm804, %v6190, %v6191
        %v6193 = vrot.slane %v6009, 5
        %v6194 = vrot.slane %v6163, 5
        %v6195 = vsel %vm804, %v6193, %v6194
        %v6196 = vrot.slane %v6010, 5
        %v6197 = vrot.slane %v6164, 5
        %v6198 = vsel %vm804, %v6196, %v6197
        %v6199 = vrot.slane %v6011, 5
        %v6200 = vrot.slane %v6165, 5
        %v6201 = vsel %vm804, %v6199, %v6200
        %v6202 = vrot.slane %v6012, 5
        %v6203 = vrot.slane %v6166, 5
        %v6204 = vsel %vm804, %v6202, %v6203
        %v6205 = vrot.slane %v6013, 5
        %v6206 = vrot.slane %v6167, 5
        %v6207 = vsel %vm804, %v6205, %v6206
        %v6208 = vrot.slane %v6014, 5
        %v6209 = vrot.slane %v6168, 5
        %v6210 = vsel %vm804, %v6208, %v6209
        %v6212 = vshrl.u32 %v5973, 16
        %v6214 = vrot.slane %v6212, 3
        %v6215 = vshll.u32 %v5973, 16
        %v6217 = vrot.slane %v6215, 4
        %v6218 = vor.u32 %v6214, %v6217
        %v6220 = vshrl.u32 %v5974, 16
        %v6222 = vrot.slane %v6220, 3
        %v6223 = vshll.u32 %v5974, 16
        %v6225 = vrot.slane %v6223, 4
        %v6226 = vor.u32 %v6222, %v6225
        %v6227 = vsel %vm859, %v6218, %v6226
        %v6229 = vshrl.u32 %v6022, 16
        %v6231 = vrot.slane %v6229, 3
        %v6232 = vshll.u32 %v6022, 16
        %v6234 = vrot.slane %v6232, 4
        %v6235 = vor.u32 %v6231, %v6234
        %v6236 = vsel %vm859, %v6235, %v6235
        %v6238 = vshrl.u32 %v6169, 16
        %v6240 = vrot.slane %v6238, 3
        %v6241 = vshll.u32 %v6169, 16
        %v6243 = vrot.slane %v6241, 4
        %v6244 = vor.u32 %v6240, %v6243
        %v6246 = vshrl.u32 %v6171, 16
        %v6248 = vrot.slane %v6246, 3
        %v6249 = vshll.u32 %v6171, 16
        %v6251 = vrot.slane %v6249, 4
        %v6252 = vor.u32 %v6248, %v6251
        %v6253 = vsel %vm859, %v6244, %v6252
        %v6255 = vshrl.u32 %v5975, 16
        %v6257 = vrot.slane %v6255, 3
        %v6258 = vshll.u32 %v5975, 16
        %v6260 = vrot.slane %v6258, 4
        %v6261 = vor.u32 %v6257, %v6260
        %v6263 = vshrl.u32 %v5976, 16
        %v6265 = vrot.slane %v6263, 3
        %v6266 = vshll.u32 %v5976, 16
        %v6268 = vrot.slane %v6266, 4
        %v6269 = vor.u32 %v6265, %v6268
        %v6270 = vsel %vm859, %v6261, %v6269
        %v6272 = vshrl.u32 %v6030, 16
        %v6274 = vrot.slane %v6272, 3
        %v6275 = vshll.u32 %v6030, 16
        %v6277 = vrot.slane %v6275, 4
        %v6278 = vor.u32 %v6274, %v6277
        %v6279 = vsel %vm859, %v6278, %v6278
        %v6281 = vshrl.u32 %v6172, 16
        %v6283 = vrot.slane %v6281, 3
        %v6284 = vshll.u32 %v6172, 16
        %v6286 = vrot.slane %v6284, 4
        %v6287 = vor.u32 %v6283, %v6286
        %v6289 = vshrl.u32 %v6174, 16
        %v6291 = vrot.slane %v6289, 3
        %v6292 = vshll.u32 %v6174, 16
        %v6294 = vrot.slane %v6292, 4
        %v6295 = vor.u32 %v6291, %v6294
        %v6296 = vsel %vm859, %v6287, %v6295
        %v6298 = vshrl.u32 %v5977, 16
        %v6300 = vrot.slane %v6298, 3
        %v6301 = vshll.u32 %v5977, 16
        %v6303 = vrot.slane %v6301, 4
        %v6304 = vor.u32 %v6300, %v6303
        %v6306 = vshrl.u32 %v5978, 16
        %v6308 = vrot.slane %v6306, 3
        %v6309 = vshll.u32 %v5978, 16
        %v6311 = vrot.slane %v6309, 4
        %v6312 = vor.u32 %v6308, %v6311
        %v6313 = vsel %vm859, %v6304, %v6312
        %v6315 = vshrl.u32 %v6038, 16
        %v6317 = vrot.slane %v6315, 3
        %v6318 = vshll.u32 %v6038, 16
        %v6320 = vrot.slane %v6318, 4
        %v6321 = vor.u32 %v6317, %v6320
        %v6322 = vsel %vm859, %v6321, %v6321
        %v6324 = vshrl.u32 %v6175, 16
        %v6326 = vrot.slane %v6324, 3
        %v6327 = vshll.u32 %v6175, 16
        %v6329 = vrot.slane %v6327, 4
        %v6330 = vor.u32 %v6326, %v6329
        %v6332 = vshrl.u32 %v6177, 16
        %v6334 = vrot.slane %v6332, 3
        %v6335 = vshll.u32 %v6177, 16
        %v6337 = vrot.slane %v6335, 4
        %v6338 = vor.u32 %v6334, %v6337
        %v6339 = vsel %vm859, %v6330, %v6338
        %v6341 = vshrl.u32 %v5979, 16
        %v6343 = vrot.slane %v6341, 3
        %v6344 = vshll.u32 %v5979, 16
        %v6346 = vrot.slane %v6344, 4
        %v6347 = vor.u32 %v6343, %v6346
        %v6349 = vshrl.u32 %v5980, 16
        %v6351 = vrot.slane %v6349, 3
        %v6352 = vshll.u32 %v5980, 16
        %v6354 = vrot.slane %v6352, 4
        %v6355 = vor.u32 %v6351, %v6354
        %v6356 = vsel %vm859, %v6347, %v6355
        %v6358 = vshrl.u32 %v6046, 16
        %v6360 = vrot.slane %v6358, 3
        %v6361 = vshll.u32 %v6046, 16
        %v6363 = vrot.slane %v6361, 4
        %v6364 = vor.u32 %v6360, %v6363
        %v6365 = vsel %vm859, %v6364, %v6364
        %v6367 = vshrl.u32 %v6178, 16
        %v6369 = vrot.slane %v6367, 3
        %v6370 = vshll.u32 %v6178, 16
        %v6372 = vrot.slane %v6370, 4
        %v6373 = vor.u32 %v6369, %v6372
        %v6375 = vshrl.u32 %v6180, 16
        %v6377 = vrot.slane %v6375, 3
        %v6378 = vshll.u32 %v6180, 16
        %v6380 = vrot.slane %v6378, 4
        %v6381 = vor.u32 %v6377, %v6380
        %v6382 = vsel %vm859, %v6373, %v6381
        %v6384 = vshrl.u32 %v5981, 16
        %v6386 = vrot.slane %v6384, 3
        %v6387 = vshll.u32 %v5981, 16
        %v6389 = vrot.slane %v6387, 4
        %v6390 = vor.u32 %v6386, %v6389
        %v6392 = vshrl.u32 %v5982, 16
        %v6394 = vrot.slane %v6392, 3
        %v6395 = vshll.u32 %v5982, 16
        %v6397 = vrot.slane %v6395, 4
        %v6398 = vor.u32 %v6394, %v6397
        %v6399 = vsel %vm859, %v6390, %v6398
        %v6401 = vshrl.u32 %v6054, 16
        %v6403 = vrot.slane %v6401, 3
        %v6404 = vshll.u32 %v6054, 16
        %v6406 = vrot.slane %v6404, 4
        %v6407 = vor.u32 %v6403, %v6406
        %v6408 = vsel %vm859, %v6407, %v6407
        %v6410 = vshrl.u32 %v6181, 16
        %v6412 = vrot.slane %v6410, 3
        %v6413 = vshll.u32 %v6181, 16
        %v6415 = vrot.slane %v6413, 4
        %v6416 = vor.u32 %v6412, %v6415
        %v6418 = vshrl.u32 %v6183, 16
        %v6420 = vrot.slane %v6418, 3
        %v6421 = vshll.u32 %v6183, 16
        %v6423 = vrot.slane %v6421, 4
        %v6424 = vor.u32 %v6420, %v6423
        %v6425 = vsel %vm859, %v6416, %v6424
        %v6427 = vshrl.u32 %v5983, 16
        %v6429 = vrot.slane %v6427, 3
        %v6430 = vshll.u32 %v5983, 16
        %v6432 = vrot.slane %v6430, 4
        %v6433 = vor.u32 %v6429, %v6432
        %v6435 = vshrl.u32 %v5984, 16
        %v6437 = vrot.slane %v6435, 3
        %v6438 = vshll.u32 %v5984, 16
        %v6440 = vrot.slane %v6438, 4
        %v6441 = vor.u32 %v6437, %v6440
        %v6442 = vsel %vm859, %v6433, %v6441
        %v6444 = vshrl.u32 %v6062, 16
        %v6446 = vrot.slane %v6444, 3
        %v6447 = vshll.u32 %v6062, 16
        %v6449 = vrot.slane %v6447, 4
        %v6450 = vor.u32 %v6446, %v6449
        %v6451 = vsel %vm859, %v6450, %v6450
        %v6453 = vshrl.u32 %v6184, 16
        %v6455 = vrot.slane %v6453, 3
        %v6456 = vshll.u32 %v6184, 16
        %v6458 = vrot.slane %v6456, 4
        %v6459 = vor.u32 %v6455, %v6458
        %v6461 = vshrl.u32 %v6186, 16
        %v6463 = vrot.slane %v6461, 3
        %v6464 = vshll.u32 %v6186, 16
        %v6466 = vrot.slane %v6464, 4
        %v6467 = vor.u32 %v6463, %v6466
        %v6468 = vsel %vm859, %v6459, %v6467
        %v6470 = vshrl.u32 %v5985, 16
        %v6472 = vrot.slane %v6470, 3
        %v6473 = vshll.u32 %v5985, 16
        %v6475 = vrot.slane %v6473, 4
        %v6476 = vor.u32 %v6472, %v6475
        %v6478 = vshrl.u32 %v5986, 16
        %v6480 = vrot.slane %v6478, 3
        %v6481 = vshll.u32 %v5986, 16
        %v6483 = vrot.slane %v6481, 4
        %v6484 = vor.u32 %v6480, %v6483
        %v6485 = vsel %vm859, %v6476, %v6484
        %v6487 = vshrl.u32 %v6070, 16
        %v6489 = vrot.slane %v6487, 3
        %v6490 = vshll.u32 %v6070, 16
        %v6492 = vrot.slane %v6490, 4
        %v6493 = vor.u32 %v6489, %v6492
        %v6494 = vsel %vm859, %v6493, %v6493
        %v6496 = vshrl.u32 %v6187, 16
        %v6498 = vrot.slane %v6496, 3
        %v6499 = vshll.u32 %v6187, 16
        %v6501 = vrot.slane %v6499, 4
        %v6502 = vor.u32 %v6498, %v6501
        %v6504 = vshrl.u32 %v6189, 16
        %v6506 = vrot.slane %v6504, 3
        %v6507 = vshll.u32 %v6189, 16
        %v6509 = vrot.slane %v6507, 4
        %v6510 = vor.u32 %v6506, %v6509
        %v6511 = vsel %vm859, %v6502, %v6510
        %v6513 = vshrl.u32 %v5987, 16
        %v6515 = vrot.slane %v6513, 3
        %v6516 = vshll.u32 %v5987, 16
        %v6518 = vrot.slane %v6516, 4
        %v6519 = vor.u32 %v6515, %v6518
        %v6521 = vshrl.u32 %v5988, 16
        %v6523 = vrot.slane %v6521, 3
        %v6524 = vshll.u32 %v5988, 16
        %v6526 = vrot.slane %v6524, 4
        %v6527 = vor.u32 %v6523, %v6526
        %v6528 = vsel %vm859, %v6519, %v6527
        %v6530 = vshrl.u32 %v6078, 16
        %v6532 = vrot.slane %v6530, 3
        %v6533 = vshll.u32 %v6078, 16
        %v6535 = vrot.slane %v6533, 4
        %v6536 = vor.u32 %v6532, %v6535
        %v6537 = vsel %vm859, %v6536, %v6536
        %v6539 = vshrl.u32 %v6190, 16
        %v6541 = vrot.slane %v6539, 3
        %v6542 = vshll.u32 %v6190, 16
        %v6544 = vrot.slane %v6542, 4
        %v6545 = vor.u32 %v6541, %v6544
        %v6547 = vshrl.u32 %v6192, 16
        %v6549 = vrot.slane %v6547, 3
        %v6550 = vshll.u32 %v6192, 16
        %v6552 = vrot.slane %v6550, 4
        %v6553 = vor.u32 %v6549, %v6552
        %v6554 = vsel %vm859, %v6545, %v6553
        %v6556 = vshrl.u32 %v5989, 16
        %v6558 = vrot.slane %v6556, 3
        %v6559 = vshll.u32 %v5989, 16
        %v6561 = vrot.slane %v6559, 4
        %v6562 = vor.u32 %v6558, %v6561
        %v6564 = vshrl.u32 %v5990, 16
        %v6566 = vrot.slane %v6564, 3
        %v6567 = vshll.u32 %v5990, 16
        %v6569 = vrot.slane %v6567, 4
        %v6570 = vor.u32 %v6566, %v6569
        %v6571 = vsel %vm859, %v6562, %v6570
        %v6573 = vshrl.u32 %v6086, 16
        %v6575 = vrot.slane %v6573, 3
        %v6576 = vshll.u32 %v6086, 16
        %v6578 = vrot.slane %v6576, 4
        %v6579 = vor.u32 %v6575, %v6578
        %v6580 = vsel %vm859, %v6579, %v6579
        %v6582 = vshrl.u32 %v6193, 16
        %v6584 = vrot.slane %v6582, 3
        %v6585 = vshll.u32 %v6193, 16
        %v6587 = vrot.slane %v6585, 4
        %v6588 = vor.u32 %v6584, %v6587
        %v6590 = vshrl.u32 %v6195, 16
        %v6592 = vrot.slane %v6590, 3
        %v6593 = vshll.u32 %v6195, 16
        %v6595 = vrot.slane %v6593, 4
        %v6596 = vor.u32 %v6592, %v6595
        %v6597 = vsel %vm859, %v6588, %v6596
        %v6599 = vshrl.u32 %v5991, 16
        %v6601 = vrot.slane %v6599, 3
        %v6602 = vshll.u32 %v5991, 16
        %v6604 = vrot.slane %v6602, 4
        %v6605 = vor.u32 %v6601, %v6604
        %v6607 = vshrl.u32 %v5992, 16
        %v6609 = vrot.slane %v6607, 3
        %v6610 = vshll.u32 %v5992, 16
        %v6612 = vrot.slane %v6610, 4
        %v6613 = vor.u32 %v6609, %v6612
        %v6614 = vsel %vm859, %v6605, %v6613
        %v6616 = vshrl.u32 %v6094, 16
        %v6618 = vrot.slane %v6616, 3
        %v6619 = vshll.u32 %v6094, 16
        %v6621 = vrot.slane %v6619, 4
        %v6622 = vor.u32 %v6618, %v6621
        %v6623 = vsel %vm859, %v6622, %v6622
        %v6625 = vshrl.u32 %v6196, 16
        %v6627 = vrot.slane %v6625, 3
        %v6628 = vshll.u32 %v6196, 16
        %v6630 = vrot.slane %v6628, 4
        %v6631 = vor.u32 %v6627, %v6630
        %v6633 = vshrl.u32 %v6198, 16
        %v6635 = vrot.slane %v6633, 3
        %v6636 = vshll.u32 %v6198, 16
        %v6638 = vrot.slane %v6636, 4
        %v6639 = vor.u32 %v6635, %v6638
        %v6640 = vsel %vm859, %v6631, %v6639
        %v6642 = vshrl.u32 %v5993, 16
        %v6644 = vrot.slane %v6642, 3
        %v6645 = vshll.u32 %v5993, 16
        %v6647 = vrot.slane %v6645, 4
        %v6648 = vor.u32 %v6644, %v6647
        %v6650 = vshrl.u32 %v5994, 16
        %v6652 = vrot.slane %v6650, 3
        %v6653 = vshll.u32 %v5994, 16
        %v6655 = vrot.slane %v6653, 4
        %v6656 = vor.u32 %v6652, %v6655
        %v6657 = vsel %vm859, %v6648, %v6656
        %v6659 = vshrl.u32 %v6102, 16
        %v6661 = vrot.slane %v6659, 3
        %v6662 = vshll.u32 %v6102, 16
        %v6664 = vrot.slane %v6662, 4
        %v6665 = vor.u32 %v6661, %v6664
        %v6666 = vsel %vm859, %v6665, %v6665
        %v6668 = vshrl.u32 %v6199, 16
        %v6670 = vrot.slane %v6668, 3
        %v6671 = vshll.u32 %v6199, 16
        %v6673 = vrot.slane %v6671, 4
        %v6674 = vor.u32 %v6670, %v6673
        %v6676 = vshrl.u32 %v6201, 16
        %v6678 = vrot.slane %v6676, 3
        %v6679 = vshll.u32 %v6201, 16
        %v6681 = vrot.slane %v6679, 4
        %v6682 = vor.u32 %v6678, %v6681
        %v6683 = vsel %vm859, %v6674, %v6682
        %v6685 = vshrl.u32 %v5995, 16
        %v6687 = vrot.slane %v6685, 3
        %v6688 = vshll.u32 %v5995, 16
        %v6690 = vrot.slane %v6688, 4
        %v6691 = vor.u32 %v6687, %v6690
        %v6693 = vshrl.u32 %v5996, 16
        %v6695 = vrot.slane %v6693, 3
        %v6696 = vshll.u32 %v5996, 16
        %v6698 = vrot.slane %v6696, 4
        %v6699 = vor.u32 %v6695, %v6698
        %v6700 = vsel %vm859, %v6691, %v6699
        %v6702 = vshrl.u32 %v6110, 16
        %v6704 = vrot.slane %v6702, 3
        %v6705 = vshll.u32 %v6110, 16
        %v6707 = vrot.slane %v6705, 4
        %v6708 = vor.u32 %v6704, %v6707
        %v6709 = vsel %vm859, %v6708, %v6708
        %v6711 = vshrl.u32 %v6202, 16
        %v6713 = vrot.slane %v6711, 3
        %v6714 = vshll.u32 %v6202, 16
        %v6716 = vrot.slane %v6714, 4
        %v6717 = vor.u32 %v6713, %v6716
        %v6719 = vshrl.u32 %v6204, 16
        %v6721 = vrot.slane %v6719, 3
        %v6722 = vshll.u32 %v6204, 16
        %v6724 = vrot.slane %v6722, 4
        %v6725 = vor.u32 %v6721, %v6724
        %v6726 = vsel %vm859, %v6717, %v6725
        %s6763 = scalar_lea.vmem [#allocation5], 1152
        %v6764 = vld [vmem:[%s6763] sm:$0xf]
        %v6765 = vld [vmem:[%s6763 + $0x4] sm:$0xf]
        %v6766 = vld [vmem:[%s6763 + $0x8] sm:$0xf]
        %v6767 = vld [vmem:[%s6763 + $0xc] sm:$0xf]
        %v6768 = vld [vmem:[%s6763 + $0x10] sm:$0xf]
        %v6769 = vld [vmem:[%s6763 + $0x14] sm:$0xf]
        %v6770 = vld [vmem:[%s6763 + $0x18] sm:$0xf]
        %v6771 = vld [vmem:[%s6763 + $0x1c] sm:$0xf]
        %v6772 = vld [vmem:[%s6763 + $0x20] sm:$0xf]
        %v6773 = vld [vmem:[%s6763 + $0x24] sm:$0xf]
        %v6774 = vld [vmem:[%s6763 + $0x28] sm:$0xf]
        %v6775 = vld [vmem:[%s6763 + $0x2c] sm:$0xf]
        %v6776 = vld [vmem:[%s6763 + $0x30] sm:$0xf]
        %v6777 = vld [vmem:[%s6763 + $0x34] sm:$0xf]
        %v6778 = vld [vmem:[%s6763 + $0x38] sm:$0xf]
        %v6779 = vld [vmem:[%s6763 + $0x3c] sm:$0xf]
        %v6780 = vld [vmem:[%s6763 + $0x40] sm:$0xf]
        %v6781 = vld [vmem:[%s6763 + $0x44] sm:$0xf]
        %v6782 = vld [vmem:[%s6763 + $0x48] sm:$0xf]
        %v6783 = vld [vmem:[%s6763 + $0x4c] sm:$0xf]
        %v6784 = vld [vmem:[%s6763 + $0x50] sm:$0xf]
        %v6785 = vld [vmem:[%s6763 + $0x54] sm:$0xf]
        %v6786 = vld [vmem:[%s6763 + $0x58] sm:$0xf]
        %v6787 = vld [vmem:[%s6763 + $0x5c] sm:$0xf]
        %v6788 = vld [vmem:[%s6763 + $0x60] sm:$0xf]
        %v6789 = vld [vmem:[%s6763 + $0x64] sm:$0xf]
        %v6790 = vld [vmem:[%s6763 + $0x68] sm:$0xf]
        %v6791 = vld [vmem:[%s6763 + $0x6c] sm:$0xf]
        %v6792 = vld [vmem:[%s6763 + $0x70] sm:$0xf]
        %v6793 = vld [vmem:[%s6763 + $0x74] sm:$0xf]
        %v6794 = vld [vmem:[%s6763 + $0x78] sm:$0xf]
        %v6795 = vld [vmem:[%s6763 + $0x7c] sm:$0xf]
        %v6796 = vld [vmem:[%s6763 + $0x80] sm:$0xf]
        %v6797 = vld [vmem:[%s6763 + $0x84] sm:$0xf]
        %v6798 = vld [vmem:[%s6763 + $0x88] sm:$0xf]
        %v6799 = vld [vmem:[%s6763 + $0x8c] sm:$0xf]
        %v6800 = vld [vmem:[%s6763 + $0x90] sm:$0xf]
        %v6801 = vld [vmem:[%s6763 + $0x94] sm:$0xf]
        %v6802 = vld [vmem:[%s6763 + $0x98] sm:$0xf]
        %v6803 = vld [vmem:[%s6763 + $0x9c] sm:$0xf]
        %v6804 = vld [vmem:[%s6763 + $0xa0] sm:$0xf]
        %v6805 = vld [vmem:[%s6763 + $0xa4] sm:$0xf]
        %v6806 = vld [vmem:[%s6763 + $0xa8] sm:$0xf]
        %v6807 = vld [vmem:[%s6763 + $0xac] sm:$0xf]
        %v6808 = vld [vmem:[%s6763 + $0xb0] sm:$0xf]
        %v6809 = vld [vmem:[%s6763 + $0xb4] sm:$0xf]
        %v6810 = vld [vmem:[%s6763 + $0xb8] sm:$0xf]
        %v6811 = vld [vmem:[%s6763 + $0xbc] sm:$0xf]
        %v6813 = vshrl.u32 %v5997, 16
        %v6815 = vrot.slane %v6813, 3
        %v6816 = vshll.u32 %v5997, 16
        %v6818 = vrot.slane %v6816, 4
        %v6819 = vor.u32 %v6815, %v6818
        %v6821 = vshrl.u32 %v5998, 16
        %v6823 = vrot.slane %v6821, 3
        %v6824 = vshll.u32 %v5998, 16
        %v6826 = vrot.slane %v6824, 4
        %v6827 = vor.u32 %v6823, %v6826
        %v6828 = vsel %vm859, %v6819, %v6827
        %v6830 = vshrl.u32 %v6118, 16
        %v6832 = vrot.slane %v6830, 3
        %v6833 = vshll.u32 %v6118, 16
        %v6835 = vrot.slane %v6833, 4
        %v6836 = vor.u32 %v6832, %v6835
        %v6837 = vsel %vm859, %v6836, %v6836
        %v6839 = vshrl.u32 %v6205, 16
        %v6841 = vrot.slane %v6839, 3
        %v6842 = vshll.u32 %v6205, 16
        %v6844 = vrot.slane %v6842, 4
        %v6845 = vor.u32 %v6841, %v6844
        %v6847 = vshrl.u32 %v6207, 16
        %v6849 = vrot.slane %v6847, 3
        %v6850 = vshll.u32 %v6207, 16
        %v6852 = vrot.slane %v6850, 4
        %v6853 = vor.u32 %v6849, %v6852
        %v6854 = vsel %vm859, %v6845, %v6853
        %s6858 = scalar_lea.vmem [#allocation5], 1344
        %v6859 = vld [vmem:[%s6858] sm:$0xf]
        %v6860 = vld [vmem:[%s6858 + $0x4] sm:$0xf]
        %v6861 = vld [vmem:[%s6858 + $0x8] sm:$0xf]
        %v6862 = vld [vmem:[%s6858 + $0xc] sm:$0xf]
        %v6863 = vld [vmem:[%s6858 + $0x10] sm:$0xf]
        %v6864 = vld [vmem:[%s6858 + $0x14] sm:$0xf]
        %v6865 = vld [vmem:[%s6858 + $0x18] sm:$0xf]
        %v6866 = vld [vmem:[%s6858 + $0x1c] sm:$0xf]
        %v6867 = vld [vmem:[%s6858 + $0x20] sm:$0xf]
        %v6868 = vld [vmem:[%s6858 + $0x24] sm:$0xf]
        %v6869 = vld [vmem:[%s6858 + $0x28] sm:$0xf]
        %v6870 = vld [vmem:[%s6858 + $0x2c] sm:$0xf]
        %v6871 = vld [vmem:[%s6858 + $0x30] sm:$0xf]
        %v6872 = vld [vmem:[%s6858 + $0x34] sm:$0xf]
        %v6873 = vld [vmem:[%s6858 + $0x38] sm:$0xf]
        %v6874 = vld [vmem:[%s6858 + $0x3c] sm:$0xf]
        %v6875 = vld [vmem:[%s6858 + $0x40] sm:$0xf]
        %v6876 = vld [vmem:[%s6858 + $0x44] sm:$0xf]
        %v6877 = vld [vmem:[%s6858 + $0x48] sm:$0xf]
        %v6878 = vld [vmem:[%s6858 + $0x4c] sm:$0xf]
        %v6879 = vld [vmem:[%s6858 + $0x50] sm:$0xf]
        %v6880 = vld [vmem:[%s6858 + $0x54] sm:$0xf]
        %v6881 = vld [vmem:[%s6858 + $0x58] sm:$0xf]
        %v6882 = vld [vmem:[%s6858 + $0x5c] sm:$0xf]
        %v6883 = vld [vmem:[%s6858 + $0x60] sm:$0xf]
        %v6884 = vld [vmem:[%s6858 + $0x64] sm:$0xf]
        %v6885 = vld [vmem:[%s6858 + $0x68] sm:$0xf]
        %v6886 = vld [vmem:[%s6858 + $0x6c] sm:$0xf]
        %v6887 = vld [vmem:[%s6858 + $0x70] sm:$0xf]
        %v6888 = vld [vmem:[%s6858 + $0x74] sm:$0xf]
        %v6889 = vld [vmem:[%s6858 + $0x78] sm:$0xf]
        %v6890 = vld [vmem:[%s6858 + $0x7c] sm:$0xf]
        %v6891 = vld [vmem:[%s6858 + $0x80] sm:$0xf]
        %v6892 = vld [vmem:[%s6858 + $0x84] sm:$0xf]
        %v6893 = vld [vmem:[%s6858 + $0x88] sm:$0xf]
        %v6894 = vld [vmem:[%s6858 + $0x8c] sm:$0xf]
        %v6895 = vld [vmem:[%s6858 + $0x90] sm:$0xf]
        %v6896 = vld [vmem:[%s6858 + $0x94] sm:$0xf]
        %v6897 = vld [vmem:[%s6858 + $0x98] sm:$0xf]
        %v6898 = vld [vmem:[%s6858 + $0x9c] sm:$0xf]
        %v6899 = vld [vmem:[%s6858 + $0xa0] sm:$0xf]
        %v6900 = vld [vmem:[%s6858 + $0xa4] sm:$0xf]
        %v6901 = vld [vmem:[%s6858 + $0xa8] sm:$0xf]
        %v6902 = vld [vmem:[%s6858 + $0xac] sm:$0xf]
        %v6903 = vld [vmem:[%s6858 + $0xb0] sm:$0xf]
        %v6904 = vld [vmem:[%s6858 + $0xb4] sm:$0xf]
        %v6905 = vld [vmem:[%s6858 + $0xb8] sm:$0xf]
        %v6906 = vld [vmem:[%s6858 + $0xbc] sm:$0xf]
        %v6955 = vunpack.c.l.b16 %v6859
        %v6956 = vunpack.c.l.b16 %v6860
        %v6957 = vunpack.c.l.b16 %v6861
        %v6958 = vunpack.c.l.b16 %v6862
        %v6959 = vunpack.c.l.b16 %v6863
        %v6960 = vunpack.c.l.b16 %v6864
        %v6961 = vunpack.c.l.b16 %v6865
        %v6962 = vunpack.c.l.b16 %v6866
        %v6963 = vunpack.c.l.b16 %v6867
        %v6964 = vunpack.c.l.b16 %v6868
        %v6965 = vunpack.c.l.b16 %v6869
        %v6966 = vunpack.c.l.b16 %v6870
        %v6967 = vunpack.c.l.b16 %v6871
        %v6968 = vunpack.c.l.b16 %v6872
        %v6969 = vunpack.c.l.b16 %v6873
        %v6970 = vunpack.c.l.b16 %v6874
        %v6971 = vunpack.c.l.b16 %v6875
        %v6972 = vunpack.c.l.b16 %v6876
        %v6973 = vunpack.c.l.b16 %v6877
        %v6974 = vunpack.c.l.b16 %v6878
        %v6975 = vunpack.c.l.b16 %v6879
        %v6976 = vunpack.c.l.b16 %v6880
        %v6977 = vunpack.c.l.b16 %v6881
        %v6978 = vunpack.c.l.b16 %v6882
        %v6979 = vunpack.c.l.b16 %v6883
        %v6980 = vunpack.c.l.b16 %v6884
        %v6981 = vunpack.c.l.b16 %v6885
        %v6982 = vunpack.c.l.b16 %v6886
        %v6983 = vunpack.c.l.b16 %v6887
        %v6984 = vunpack.c.l.b16 %v6888
        %v6985 = vunpack.c.l.b16 %v6889
        %v6986 = vunpack.c.l.b16 %v6890
        %v6987 = vunpack.c.l.b16 %v6891
        %v6988 = vunpack.c.l.b16 %v6892
        %v6989 = vunpack.c.l.b16 %v6893
        %v6990 = vunpack.c.l.b16 %v6894
        %v6991 = vunpack.c.l.b16 %v6895
        %v6992 = vunpack.c.l.b16 %v6896
        %v6993 = vunpack.c.l.b16 %v6897
        %v6994 = vunpack.c.l.b16 %v6898
        %v6995 = vunpack.c.l.b16 %v6899
        %v6996 = vunpack.c.l.b16 %v6900
        %v6997 = vunpack.c.l.b16 %v6901
        %v6998 = vunpack.c.l.b16 %v6902
        %v6999 = vunpack.c.l.b16 %v6903
        %v7000 = vunpack.c.l.b16 %v6904
        %v7001 = vunpack.c.l.b16 %v6905
        %v7002 = vunpack.c.l.b16 %v6906
        %v7003 = vpack.c.b16 %v6956, %v6955
        %v7004 = vpack.c.b16 %v6958, %v6957
        %v7005 = vpack.c.b16 %v6960, %v6959
        %v7006 = vpack.c.b16 %v6962, %v6961
        %v7007 = vpack.c.b16 %v6964, %v6963
        %v7008 = vpack.c.b16 %v6966, %v6965
        %v7009 = vpack.c.b16 %v6968, %v6967
        %v7010 = vpack.c.b16 %v6970, %v6969
        %v7011 = vpack.c.b16 %v6972, %v6971
        %v7012 = vpack.c.b16 %v6974, %v6973
        %v7013 = vpack.c.b16 %v6976, %v6975
        %v7014 = vpack.c.b16 %v6978, %v6977
        %v7015 = vpack.c.b16 %v6980, %v6979
        %v7016 = vpack.c.b16 %v6982, %v6981
        %v7017 = vpack.c.b16 %v6984, %v6983
        %v7018 = vpack.c.b16 %v6986, %v6985
        %v7019 = vpack.c.b16 %v6988, %v6987
        %v7020 = vpack.c.b16 %v6990, %v6989
        %v7021 = vpack.c.b16 %v6992, %v6991
        %v7022 = vpack.c.b16 %v6994, %v6993
        %v7023 = vpack.c.b16 %v6996, %v6995
        %v7024 = vpack.c.b16 %v6998, %v6997
        %v7025 = vpack.c.b16 %v7000, %v6999
        %v7026 = vpack.c.b16 %v7002, %v7001
        %7051 = vmatpush.bf16.msra.mxu0 %v7010
        %7052 = vmatpush.bf16.msra.mxu0 %v7009
        %7053 = vmatpush.bf16.msra.mxu0 %v7008
        %7054 = vmatpush.bf16.msra.mxu0 %v7007
        %7055 = vmatpush.bf16.msra.mxu0 %v7006
        %7056 = vmatpush.bf16.msra.mxu0 %v7005
        %7057 = vmatpush.bf16.msra.mxu0 %v7004
        %7058 = vmatpush.bf16.msra.mxu0 %v7003
        %7059 = vmatmul.bf16.gmra.mxu0 %v6270
        %v7060 = vpop.f32.mrf.mxu0
        %v7061 = vadd.f32 0.0, %v7060
        %v7062 = vpop.f32.mrf.mxu0
        %v7063 = vadd.f32 0.0, %v7062
        %7064 = vmatmul.bf16.gmra.mxu0 %v6313
        %v7065 = vpop.f32.mrf.mxu0
        %v7066 = vadd.f32 0.0, %v7065
        %v7067 = vpop.f32.mrf.mxu0
        %v7068 = vadd.f32 0.0, %v7067
        %7069 = vmatmul.bf16.gmra.mxu0 %v6356
        %v7070 = vpop.f32.mrf.mxu0
        %v7071 = vadd.f32 0.0, %v7070
        %v7072 = vpop.f32.mrf.mxu0
        %v7073 = vadd.f32 0.0, %v7072
        %7074 = vmatmul.bf16.gmra.mxu0 %v6399
        %v7075 = vpop.f32.mrf.mxu0
        %v7076 = vadd.f32 0.0, %v7075
        %v7077 = vpop.f32.mrf.mxu0
        %v7078 = vadd.f32 0.0, %v7077
        %7079 = vmatmul.bf16.gmra.mxu0 %v6442
        %v7080 = vpop.f32.mrf.mxu0
        %v7081 = vadd.f32 0.0, %v7080
        %v7082 = vpop.f32.mrf.mxu0
        %v7083 = vadd.f32 0.0, %v7082
        %7084 = vmatmul.bf16.gmra.mxu0 %v6485
        %v7085 = vpop.f32.mrf.mxu0
        %v7086 = vadd.f32 0.0, %v7085
        %v7087 = vpop.f32.mrf.mxu0
        %v7088 = vadd.f32 0.0, %v7087
        %7089 = vmatmul.bf16.gmra.mxu0 %v6528
        %v7090 = vpop.f32.mrf.mxu0
        %v7091 = vadd.f32 0.0, %v7090
        %v7092 = vpop.f32.mrf.mxu0
        %v7093 = vadd.f32 0.0, %v7092
        %7094 = vmatmul.bf16.gmra.mxu0 %v6571
        %v7095 = vpop.f32.mrf.mxu0
        %v7096 = vadd.f32 0.0, %v7095
        %v7097 = vpop.f32.mrf.mxu0
        %v7098 = vadd.f32 0.0, %v7097
        %7099 = vmatmul.bf16.gmra.mxu0 %v6614
        %v7100 = vpop.f32.mrf.mxu0
        %v7101 = vadd.f32 0.0, %v7100
        %v7102 = vpop.f32.mrf.mxu0
        %v7103 = vadd.f32 0.0, %v7102
        %7104 = vmatmul.bf16.gmra.mxu0 %v6657
        %v7105 = vpop.f32.mrf.mxu0
        %v7106 = vadd.f32 0.0, %v7105
        %v7107 = vpop.f32.mrf.mxu0
        %v7108 = vadd.f32 0.0, %v7107
        %7109 = vmatmul.bf16.gmra.mxu0 %v6700
        %v7110 = vpop.f32.mrf.mxu0
        %v7111 = vadd.f32 0.0, %v7110
        %v7112 = vpop.f32.mrf.mxu0
        %v7113 = vadd.f32 0.0, %v7112
        %7114 = vmatmul.bf16.gmra.mxu0 %v6828
        %v7115 = vpop.f32.mrf.mxu0
        %v7116 = vadd.f32 0.0, %v7115
        %v7117 = vpop.f32.mrf.mxu0
        %v7118 = vadd.f32 0.0, %v7117
        %7119 = vdwg.mxu0
        %7120 = vmatpush.bf16.msra.mxu0 %v7018
        %7121 = vmatpush.bf16.msra.mxu0 %v7017
        %7122 = vmatpush.bf16.msra.mxu0 %v7016
        %7123 = vmatpush.bf16.msra.mxu0 %v7015
        %7124 = vmatpush.bf16.msra.mxu0 %v7014
        %7125 = vmatpush.bf16.msra.mxu0 %v7013
        %7126 = vmatpush.bf16.msra.mxu0 %v7012
        %7127 = vmatpush.bf16.msra.mxu0 %v7011
        %7128 = vmatmul.bf16.gmra.mxu0 %v6279
        %v7129 = vpop.f32.mrf.mxu0
        %v7130 = vadd.f32 %v7061, %v7129
        %v7131 = vpop.f32.mrf.mxu0
        %v7132 = vadd.f32 %v7063, %v7131
        %7133 = vmatmul.bf16.gmra.mxu0 %v6322
        %v7134 = vpop.f32.mrf.mxu0
        %v7135 = vadd.f32 %v7066, %v7134
        %v7136 = vpop.f32.mrf.mxu0
        %v7137 = vadd.f32 %v7068, %v7136
        %7138 = vmatmul.bf16.gmra.mxu0 %v6365
        %v7139 = vpop.f32.mrf.mxu0
        %v7140 = vadd.f32 %v7071, %v7139
        %v7141 = vpop.f32.mrf.mxu0
        %v7142 = vadd.f32 %v7073, %v7141
        %7143 = vmatmul.bf16.gmra.mxu0 %v6408
        %v7144 = vpop.f32.mrf.mxu0
        %v7145 = vadd.f32 %v7076, %v7144
        %v7146 = vpop.f32.mrf.mxu0
        %v7147 = vadd.f32 %v7078, %v7146
        %7148 = vmatmul.bf16.gmra.mxu0 %v6451
        %v7149 = vpop.f32.mrf.mxu0
        %v7150 = vadd.f32 %v7081, %v7149
        %v7151 = vpop.f32.mrf.mxu0
        %v7152 = vadd.f32 %v7083, %v7151
        %7153 = vmatmul.bf16.gmra.mxu0 %v6494
        %v7154 = vpop.f32.mrf.mxu0
        %v7155 = vadd.f32 %v7086, %v7154
        %v7156 = vpop.f32.mrf.mxu0
        %v7157 = vadd.f32 %v7088, %v7156
        %7158 = vmatmul.bf16.gmra.mxu0 %v6537
        %v7159 = vpop.f32.mrf.mxu0
        %v7160 = vadd.f32 %v7091, %v7159
        %v7161 = vpop.f32.mrf.mxu0
        %v7162 = vadd.f32 %v7093, %v7161
        %7163 = vmatmul.bf16.gmra.mxu0 %v6580
        %v7164 = vpop.f32.mrf.mxu0
        %v7165 = vadd.f32 %v7096, %v7164
        %v7166 = vpop.f32.mrf.mxu0
        %v7167 = vadd.f32 %v7098, %v7166
        %7168 = vmatmul.bf16.gmra.mxu0 %v6623
        %v7169 = vpop.f32.mrf.mxu0
        %v7170 = vadd.f32 %v7101, %v7169
        %v7171 = vpop.f32.mrf.mxu0
        %v7172 = vadd.f32 %v7103, %v7171
        %7173 = vmatmul.bf16.gmra.mxu0 %v6666
        %v7174 = vpop.f32.mrf.mxu0
        %v7175 = vadd.f32 %v7106, %v7174
        %v7176 = vpop.f32.mrf.mxu0
        %v7177 = vadd.f32 %v7108, %v7176
        %7178 = vmatmul.bf16.gmra.mxu0 %v6709
        %v7179 = vpop.f32.mrf.mxu0
        %v7180 = vadd.f32 %v7111, %v7179
        %v7181 = vpop.f32.mrf.mxu0
        %v7182 = vadd.f32 %v7113, %v7181
        %7183 = vmatmul.bf16.gmra.mxu0 %v6837
        %v7184 = vpop.f32.mrf.mxu0
        %v7185 = vadd.f32 %v7116, %v7184
        %v7186 = vpop.f32.mrf.mxu0
        %v7187 = vadd.f32 %v7118, %v7186
        %7188 = vdwg.mxu0
        %7189 = vmatpush.bf16.msra.mxu0 %v7026
        %7190 = vmatpush.bf16.msra.mxu0 %v7025
        %7191 = vmatpush.bf16.msra.mxu0 %v7024
        %7192 = vmatpush.bf16.msra.mxu0 %v7023
        %7193 = vmatpush.bf16.msra.mxu0 %v7022
        %7194 = vmatpush.bf16.msra.mxu0 %v7021
        %7195 = vmatpush.bf16.msra.mxu0 %v7020
        %7196 = vmatpush.bf16.msra.mxu0 %v7019
        %7197 = vmatmul.bf16.gmra.mxu0 %v6296
        %v7198 = vpop.f32.mrf.mxu0
        %v7199 = vadd.f32 %v7130, %v7198
        %v7200 = vpop.f32.mrf.mxu0
        %v7201 = vadd.f32 %v7132, %v7200
        %7202 = vmatmul.bf16.gmra.mxu0 %v6339
        %v7203 = vpop.f32.mrf.mxu0
        %v7204 = vadd.f32 %v7135, %v7203
        %v7205 = vpop.f32.mrf.mxu0
        %v7206 = vadd.f32 %v7137, %v7205
        %7207 = vmatmul.bf16.gmra.mxu0 %v6382
        %v7208 = vpop.f32.mrf.mxu0
        %v7209 = vadd.f32 %v7140, %v7208
        %v7210 = vpop.f32.mrf.mxu0
        %v7211 = vadd.f32 %v7142, %v7210
        %7212 = vmatmul.bf16.gmra.mxu0 %v6425
        %v7213 = vpop.f32.mrf.mxu0
        %v7214 = vadd.f32 %v7145, %v7213
        %v7215 = vpop.f32.mrf.mxu0
        %v7216 = vadd.f32 %v7147, %v7215
        %7217 = vmatmul.bf16.gmra.mxu0 %v6468
        %v7218 = vpop.f32.mrf.mxu0
        %v7219 = vadd.f32 %v7150, %v7218
        %v7220 = vpop.f32.mrf.mxu0
        %v7221 = vadd.f32 %v7152, %v7220
        %7222 = vmatmul.bf16.gmra.mxu0 %v6511
        %v7223 = vpop.f32.mrf.mxu0
        %v7224 = vadd.f32 %v7155, %v7223
        %v7225 = vpop.f32.mrf.mxu0
        %v7226 = vadd.f32 %v7157, %v7225
        %7227 = vmatmul.bf16.gmra.mxu0 %v6554
        %v7228 = vpop.f32.mrf.mxu0
        %v7229 = vadd.f32 %v7160, %v7228
        %v7230 = vpop.f32.mrf.mxu0
        %v7231 = vadd.f32 %v7162, %v7230
        %7232 = vmatmul.bf16.gmra.mxu0 %v6597
        %v7233 = vpop.f32.mrf.mxu0
        %v7234 = vadd.f32 %v7165, %v7233
        %v7235 = vpop.f32.mrf.mxu0
        %v7236 = vadd.f32 %v7167, %v7235
        %7237 = vmatmul.bf16.gmra.mxu0 %v6640
        %v7238 = vpop.f32.mrf.mxu0
        %v7239 = vadd.f32 %v7170, %v7238
        %v7240 = vpop.f32.mrf.mxu0
        %v7241 = vadd.f32 %v7172, %v7240
        %7242 = vmatmul.bf16.gmra.mxu0 %v6683
        %v7243 = vpop.f32.mrf.mxu0
        %v7244 = vadd.f32 %v7175, %v7243
        %v7245 = vpop.f32.mrf.mxu0
        %v7246 = vadd.f32 %v7177, %v7245
        %7247 = vmatmul.bf16.gmra.mxu0 %v6726
        %v7248 = vpop.f32.mrf.mxu0
        %v7249 = vadd.f32 %v7180, %v7248
        %v7250 = vpop.f32.mrf.mxu0
        %v7251 = vadd.f32 %v7182, %v7250
        %7252 = vmatmul.bf16.gmra.mxu0 %v6854
        %v7253 = vpop.f32.mrf.mxu0
        %v7254 = vadd.f32 %v7185, %v7253
        %v7255 = vpop.f32.mrf.mxu0
        %v7256 = vadd.f32 %v7187, %v7255
        %7257 = vdwg.mxu0
        %v7306 = vunpack.c.l.b16 %v6764
        %v7307 = vunpack.c.l.b16 %v6765
        %v7308 = vunpack.c.l.b16 %v6766
        %v7309 = vunpack.c.l.b16 %v6767
        %v7310 = vunpack.c.l.b16 %v6768
        %v7311 = vunpack.c.l.b16 %v6769
        %v7312 = vunpack.c.l.b16 %v6770
        %v7313 = vunpack.c.l.b16 %v6771
        %v7314 = vunpack.c.l.b16 %v6772
        %v7315 = vunpack.c.l.b16 %v6773
        %v7316 = vunpack.c.l.b16 %v6774
        %v7317 = vunpack.c.l.b16 %v6775
        %v7318 = vunpack.c.l.b16 %v6776
        %v7319 = vunpack.c.l.b16 %v6777
        %v7320 = vunpack.c.l.b16 %v6778
        %v7321 = vunpack.c.l.b16 %v6779
        %v7322 = vunpack.c.l.b16 %v6780
        %v7323 = vunpack.c.l.b16 %v6781
        %v7324 = vunpack.c.l.b16 %v6782
        %v7325 = vunpack.c.l.b16 %v6783
        %v7326 = vunpack.c.l.b16 %v6784
        %v7327 = vunpack.c.l.b16 %v6785
        %v7328 = vunpack.c.l.b16 %v6786
        %v7329 = vunpack.c.l.b16 %v6787
        %v7330 = vunpack.c.l.b16 %v6788
        %v7331 = vunpack.c.l.b16 %v6789
        %v7332 = vunpack.c.l.b16 %v6790
        %v7333 = vunpack.c.l.b16 %v6791
        %v7334 = vunpack.c.l.b16 %v6792
        %v7335 = vunpack.c.l.b16 %v6793
        %v7336 = vunpack.c.l.b16 %v6794
        %v7337 = vunpack.c.l.b16 %v6795
        %v7338 = vunpack.c.l.b16 %v6796
        %v7339 = vunpack.c.l.b16 %v6797
        %v7340 = vunpack.c.l.b16 %v6798
        %v7341 = vunpack.c.l.b16 %v6799
        %v7342 = vunpack.c.l.b16 %v6800
        %v7343 = vunpack.c.l.b16 %v6801
        %v7344 = vunpack.c.l.b16 %v6802
        %v7345 = vunpack.c.l.b16 %v6803
        %v7346 = vunpack.c.l.b16 %v6804
        %v7347 = vunpack.c.l.b16 %v6805
        %v7348 = vunpack.c.l.b16 %v6806
        %v7349 = vunpack.c.l.b16 %v6807
        %v7350 = vunpack.c.l.b16 %v6808
        %v7351 = vunpack.c.l.b16 %v6809
        %v7352 = vunpack.c.l.b16 %v6810
        %v7353 = vunpack.c.l.b16 %v6811
        %v7354 = vpack.c.b16 %v7307, %v7306
        %v7355 = vpack.c.b16 %v7309, %v7308
        %v7356 = vpack.c.b16 %v7311, %v7310
        %v7357 = vpack.c.b16 %v7313, %v7312
        %v7358 = vpack.c.b16 %v7315, %v7314
        %v7359 = vpack.c.b16 %v7317, %v7316
        %v7360 = vpack.c.b16 %v7319, %v7318
        %v7361 = vpack.c.b16 %v7321, %v7320
        %v7362 = vpack.c.b16 %v7323, %v7322
        %v7363 = vpack.c.b16 %v7325, %v7324
        %v7364 = vpack.c.b16 %v7327, %v7326
        %v7365 = vpack.c.b16 %v7329, %v7328
        %v7366 = vpack.c.b16 %v7331, %v7330
        %v7367 = vpack.c.b16 %v7333, %v7332
        %v7368 = vpack.c.b16 %v7335, %v7334
        %v7369 = vpack.c.b16 %v7337, %v7336
        %v7370 = vpack.c.b16 %v7339, %v7338
        %v7371 = vpack.c.b16 %v7341, %v7340
        %v7372 = vpack.c.b16 %v7343, %v7342
        %v7373 = vpack.c.b16 %v7345, %v7344
        %v7374 = vpack.c.b16 %v7347, %v7346
        %v7375 = vpack.c.b16 %v7349, %v7348
        %v7376 = vpack.c.b16 %v7351, %v7350
        %v7377 = vpack.c.b16 %v7353, %v7352
        %7402 = vmatpush.bf16.msra.mxu0 %v7361
        %7403 = vmatpush.bf16.msra.mxu0 %v7360
        %7404 = vmatpush.bf16.msra.mxu0 %v7359
        %7405 = vmatpush.bf16.msra.mxu0 %v7358
        %7406 = vmatpush.bf16.msra.mxu0 %v7357
        %7407 = vmatpush.bf16.msra.mxu0 %v7356
        %7408 = vmatpush.bf16.msra.mxu0 %v7355
        %7409 = vmatpush.bf16.msra.mxu0 %v7354
        %7410 = vmatmul.bf16.gmra.mxu0 %v6227
        %v7411 = vpop.f32.mrf.mxu0
        %v7412 = vadd.f32 %v7199, %v7411
        %v7413 = vpop.f32.mrf.mxu0
        %v7414 = vadd.f32 %v7201, %v7413
        %7415 = vmatmul.bf16.gmra.mxu0 %v6270
        %v7416 = vpop.f32.mrf.mxu0
        %v7417 = vadd.f32 %v7204, %v7416
        %v7418 = vpop.f32.mrf.mxu0
        %v7419 = vadd.f32 %v7206, %v7418
        %7420 = vmatmul.bf16.gmra.mxu0 %v6313
        %v7421 = vpop.f32.mrf.mxu0
        %v7422 = vadd.f32 %v7209, %v7421
        %v7423 = vpop.f32.mrf.mxu0
        %v7424 = vadd.f32 %v7211, %v7423
        %7425 = vmatmul.bf16.gmra.mxu0 %v6356
        %v7426 = vpop.f32.mrf.mxu0
        %v7427 = vadd.f32 %v7214, %v7426
        %v7428 = vpop.f32.mrf.mxu0
        %v7429 = vadd.f32 %v7216, %v7428
        %7430 = vmatmul.bf16.gmra.mxu0 %v6399
        %v7431 = vpop.f32.mrf.mxu0
        %v7432 = vadd.f32 %v7219, %v7431
        %v7433 = vpop.f32.mrf.mxu0
        %v7434 = vadd.f32 %v7221, %v7433
        %7435 = vmatmul.bf16.gmra.mxu0 %v6442
        %v7436 = vpop.f32.mrf.mxu0
        %v7437 = vadd.f32 %v7224, %v7436
        %v7438 = vpop.f32.mrf.mxu0
        %v7439 = vadd.f32 %v7226, %v7438
        %7440 = vmatmul.bf16.gmra.mxu0 %v6485
        %v7441 = vpop.f32.mrf.mxu0
        %v7442 = vadd.f32 %v7229, %v7441
        %v7443 = vpop.f32.mrf.mxu0
        %v7444 = vadd.f32 %v7231, %v7443
        %7445 = vmatmul.bf16.gmra.mxu0 %v6528
        %v7446 = vpop.f32.mrf.mxu0
        %v7447 = vadd.f32 %v7234, %v7446
        %v7448 = vpop.f32.mrf.mxu0
        %v7449 = vadd.f32 %v7236, %v7448
        %7450 = vmatmul.bf16.gmra.mxu0 %v6571
        %v7451 = vpop.f32.mrf.mxu0
        %v7452 = vadd.f32 %v7239, %v7451
        %v7453 = vpop.f32.mrf.mxu0
        %v7454 = vadd.f32 %v7241, %v7453
        %7455 = vmatmul.bf16.gmra.mxu0 %v6614
        %v7456 = vpop.f32.mrf.mxu0
        %v7457 = vadd.f32 %v7244, %v7456
        %v7458 = vpop.f32.mrf.mxu0
        %v7459 = vadd.f32 %v7246, %v7458
        %7460 = vmatmul.bf16.gmra.mxu0 %v6657
        %v7461 = vpop.f32.mrf.mxu0
        %v7462 = vadd.f32 %v7249, %v7461
        %v7463 = vpop.f32.mrf.mxu0
        %v7464 = vadd.f32 %v7251, %v7463
        %7465 = vmatmul.bf16.gmra.mxu0 %v6700
        %v7466 = vpop.f32.mrf.mxu0
        %v7467 = vadd.f32 %v7254, %v7466
        %v7468 = vpop.f32.mrf.mxu0
        %v7469 = vadd.f32 %v7256, %v7468
        %7470 = vdwg.mxu0
        %7471 = vmatpush.bf16.msra.mxu0 %v7369
        %7472 = vmatpush.bf16.msra.mxu0 %v7368
        %7473 = vmatpush.bf16.msra.mxu0 %v7367
        %7474 = vmatpush.bf16.msra.mxu0 %v7366
        %7475 = vmatpush.bf16.msra.mxu0 %v7365
        %7476 = vmatpush.bf16.msra.mxu0 %v7364
        %7477 = vmatpush.bf16.msra.mxu0 %v7363
        %7478 = vmatpush.bf16.msra.mxu0 %v7362
        %7479 = vmatmul.bf16.gmra.mxu0 %v6236
        %v7480 = vpop.f32.mrf.mxu0
        %v7481 = vadd.f32 %v7412, %v7480
        %v7482 = vpop.f32.mrf.mxu0
        %v7483 = vadd.f32 %v7414, %v7482
        %7484 = vmatmul.bf16.gmra.mxu0 %v6279
        %v7485 = vpop.f32.mrf.mxu0
        %v7486 = vadd.f32 %v7417, %v7485
        %v7487 = vpop.f32.mrf.mxu0
        %v7488 = vadd.f32 %v7419, %v7487
        %7489 = vmatmul.bf16.gmra.mxu0 %v6322
        %v7490 = vpop.f32.mrf.mxu0
        %v7491 = vadd.f32 %v7422, %v7490
        %v7492 = vpop.f32.mrf.mxu0
        %v7493 = vadd.f32 %v7424, %v7492
        %7494 = vmatmul.bf16.gmra.mxu0 %v6365
        %v7495 = vpop.f32.mrf.mxu0
        %v7496 = vadd.f32 %v7427, %v7495
        %v7497 = vpop.f32.mrf.mxu0
        %v7498 = vadd.f32 %v7429, %v7497
        %7499 = vmatmul.bf16.gmra.mxu0 %v6408
        %v7500 = vpop.f32.mrf.mxu0
        %v7501 = vadd.f32 %v7432, %v7500
        %v7502 = vpop.f32.mrf.mxu0
        %v7503 = vadd.f32 %v7434, %v7502
        %7504 = vmatmul.bf16.gmra.mxu0 %v6451
        %v7505 = vpop.f32.mrf.mxu0
        %v7506 = vadd.f32 %v7437, %v7505
        %v7507 = vpop.f32.mrf.mxu0
        %v7508 = vadd.f32 %v7439, %v7507
        %7509 = vmatmul.bf16.gmra.mxu0 %v6494
        %v7510 = vpop.f32.mrf.mxu0
        %v7511 = vadd.f32 %v7442, %v7510
        %v7512 = vpop.f32.mrf.mxu0
        %v7513 = vadd.f32 %v7444, %v7512
        %7514 = vmatmul.bf16.gmra.mxu0 %v6537
        %v7515 = vpop.f32.mrf.mxu0
        %v7516 = vadd.f32 %v7447, %v7515
        %v7517 = vpop.f32.mrf.mxu0
        %v7518 = vadd.f32 %v7449, %v7517
        %7519 = vmatmul.bf16.gmra.mxu0 %v6580
        %v7520 = vpop.f32.mrf.mxu0
        %v7521 = vadd.f32 %v7452, %v7520
        %v7522 = vpop.f32.mrf.mxu0
        %v7523 = vadd.f32 %v7454, %v7522
        %7524 = vmatmul.bf16.gmra.mxu0 %v6623
        %v7525 = vpop.f32.mrf.mxu0
        %v7526 = vadd.f32 %v7457, %v7525
        %v7527 = vpop.f32.mrf.mxu0
        %v7528 = vadd.f32 %v7459, %v7527
        %7529 = vmatmul.bf16.gmra.mxu0 %v6666
        %v7530 = vpop.f32.mrf.mxu0
        %v7531 = vadd.f32 %v7462, %v7530
        %v7532 = vpop.f32.mrf.mxu0
        %v7533 = vadd.f32 %v7464, %v7532
        %7534 = vmatmul.bf16.gmra.mxu0 %v6709
        %v7535 = vpop.f32.mrf.mxu0
        %v7536 = vadd.f32 %v7467, %v7535
        %v7537 = vpop.f32.mrf.mxu0
        %v7538 = vadd.f32 %v7469, %v7537
        %7539 = vdwg.mxu0
        %7540 = vmatpush.bf16.msra.mxu0 %v7377
        %7541 = vmatpush.bf16.msra.mxu0 %v7376
        %7542 = vmatpush.bf16.msra.mxu0 %v7375
        %7543 = vmatpush.bf16.msra.mxu0 %v7374
        %7544 = vmatpush.bf16.msra.mxu0 %v7373
        %7545 = vmatpush.bf16.msra.mxu0 %v7372
        %7546 = vmatpush.bf16.msra.mxu0 %v7371
        %7547 = vmatpush.bf16.msra.mxu0 %v7370
        %7548 = vmatmul.bf16.gmra.mxu0 %v6253
        %v7549 = vpop.f32.mrf.mxu0
        %v7550 = vadd.f32 %v7481, %v7549
        %v7551 = vpop.f32.mrf.mxu0
        %v7552 = vadd.f32 %v7483, %v7551
        %7553 = vmatmul.bf16.gmra.mxu0 %v6296
        %v7554 = vpop.f32.mrf.mxu0
        %v7555 = vadd.f32 %v7486, %v7554
        %v7556 = vpop.f32.mrf.mxu0
        %v7557 = vadd.f32 %v7488, %v7556
        %7558 = vmatmul.bf16.gmra.mxu0 %v6339
        %v7559 = vpop.f32.mrf.mxu0
        %v7560 = vadd.f32 %v7491, %v7559
        %v7561 = vpop.f32.mrf.mxu0
        %v7562 = vadd.f32 %v7493, %v7561
        %7563 = vmatmul.bf16.gmra.mxu0 %v6382
        %v7564 = vpop.f32.mrf.mxu0
        %v7565 = vadd.f32 %v7496, %v7564
        %v7566 = vpop.f32.mrf.mxu0
        %v7567 = vadd.f32 %v7498, %v7566
        %7568 = vmatmul.bf16.gmra.mxu0 %v6425
        %v7569 = vpop.f32.mrf.mxu0
        %v7570 = vadd.f32 %v7501, %v7569
        %v7571 = vpop.f32.mrf.mxu0
        %v7572 = vadd.f32 %v7503, %v7571
        %7573 = vmatmul.bf16.gmra.mxu0 %v6468
        %v7574 = vpop.f32.mrf.mxu0
        %v7575 = vadd.f32 %v7506, %v7574
        %v7576 = vpop.f32.mrf.mxu0
        %v7577 = vadd.f32 %v7508, %v7576
        %7578 = vmatmul.bf16.gmra.mxu0 %v6511
        %v7579 = vpop.f32.mrf.mxu0
        %v7580 = vadd.f32 %v7511, %v7579
        %v7581 = vpop.f32.mrf.mxu0
        %v7582 = vadd.f32 %v7513, %v7581
        %7583 = vmatmul.bf16.gmra.mxu0 %v6554
        %v7584 = vpop.f32.mrf.mxu0
        %v7585 = vadd.f32 %v7516, %v7584
        %v7586 = vpop.f32.mrf.mxu0
        %v7587 = vadd.f32 %v7518, %v7586
        %7588 = vmatmul.bf16.gmra.mxu0 %v6597
        %v7589 = vpop.f32.mrf.mxu0
        %v7590 = vadd.f32 %v7521, %v7589
        %v7591 = vpop.f32.mrf.mxu0
        %v7592 = vadd.f32 %v7523, %v7591
        %7593 = vmatmul.bf16.gmra.mxu0 %v6640
        %v7594 = vpop.f32.mrf.mxu0
        %v7595 = vadd.f32 %v7526, %v7594
        %v7596 = vpop.f32.mrf.mxu0
        %v7597 = vadd.f32 %v7528, %v7596
        %7598 = vmatmul.bf16.gmra.mxu0 %v6683
        %v7599 = vpop.f32.mrf.mxu0
        %v7600 = vadd.f32 %v7531, %v7599
        %v7601 = vpop.f32.mrf.mxu0
        %v7602 = vadd.f32 %v7533, %v7601
        %7603 = vmatmul.bf16.gmra.mxu0 %v6726
        %v7604 = vpop.f32.mrf.mxu0
        %v7605 = vadd.f32 %v7536, %v7604
        %v7606 = vpop.f32.mrf.mxu0
        %v7607 = vadd.f32 %v7538, %v7606
        %7608 = vdwg.mxu0
        %v7610 = vshrl.u32 %v5999, 16
        %v7612 = vrot.slane %v7610, 3
        %v7613 = vshll.u32 %v5999, 16
        %v7615 = vrot.slane %v7613, 4
        %v7616 = vor.u32 %v7612, %v7615
        %v7618 = vshrl.u32 %v6000, 16
        %v7620 = vrot.slane %v7618, 3
        %v7621 = vshll.u32 %v6000, 16
        %v7623 = vrot.slane %v7621, 4
        %v7624 = vor.u32 %v7620, %v7623
        %v7625 = vsel %vm859, %v7616, %v7624
        %v7627 = vshrl.u32 %v6126, 16
        %v7629 = vrot.slane %v7627, 3
        %v7630 = vshll.u32 %v6126, 16
        %v7632 = vrot.slane %v7630, 4
        %v7633 = vor.u32 %v7629, %v7632
        %v7634 = vsel %vm859, %v7633, %v7633
        %v7636 = vshrl.u32 %v6208, 16
        %v7638 = vrot.slane %v7636, 3
        %v7639 = vshll.u32 %v6208, 16
        %v7641 = vrot.slane %v7639, 4
        %v7642 = vor.u32 %v7638, %v7641
        %v7644 = vshrl.u32 %v6210, 16
        %v7646 = vrot.slane %v7644, 3
        %v7647 = vshll.u32 %v6210, 16
        %v7649 = vrot.slane %v7647, 4
        %v7650 = vor.u32 %v7646, %v7649
        %v7651 = vsel %vm859, %v7642, %v7650
        %s7655 = scalar_lea.vmem [#allocation5], 1536
        %v7656 = vld [vmem:[%s7655] sm:$0xf]
        %v7657 = vld [vmem:[%s7655 + $0x4] sm:$0xf]
        %v7658 = vld [vmem:[%s7655 + $0x8] sm:$0xf]
        %v7659 = vld [vmem:[%s7655 + $0xc] sm:$0xf]
        %v7660 = vld [vmem:[%s7655 + $0x10] sm:$0xf]
        %v7661 = vld [vmem:[%s7655 + $0x14] sm:$0xf]
        %v7662 = vld [vmem:[%s7655 + $0x18] sm:$0xf]
        %v7663 = vld [vmem:[%s7655 + $0x1c] sm:$0xf]
        %v7664 = vld [vmem:[%s7655 + $0x20] sm:$0xf]
        %v7665 = vld [vmem:[%s7655 + $0x24] sm:$0xf]
        %v7666 = vld [vmem:[%s7655 + $0x28] sm:$0xf]
        %v7667 = vld [vmem:[%s7655 + $0x2c] sm:$0xf]
        %v7668 = vld [vmem:[%s7655 + $0x30] sm:$0xf]
        %v7669 = vld [vmem:[%s7655 + $0x34] sm:$0xf]
        %v7670 = vld [vmem:[%s7655 + $0x38] sm:$0xf]
        %v7671 = vld [vmem:[%s7655 + $0x3c] sm:$0xf]
        %v7672 = vld [vmem:[%s7655 + $0x40] sm:$0xf]
        %v7673 = vld [vmem:[%s7655 + $0x44] sm:$0xf]
        %v7674 = vld [vmem:[%s7655 + $0x48] sm:$0xf]
        %v7675 = vld [vmem:[%s7655 + $0x4c] sm:$0xf]
        %v7676 = vld [vmem:[%s7655 + $0x50] sm:$0xf]
        %v7677 = vld [vmem:[%s7655 + $0x54] sm:$0xf]
        %v7678 = vld [vmem:[%s7655 + $0x58] sm:$0xf]
        %v7679 = vld [vmem:[%s7655 + $0x5c] sm:$0xf]
        %v7680 = vld [vmem:[%s7655 + $0x60] sm:$0xf]
        %v7681 = vld [vmem:[%s7655 + $0x64] sm:$0xf]
        %v7682 = vld [vmem:[%s7655 + $0x68] sm:$0xf]
        %v7683 = vld [vmem:[%s7655 + $0x6c] sm:$0xf]
        %v7684 = vld [vmem:[%s7655 + $0x70] sm:$0xf]
        %v7685 = vld [vmem:[%s7655 + $0x74] sm:$0xf]
        %v7686 = vld [vmem:[%s7655 + $0x78] sm:$0xf]
        %v7687 = vld [vmem:[%s7655 + $0x7c] sm:$0xf]
        %v7688 = vld [vmem:[%s7655 + $0x80] sm:$0xf]
        %v7689 = vld [vmem:[%s7655 + $0x84] sm:$0xf]
        %v7690 = vld [vmem:[%s7655 + $0x88] sm:$0xf]
        %v7691 = vld [vmem:[%s7655 + $0x8c] sm:$0xf]
        %v7692 = vld [vmem:[%s7655 + $0x90] sm:$0xf]
        %v7693 = vld [vmem:[%s7655 + $0x94] sm:$0xf]
        %v7694 = vld [vmem:[%s7655 + $0x98] sm:$0xf]
        %v7695 = vld [vmem:[%s7655 + $0x9c] sm:$0xf]
        %v7696 = vld [vmem:[%s7655 + $0xa0] sm:$0xf]
        %v7697 = vld [vmem:[%s7655 + $0xa4] sm:$0xf]
        %v7698 = vld [vmem:[%s7655 + $0xa8] sm:$0xf]
        %v7699 = vld [vmem:[%s7655 + $0xac] sm:$0xf]
        %v7700 = vld [vmem:[%s7655 + $0xb0] sm:$0xf]
        %v7701 = vld [vmem:[%s7655 + $0xb4] sm:$0xf]
        %v7702 = vld [vmem:[%s7655 + $0xb8] sm:$0xf]
        %v7703 = vld [vmem:[%s7655 + $0xbc] sm:$0xf]
        %v7752 = vunpack.c.l.b16 %v7656
        %v7753 = vunpack.c.l.b16 %v7657
        %v7754 = vunpack.c.l.b16 %v7658
        %v7755 = vunpack.c.l.b16 %v7659
        %v7756 = vunpack.c.l.b16 %v7660
        %v7757 = vunpack.c.l.b16 %v7661
        %v7758 = vunpack.c.l.b16 %v7662
        %v7759 = vunpack.c.l.b16 %v7663
        %v7760 = vunpack.c.l.b16 %v7664
        %v7761 = vunpack.c.l.b16 %v7665
        %v7762 = vunpack.c.l.b16 %v7666
        %v7763 = vunpack.c.l.b16 %v7667
        %v7764 = vunpack.c.l.b16 %v7668
        %v7765 = vunpack.c.l.b16 %v7669
        %v7766 = vunpack.c.l.b16 %v7670
        %v7767 = vunpack.c.l.b16 %v7671
        %v7768 = vunpack.c.l.b16 %v7672
        %v7769 = vunpack.c.l.b16 %v7673
        %v7770 = vunpack.c.l.b16 %v7674
        %v7771 = vunpack.c.l.b16 %v7675
        %v7772 = vunpack.c.l.b16 %v7676
        %v7773 = vunpack.c.l.b16 %v7677
        %v7774 = vunpack.c.l.b16 %v7678
        %v7775 = vunpack.c.l.b16 %v7679
        %v7776 = vunpack.c.l.b16 %v7680
        %v7777 = vunpack.c.l.b16 %v7681
        %v7778 = vunpack.c.l.b16 %v7682
        %v7779 = vunpack.c.l.b16 %v7683
        %v7780 = vunpack.c.l.b16 %v7684
        %v7781 = vunpack.c.l.b16 %v7685
        %v7782 = vunpack.c.l.b16 %v7686
        %v7783 = vunpack.c.l.b16 %v7687
        %v7784 = vunpack.c.l.b16 %v7688
        %v7785 = vunpack.c.l.b16 %v7689
        %v7786 = vunpack.c.l.b16 %v7690
        %v7787 = vunpack.c.l.b16 %v7691
        %v7788 = vunpack.c.l.b16 %v7692
        %v7789 = vunpack.c.l.b16 %v7693
        %v7790 = vunpack.c.l.b16 %v7694
        %v7791 = vunpack.c.l.b16 %v7695
        %v7792 = vunpack.c.l.b16 %v7696
        %v7793 = vunpack.c.l.b16 %v7697
        %v7794 = vunpack.c.l.b16 %v7698
        %v7795 = vunpack.c.l.b16 %v7699
        %v7796 = vunpack.c.l.b16 %v7700
        %v7797 = vunpack.c.l.b16 %v7701
        %v7798 = vunpack.c.l.b16 %v7702
        %v7799 = vunpack.c.l.b16 %v7703
        %v7800 = vpack.c.b16 %v7753, %v7752
        %v7801 = vpack.c.b16 %v7755, %v7754
        %v7802 = vpack.c.b16 %v7757, %v7756
        %v7803 = vpack.c.b16 %v7759, %v7758
        %v7804 = vpack.c.b16 %v7761, %v7760
        %v7805 = vpack.c.b16 %v7763, %v7762
        %v7806 = vpack.c.b16 %v7765, %v7764
        %v7807 = vpack.c.b16 %v7767, %v7766
        %v7808 = vpack.c.b16 %v7769, %v7768
        %v7809 = vpack.c.b16 %v7771, %v7770
        %v7810 = vpack.c.b16 %v7773, %v7772
        %v7811 = vpack.c.b16 %v7775, %v7774
        %v7812 = vpack.c.b16 %v7777, %v7776
        %v7813 = vpack.c.b16 %v7779, %v7778
        %v7814 = vpack.c.b16 %v7781, %v7780
        %v7815 = vpack.c.b16 %v7783, %v7782
        %v7816 = vpack.c.b16 %v7785, %v7784
        %v7817 = vpack.c.b16 %v7787, %v7786
        %v7818 = vpack.c.b16 %v7789, %v7788
        %v7819 = vpack.c.b16 %v7791, %v7790
        %v7820 = vpack.c.b16 %v7793, %v7792
        %v7821 = vpack.c.b16 %v7795, %v7794
        %v7822 = vpack.c.b16 %v7797, %v7796
        %v7823 = vpack.c.b16 %v7799, %v7798
        %7848 = vmatpush.bf16.msra.mxu0 %v7807
        %7849 = vmatpush.bf16.msra.mxu0 %v7806
        %7850 = vmatpush.bf16.msra.mxu0 %v7805
        %7851 = vmatpush.bf16.msra.mxu0 %v7804
        %7852 = vmatpush.bf16.msra.mxu0 %v7803
        %7853 = vmatpush.bf16.msra.mxu0 %v7802
        %7854 = vmatpush.bf16.msra.mxu0 %v7801
        %7855 = vmatpush.bf16.msra.mxu0 %v7800
        %7856 = vmatmul.bf16.gmra.mxu0 %v6313
        %v7857 = vpop.f32.mrf.mxu0
        %v7858 = vadd.f32 0.0, %v7857
        %v7859 = vpop.f32.mrf.mxu0
        %v7860 = vadd.f32 0.0, %v7859
        %7861 = vmatmul.bf16.gmra.mxu0 %v6356
        %v7862 = vpop.f32.mrf.mxu0
        %v7863 = vadd.f32 0.0, %v7862
        %v7864 = vpop.f32.mrf.mxu0
        %v7865 = vadd.f32 0.0, %v7864
        %7866 = vmatmul.bf16.gmra.mxu0 %v6399
        %v7867 = vpop.f32.mrf.mxu0
        %v7868 = vadd.f32 0.0, %v7867
        %v7869 = vpop.f32.mrf.mxu0
        %v7870 = vadd.f32 0.0, %v7869
        %7871 = vmatmul.bf16.gmra.mxu0 %v6442
        %v7872 = vpop.f32.mrf.mxu0
        %v7873 = vadd.f32 0.0, %v7872
        %v7874 = vpop.f32.mrf.mxu0
        %v7875 = vadd.f32 0.0, %v7874
        %7876 = vmatmul.bf16.gmra.mxu0 %v6485
        %v7877 = vpop.f32.mrf.mxu0
        %v7878 = vadd.f32 0.0, %v7877
        %v7879 = vpop.f32.mrf.mxu0
        %v7880 = vadd.f32 0.0, %v7879
        %7881 = vmatmul.bf16.gmra.mxu0 %v6528
        %v7882 = vpop.f32.mrf.mxu0
        %v7883 = vadd.f32 0.0, %v7882
        %v7884 = vpop.f32.mrf.mxu0
        %v7885 = vadd.f32 0.0, %v7884
        %7886 = vmatmul.bf16.gmra.mxu0 %v6571
        %v7887 = vpop.f32.mrf.mxu0
        %v7888 = vadd.f32 0.0, %v7887
        %v7889 = vpop.f32.mrf.mxu0
        %v7890 = vadd.f32 0.0, %v7889
        %7891 = vmatmul.bf16.gmra.mxu0 %v6614
        %v7892 = vpop.f32.mrf.mxu0
        %v7893 = vadd.f32 0.0, %v7892
        %v7894 = vpop.f32.mrf.mxu0
        %v7895 = vadd.f32 0.0, %v7894
        %7896 = vmatmul.bf16.gmra.mxu0 %v6657
        %v7897 = vpop.f32.mrf.mxu0
        %v7898 = vadd.f32 0.0, %v7897
        %v7899 = vpop.f32.mrf.mxu0
        %v7900 = vadd.f32 0.0, %v7899
        %7901 = vmatmul.bf16.gmra.mxu0 %v6700
        %v7902 = vpop.f32.mrf.mxu0
        %v7903 = vadd.f32 0.0, %v7902
        %v7904 = vpop.f32.mrf.mxu0
        %v7905 = vadd.f32 0.0, %v7904
        %7906 = vmatmul.bf16.gmra.mxu0 %v6828
        %v7907 = vpop.f32.mrf.mxu0
        %v7908 = vadd.f32 0.0, %v7907
        %v7909 = vpop.f32.mrf.mxu0
        %v7910 = vadd.f32 0.0, %v7909
        %7911 = vmatmul.bf16.gmra.mxu0 %v7625
        %v7912 = vpop.f32.mrf.mxu0
        %v7913 = vadd.f32 0.0, %v7912
        %v7914 = vpop.f32.mrf.mxu0
        %v7915 = vadd.f32 0.0, %v7914
        %7916 = vdwg.mxu0
        %7917 = vmatpush.bf16.msra.mxu0 %v7815
        %7918 = vmatpush.bf16.msra.mxu0 %v7814
        %7919 = vmatpush.bf16.msra.mxu0 %v7813
        %7920 = vmatpush.bf16.msra.mxu0 %v7812
        %7921 = vmatpush.bf16.msra.mxu0 %v7811
        %7922 = vmatpush.bf16.msra.mxu0 %v7810
        %7923 = vmatpush.bf16.msra.mxu0 %v7809
        %7924 = vmatpush.bf16.msra.mxu0 %v7808
        %7925 = vmatmul.bf16.gmra.mxu0 %v6322
        %v7926 = vpop.f32.mrf.mxu0
        %v7927 = vadd.f32 %v7858, %v7926
        %v7928 = vpop.f32.mrf.mxu0
        %v7929 = vadd.f32 %v7860, %v7928
        %7930 = vmatmul.bf16.gmra.mxu0 %v6365
        %v7931 = vpop.f32.mrf.mxu0
        %v7932 = vadd.f32 %v7863, %v7931
        %v7933 = vpop.f32.mrf.mxu0
        %v7934 = vadd.f32 %v7865, %v7933
        %7935 = vmatmul.bf16.gmra.mxu0 %v6408
        %v7936 = vpop.f32.mrf.mxu0
        %v7937 = vadd.f32 %v7868, %v7936
        %v7938 = vpop.f32.mrf.mxu0
        %v7939 = vadd.f32 %v7870, %v7938
        %7940 = vmatmul.bf16.gmra.mxu0 %v6451
        %v7941 = vpop.f32.mrf.mxu0
        %v7942 = vadd.f32 %v7873, %v7941
        %v7943 = vpop.f32.mrf.mxu0
        %v7944 = vadd.f32 %v7875, %v7943
        %7945 = vmatmul.bf16.gmra.mxu0 %v6494
        %v7946 = vpop.f32.mrf.mxu0
        %v7947 = vadd.f32 %v7878, %v7946
        %v7948 = vpop.f32.mrf.mxu0
        %v7949 = vadd.f32 %v7880, %v7948
        %7950 = vmatmul.bf16.gmra.mxu0 %v6537
        %v7951 = vpop.f32.mrf.mxu0
        %v7952 = vadd.f32 %v7883, %v7951
        %v7953 = vpop.f32.mrf.mxu0
        %v7954 = vadd.f32 %v7885, %v7953
        %7955 = vmatmul.bf16.gmra.mxu0 %v6580
        %v7956 = vpop.f32.mrf.mxu0
        %v7957 = vadd.f32 %v7888, %v7956
        %v7958 = vpop.f32.mrf.mxu0
        %v7959 = vadd.f32 %v7890, %v7958
        %7960 = vmatmul.bf16.gmra.mxu0 %v6623
        %v7961 = vpop.f32.mrf.mxu0
        %v7962 = vadd.f32 %v7893, %v7961
        %v7963 = vpop.f32.mrf.mxu0
        %v7964 = vadd.f32 %v7895, %v7963
        %7965 = vmatmul.bf16.gmra.mxu0 %v6666
        %v7966 = vpop.f32.mrf.mxu0
        %v7967 = vadd.f32 %v7898, %v7966
        %v7968 = vpop.f32.mrf.mxu0
        %v7969 = vadd.f32 %v7900, %v7968
        %7970 = vmatmul.bf16.gmra.mxu0 %v6709
        %v7971 = vpop.f32.mrf.mxu0
        %v7972 = vadd.f32 %v7903, %v7971
        %v7973 = vpop.f32.mrf.mxu0
        %v7974 = vadd.f32 %v7905, %v7973
        %7975 = vmatmul.bf16.gmra.mxu0 %v6837
        %v7976 = vpop.f32.mrf.mxu0
        %v7977 = vadd.f32 %v7908, %v7976
        %v7978 = vpop.f32.mrf.mxu0
        %v7979 = vadd.f32 %v7910, %v7978
        %7980 = vmatmul.bf16.gmra.mxu0 %v7634
        %v7981 = vpop.f32.mrf.mxu0
        %v7982 = vadd.f32 %v7913, %v7981
        %v7983 = vpop.f32.mrf.mxu0
        %v7984 = vadd.f32 %v7915, %v7983
        %7985 = vdwg.mxu0
        %7986 = vmatpush.bf16.msra.mxu0 %v7823
        %7987 = vmatpush.bf16.msra.mxu0 %v7822
        %7988 = vmatpush.bf16.msra.mxu0 %v7821
        %7989 = vmatpush.bf16.msra.mxu0 %v7820
        %7990 = vmatpush.bf16.msra.mxu0 %v7819
        %7991 = vmatpush.bf16.msra.mxu0 %v7818
        %7992 = vmatpush.bf16.msra.mxu0 %v7817
        %7993 = vmatpush.bf16.msra.mxu0 %v7816
        %7994 = vmatmul.bf16.gmra.mxu0 %v6339
        %v7995 = vpop.f32.mrf.mxu0
        %v7996 = vadd.f32 %v7927, %v7995
        %v7997 = vpop.f32.mrf.mxu0
        %v7998 = vadd.f32 %v7929, %v7997
        %7999 = vmatmul.bf16.gmra.mxu0 %v6382
        %v8000 = vpop.f32.mrf.mxu0
        %v8001 = vadd.f32 %v7932, %v8000
        %v8002 = vpop.f32.mrf.mxu0
        %v8003 = vadd.f32 %v7934, %v8002
        %8004 = vmatmul.bf16.gmra.mxu0 %v6425
        %v8005 = vpop.f32.mrf.mxu0
        %v8006 = vadd.f32 %v7937, %v8005
        %v8007 = vpop.f32.mrf.mxu0
        %v8008 = vadd.f32 %v7939, %v8007
        %8009 = vmatmul.bf16.gmra.mxu0 %v6468
        %v8010 = vpop.f32.mrf.mxu0
        %v8011 = vadd.f32 %v7942, %v8010
        %v8012 = vpop.f32.mrf.mxu0
        %v8013 = vadd.f32 %v7944, %v8012
        %8014 = vmatmul.bf16.gmra.mxu0 %v6511
        %v8015 = vpop.f32.mrf.mxu0
        %v8016 = vadd.f32 %v7947, %v8015
        %v8017 = vpop.f32.mrf.mxu0
        %v8018 = vadd.f32 %v7949, %v8017
        %8019 = vmatmul.bf16.gmra.mxu0 %v6554
        %v8020 = vpop.f32.mrf.mxu0
        %v8021 = vadd.f32 %v7952, %v8020
        %v8022 = vpop.f32.mrf.mxu0
        %v8023 = vadd.f32 %v7954, %v8022
        %8024 = vmatmul.bf16.gmra.mxu0 %v6597
        %v8025 = vpop.f32.mrf.mxu0
        %v8026 = vadd.f32 %v7957, %v8025
        %v8027 = vpop.f32.mrf.mxu0
        %v8028 = vadd.f32 %v7959, %v8027
        %8029 = vmatmul.bf16.gmra.mxu0 %v6640
        %v8030 = vpop.f32.mrf.mxu0
        %v8031 = vadd.f32 %v7962, %v8030
        %v8032 = vpop.f32.mrf.mxu0
        %v8033 = vadd.f32 %v7964, %v8032
        %8034 = vmatmul.bf16.gmra.mxu0 %v6683
        %v8035 = vpop.f32.mrf.mxu0
        %v8036 = vadd.f32 %v7967, %v8035
        %v8037 = vpop.f32.mrf.mxu0
        %v8038 = vadd.f32 %v7969, %v8037
        %8039 = vmatmul.bf16.gmra.mxu0 %v6726
        %v8040 = vpop.f32.mrf.mxu0
        %v8041 = vadd.f32 %v7972, %v8040
        %v8042 = vpop.f32.mrf.mxu0
        %v8043 = vadd.f32 %v7974, %v8042
        %8044 = vmatmul.bf16.gmra.mxu0 %v6854
        %v8045 = vpop.f32.mrf.mxu0
        %v8046 = vadd.f32 %v7977, %v8045
        %v8047 = vpop.f32.mrf.mxu0
        %v8048 = vadd.f32 %v7979, %v8047
        %8049 = vmatmul.bf16.gmra.mxu0 %v7651
        %v8050 = vpop.f32.mrf.mxu0
        %v8051 = vadd.f32 %v7982, %v8050
        %v8052 = vpop.f32.mrf.mxu0
        %v8053 = vadd.f32 %v7984, %v8052
        %8054 = vdwg.mxu0
        %v8055 = vadd.f32 %v7550, %v7996
        %v8056 = vadd.f32 %v7552, %v7998
        %v8057 = vadd.f32 %v7555, %v8001
        %v8058 = vadd.f32 %v7557, %v8003
        %v8059 = vadd.f32 %v7560, %v8006
        %v8060 = vadd.f32 %v7562, %v8008
        %v8061 = vadd.f32 %v7565, %v8011
        %v8062 = vadd.f32 %v7567, %v8013
        %v8063 = vadd.f32 %v7570, %v8016
        %v8064 = vadd.f32 %v7572, %v8018
        %v8065 = vadd.f32 %v7575, %v8021
        %v8066 = vadd.f32 %v7577, %v8023
        %v8067 = vadd.f32 %v7580, %v8026
        %v8068 = vadd.f32 %v7582, %v8028
        %v8069 = vadd.f32 %v7585, %v8031
        %v8070 = vadd.f32 %v7587, %v8033
        %v8071 = vadd.f32 %v7590, %v8036
        %v8072 = vadd.f32 %v7592, %v8038
        %v8073 = vadd.f32 %v7595, %v8041
        %v8074 = vadd.f32 %v7597, %v8043
        %v8075 = vadd.f32 %v7600, %v8046
        %v8076 = vadd.f32 %v7602, %v8048
        %v8077 = vadd.f32 %v7605, %v8051
        %v8078 = vadd.f32 %v7607, %v8053
        %s8079 = scalar_lea.vmem [#allocation7], 2
        %v8080 = vld [vmem:[%s8079] sm:$0x1]
        %v8082 = vperm.slane %v8080, 0
        %v8084 = vadd.f32 %v8055, %v8082
        %v8085 = vadd.f32 %v8056, %v8082
        %v8086 = vadd.f32 %v8057, %v8082
        %v8087 = vadd.f32 %v8058, %v8082
        %v8088 = vadd.f32 %v8059, %v8082
        %v8089 = vadd.f32 %v8060, %v8082
        %v8090 = vadd.f32 %v8061, %v8082
        %v8091 = vadd.f32 %v8062, %v8082
        %v8092 = vadd.f32 %v8063, %v8082
        %v8093 = vadd.f32 %v8064, %v8082
        %v8094 = vadd.f32 %v8065, %v8082
        %v8095 = vadd.f32 %v8066, %v8082
        %v8096 = vadd.f32 %v8067, %v8082
        %v8097 = vadd.f32 %v8068, %v8082
        %v8098 = vadd.f32 %v8069, %v8082
        %v8099 = vadd.f32 %v8070, %v8082
        %v8100 = vadd.f32 %v8071, %v8082
        %v8101 = vadd.f32 %v8072, %v8082
        %v8102 = vadd.f32 %v8073, %v8082
        %v8103 = vadd.f32 %v8074, %v8082
        %v8104 = vadd.f32 %v8075, %v8082
        %v8105 = vadd.f32 %v8076, %v8082
        %v8106 = vadd.f32 %v8077, %v8082
        %v8107 = vadd.f32 %v8078, %v8082
        %v8108 = vpack.c.bf16 %v8084, %v8084
        %v8109 = vpack.c.bf16 %v8085, %v8085
        %v8110 = vpack.c.bf16 %v8086, %v8086
        %v8111 = vpack.c.bf16 %v8087, %v8087
        %v8112 = vpack.c.bf16 %v8088, %v8088
        %v8113 = vpack.c.bf16 %v8089, %v8089
        %v8114 = vpack.c.bf16 %v8090, %v8090
        %v8115 = vpack.c.bf16 %v8091, %v8091
        %v8116 = vpack.c.bf16 %v8092, %v8092
        %v8117 = vpack.c.bf16 %v8093, %v8093
        %v8118 = vpack.c.bf16 %v8094, %v8094
        %v8119 = vpack.c.bf16 %v8095, %v8095
        %v8120 = vpack.c.bf16 %v8096, %v8096
        %v8121 = vpack.c.bf16 %v8097, %v8097
        %v8122 = vpack.c.bf16 %v8098, %v8098
        %v8123 = vpack.c.bf16 %v8099, %v8099
        %v8124 = vpack.c.bf16 %v8100, %v8100
        %v8125 = vpack.c.bf16 %v8101, %v8101
        %v8126 = vpack.c.bf16 %v8102, %v8102
        %v8127 = vpack.c.bf16 %v8103, %v8103
        %v8128 = vpack.c.bf16 %v8104, %v8104
        %v8129 = vpack.c.bf16 %v8105, %v8105
        %v8130 = vpack.c.bf16 %v8106, %v8106
        %v8131 = vpack.c.bf16 %v8107, %v8107
        %s8132 = scalar_lea.vmem [#allocation3], 64
        %8133 = vst [vmem:[%s8132 + $0x4] sm:$0xf] %v8108
        %8134 = vst [vmem:[%s8132 + $0x8] sm:$0xf] %v8109
        %8135 = vst [vmem:[%s8132 + $0x14] sm:$0xf] %v8110
        %8136 = vst [vmem:[%s8132 + $0x18] sm:$0xf] %v8111
        %8137 = vst [vmem:[%s8132 + $0x24] sm:$0xf] %v8112
        %8138 = vst [vmem:[%s8132 + $0x28] sm:$0xf] %v8113
        %8139 = vst [vmem:[%s8132 + $0x34] sm:$0xf] %v8114
        %8140 = vst [vmem:[%s8132 + $0x38] sm:$0xf] %v8115
        %8141 = vst [vmem:[%s8132 + $0x44] sm:$0xf] %v8116
        %8142 = vst [vmem:[%s8132 + $0x48] sm:$0xf] %v8117
        %8143 = vst [vmem:[%s8132 + $0x54] sm:$0xf] %v8118
        %8144 = vst [vmem:[%s8132 + $0x58] sm:$0xf] %v8119
        %8145 = vst [vmem:[%s8132 + $0x64] sm:$0xf] %v8120
        %8146 = vst [vmem:[%s8132 + $0x68] sm:$0xf] %v8121
        %8147 = vst [vmem:[%s8132 + $0x74] sm:$0xf] %v8122
        %8148 = vst [vmem:[%s8132 + $0x78] sm:$0xf] %v8123
        %8149 = vst [vmem:[%s8132 + $0x84] sm:$0xf] %v8124
        %8150 = vst [vmem:[%s8132 + $0x88] sm:$0xf] %v8125
        %8151 = vst [vmem:[%s8132 + $0x94] sm:$0xf] %v8126
        %8152 = vst [vmem:[%s8132 + $0x98] sm:$0xf] %v8127
        %8153 = vst [vmem:[%s8132 + $0xa4] sm:$0xf] %v8128
        %8154 = vst [vmem:[%s8132 + $0xa8] sm:$0xf] %v8129
        %8155 = vst [vmem:[%s8132 + $0xb4] sm:$0xf] %v8130
        %8156 = vst [vmem:[%s8132 + $0xb8] sm:$0xf] %v8131
        // Predicated region
        $region65: #{tpu_custom_call.1} parent=35 // pred_check
          %p8157 = pneg %p3200
        $region66: #{tpu_custom_call.1} parent=35 // pred_check_branch
          %8159 = sbr.rel (%p8157) target = $region68
        $region67: #{tpu_custom_call.1} parent=35 // pred_region
          %s8160 = scalar_lea.vmem [#allocation3], 16
          %8161 = vst [vmem:[%s8160 + $0x4] sm:$0xf] 0
          %8162 = vst [vmem:[%s8160 + $0x8] sm:$0xf] 0
          %8163 = vst [vmem:[%s8160 + $0x14] sm:$0xf] 0
          %8164 = vst [vmem:[%s8160 + $0x18] sm:$0xf] 0
          %8165 = vst [vmem:[%s8160 + $0x24] sm:$0xf] 0
          %8166 = vst [vmem:[%s8160 + $0x28] sm:$0xf] 0
          %8167 = vst [vmem:[%s8160 + $0x34] sm:$0xf] 0
          %8168 = vst [vmem:[%s8160 + $0x38] sm:$0xf] 0
          %8169 = vst [vmem:[%s8160 + $0x44] sm:$0xf] 0
          %8170 = vst [vmem:[%s8160 + $0x48] sm:$0xf] 0
        $region68: #{tpu_custom_call.1} parent=35 // pred_fallthru
          _
        // Predicated region
        $region69: #{tpu_custom_call.1} parent=35 // pred_check
          %p8171 = pneg %p3215
        $region70: #{tpu_custom_call.1} parent=35 // pred_check_branch
          %8173 = sbr.rel (%p8171) target = $region72
        $region71: #{tpu_custom_call.1} parent=35 // pred_region
          %s8174 = scalar_lea.vmem [#allocation3], 224
          %8175 = vst [vmem:[%s8174 + $0x4] sm:$0xf] 0
          %8176 = vst [vmem:[%s8174 + $0x8] sm:$0xf] 0
          %8177 = vst [vmem:[%s8174 + $0x14] sm:$0xf] 0
          %8178 = vst [vmem:[%s8174 + $0x18] sm:$0xf] 0
          %8179 = vst [vmem:[%s8174 + $0x24] sm:$0xf] 0
          %8180 = vst [vmem:[%s8174 + $0x28] sm:$0xf] 0
          %8181 = vst [vmem:[%s8174 + $0x34] sm:$0xf] 0
          %8182 = vst [vmem:[%s8174 + $0x38] sm:$0xf] 0
          %8183 = vst [vmem:[%s8174 + $0x44] sm:$0xf] 0
          %8184 = vst [vmem:[%s8174 + $0x48] sm:$0xf] 0
        $region72: #{tpu_custom_call.1} parent=35 // pred_fallthru
          _
        %v8185 = vld [vmem:[%s8132] sm:$0xf]
        %v8186 = vld [vmem:[%s8132 + $0x4] sm:$0xf]
        %v8187 = vld [vmem:[%s8132 + $0x8] sm:$0xf]
        %v8188 = vld [vmem:[%s8132 + $0xc] sm:$0xf]
        %v8189 = vld [vmem:[%s8132 + $0x10] sm:$0xf]
        %v8190 = vld [vmem:[%s8132 + $0x14] sm:$0xf]
        %v8191 = vld [vmem:[%s8132 + $0x18] sm:$0xf]
        %v8192 = vld [vmem:[%s8132 + $0x1c] sm:$0xf]
        %v8193 = vld [vmem:[%s8132 + $0x20] sm:$0xf]
        %v8194 = vld [vmem:[%s8132 + $0x24] sm:$0xf]
        %v8195 = vld [vmem:[%s8132 + $0x28] sm:$0xf]
        %v8196 = vld [vmem:[%s8132 + $0x2c] sm:$0xf]
        %v8197 = vld [vmem:[%s8132 + $0x30] sm:$0xf]
        %v8198 = vld [vmem:[%s8132 + $0x34] sm:$0xf]
        %v8199 = vld [vmem:[%s8132 + $0x38] sm:$0xf]
        %v8200 = vld [vmem:[%s8132 + $0x3c] sm:$0xf]
        %v8201 = vld [vmem:[%s8132 + $0x40] sm:$0xf]
        %v8202 = vld [vmem:[%s8132 + $0x44] sm:$0xf]
        %v8203 = vld [vmem:[%s8132 + $0x48] sm:$0xf]
        %v8204 = vld [vmem:[%s8132 + $0x4c] sm:$0xf]
        %v8205 = vld [vmem:[%s8132 + $0x50] sm:$0xf]
        %v8206 = vld [vmem:[%s8132 + $0x54] sm:$0xf]
        %v8207 = vld [vmem:[%s8132 + $0x58] sm:$0xf]
        %v8208 = vld [vmem:[%s8132 + $0x5c] sm:$0xf]
        %v8209 = vld [vmem:[%s8132 + $0x60] sm:$0xf]
        %v8210 = vld [vmem:[%s8132 + $0x64] sm:$0xf]
        %v8211 = vld [vmem:[%s8132 + $0x68] sm:$0xf]
        %v8212 = vld [vmem:[%s8132 + $0x6c] sm:$0xf]
        %v8213 = vld [vmem:[%s8132 + $0x70] sm:$0xf]
        %v8214 = vld [vmem:[%s8132 + $0x74] sm:$0xf]
        %v8215 = vld [vmem:[%s8132 + $0x78] sm:$0xf]
        %v8216 = vld [vmem:[%s8132 + $0x7c] sm:$0xf]
        %v8217 = vld [vmem:[%s8132 + $0x80] sm:$0xf]
        %v8218 = vld [vmem:[%s8132 + $0x84] sm:$0xf]
        %v8219 = vld [vmem:[%s8132 + $0x88] sm:$0xf]
        %v8220 = vld [vmem:[%s8132 + $0x8c] sm:$0xf]
        %v8221 = vld [vmem:[%s8132 + $0x90] sm:$0xf]
        %v8222 = vld [vmem:[%s8132 + $0x94] sm:$0xf]
        %v8223 = vld [vmem:[%s8132 + $0x98] sm:$0xf]
        %v8224 = vld [vmem:[%s8132 + $0x9c] sm:$0xf]
        %v8225 = vld [vmem:[%s8132 + $0xa0] sm:$0xf]
        %v8226 = vld [vmem:[%s8132 + $0xa4] sm:$0xf]
        %v8227 = vld [vmem:[%s8132 + $0xa8] sm:$0xf]
        %v8228 = vld [vmem:[%s8132 + $0xac] sm:$0xf]
        %v8229 = vld [vmem:[%s8132 + $0xb0] sm:$0xf]
        %v8230 = vld [vmem:[%s8132 + $0xb4] sm:$0xf]
        %v8231 = vld [vmem:[%s8132 + $0xb8] sm:$0xf]
        %v8232 = vld [vmem:[%s8132 + $0xbc] sm:$0xf]
        %v8269 = vunpack.c.l.b16 %v8185
        %v8270 = vunpack.c.l.b16 %v8186
        %v8271 = vunpack.c.l.b16 %v8187
        %v8272 = vunpack.c.l.b16 %v8189
        %v8273 = vunpack.c.l.b16 %v8190
        %v8274 = vunpack.c.l.b16 %v8191
        %v8275 = vunpack.c.l.b16 %v8193
        %v8276 = vunpack.c.l.b16 %v8194
        %v8277 = vunpack.c.l.b16 %v8195
        %v8278 = vunpack.c.l.b16 %v8197
        %v8279 = vunpack.c.l.b16 %v8198
        %v8280 = vunpack.c.l.b16 %v8199
        %v8281 = vunpack.c.l.b16 %v8201
        %v8282 = vunpack.c.l.b16 %v8202
        %v8283 = vunpack.c.l.b16 %v8203
        %v8284 = vunpack.c.l.b16 %v8205
        %v8285 = vunpack.c.l.b16 %v8206
        %v8286 = vunpack.c.l.b16 %v8207
        %v8287 = vunpack.c.l.b16 %v8209
        %v8288 = vunpack.c.l.b16 %v8210
        %v8289 = vunpack.c.l.b16 %v8211
        %v8290 = vunpack.c.l.b16 %v8213
        %v8291 = vunpack.c.l.b16 %v8214
        %v8292 = vunpack.c.l.b16 %v8215
        %v8293 = vunpack.c.l.b16 %v8217
        %v8294 = vunpack.c.l.b16 %v8218
        %v8295 = vunpack.c.l.b16 %v8219
        %v8296 = vunpack.c.l.b16 %v8221
        %v8297 = vunpack.c.l.b16 %v8222
        %v8298 = vunpack.c.l.b16 %v8223
        %v8299 = vunpack.c.l.b16 %v8225
        %v8300 = vunpack.c.l.b16 %v8226
        %v8301 = vunpack.c.l.b16 %v8227
        %v8302 = vunpack.c.l.b16 %v8229
        %v8303 = vunpack.c.l.b16 %v8230
        %v8304 = vunpack.c.l.b16 %v8231
        %v8305 = vpack.c.b16 %v8270, %v8269
        %v8306 = vpack.c.b16 %v8271, %v8271
        %v8307 = vpack.c.b16 %v8273, %v8272
        %v8308 = vpack.c.b16 %v8274, %v8274
        %v8309 = vpack.c.b16 %v8276, %v8275
        %v8310 = vpack.c.b16 %v8277, %v8277
        %v8311 = vpack.c.b16 %v8279, %v8278
        %v8312 = vpack.c.b16 %v8280, %v8280
        %v8313 = vpack.c.b16 %v8282, %v8281
        %v8314 = vpack.c.b16 %v8283, %v8283
        %v8315 = vpack.c.b16 %v8285, %v8284
        %v8316 = vpack.c.b16 %v8286, %v8286
        %v8317 = vpack.c.b16 %v8288, %v8287
        %v8318 = vpack.c.b16 %v8289, %v8289
        %v8319 = vpack.c.b16 %v8291, %v8290
        %v8320 = vpack.c.b16 %v8292, %v8292
        %v8321 = vpack.c.b16 %v8294, %v8293
        %v8322 = vpack.c.b16 %v8295, %v8295
        %v8323 = vpack.c.b16 %v8297, %v8296
        %v8324 = vpack.c.b16 %v8298, %v8298
        %v8325 = vpack.c.b16 %v8300, %v8299
        %v8326 = vpack.c.b16 %v8301, %v8301
        %v8327 = vpack.c.b16 %v8303, %v8302
        %v8328 = vpack.c.b16 %v8304, %v8304
        %v8329 = vpack.c.b16 %v8271, %v8270
        %v8330 = vpack.c.b16 %v8274, %v8273
        %v8331 = vpack.c.b16 %v8277, %v8276
        %v8332 = vpack.c.b16 %v8280, %v8279
        %v8333 = vpack.c.b16 %v8283, %v8282
        %v8334 = vpack.c.b16 %v8286, %v8285
        %v8335 = vpack.c.b16 %v8289, %v8288
        %v8336 = vpack.c.b16 %v8292, %v8291
        %v8337 = vpack.c.b16 %v8295, %v8294
        %v8338 = vpack.c.b16 %v8298, %v8297
        %v8339 = vpack.c.b16 %v8301, %v8300
        %v8340 = vpack.c.b16 %v8304, %v8303
        %v8342 = vshrl.u32 %v8329, 16
        %v8344 = vrot.slane %v8342, 4
        %v8345 = vshll.u32 %v8329, 16
        %v8347 = vrot.slane %v8345, 5
        %v8348 = vor.u32 %v8344, %v8347
        %v8350 = vshrl.u32 %v8330, 16
        %v8352 = vrot.slane %v8350, 4
        %v8353 = vshll.u32 %v8330, 16
        %v8355 = vrot.slane %v8353, 5
        %v8356 = vor.u32 %v8352, %v8355
        %v8358 = vshrl.u32 %v8331, 16
        %v8360 = vrot.slane %v8358, 4
        %v8361 = vshll.u32 %v8331, 16
        %v8363 = vrot.slane %v8361, 5
        %v8364 = vor.u32 %v8360, %v8363
        %v8366 = vshrl.u32 %v8332, 16
        %v8368 = vrot.slane %v8366, 4
        %v8369 = vshll.u32 %v8332, 16
        %v8371 = vrot.slane %v8369, 5
        %v8372 = vor.u32 %v8368, %v8371
        %v8374 = vshrl.u32 %v8333, 16
        %v8376 = vrot.slane %v8374, 4
        %v8377 = vshll.u32 %v8333, 16
        %v8379 = vrot.slane %v8377, 5
        %v8380 = vor.u32 %v8376, %v8379
        %v8382 = vshrl.u32 %v8334, 16
        %v8384 = vrot.slane %v8382, 4
        %v8385 = vshll.u32 %v8334, 16
        %v8387 = vrot.slane %v8385, 5
        %v8388 = vor.u32 %v8384, %v8387
        %v8390 = vshrl.u32 %v8335, 16
        %v8392 = vrot.slane %v8390, 4
        %v8393 = vshll.u32 %v8335, 16
        %v8395 = vrot.slane %v8393, 5
        %v8396 = vor.u32 %v8392, %v8395
        %v8398 = vshrl.u32 %v8336, 16
        %v8400 = vrot.slane %v8398, 4
        %v8401 = vshll.u32 %v8336, 16
        %v8403 = vrot.slane %v8401, 5
        %v8404 = vor.u32 %v8400, %v8403
        %v8406 = vshrl.u32 %v8337, 16
        %v8408 = vrot.slane %v8406, 4
        %v8409 = vshll.u32 %v8337, 16
        %v8411 = vrot.slane %v8409, 5
        %v8412 = vor.u32 %v8408, %v8411
        %v8414 = vshrl.u32 %v8338, 16
        %v8416 = vrot.slane %v8414, 4
        %v8417 = vshll.u32 %v8338, 16
        %v8419 = vrot.slane %v8417, 5
        %v8420 = vor.u32 %v8416, %v8419
        %v8422 = vshrl.u32 %v8339, 16
        %v8424 = vrot.slane %v8422, 4
        %v8425 = vshll.u32 %v8339, 16
        %v8427 = vrot.slane %v8425, 5
        %v8428 = vor.u32 %v8424, %v8427
        %v8430 = vshrl.u32 %v8340, 16
        %v8432 = vrot.slane %v8430, 4
        %v8433 = vshll.u32 %v8340, 16
        %v8435 = vrot.slane %v8433, 5
        %v8436 = vor.u32 %v8432, %v8435
        %v8449 = vunpack.c.l.b16 %v8188
        %v8450 = vunpack.c.l.b16 %v8192
        %v8451 = vunpack.c.l.b16 %v8196
        %v8452 = vunpack.c.l.b16 %v8200
        %v8453 = vunpack.c.l.b16 %v8204
        %v8454 = vunpack.c.l.b16 %v8208
        %v8455 = vunpack.c.l.b16 %v8212
        %v8456 = vunpack.c.l.b16 %v8216
        %v8457 = vunpack.c.l.b16 %v8220
        %v8458 = vunpack.c.l.b16 %v8224
        %v8459 = vunpack.c.l.b16 %v8228
        %v8460 = vunpack.c.l.b16 %v8232
        %v8461 = vpack.c.b16 %v8449, %v8449
        %v8462 = vpack.c.b16 %v8450, %v8450
        %v8463 = vpack.c.b16 %v8451, %v8451
        %v8464 = vpack.c.b16 %v8452, %v8452
        %v8465 = vpack.c.b16 %v8453, %v8453
        %v8466 = vpack.c.b16 %v8454, %v8454
        %v8467 = vpack.c.b16 %v8455, %v8455
        %v8468 = vpack.c.b16 %v8456, %v8456
        %v8469 = vpack.c.b16 %v8457, %v8457
        %v8470 = vpack.c.b16 %v8458, %v8458
        %v8471 = vpack.c.b16 %v8459, %v8459
        %v8472 = vpack.c.b16 %v8460, %v8460
        %v8473 = vrot.slane %v8329, 5
        %v8474 = vrot.slane %v8461, 5
        %v8475 = vsel %vm804, %v8473, %v8474
        %v8476 = vrot.slane %v8330, 5
        %v8477 = vrot.slane %v8462, 5
        %v8478 = vsel %vm804, %v8476, %v8477
        %v8479 = vrot.slane %v8331, 5
        %v8480 = vrot.slane %v8463, 5
        %v8481 = vsel %vm804, %v8479, %v8480
        %v8482 = vrot.slane %v8332, 5
        %v8483 = vrot.slane %v8464, 5
        %v8484 = vsel %vm804, %v8482, %v8483
        %v8485 = vrot.slane %v8333, 5
        %v8486 = vrot.slane %v8465, 5
        %v8487 = vsel %vm804, %v8485, %v8486
        %v8488 = vrot.slane %v8334, 5
        %v8489 = vrot.slane %v8466, 5
        %v8490 = vsel %vm804, %v8488, %v8489
        %v8491 = vrot.slane %v8335, 5
        %v8492 = vrot.slane %v8467, 5
        %v8493 = vsel %vm804, %v8491, %v8492
        %v8494 = vrot.slane %v8336, 5
        %v8495 = vrot.slane %v8468, 5
        %v8496 = vsel %vm804, %v8494, %v8495
        %v8497 = vrot.slane %v8337, 5
        %v8498 = vrot.slane %v8469, 5
        %v8499 = vsel %vm804, %v8497, %v8498
        %v8500 = vrot.slane %v8338, 5
        %v8501 = vrot.slane %v8470, 5
        %v8502 = vsel %vm804, %v8500, %v8501
        %v8503 = vrot.slane %v8339, 5
        %v8504 = vrot.slane %v8471, 5
        %v8505 = vsel %vm804, %v8503, %v8504
        %v8506 = vrot.slane %v8340, 5
        %v8507 = vrot.slane %v8472, 5
        %v8508 = vsel %vm804, %v8506, %v8507
        %v8510 = vshrl.u32 %v8305, 16
        %v8512 = vrot.slane %v8510, 3
        %v8513 = vshll.u32 %v8305, 16
        %v8515 = vrot.slane %v8513, 4
        %v8516 = vor.u32 %v8512, %v8515
        %v8518 = vshrl.u32 %v8306, 16
        %v8520 = vrot.slane %v8518, 3
        %v8521 = vshll.u32 %v8306, 16
        %v8523 = vrot.slane %v8521, 4
        %v8524 = vor.u32 %v8520, %v8523
        %v8525 = vsel %vm859, %v8516, %v8524
        %v8527 = vshrl.u32 %v8348, 16
        %v8529 = vrot.slane %v8527, 3
        %v8530 = vshll.u32 %v8348, 16
        %v8532 = vrot.slane %v8530, 4
        %v8533 = vor.u32 %v8529, %v8532
        %v8534 = vsel %vm859, %v8533, %v8533
        %v8536 = vshrl.u32 %v8473, 16
        %v8538 = vrot.slane %v8536, 3
        %v8539 = vshll.u32 %v8473, 16
        %v8541 = vrot.slane %v8539, 4
        %v8542 = vor.u32 %v8538, %v8541
        %v8544 = vshrl.u32 %v8475, 16
        %v8546 = vrot.slane %v8544, 3
        %v8547 = vshll.u32 %v8475, 16
        %v8549 = vrot.slane %v8547, 4
        %v8550 = vor.u32 %v8546, %v8549
        %v8551 = vsel %vm859, %v8542, %v8550
        %v8553 = vshrl.u32 %v8307, 16
        %v8555 = vrot.slane %v8553, 3
        %v8556 = vshll.u32 %v8307, 16
        %v8558 = vrot.slane %v8556, 4
        %v8559 = vor.u32 %v8555, %v8558
        %v8561 = vshrl.u32 %v8308, 16
        %v8563 = vrot.slane %v8561, 3
        %v8564 = vshll.u32 %v8308, 16
        %v8566 = vrot.slane %v8564, 4
        %v8567 = vor.u32 %v8563, %v8566
        %v8568 = vsel %vm859, %v8559, %v8567
        %v8570 = vshrl.u32 %v8356, 16
        %v8572 = vrot.slane %v8570, 3
        %v8573 = vshll.u32 %v8356, 16
        %v8575 = vrot.slane %v8573, 4
        %v8576 = vor.u32 %v8572, %v8575
        %v8577 = vsel %vm859, %v8576, %v8576
        %v8579 = vshrl.u32 %v8476, 16
        %v8581 = vrot.slane %v8579, 3
        %v8582 = vshll.u32 %v8476, 16
        %v8584 = vrot.slane %v8582, 4
        %v8585 = vor.u32 %v8581, %v8584
        %v8587 = vshrl.u32 %v8478, 16
        %v8589 = vrot.slane %v8587, 3
        %v8590 = vshll.u32 %v8478, 16
        %v8592 = vrot.slane %v8590, 4
        %v8593 = vor.u32 %v8589, %v8592
        %v8594 = vsel %vm859, %v8585, %v8593
        %v8596 = vshrl.u32 %v8309, 16
        %v8598 = vrot.slane %v8596, 3
        %v8599 = vshll.u32 %v8309, 16
        %v8601 = vrot.slane %v8599, 4
        %v8602 = vor.u32 %v8598, %v8601
        %v8604 = vshrl.u32 %v8310, 16
        %v8606 = vrot.slane %v8604, 3
        %v8607 = vshll.u32 %v8310, 16
        %v8609 = vrot.slane %v8607, 4
        %v8610 = vor.u32 %v8606, %v8609
        %v8611 = vsel %vm859, %v8602, %v8610
        %v8613 = vshrl.u32 %v8364, 16
        %v8615 = vrot.slane %v8613, 3
        %v8616 = vshll.u32 %v8364, 16
        %v8618 = vrot.slane %v8616, 4
        %v8619 = vor.u32 %v8615, %v8618
        %v8620 = vsel %vm859, %v8619, %v8619
        %v8622 = vshrl.u32 %v8479, 16
        %v8624 = vrot.slane %v8622, 3
        %v8625 = vshll.u32 %v8479, 16
        %v8627 = vrot.slane %v8625, 4
        %v8628 = vor.u32 %v8624, %v8627
        %v8630 = vshrl.u32 %v8481, 16
        %v8632 = vrot.slane %v8630, 3
        %v8633 = vshll.u32 %v8481, 16
        %v8635 = vrot.slane %v8633, 4
        %v8636 = vor.u32 %v8632, %v8635
        %v8637 = vsel %vm859, %v8628, %v8636
        %v8639 = vshrl.u32 %v8311, 16
        %v8641 = vrot.slane %v8639, 3
        %v8642 = vshll.u32 %v8311, 16
        %v8644 = vrot.slane %v8642, 4
        %v8645 = vor.u32 %v8641, %v8644
        %v8647 = vshrl.u32 %v8312, 16
        %v8649 = vrot.slane %v8647, 3
        %v8650 = vshll.u32 %v8312, 16
        %v8652 = vrot.slane %v8650, 4
        %v8653 = vor.u32 %v8649, %v8652
        %v8654 = vsel %vm859, %v8645, %v8653
        %v8656 = vshrl.u32 %v8372, 16
        %v8658 = vrot.slane %v8656, 3
        %v8659 = vshll.u32 %v8372, 16
        %v8661 = vrot.slane %v8659, 4
        %v8662 = vor.u32 %v8658, %v8661
        %v8663 = vsel %vm859, %v8662, %v8662
        %v8665 = vshrl.u32 %v8482, 16
        %v8667 = vrot.slane %v8665, 3
        %v8668 = vshll.u32 %v8482, 16
        %v8670 = vrot.slane %v8668, 4
        %v8671 = vor.u32 %v8667, %v8670
        %v8673 = vshrl.u32 %v8484, 16
        %v8675 = vrot.slane %v8673, 3
        %v8676 = vshll.u32 %v8484, 16
        %v8678 = vrot.slane %v8676, 4
        %v8679 = vor.u32 %v8675, %v8678
        %v8680 = vsel %vm859, %v8671, %v8679
        %v8682 = vshrl.u32 %v8313, 16
        %v8684 = vrot.slane %v8682, 3
        %v8685 = vshll.u32 %v8313, 16
        %v8687 = vrot.slane %v8685, 4
        %v8688 = vor.u32 %v8684, %v8687
        %v8690 = vshrl.u32 %v8314, 16
        %v8692 = vrot.slane %v8690, 3
        %v8693 = vshll.u32 %v8314, 16
        %v8695 = vrot.slane %v8693, 4
        %v8696 = vor.u32 %v8692, %v8695
        %v8697 = vsel %vm859, %v8688, %v8696
        %v8699 = vshrl.u32 %v8380, 16
        %v8701 = vrot.slane %v8699, 3
        %v8702 = vshll.u32 %v8380, 16
        %v8704 = vrot.slane %v8702, 4
        %v8705 = vor.u32 %v8701, %v8704
        %v8706 = vsel %vm859, %v8705, %v8705
        %v8708 = vshrl.u32 %v8485, 16
        %v8710 = vrot.slane %v8708, 3
        %v8711 = vshll.u32 %v8485, 16
        %v8713 = vrot.slane %v8711, 4
        %v8714 = vor.u32 %v8710, %v8713
        %v8716 = vshrl.u32 %v8487, 16
        %v8718 = vrot.slane %v8716, 3
        %v8719 = vshll.u32 %v8487, 16
        %v8721 = vrot.slane %v8719, 4
        %v8722 = vor.u32 %v8718, %v8721
        %v8723 = vsel %vm859, %v8714, %v8722
        %v8725 = vshrl.u32 %v8315, 16
        %v8727 = vrot.slane %v8725, 3
        %v8728 = vshll.u32 %v8315, 16
        %v8730 = vrot.slane %v8728, 4
        %v8731 = vor.u32 %v8727, %v8730
        %v8733 = vshrl.u32 %v8316, 16
        %v8735 = vrot.slane %v8733, 3
        %v8736 = vshll.u32 %v8316, 16
        %v8738 = vrot.slane %v8736, 4
        %v8739 = vor.u32 %v8735, %v8738
        %v8740 = vsel %vm859, %v8731, %v8739
        %v8742 = vshrl.u32 %v8388, 16
        %v8744 = vrot.slane %v8742, 3
        %v8745 = vshll.u32 %v8388, 16
        %v8747 = vrot.slane %v8745, 4
        %v8748 = vor.u32 %v8744, %v8747
        %v8749 = vsel %vm859, %v8748, %v8748
        %v8751 = vshrl.u32 %v8488, 16
        %v8753 = vrot.slane %v8751, 3
        %v8754 = vshll.u32 %v8488, 16
        %v8756 = vrot.slane %v8754, 4
        %v8757 = vor.u32 %v8753, %v8756
        %v8759 = vshrl.u32 %v8490, 16
        %v8761 = vrot.slane %v8759, 3
        %v8762 = vshll.u32 %v8490, 16
        %v8764 = vrot.slane %v8762, 4
        %v8765 = vor.u32 %v8761, %v8764
        %v8766 = vsel %vm859, %v8757, %v8765
        %v8768 = vshrl.u32 %v8317, 16
        %v8770 = vrot.slane %v8768, 3
        %v8771 = vshll.u32 %v8317, 16
        %v8773 = vrot.slane %v8771, 4
        %v8774 = vor.u32 %v8770, %v8773
        %v8776 = vshrl.u32 %v8318, 16
        %v8778 = vrot.slane %v8776, 3
        %v8779 = vshll.u32 %v8318, 16
        %v8781 = vrot.slane %v8779, 4
        %v8782 = vor.u32 %v8778, %v8781
        %v8783 = vsel %vm859, %v8774, %v8782
        %v8785 = vshrl.u32 %v8396, 16
        %v8787 = vrot.slane %v8785, 3
        %v8788 = vshll.u32 %v8396, 16
        %v8790 = vrot.slane %v8788, 4
        %v8791 = vor.u32 %v8787, %v8790
        %v8792 = vsel %vm859, %v8791, %v8791
        %v8794 = vshrl.u32 %v8491, 16
        %v8796 = vrot.slane %v8794, 3
        %v8797 = vshll.u32 %v8491, 16
        %v8799 = vrot.slane %v8797, 4
        %v8800 = vor.u32 %v8796, %v8799
        %v8802 = vshrl.u32 %v8493, 16
        %v8804 = vrot.slane %v8802, 3
        %v8805 = vshll.u32 %v8493, 16
        %v8807 = vrot.slane %v8805, 4
        %v8808 = vor.u32 %v8804, %v8807
        %v8809 = vsel %vm859, %v8800, %v8808
        %v8811 = vshrl.u32 %v8319, 16
        %v8813 = vrot.slane %v8811, 3
        %v8814 = vshll.u32 %v8319, 16
        %v8816 = vrot.slane %v8814, 4
        %v8817 = vor.u32 %v8813, %v8816
        %v8819 = vshrl.u32 %v8320, 16
        %v8821 = vrot.slane %v8819, 3
        %v8822 = vshll.u32 %v8320, 16
        %v8824 = vrot.slane %v8822, 4
        %v8825 = vor.u32 %v8821, %v8824
        %v8826 = vsel %vm859, %v8817, %v8825
        %v8828 = vshrl.u32 %v8404, 16
        %v8830 = vrot.slane %v8828, 3
        %v8831 = vshll.u32 %v8404, 16
        %v8833 = vrot.slane %v8831, 4
        %v8834 = vor.u32 %v8830, %v8833
        %v8835 = vsel %vm859, %v8834, %v8834
        %v8837 = vshrl.u32 %v8494, 16
        %v8839 = vrot.slane %v8837, 3
        %v8840 = vshll.u32 %v8494, 16
        %v8842 = vrot.slane %v8840, 4
        %v8843 = vor.u32 %v8839, %v8842
        %v8845 = vshrl.u32 %v8496, 16
        %v8847 = vrot.slane %v8845, 3
        %v8848 = vshll.u32 %v8496, 16
        %v8850 = vrot.slane %v8848, 4
        %v8851 = vor.u32 %v8847, %v8850
        %v8852 = vsel %vm859, %v8843, %v8851
        %v8854 = vshrl.u32 %v8321, 16
        %v8856 = vrot.slane %v8854, 3
        %v8857 = vshll.u32 %v8321, 16
        %v8859 = vrot.slane %v8857, 4
        %v8860 = vor.u32 %v8856, %v8859
        %v8862 = vshrl.u32 %v8322, 16
        %v8864 = vrot.slane %v8862, 3
        %v8865 = vshll.u32 %v8322, 16
        %v8867 = vrot.slane %v8865, 4
        %v8868 = vor.u32 %v8864, %v8867
        %v8869 = vsel %vm859, %v8860, %v8868
        %v8871 = vshrl.u32 %v8412, 16
        %v8873 = vrot.slane %v8871, 3
        %v8874 = vshll.u32 %v8412, 16
        %v8876 = vrot.slane %v8874, 4
        %v8877 = vor.u32 %v8873, %v8876
        %v8878 = vsel %vm859, %v8877, %v8877
        %v8880 = vshrl.u32 %v8497, 16
        %v8882 = vrot.slane %v8880, 3
        %v8883 = vshll.u32 %v8497, 16
        %v8885 = vrot.slane %v8883, 4
        %v8886 = vor.u32 %v8882, %v8885
        %v8888 = vshrl.u32 %v8499, 16
        %v8890 = vrot.slane %v8888, 3
        %v8891 = vshll.u32 %v8499, 16
        %v8893 = vrot.slane %v8891, 4
        %v8894 = vor.u32 %v8890, %v8893
        %v8895 = vsel %vm859, %v8886, %v8894
        %v8897 = vshrl.u32 %v8323, 16
        %v8899 = vrot.slane %v8897, 3
        %v8900 = vshll.u32 %v8323, 16
        %v8902 = vrot.slane %v8900, 4
        %v8903 = vor.u32 %v8899, %v8902
        %v8905 = vshrl.u32 %v8324, 16
        %v8907 = vrot.slane %v8905, 3
        %v8908 = vshll.u32 %v8324, 16
        %v8910 = vrot.slane %v8908, 4
        %v8911 = vor.u32 %v8907, %v8910
        %v8912 = vsel %vm859, %v8903, %v8911
        %v8914 = vshrl.u32 %v8420, 16
        %v8916 = vrot.slane %v8914, 3
        %v8917 = vshll.u32 %v8420, 16
        %v8919 = vrot.slane %v8917, 4
        %v8920 = vor.u32 %v8916, %v8919
        %v8921 = vsel %vm859, %v8920, %v8920
        %v8923 = vshrl.u32 %v8500, 16
        %v8925 = vrot.slane %v8923, 3
        %v8926 = vshll.u32 %v8500, 16
        %v8928 = vrot.slane %v8926, 4
        %v8929 = vor.u32 %v8925, %v8928
        %v8931 = vshrl.u32 %v8502, 16
        %v8933 = vrot.slane %v8931, 3
        %v8934 = vshll.u32 %v8502, 16
        %v8936 = vrot.slane %v8934, 4
        %v8937 = vor.u32 %v8933, %v8936
        %v8938 = vsel %vm859, %v8929, %v8937
        %s8969 = scalar_lea.vmem [#allocation5], 1728
        %v8970 = vld [vmem:[%s8969] sm:$0xf]
        %v8971 = vld [vmem:[%s8969 + $0x4] sm:$0xf]
        %v8972 = vld [vmem:[%s8969 + $0x8] sm:$0xf]
        %v8973 = vld [vmem:[%s8969 + $0xc] sm:$0xf]
        %v8974 = vld [vmem:[%s8969 + $0x10] sm:$0xf]
        %v8975 = vld [vmem:[%s8969 + $0x14] sm:$0xf]
        %v8976 = vld [vmem:[%s8969 + $0x18] sm:$0xf]
        %v8977 = vld [vmem:[%s8969 + $0x1c] sm:$0xf]
        %v8978 = vld [vmem:[%s8969 + $0x20] sm:$0xf]
        %v8979 = vld [vmem:[%s8969 + $0x24] sm:$0xf]
        %v8980 = vld [vmem:[%s8969 + $0x28] sm:$0xf]
        %v8981 = vld [vmem:[%s8969 + $0x2c] sm:$0xf]
        %v8982 = vld [vmem:[%s8969 + $0x30] sm:$0xf]
        %v8983 = vld [vmem:[%s8969 + $0x34] sm:$0xf]
        %v8984 = vld [vmem:[%s8969 + $0x38] sm:$0xf]
        %v8985 = vld [vmem:[%s8969 + $0x3c] sm:$0xf]
        %v8986 = vld [vmem:[%s8969 + $0x40] sm:$0xf]
        %v8987 = vld [vmem:[%s8969 + $0x44] sm:$0xf]
        %v8988 = vld [vmem:[%s8969 + $0x48] sm:$0xf]
        %v8989 = vld [vmem:[%s8969 + $0x4c] sm:$0xf]
        %v8990 = vld [vmem:[%s8969 + $0x50] sm:$0xf]
        %v8991 = vld [vmem:[%s8969 + $0x54] sm:$0xf]
        %v8992 = vld [vmem:[%s8969 + $0x58] sm:$0xf]
        %v8993 = vld [vmem:[%s8969 + $0x5c] sm:$0xf]
        %v8994 = vld [vmem:[%s8969 + $0x60] sm:$0xf]
        %v8995 = vld [vmem:[%s8969 + $0x64] sm:$0xf]
        %v8996 = vld [vmem:[%s8969 + $0x68] sm:$0xf]
        %v8997 = vld [vmem:[%s8969 + $0x6c] sm:$0xf]
        %v8998 = vld [vmem:[%s8969 + $0x70] sm:$0xf]
        %v8999 = vld [vmem:[%s8969 + $0x74] sm:$0xf]
        %v9000 = vld [vmem:[%s8969 + $0x78] sm:$0xf]
        %v9001 = vld [vmem:[%s8969 + $0x7c] sm:$0xf]
        %v9002 = vld [vmem:[%s8969 + $0x80] sm:$0xf]
        %v9003 = vld [vmem:[%s8969 + $0x84] sm:$0xf]
        %v9004 = vld [vmem:[%s8969 + $0x88] sm:$0xf]
        %v9005 = vld [vmem:[%s8969 + $0x8c] sm:$0xf]
        %v9006 = vld [vmem:[%s8969 + $0x90] sm:$0xf]
        %v9007 = vld [vmem:[%s8969 + $0x94] sm:$0xf]
        %v9008 = vld [vmem:[%s8969 + $0x98] sm:$0xf]
        %v9009 = vld [vmem:[%s8969 + $0x9c] sm:$0xf]
        %v9010 = vld [vmem:[%s8969 + $0xa0] sm:$0xf]
        %v9011 = vld [vmem:[%s8969 + $0xa4] sm:$0xf]
        %v9012 = vld [vmem:[%s8969 + $0xa8] sm:$0xf]
        %v9013 = vld [vmem:[%s8969 + $0xac] sm:$0xf]
        %v9014 = vld [vmem:[%s8969 + $0xb0] sm:$0xf]
        %v9015 = vld [vmem:[%s8969 + $0xb4] sm:$0xf]
        %v9016 = vld [vmem:[%s8969 + $0xb8] sm:$0xf]
        %v9017 = vld [vmem:[%s8969 + $0xbc] sm:$0xf]
        %v9019 = vshrl.u32 %v8325, 16
        %v9021 = vrot.slane %v9019, 3
        %v9022 = vshll.u32 %v8325, 16
        %v9024 = vrot.slane %v9022, 4
        %v9025 = vor.u32 %v9021, %v9024
        %v9027 = vshrl.u32 %v8326, 16
        %v9029 = vrot.slane %v9027, 3
        %v9030 = vshll.u32 %v8326, 16
        %v9032 = vrot.slane %v9030, 4
        %v9033 = vor.u32 %v9029, %v9032
        %v9034 = vsel %vm859, %v9025, %v9033
        %v9036 = vshrl.u32 %v8428, 16
        %v9038 = vrot.slane %v9036, 3
        %v9039 = vshll.u32 %v8428, 16
        %v9041 = vrot.slane %v9039, 4
        %v9042 = vor.u32 %v9038, %v9041
        %v9043 = vsel %vm859, %v9042, %v9042
        %v9045 = vshrl.u32 %v8503, 16
        %v9047 = vrot.slane %v9045, 3
        %v9048 = vshll.u32 %v8503, 16
        %v9050 = vrot.slane %v9048, 4
        %v9051 = vor.u32 %v9047, %v9050
        %v9053 = vshrl.u32 %v8505, 16
        %v9055 = vrot.slane %v9053, 3
        %v9056 = vshll.u32 %v8505, 16
        %v9058 = vrot.slane %v9056, 4
        %v9059 = vor.u32 %v9055, %v9058
        %v9060 = vsel %vm859, %v9051, %v9059
        %s9064 = scalar_lea.vmem [#allocation5], 1920
        %v9065 = vld [vmem:[%s9064] sm:$0xf]
        %v9066 = vld [vmem:[%s9064 + $0x4] sm:$0xf]
        %v9067 = vld [vmem:[%s9064 + $0x8] sm:$0xf]
        %v9068 = vld [vmem:[%s9064 + $0xc] sm:$0xf]
        %v9069 = vld [vmem:[%s9064 + $0x10] sm:$0xf]
        %v9070 = vld [vmem:[%s9064 + $0x14] sm:$0xf]
        %v9071 = vld [vmem:[%s9064 + $0x18] sm:$0xf]
        %v9072 = vld [vmem:[%s9064 + $0x1c] sm:$0xf]
        %v9073 = vld [vmem:[%s9064 + $0x20] sm:$0xf]
        %v9074 = vld [vmem:[%s9064 + $0x24] sm:$0xf]
        %v9075 = vld [vmem:[%s9064 + $0x28] sm:$0xf]
        %v9076 = vld [vmem:[%s9064 + $0x2c] sm:$0xf]
        %v9077 = vld [vmem:[%s9064 + $0x30] sm:$0xf]
        %v9078 = vld [vmem:[%s9064 + $0x34] sm:$0xf]
        %v9079 = vld [vmem:[%s9064 + $0x38] sm:$0xf]
        %v9080 = vld [vmem:[%s9064 + $0x3c] sm:$0xf]
        %v9081 = vld [vmem:[%s9064 + $0x40] sm:$0xf]
        %v9082 = vld [vmem:[%s9064 + $0x44] sm:$0xf]
        %v9083 = vld [vmem:[%s9064 + $0x48] sm:$0xf]
        %v9084 = vld [vmem:[%s9064 + $0x4c] sm:$0xf]
        %v9085 = vld [vmem:[%s9064 + $0x50] sm:$0xf]
        %v9086 = vld [vmem:[%s9064 + $0x54] sm:$0xf]
        %v9087 = vld [vmem:[%s9064 + $0x58] sm:$0xf]
        %v9088 = vld [vmem:[%s9064 + $0x5c] sm:$0xf]
        %v9089 = vld [vmem:[%s9064 + $0x60] sm:$0xf]
        %v9090 = vld [vmem:[%s9064 + $0x64] sm:$0xf]
        %v9091 = vld [vmem:[%s9064 + $0x68] sm:$0xf]
        %v9092 = vld [vmem:[%s9064 + $0x6c] sm:$0xf]
        %v9093 = vld [vmem:[%s9064 + $0x70] sm:$0xf]
        %v9094 = vld [vmem:[%s9064 + $0x74] sm:$0xf]
        %v9095 = vld [vmem:[%s9064 + $0x78] sm:$0xf]
        %v9096 = vld [vmem:[%s9064 + $0x7c] sm:$0xf]
        %v9097 = vld [vmem:[%s9064 + $0x80] sm:$0xf]
        %v9098 = vld [vmem:[%s9064 + $0x84] sm:$0xf]
        %v9099 = vld [vmem:[%s9064 + $0x88] sm:$0xf]
        %v9100 = vld [vmem:[%s9064 + $0x8c] sm:$0xf]
        %v9101 = vld [vmem:[%s9064 + $0x90] sm:$0xf]
        %v9102 = vld [vmem:[%s9064 + $0x94] sm:$0xf]
        %v9103 = vld [vmem:[%s9064 + $0x98] sm:$0xf]
        %v9104 = vld [vmem:[%s9064 + $0x9c] sm:$0xf]
        %v9105 = vld [vmem:[%s9064 + $0xa0] sm:$0xf]
        %v9106 = vld [vmem:[%s9064 + $0xa4] sm:$0xf]
        %v9107 = vld [vmem:[%s9064 + $0xa8] sm:$0xf]
        %v9108 = vld [vmem:[%s9064 + $0xac] sm:$0xf]
        %v9109 = vld [vmem:[%s9064 + $0xb0] sm:$0xf]
        %v9110 = vld [vmem:[%s9064 + $0xb4] sm:$0xf]
        %v9111 = vld [vmem:[%s9064 + $0xb8] sm:$0xf]
        %v9112 = vld [vmem:[%s9064 + $0xbc] sm:$0xf]
        %v9161 = vunpack.c.l.b16 %v9065
        %v9162 = vunpack.c.l.b16 %v9066
        %v9163 = vunpack.c.l.b16 %v9067
        %v9164 = vunpack.c.l.b16 %v9068
        %v9165 = vunpack.c.l.b16 %v9069
        %v9166 = vunpack.c.l.b16 %v9070
        %v9167 = vunpack.c.l.b16 %v9071
        %v9168 = vunpack.c.l.b16 %v9072
        %v9169 = vunpack.c.l.b16 %v9073
        %v9170 = vunpack.c.l.b16 %v9074
        %v9171 = vunpack.c.l.b16 %v9075
        %v9172 = vunpack.c.l.b16 %v9076
        %v9173 = vunpack.c.l.b16 %v9077
        %v9174 = vunpack.c.l.b16 %v9078
        %v9175 = vunpack.c.l.b16 %v9079
        %v9176 = vunpack.c.l.b16 %v9080
        %v9177 = vunpack.c.l.b16 %v9081
        %v9178 = vunpack.c.l.b16 %v9082
        %v9179 = vunpack.c.l.b16 %v9083
        %v9180 = vunpack.c.l.b16 %v9084
        %v9181 = vunpack.c.l.b16 %v9085
        %v9182 = vunpack.c.l.b16 %v9086
        %v9183 = vunpack.c.l.b16 %v9087
        %v9184 = vunpack.c.l.b16 %v9088
        %v9185 = vunpack.c.l.b16 %v9089
        %v9186 = vunpack.c.l.b16 %v9090
        %v9187 = vunpack.c.l.b16 %v9091
        %v9188 = vunpack.c.l.b16 %v9092
        %v9189 = vunpack.c.l.b16 %v9093
        %v9190 = vunpack.c.l.b16 %v9094
        %v9191 = vunpack.c.l.b16 %v9095
        %v9192 = vunpack.c.l.b16 %v9096
        %v9193 = vunpack.c.l.b16 %v9097
        %v9194 = vunpack.c.l.b16 %v9098
        %v9195 = vunpack.c.l.b16 %v9099
        %v9196 = vunpack.c.l.b16 %v9100
        %v9197 = vunpack.c.l.b16 %v9101
        %v9198 = vunpack.c.l.b16 %v9102
        %v9199 = vunpack.c.l.b16 %v9103
        %v9200 = vunpack.c.l.b16 %v9104
        %v9201 = vunpack.c.l.b16 %v9105
        %v9202 = vunpack.c.l.b16 %v9106
        %v9203 = vunpack.c.l.b16 %v9107
        %v9204 = vunpack.c.l.b16 %v9108
        %v9205 = vunpack.c.l.b16 %v9109
        %v9206 = vunpack.c.l.b16 %v9110
        %v9207 = vunpack.c.l.b16 %v9111
        %v9208 = vunpack.c.l.b16 %v9112
        %v9209 = vpack.c.b16 %v9162, %v9161
        %v9210 = vpack.c.b16 %v9164, %v9163
        %v9211 = vpack.c.b16 %v9166, %v9165
        %v9212 = vpack.c.b16 %v9168, %v9167
        %v9213 = vpack.c.b16 %v9170, %v9169
        %v9214 = vpack.c.b16 %v9172, %v9171
        %v9215 = vpack.c.b16 %v9174, %v9173
        %v9216 = vpack.c.b16 %v9176, %v9175
        %v9217 = vpack.c.b16 %v9178, %v9177
        %v9218 = vpack.c.b16 %v9180, %v9179
        %v9219 = vpack.c.b16 %v9182, %v9181
        %v9220 = vpack.c.b16 %v9184, %v9183
        %v9221 = vpack.c.b16 %v9186, %v9185
        %v9222 = vpack.c.b16 %v9188, %v9187
        %v9223 = vpack.c.b16 %v9190, %v9189
        %v9224 = vpack.c.b16 %v9192, %v9191
        %v9225 = vpack.c.b16 %v9194, %v9193
        %v9226 = vpack.c.b16 %v9196, %v9195
        %v9227 = vpack.c.b16 %v9198, %v9197
        %v9228 = vpack.c.b16 %v9200, %v9199
        %v9229 = vpack.c.b16 %v9202, %v9201
        %v9230 = vpack.c.b16 %v9204, %v9203
        %v9231 = vpack.c.b16 %v9206, %v9205
        %v9232 = vpack.c.b16 %v9208, %v9207
        %9257 = vmatpush.bf16.msra.mxu0 %v9216
        %9258 = vmatpush.bf16.msra.mxu0 %v9215
        %9259 = vmatpush.bf16.msra.mxu0 %v9214
        %9260 = vmatpush.bf16.msra.mxu0 %v9213
        %9261 = vmatpush.bf16.msra.mxu0 %v9212
        %9262 = vmatpush.bf16.msra.mxu0 %v9211
        %9263 = vmatpush.bf16.msra.mxu0 %v9210
        %9264 = vmatpush.bf16.msra.mxu0 %v9209
        %9265 = vmatmul.bf16.gmra.mxu0 %v8568
        %v9266 = vpop.f32.mrf.mxu0
        %v9267 = vadd.f32 0.0, %v9266
        %v9268 = vpop.f32.mrf.mxu0
        %v9269 = vadd.f32 0.0, %v9268
        %9270 = vmatmul.bf16.gmra.mxu0 %v8611
        %v9271 = vpop.f32.mrf.mxu0
        %v9272 = vadd.f32 0.0, %v9271
        %v9273 = vpop.f32.mrf.mxu0
        %v9274 = vadd.f32 0.0, %v9273
        %9275 = vmatmul.bf16.gmra.mxu0 %v8654
        %v9276 = vpop.f32.mrf.mxu0
        %v9277 = vadd.f32 0.0, %v9276
        %v9278 = vpop.f32.mrf.mxu0
        %v9279 = vadd.f32 0.0, %v9278
        %9280 = vmatmul.bf16.gmra.mxu0 %v8697
        %v9281 = vpop.f32.mrf.mxu0
        %v9282 = vadd.f32 0.0, %v9281
        %v9283 = vpop.f32.mrf.mxu0
        %v9284 = vadd.f32 0.0, %v9283
        %9285 = vmatmul.bf16.gmra.mxu0 %v8740
        %v9286 = vpop.f32.mrf.mxu0
        %v9287 = vadd.f32 0.0, %v9286
        %v9288 = vpop.f32.mrf.mxu0
        %v9289 = vadd.f32 0.0, %v9288
        %9290 = vmatmul.bf16.gmra.mxu0 %v8783
        %v9291 = vpop.f32.mrf.mxu0
        %v9292 = vadd.f32 0.0, %v9291
        %v9293 = vpop.f32.mrf.mxu0
        %v9294 = vadd.f32 0.0, %v9293
        %9295 = vmatmul.bf16.gmra.mxu0 %v8826
        %v9296 = vpop.f32.mrf.mxu0
        %v9297 = vadd.f32 0.0, %v9296
        %v9298 = vpop.f32.mrf.mxu0
        %v9299 = vadd.f32 0.0, %v9298
        %9300 = vmatmul.bf16.gmra.mxu0 %v8869
        %v9301 = vpop.f32.mrf.mxu0
        %v9302 = vadd.f32 0.0, %v9301
        %v9303 = vpop.f32.mrf.mxu0
        %v9304 = vadd.f32 0.0, %v9303
        %9305 = vmatmul.bf16.gmra.mxu0 %v8912
        %v9306 = vpop.f32.mrf.mxu0
        %v9307 = vadd.f32 0.0, %v9306
        %v9308 = vpop.f32.mrf.mxu0
        %v9309 = vadd.f32 0.0, %v9308
        %9310 = vmatmul.bf16.gmra.mxu0 %v9034
        %v9311 = vpop.f32.mrf.mxu0
        %v9312 = vadd.f32 0.0, %v9311
        %v9313 = vpop.f32.mrf.mxu0
        %v9314 = vadd.f32 0.0, %v9313
        %9315 = vdwg.mxu0
        %9316 = vmatpush.bf16.msra.mxu0 %v9224
        %9317 = vmatpush.bf16.msra.mxu0 %v9223
        %9318 = vmatpush.bf16.msra.mxu0 %v9222
        %9319 = vmatpush.bf16.msra.mxu0 %v9221
        %9320 = vmatpush.bf16.msra.mxu0 %v9220
        %9321 = vmatpush.bf16.msra.mxu0 %v9219
        %9322 = vmatpush.bf16.msra.mxu0 %v9218
        %9323 = vmatpush.bf16.msra.mxu0 %v9217
        %9324 = vmatmul.bf16.gmra.mxu0 %v8577
        %v9325 = vpop.f32.mrf.mxu0
        %v9326 = vadd.f32 %v9267, %v9325
        %v9327 = vpop.f32.mrf.mxu0
        %v9328 = vadd.f32 %v9269, %v9327
        %9329 = vmatmul.bf16.gmra.mxu0 %v8620
        %v9330 = vpop.f32.mrf.mxu0
        %v9331 = vadd.f32 %v9272, %v9330
        %v9332 = vpop.f32.mrf.mxu0
        %v9333 = vadd.f32 %v9274, %v9332
        %9334 = vmatmul.bf16.gmra.mxu0 %v8663
        %v9335 = vpop.f32.mrf.mxu0
        %v9336 = vadd.f32 %v9277, %v9335
        %v9337 = vpop.f32.mrf.mxu0
        %v9338 = vadd.f32 %v9279, %v9337
        %9339 = vmatmul.bf16.gmra.mxu0 %v8706
        %v9340 = vpop.f32.mrf.mxu0
        %v9341 = vadd.f32 %v9282, %v9340
        %v9342 = vpop.f32.mrf.mxu0
        %v9343 = vadd.f32 %v9284, %v9342
        %9344 = vmatmul.bf16.gmra.mxu0 %v8749
        %v9345 = vpop.f32.mrf.mxu0
        %v9346 = vadd.f32 %v9287, %v9345
        %v9347 = vpop.f32.mrf.mxu0
        %v9348 = vadd.f32 %v9289, %v9347
        %9349 = vmatmul.bf16.gmra.mxu0 %v8792
        %v9350 = vpop.f32.mrf.mxu0
        %v9351 = vadd.f32 %v9292, %v9350
        %v9352 = vpop.f32.mrf.mxu0
        %v9353 = vadd.f32 %v9294, %v9352
        %9354 = vmatmul.bf16.gmra.mxu0 %v8835
        %v9355 = vpop.f32.mrf.mxu0
        %v9356 = vadd.f32 %v9297, %v9355
        %v9357 = vpop.f32.mrf.mxu0
        %v9358 = vadd.f32 %v9299, %v9357
        %9359 = vmatmul.bf16.gmra.mxu0 %v8878
        %v9360 = vpop.f32.mrf.mxu0
        %v9361 = vadd.f32 %v9302, %v9360
        %v9362 = vpop.f32.mrf.mxu0
        %v9363 = vadd.f32 %v9304, %v9362
        %9364 = vmatmul.bf16.gmra.mxu0 %v8921
        %v9365 = vpop.f32.mrf.mxu0
        %v9366 = vadd.f32 %v9307, %v9365
        %v9367 = vpop.f32.mrf.mxu0
        %v9368 = vadd.f32 %v9309, %v9367
        %9369 = vmatmul.bf16.gmra.mxu0 %v9043
        %v9370 = vpop.f32.mrf.mxu0
        %v9371 = vadd.f32 %v9312, %v9370
        %v9372 = vpop.f32.mrf.mxu0
        %v9373 = vadd.f32 %v9314, %v9372
        %9374 = vdwg.mxu0
        %9375 = vmatpush.bf16.msra.mxu0 %v9232
        %9376 = vmatpush.bf16.msra.mxu0 %v9231
        %9377 = vmatpush.bf16.msra.mxu0 %v9230
        %9378 = vmatpush.bf16.msra.mxu0 %v9229
        %9379 = vmatpush.bf16.msra.mxu0 %v9228
        %9380 = vmatpush.bf16.msra.mxu0 %v9227
        %9381 = vmatpush.bf16.msra.mxu0 %v9226
        %9382 = vmatpush.bf16.msra.mxu0 %v9225
        %9383 = vmatmul.bf16.gmra.mxu0 %v8594
        %v9384 = vpop.f32.mrf.mxu0
        %v9385 = vadd.f32 %v9326, %v9384
        %v9386 = vpop.f32.mrf.mxu0
        %v9387 = vadd.f32 %v9328, %v9386
        %9388 = vmatmul.bf16.gmra.mxu0 %v8637
        %v9389 = vpop.f32.mrf.mxu0
        %v9390 = vadd.f32 %v9331, %v9389
        %v9391 = vpop.f32.mrf.mxu0
        %v9392 = vadd.f32 %v9333, %v9391
        %9393 = vmatmul.bf16.gmra.mxu0 %v8680
        %v9394 = vpop.f32.mrf.mxu0
        %v9395 = vadd.f32 %v9336, %v9394
        %v9396 = vpop.f32.mrf.mxu0
        %v9397 = vadd.f32 %v9338, %v9396
        %9398 = vmatmul.bf16.gmra.mxu0 %v8723
        %v9399 = vpop.f32.mrf.mxu0
        %v9400 = vadd.f32 %v9341, %v9399
        %v9401 = vpop.f32.mrf.mxu0
        %v9402 = vadd.f32 %v9343, %v9401
        %9403 = vmatmul.bf16.gmra.mxu0 %v8766
        %v9404 = vpop.f32.mrf.mxu0
        %v9405 = vadd.f32 %v9346, %v9404
        %v9406 = vpop.f32.mrf.mxu0
        %v9407 = vadd.f32 %v9348, %v9406
        %9408 = vmatmul.bf16.gmra.mxu0 %v8809
        %v9409 = vpop.f32.mrf.mxu0
        %v9410 = vadd.f32 %v9351, %v9409
        %v9411 = vpop.f32.mrf.mxu0
        %v9412 = vadd.f32 %v9353, %v9411
        %9413 = vmatmul.bf16.gmra.mxu0 %v8852
        %v9414 = vpop.f32.mrf.mxu0
        %v9415 = vadd.f32 %v9356, %v9414
        %v9416 = vpop.f32.mrf.mxu0
        %v9417 = vadd.f32 %v9358, %v9416
        %9418 = vmatmul.bf16.gmra.mxu0 %v8895
        %v9419 = vpop.f32.mrf.mxu0
        %v9420 = vadd.f32 %v9361, %v9419
        %v9421 = vpop.f32.mrf.mxu0
        %v9422 = vadd.f32 %v9363, %v9421
        %9423 = vmatmul.bf16.gmra.mxu0 %v8938
        %v9424 = vpop.f32.mrf.mxu0
        %v9425 = vadd.f32 %v9366, %v9424
        %v9426 = vpop.f32.mrf.mxu0
        %v9427 = vadd.f32 %v9368, %v9426
        %9428 = vmatmul.bf16.gmra.mxu0 %v9060
        %v9429 = vpop.f32.mrf.mxu0
        %v9430 = vadd.f32 %v9371, %v9429
        %v9431 = vpop.f32.mrf.mxu0
        %v9432 = vadd.f32 %v9373, %v9431
        %9433 = vdwg.mxu0
        %v9482 = vunpack.c.l.b16 %v8970
        %v9483 = vunpack.c.l.b16 %v8971
        %v9484 = vunpack.c.l.b16 %v8972
        %v9485 = vunpack.c.l.b16 %v8973
        %v9486 = vunpack.c.l.b16 %v8974
        %v9487 = vunpack.c.l.b16 %v8975
        %v9488 = vunpack.c.l.b16 %v8976
        %v9489 = vunpack.c.l.b16 %v8977
        %v9490 = vunpack.c.l.b16 %v8978
        %v9491 = vunpack.c.l.b16 %v8979
        %v9492 = vunpack.c.l.b16 %v8980
        %v9493 = vunpack.c.l.b16 %v8981
        %v9494 = vunpack.c.l.b16 %v8982
        %v9495 = vunpack.c.l.b16 %v8983
        %v9496 = vunpack.c.l.b16 %v8984
        %v9497 = vunpack.c.l.b16 %v8985
        %v9498 = vunpack.c.l.b16 %v8986
        %v9499 = vunpack.c.l.b16 %v8987
        %v9500 = vunpack.c.l.b16 %v8988
        %v9501 = vunpack.c.l.b16 %v8989
        %v9502 = vunpack.c.l.b16 %v8990
        %v9503 = vunpack.c.l.b16 %v8991
        %v9504 = vunpack.c.l.b16 %v8992
        %v9505 = vunpack.c.l.b16 %v8993
        %v9506 = vunpack.c.l.b16 %v8994
        %v9507 = vunpack.c.l.b16 %v8995
        %v9508 = vunpack.c.l.b16 %v8996
        %v9509 = vunpack.c.l.b16 %v8997
        %v9510 = vunpack.c.l.b16 %v8998
        %v9511 = vunpack.c.l.b16 %v8999
        %v9512 = vunpack.c.l.b16 %v9000
        %v9513 = vunpack.c.l.b16 %v9001
        %v9514 = vunpack.c.l.b16 %v9002
        %v9515 = vunpack.c.l.b16 %v9003
        %v9516 = vunpack.c.l.b16 %v9004
        %v9517 = vunpack.c.l.b16 %v9005
        %v9518 = vunpack.c.l.b16 %v9006
        %v9519 = vunpack.c.l.b16 %v9007
        %v9520 = vunpack.c.l.b16 %v9008
        %v9521 = vunpack.c.l.b16 %v9009
        %v9522 = vunpack.c.l.b16 %v9010
        %v9523 = vunpack.c.l.b16 %v9011
        %v9524 = vunpack.c.l.b16 %v9012
        %v9525 = vunpack.c.l.b16 %v9013
        %v9526 = vunpack.c.l.b16 %v9014
        %v9527 = vunpack.c.l.b16 %v9015
        %v9528 = vunpack.c.l.b16 %v9016
        %v9529 = vunpack.c.l.b16 %v9017
        %v9530 = vpack.c.b16 %v9483, %v9482
        %v9531 = vpack.c.b16 %v9485, %v9484
        %v9532 = vpack.c.b16 %v9487, %v9486
        %v9533 = vpack.c.b16 %v9489, %v9488
        %v9534 = vpack.c.b16 %v9491, %v9490
        %v9535 = vpack.c.b16 %v9493, %v9492
        %v9536 = vpack.c.b16 %v9495, %v9494
        %v9537 = vpack.c.b16 %v9497, %v9496
        %v9538 = vpack.c.b16 %v9499, %v9498
        %v9539 = vpack.c.b16 %v9501, %v9500
        %v9540 = vpack.c.b16 %v9503, %v9502
        %v9541 = vpack.c.b16 %v9505, %v9504
        %v9542 = vpack.c.b16 %v9507, %v9506
        %v9543 = vpack.c.b16 %v9509, %v9508
        %v9544 = vpack.c.b16 %v9511, %v9510
        %v9545 = vpack.c.b16 %v9513, %v9512
        %v9546 = vpack.c.b16 %v9515, %v9514
        %v9547 = vpack.c.b16 %v9517, %v9516
        %v9548 = vpack.c.b16 %v9519, %v9518
        %v9549 = vpack.c.b16 %v9521, %v9520
        %v9550 = vpack.c.b16 %v9523, %v9522
        %v9551 = vpack.c.b16 %v9525, %v9524
        %v9552 = vpack.c.b16 %v9527, %v9526
        %v9553 = vpack.c.b16 %v9529, %v9528
        %9578 = vmatpush.bf16.msra.mxu0 %v9537
        %9579 = vmatpush.bf16.msra.mxu0 %v9536
        %9580 = vmatpush.bf16.msra.mxu0 %v9535
        %9581 = vmatpush.bf16.msra.mxu0 %v9534
        %9582 = vmatpush.bf16.msra.mxu0 %v9533
        %9583 = vmatpush.bf16.msra.mxu0 %v9532
        %9584 = vmatpush.bf16.msra.mxu0 %v9531
        %9585 = vmatpush.bf16.msra.mxu0 %v9530
        %9586 = vmatmul.bf16.gmra.mxu0 %v8525
        %v9587 = vpop.f32.mrf.mxu0
        %v9588 = vadd.f32 %v9385, %v9587
        %v9589 = vpop.f32.mrf.mxu0
        %v9590 = vadd.f32 %v9387, %v9589
        %9591 = vmatmul.bf16.gmra.mxu0 %v8568
        %v9592 = vpop.f32.mrf.mxu0
        %v9593 = vadd.f32 %v9390, %v9592
        %v9594 = vpop.f32.mrf.mxu0
        %v9595 = vadd.f32 %v9392, %v9594
        %9596 = vmatmul.bf16.gmra.mxu0 %v8611
        %v9597 = vpop.f32.mrf.mxu0
        %v9598 = vadd.f32 %v9395, %v9597
        %v9599 = vpop.f32.mrf.mxu0
        %v9600 = vadd.f32 %v9397, %v9599
        %9601 = vmatmul.bf16.gmra.mxu0 %v8654
        %v9602 = vpop.f32.mrf.mxu0
        %v9603 = vadd.f32 %v9400, %v9602
        %v9604 = vpop.f32.mrf.mxu0
        %v9605 = vadd.f32 %v9402, %v9604
        %9606 = vmatmul.bf16.gmra.mxu0 %v8697
        %v9607 = vpop.f32.mrf.mxu0
        %v9608 = vadd.f32 %v9405, %v9607
        %v9609 = vpop.f32.mrf.mxu0
        %v9610 = vadd.f32 %v9407, %v9609
        %9611 = vmatmul.bf16.gmra.mxu0 %v8740
        %v9612 = vpop.f32.mrf.mxu0
        %v9613 = vadd.f32 %v9410, %v9612
        %v9614 = vpop.f32.mrf.mxu0
        %v9615 = vadd.f32 %v9412, %v9614
        %9616 = vmatmul.bf16.gmra.mxu0 %v8783
        %v9617 = vpop.f32.mrf.mxu0
        %v9618 = vadd.f32 %v9415, %v9617
        %v9619 = vpop.f32.mrf.mxu0
        %v9620 = vadd.f32 %v9417, %v9619
        %9621 = vmatmul.bf16.gmra.mxu0 %v8826
        %v9622 = vpop.f32.mrf.mxu0
        %v9623 = vadd.f32 %v9420, %v9622
        %v9624 = vpop.f32.mrf.mxu0
        %v9625 = vadd.f32 %v9422, %v9624
        %9626 = vmatmul.bf16.gmra.mxu0 %v8869
        %v9627 = vpop.f32.mrf.mxu0
        %v9628 = vadd.f32 %v9425, %v9627
        %v9629 = vpop.f32.mrf.mxu0
        %v9630 = vadd.f32 %v9427, %v9629
        %9631 = vmatmul.bf16.gmra.mxu0 %v8912
        %v9632 = vpop.f32.mrf.mxu0
        %v9633 = vadd.f32 %v9430, %v9632
        %v9634 = vpop.f32.mrf.mxu0
        %v9635 = vadd.f32 %v9432, %v9634
        %9636 = vdwg.mxu0
        %9637 = vmatpush.bf16.msra.mxu0 %v9545
        %9638 = vmatpush.bf16.msra.mxu0 %v9544
        %9639 = vmatpush.bf16.msra.mxu0 %v9543
        %9640 = vmatpush.bf16.msra.mxu0 %v9542
        %9641 = vmatpush.bf16.msra.mxu0 %v9541
        %9642 = vmatpush.bf16.msra.mxu0 %v9540
        %9643 = vmatpush.bf16.msra.mxu0 %v9539
        %9644 = vmatpush.bf16.msra.mxu0 %v9538
        %9645 = vmatmul.bf16.gmra.mxu0 %v8534
        %v9646 = vpop.f32.mrf.mxu0
        %v9647 = vadd.f32 %v9588, %v9646
        %v9648 = vpop.f32.mrf.mxu0
        %v9649 = vadd.f32 %v9590, %v9648
        %9650 = vmatmul.bf16.gmra.mxu0 %v8577
        %v9651 = vpop.f32.mrf.mxu0
        %v9652 = vadd.f32 %v9593, %v9651
        %v9653 = vpop.f32.mrf.mxu0
        %v9654 = vadd.f32 %v9595, %v9653
        %9655 = vmatmul.bf16.gmra.mxu0 %v8620
        %v9656 = vpop.f32.mrf.mxu0
        %v9657 = vadd.f32 %v9598, %v9656
        %v9658 = vpop.f32.mrf.mxu0
        %v9659 = vadd.f32 %v9600, %v9658
        %9660 = vmatmul.bf16.gmra.mxu0 %v8663
        %v9661 = vpop.f32.mrf.mxu0
        %v9662 = vadd.f32 %v9603, %v9661
        %v9663 = vpop.f32.mrf.mxu0
        %v9664 = vadd.f32 %v9605, %v9663
        %9665 = vmatmul.bf16.gmra.mxu0 %v8706
        %v9666 = vpop.f32.mrf.mxu0
        %v9667 = vadd.f32 %v9608, %v9666
        %v9668 = vpop.f32.mrf.mxu0
        %v9669 = vadd.f32 %v9610, %v9668
        %9670 = vmatmul.bf16.gmra.mxu0 %v8749
        %v9671 = vpop.f32.mrf.mxu0
        %v9672 = vadd.f32 %v9613, %v9671
        %v9673 = vpop.f32.mrf.mxu0
        %v9674 = vadd.f32 %v9615, %v9673
        %9675 = vmatmul.bf16.gmra.mxu0 %v8792
        %v9676 = vpop.f32.mrf.mxu0
        %v9677 = vadd.f32 %v9618, %v9676
        %v9678 = vpop.f32.mrf.mxu0
        %v9679 = vadd.f32 %v9620, %v9678
        %9680 = vmatmul.bf16.gmra.mxu0 %v8835
        %v9681 = vpop.f32.mrf.mxu0
        %v9682 = vadd.f32 %v9623, %v9681
        %v9683 = vpop.f32.mrf.mxu0
        %v9684 = vadd.f32 %v9625, %v9683
        %9685 = vmatmul.bf16.gmra.mxu0 %v8878
        %v9686 = vpop.f32.mrf.mxu0
        %v9687 = vadd.f32 %v9628, %v9686
        %v9688 = vpop.f32.mrf.mxu0
        %v9689 = vadd.f32 %v9630, %v9688
        %9690 = vmatmul.bf16.gmra.mxu0 %v8921
        %v9691 = vpop.f32.mrf.mxu0
        %v9692 = vadd.f32 %v9633, %v9691
        %v9693 = vpop.f32.mrf.mxu0
        %v9694 = vadd.f32 %v9635, %v9693
        %9695 = vdwg.mxu0
        %9696 = vmatpush.bf16.msra.mxu0 %v9553
        %9697 = vmatpush.bf16.msra.mxu0 %v9552
        %9698 = vmatpush.bf16.msra.mxu0 %v9551
        %9699 = vmatpush.bf16.msra.mxu0 %v9550
        %9700 = vmatpush.bf16.msra.mxu0 %v9549
        %9701 = vmatpush.bf16.msra.mxu0 %v9548
        %9702 = vmatpush.bf16.msra.mxu0 %v9547
        %9703 = vmatpush.bf16.msra.mxu0 %v9546
        %9704 = vmatmul.bf16.gmra.mxu0 %v8551
        %v9705 = vpop.f32.mrf.mxu0
        %v9706 = vadd.f32 %v9647, %v9705
        %v9707 = vpop.f32.mrf.mxu0
        %v9708 = vadd.f32 %v9649, %v9707
        %9709 = vmatmul.bf16.gmra.mxu0 %v8594
        %v9710 = vpop.f32.mrf.mxu0
        %v9711 = vadd.f32 %v9652, %v9710
        %v9712 = vpop.f32.mrf.mxu0
        %v9713 = vadd.f32 %v9654, %v9712
        %9714 = vmatmul.bf16.gmra.mxu0 %v8637
        %v9715 = vpop.f32.mrf.mxu0
        %v9716 = vadd.f32 %v9657, %v9715
        %v9717 = vpop.f32.mrf.mxu0
        %v9718 = vadd.f32 %v9659, %v9717
        %9719 = vmatmul.bf16.gmra.mxu0 %v8680
        %v9720 = vpop.f32.mrf.mxu0
        %v9721 = vadd.f32 %v9662, %v9720
        %v9722 = vpop.f32.mrf.mxu0
        %v9723 = vadd.f32 %v9664, %v9722
        %9724 = vmatmul.bf16.gmra.mxu0 %v8723
        %v9725 = vpop.f32.mrf.mxu0
        %v9726 = vadd.f32 %v9667, %v9725
        %v9727 = vpop.f32.mrf.mxu0
        %v9728 = vadd.f32 %v9669, %v9727
        %9729 = vmatmul.bf16.gmra.mxu0 %v8766
        %v9730 = vpop.f32.mrf.mxu0
        %v9731 = vadd.f32 %v9672, %v9730
        %v9732 = vpop.f32.mrf.mxu0
        %v9733 = vadd.f32 %v9674, %v9732
        %9734 = vmatmul.bf16.gmra.mxu0 %v8809
        %v9735 = vpop.f32.mrf.mxu0
        %v9736 = vadd.f32 %v9677, %v9735
        %v9737 = vpop.f32.mrf.mxu0
        %v9738 = vadd.f32 %v9679, %v9737
        %9739 = vmatmul.bf16.gmra.mxu0 %v8852
        %v9740 = vpop.f32.mrf.mxu0
        %v9741 = vadd.f32 %v9682, %v9740
        %v9742 = vpop.f32.mrf.mxu0
        %v9743 = vadd.f32 %v9684, %v9742
        %9744 = vmatmul.bf16.gmra.mxu0 %v8895
        %v9745 = vpop.f32.mrf.mxu0
        %v9746 = vadd.f32 %v9687, %v9745
        %v9747 = vpop.f32.mrf.mxu0
        %v9748 = vadd.f32 %v9689, %v9747
        %9749 = vmatmul.bf16.gmra.mxu0 %v8938
        %v9750 = vpop.f32.mrf.mxu0
        %v9751 = vadd.f32 %v9692, %v9750
        %v9752 = vpop.f32.mrf.mxu0
        %v9753 = vadd.f32 %v9694, %v9752
        %9754 = vdwg.mxu0
        %v9756 = vshrl.u32 %v8327, 16
        %v9758 = vrot.slane %v9756, 3
        %v9759 = vshll.u32 %v8327, 16
        %v9761 = vrot.slane %v9759, 4
        %v9762 = vor.u32 %v9758, %v9761
        %v9764 = vshrl.u32 %v8328, 16
        %v9766 = vrot.slane %v9764, 3
        %v9767 = vshll.u32 %v8328, 16
        %v9769 = vrot.slane %v9767, 4
        %v9770 = vor.u32 %v9766, %v9769
        %v9771 = vsel %vm859, %v9762, %v9770
        %v9773 = vshrl.u32 %v8436, 16
        %v9775 = vrot.slane %v9773, 3
        %v9776 = vshll.u32 %v8436, 16
        %v9778 = vrot.slane %v9776, 4
        %v9779 = vor.u32 %v9775, %v9778
        %v9780 = vsel %vm859, %v9779, %v9779
        %v9782 = vshrl.u32 %v8506, 16
        %v9784 = vrot.slane %v9782, 3
        %v9785 = vshll.u32 %v8506, 16
        %v9787 = vrot.slane %v9785, 4
        %v9788 = vor.u32 %v9784, %v9787
        %v9790 = vshrl.u32 %v8508, 16
        %v9792 = vrot.slane %v9790, 3
        %v9793 = vshll.u32 %v8508, 16
        %v9795 = vrot.slane %v9793, 4
        %v9796 = vor.u32 %v9792, %v9795
        %v9797 = vsel %vm859, %v9788, %v9796
        %s9801 = scalar_lea.vmem [#allocation5], 2112
        %v9802 = vld [vmem:[%s9801] sm:$0xf]
        %v9803 = vld [vmem:[%s9801 + $0x4] sm:$0xf]
        %v9804 = vld [vmem:[%s9801 + $0x8] sm:$0xf]
        %v9805 = vld [vmem:[%s9801 + $0xc] sm:$0xf]
        %v9806 = vld [vmem:[%s9801 + $0x10] sm:$0xf]
        %v9807 = vld [vmem:[%s9801 + $0x14] sm:$0xf]
        %v9808 = vld [vmem:[%s9801 + $0x18] sm:$0xf]
        %v9809 = vld [vmem:[%s9801 + $0x1c] sm:$0xf]
        %v9810 = vld [vmem:[%s9801 + $0x20] sm:$0xf]
        %v9811 = vld [vmem:[%s9801 + $0x24] sm:$0xf]
        %v9812 = vld [vmem:[%s9801 + $0x28] sm:$0xf]
        %v9813 = vld [vmem:[%s9801 + $0x2c] sm:$0xf]
        %v9814 = vld [vmem:[%s9801 + $0x30] sm:$0xf]
        %v9815 = vld [vmem:[%s9801 + $0x34] sm:$0xf]
        %v9816 = vld [vmem:[%s9801 + $0x38] sm:$0xf]
        %v9817 = vld [vmem:[%s9801 + $0x3c] sm:$0xf]
        %v9818 = vld [vmem:[%s9801 + $0x40] sm:$0xf]
        %v9819 = vld [vmem:[%s9801 + $0x44] sm:$0xf]
        %v9820 = vld [vmem:[%s9801 + $0x48] sm:$0xf]
        %v9821 = vld [vmem:[%s9801 + $0x4c] sm:$0xf]
        %v9822 = vld [vmem:[%s9801 + $0x50] sm:$0xf]
        %v9823 = vld [vmem:[%s9801 + $0x54] sm:$0xf]
        %v9824 = vld [vmem:[%s9801 + $0x58] sm:$0xf]
        %v9825 = vld [vmem:[%s9801 + $0x5c] sm:$0xf]
        %v9826 = vld [vmem:[%s9801 + $0x60] sm:$0xf]
        %v9827 = vld [vmem:[%s9801 + $0x64] sm:$0xf]
        %v9828 = vld [vmem:[%s9801 + $0x68] sm:$0xf]
        %v9829 = vld [vmem:[%s9801 + $0x6c] sm:$0xf]
        %v9830 = vld [vmem:[%s9801 + $0x70] sm:$0xf]
        %v9831 = vld [vmem:[%s9801 + $0x74] sm:$0xf]
        %v9832 = vld [vmem:[%s9801 + $0x78] sm:$0xf]
        %v9833 = vld [vmem:[%s9801 + $0x7c] sm:$0xf]
        %v9834 = vld [vmem:[%s9801 + $0x80] sm:$0xf]
        %v9835 = vld [vmem:[%s9801 + $0x84] sm:$0xf]
        %v9836 = vld [vmem:[%s9801 + $0x88] sm:$0xf]
        %v9837 = vld [vmem:[%s9801 + $0x8c] sm:$0xf]
        %v9838 = vld [vmem:[%s9801 + $0x90] sm:$0xf]
        %v9839 = vld [vmem:[%s9801 + $0x94] sm:$0xf]
        %v9840 = vld [vmem:[%s9801 + $0x98] sm:$0xf]
        %v9841 = vld [vmem:[%s9801 + $0x9c] sm:$0xf]
        %v9842 = vld [vmem:[%s9801 + $0xa0] sm:$0xf]
        %v9843 = vld [vmem:[%s9801 + $0xa4] sm:$0xf]
        %v9844 = vld [vmem:[%s9801 + $0xa8] sm:$0xf]
        %v9845 = vld [vmem:[%s9801 + $0xac] sm:$0xf]
        %v9846 = vld [vmem:[%s9801 + $0xb0] sm:$0xf]
        %v9847 = vld [vmem:[%s9801 + $0xb4] sm:$0xf]
        %v9848 = vld [vmem:[%s9801 + $0xb8] sm:$0xf]
        %v9849 = vld [vmem:[%s9801 + $0xbc] sm:$0xf]
        %v9898 = vunpack.c.l.b16 %v9802
        %v9899 = vunpack.c.l.b16 %v9803
        %v9900 = vunpack.c.l.b16 %v9804
        %v9901 = vunpack.c.l.b16 %v9805
        %v9902 = vunpack.c.l.b16 %v9806
        %v9903 = vunpack.c.l.b16 %v9807
        %v9904 = vunpack.c.l.b16 %v9808
        %v9905 = vunpack.c.l.b16 %v9809
        %v9906 = vunpack.c.l.b16 %v9810
        %v9907 = vunpack.c.l.b16 %v9811
        %v9908 = vunpack.c.l.b16 %v9812
        %v9909 = vunpack.c.l.b16 %v9813
        %v9910 = vunpack.c.l.b16 %v9814
        %v9911 = vunpack.c.l.b16 %v9815
        %v9912 = vunpack.c.l.b16 %v9816
        %v9913 = vunpack.c.l.b16 %v9817
        %v9914 = vunpack.c.l.b16 %v9818
        %v9915 = vunpack.c.l.b16 %v9819
        %v9916 = vunpack.c.l.b16 %v9820
        %v9917 = vunpack.c.l.b16 %v9821
        %v9918 = vunpack.c.l.b16 %v9822
        %v9919 = vunpack.c.l.b16 %v9823
        %v9920 = vunpack.c.l.b16 %v9824
        %v9921 = vunpack.c.l.b16 %v9825
        %v9922 = vunpack.c.l.b16 %v9826
        %v9923 = vunpack.c.l.b16 %v9827
        %v9924 = vunpack.c.l.b16 %v9828
        %v9925 = vunpack.c.l.b16 %v9829
        %v9926 = vunpack.c.l.b16 %v9830
        %v9927 = vunpack.c.l.b16 %v9831
        %v9928 = vunpack.c.l.b16 %v9832
        %v9929 = vunpack.c.l.b16 %v9833
        %v9930 = vunpack.c.l.b16 %v9834
        %v9931 = vunpack.c.l.b16 %v9835
        %v9932 = vunpack.c.l.b16 %v9836
        %v9933 = vunpack.c.l.b16 %v9837
        %v9934 = vunpack.c.l.b16 %v9838
        %v9935 = vunpack.c.l.b16 %v9839
        %v9936 = vunpack.c.l.b16 %v9840
        %v9937 = vunpack.c.l.b16 %v9841
        %v9938 = vunpack.c.l.b16 %v9842
        %v9939 = vunpack.c.l.b16 %v9843
        %v9940 = vunpack.c.l.b16 %v9844
        %v9941 = vunpack.c.l.b16 %v9845
        %v9942 = vunpack.c.l.b16 %v9846
        %v9943 = vunpack.c.l.b16 %v9847
        %v9944 = vunpack.c.l.b16 %v9848
        %v9945 = vunpack.c.l.b16 %v9849
        %v9946 = vpack.c.b16 %v9899, %v9898
        %v9947 = vpack.c.b16 %v9901, %v9900
        %v9948 = vpack.c.b16 %v9903, %v9902
        %v9949 = vpack.c.b16 %v9905, %v9904
        %v9950 = vpack.c.b16 %v9907, %v9906
        %v9951 = vpack.c.b16 %v9909, %v9908
        %v9952 = vpack.c.b16 %v9911, %v9910
        %v9953 = vpack.c.b16 %v9913, %v9912
        %v9954 = vpack.c.b16 %v9915, %v9914
        %v9955 = vpack.c.b16 %v9917, %v9916
        %v9956 = vpack.c.b16 %v9919, %v9918
        %v9957 = vpack.c.b16 %v9921, %v9920
        %v9958 = vpack.c.b16 %v9923, %v9922
        %v9959 = vpack.c.b16 %v9925, %v9924
        %v9960 = vpack.c.b16 %v9927, %v9926
        %v9961 = vpack.c.b16 %v9929, %v9928
        %v9962 = vpack.c.b16 %v9931, %v9930
        %v9963 = vpack.c.b16 %v9933, %v9932
        %v9964 = vpack.c.b16 %v9935, %v9934
        %v9965 = vpack.c.b16 %v9937, %v9936
        %v9966 = vpack.c.b16 %v9939, %v9938
        %v9967 = vpack.c.b16 %v9941, %v9940
        %v9968 = vpack.c.b16 %v9943, %v9942
        %v9969 = vpack.c.b16 %v9945, %v9944
        %9994 = vmatpush.bf16.msra.mxu0 %v9953
        %9995 = vmatpush.bf16.msra.mxu0 %v9952
        %9996 = vmatpush.bf16.msra.mxu0 %v9951
        %9997 = vmatpush.bf16.msra.mxu0 %v9950
        %9998 = vmatpush.bf16.msra.mxu0 %v9949
        %9999 = vmatpush.bf16.msra.mxu0 %v9948
        %10000 = vmatpush.bf16.msra.mxu0 %v9947
        %10001 = vmatpush.bf16.msra.mxu0 %v9946
        %10002 = vmatmul.bf16.gmra.mxu0 %v8611
        %v10003 = vpop.f32.mrf.mxu0
        %v10004 = vadd.f32 0.0, %v10003
        %v10005 = vpop.f32.mrf.mxu0
        %v10006 = vadd.f32 0.0, %v10005
        %10007 = vmatmul.bf16.gmra.mxu0 %v8654
        %v10008 = vpop.f32.mrf.mxu0
        %v10009 = vadd.f32 0.0, %v10008
        %v10010 = vpop.f32.mrf.mxu0
        %v10011 = vadd.f32 0.0, %v10010
        %10012 = vmatmul.bf16.gmra.mxu0 %v8697
        %v10013 = vpop.f32.mrf.mxu0
        %v10014 = vadd.f32 0.0, %v10013
        %v10015 = vpop.f32.mrf.mxu0
        %v10016 = vadd.f32 0.0, %v10015
        %10017 = vmatmul.bf16.gmra.mxu0 %v8740
        %v10018 = vpop.f32.mrf.mxu0
        %v10019 = vadd.f32 0.0, %v10018
        %v10020 = vpop.f32.mrf.mxu0
        %v10021 = vadd.f32 0.0, %v10020
        %10022 = vmatmul.bf16.gmra.mxu0 %v8783
        %v10023 = vpop.f32.mrf.mxu0
        %v10024 = vadd.f32 0.0, %v10023
        %v10025 = vpop.f32.mrf.mxu0
        %v10026 = vadd.f32 0.0, %v10025
        %10027 = vmatmul.bf16.gmra.mxu0 %v8826
        %v10028 = vpop.f32.mrf.mxu0
        %v10029 = vadd.f32 0.0, %v10028
        %v10030 = vpop.f32.mrf.mxu0
        %v10031 = vadd.f32 0.0, %v10030
        %10032 = vmatmul.bf16.gmra.mxu0 %v8869
        %v10033 = vpop.f32.mrf.mxu0
        %v10034 = vadd.f32 0.0, %v10033
        %v10035 = vpop.f32.mrf.mxu0
        %v10036 = vadd.f32 0.0, %v10035
        %10037 = vmatmul.bf16.gmra.mxu0 %v8912
        %v10038 = vpop.f32.mrf.mxu0
        %v10039 = vadd.f32 0.0, %v10038
        %v10040 = vpop.f32.mrf.mxu0
        %v10041 = vadd.f32 0.0, %v10040
        %10042 = vmatmul.bf16.gmra.mxu0 %v9034
        %v10043 = vpop.f32.mrf.mxu0
        %v10044 = vadd.f32 0.0, %v10043
        %v10045 = vpop.f32.mrf.mxu0
        %v10046 = vadd.f32 0.0, %v10045
        %10047 = vmatmul.bf16.gmra.mxu0 %v9771
        %v10048 = vpop.f32.mrf.mxu0
        %v10049 = vadd.f32 0.0, %v10048
        %v10050 = vpop.f32.mrf.mxu0
        %v10051 = vadd.f32 0.0, %v10050
        %10052 = vdwg.mxu0
        %10053 = vmatpush.bf16.msra.mxu0 %v9961
        %10054 = vmatpush.bf16.msra.mxu0 %v9960
        %10055 = vmatpush.bf16.msra.mxu0 %v9959
        %10056 = vmatpush.bf16.msra.mxu0 %v9958
        %10057 = vmatpush.bf16.msra.mxu0 %v9957
        %10058 = vmatpush.bf16.msra.mxu0 %v9956
        %10059 = vmatpush.bf16.msra.mxu0 %v9955
        %10060 = vmatpush.bf16.msra.mxu0 %v9954
        %10061 = vmatmul.bf16.gmra.mxu0 %v8620
        %v10062 = vpop.f32.mrf.mxu0
        %v10063 = vadd.f32 %v10004, %v10062
        %v10064 = vpop.f32.mrf.mxu0
        %v10065 = vadd.f32 %v10006, %v10064
        %10066 = vmatmul.bf16.gmra.mxu0 %v8663
        %v10067 = vpop.f32.mrf.mxu0
        %v10068 = vadd.f32 %v10009, %v10067
        %v10069 = vpop.f32.mrf.mxu0
        %v10070 = vadd.f32 %v10011, %v10069
        %10071 = vmatmul.bf16.gmra.mxu0 %v8706
        %v10072 = vpop.f32.mrf.mxu0
        %v10073 = vadd.f32 %v10014, %v10072
        %v10074 = vpop.f32.mrf.mxu0
        %v10075 = vadd.f32 %v10016, %v10074
        %10076 = vmatmul.bf16.gmra.mxu0 %v8749
        %v10077 = vpop.f32.mrf.mxu0
        %v10078 = vadd.f32 %v10019, %v10077
        %v10079 = vpop.f32.mrf.mxu0
        %v10080 = vadd.f32 %v10021, %v10079
        %10081 = vmatmul.bf16.gmra.mxu0 %v8792
        %v10082 = vpop.f32.mrf.mxu0
        %v10083 = vadd.f32 %v10024, %v10082
        %v10084 = vpop.f32.mrf.mxu0
        %v10085 = vadd.f32 %v10026, %v10084
        %10086 = vmatmul.bf16.gmra.mxu0 %v8835
        %v10087 = vpop.f32.mrf.mxu0
        %v10088 = vadd.f32 %v10029, %v10087
        %v10089 = vpop.f32.mrf.mxu0
        %v10090 = vadd.f32 %v10031, %v10089
        %10091 = vmatmul.bf16.gmra.mxu0 %v8878
        %v10092 = vpop.f32.mrf.mxu0
        %v10093 = vadd.f32 %v10034, %v10092
        %v10094 = vpop.f32.mrf.mxu0
        %v10095 = vadd.f32 %v10036, %v10094
        %10096 = vmatmul.bf16.gmra.mxu0 %v8921
        %v10097 = vpop.f32.mrf.mxu0
        %v10098 = vadd.f32 %v10039, %v10097
        %v10099 = vpop.f32.mrf.mxu0
        %v10100 = vadd.f32 %v10041, %v10099
        %10101 = vmatmul.bf16.gmra.mxu0 %v9043
        %v10102 = vpop.f32.mrf.mxu0
        %v10103 = vadd.f32 %v10044, %v10102
        %v10104 = vpop.f32.mrf.mxu0
        %v10105 = vadd.f32 %v10046, %v10104
        %10106 = vmatmul.bf16.gmra.mxu0 %v9780
        %v10107 = vpop.f32.mrf.mxu0
        %v10108 = vadd.f32 %v10049, %v10107
        %v10109 = vpop.f32.mrf.mxu0
        %v10110 = vadd.f32 %v10051, %v10109
        %10111 = vdwg.mxu0
        %10112 = vmatpush.bf16.msra.mxu0 %v9969
        %10113 = vmatpush.bf16.msra.mxu0 %v9968
        %10114 = vmatpush.bf16.msra.mxu0 %v9967
        %10115 = vmatpush.bf16.msra.mxu0 %v9966
        %10116 = vmatpush.bf16.msra.mxu0 %v9965
        %10117 = vmatpush.bf16.msra.mxu0 %v9964
        %10118 = vmatpush.bf16.msra.mxu0 %v9963
        %10119 = vmatpush.bf16.msra.mxu0 %v9962
        %10120 = vmatmul.bf16.gmra.mxu0 %v8637
        %v10121 = vpop.f32.mrf.mxu0
        %v10122 = vadd.f32 %v10063, %v10121
        %v10123 = vpop.f32.mrf.mxu0
        %v10124 = vadd.f32 %v10065, %v10123
        %10125 = vmatmul.bf16.gmra.mxu0 %v8680
        %v10126 = vpop.f32.mrf.mxu0
        %v10127 = vadd.f32 %v10068, %v10126
        %v10128 = vpop.f32.mrf.mxu0
        %v10129 = vadd.f32 %v10070, %v10128
        %10130 = vmatmul.bf16.gmra.mxu0 %v8723
        %v10131 = vpop.f32.mrf.mxu0
        %v10132 = vadd.f32 %v10073, %v10131
        %v10133 = vpop.f32.mrf.mxu0
        %v10134 = vadd.f32 %v10075, %v10133
        %10135 = vmatmul.bf16.gmra.mxu0 %v8766
        %v10136 = vpop.f32.mrf.mxu0
        %v10137 = vadd.f32 %v10078, %v10136
        %v10138 = vpop.f32.mrf.mxu0
        %v10139 = vadd.f32 %v10080, %v10138
        %10140 = vmatmul.bf16.gmra.mxu0 %v8809
        %v10141 = vpop.f32.mrf.mxu0
        %v10142 = vadd.f32 %v10083, %v10141
        %v10143 = vpop.f32.mrf.mxu0
        %v10144 = vadd.f32 %v10085, %v10143
        %10145 = vmatmul.bf16.gmra.mxu0 %v8852
        %v10146 = vpop.f32.mrf.mxu0
        %v10147 = vadd.f32 %v10088, %v10146
        %v10148 = vpop.f32.mrf.mxu0
        %v10149 = vadd.f32 %v10090, %v10148
        %10150 = vmatmul.bf16.gmra.mxu0 %v8895
        %v10151 = vpop.f32.mrf.mxu0
        %v10152 = vadd.f32 %v10093, %v10151
        %v10153 = vpop.f32.mrf.mxu0
        %v10154 = vadd.f32 %v10095, %v10153
        %10155 = vmatmul.bf16.gmra.mxu0 %v8938
        %v10156 = vpop.f32.mrf.mxu0
        %v10157 = vadd.f32 %v10098, %v10156
        %v10158 = vpop.f32.mrf.mxu0
        %v10159 = vadd.f32 %v10100, %v10158
        %10160 = vmatmul.bf16.gmra.mxu0 %v9060
        %v10161 = vpop.f32.mrf.mxu0
        %v10162 = vadd.f32 %v10103, %v10161
        %v10163 = vpop.f32.mrf.mxu0
        %v10164 = vadd.f32 %v10105, %v10163
        %10165 = vmatmul.bf16.gmra.mxu0 %v9797
        %v10166 = vpop.f32.mrf.mxu0
        %v10167 = vadd.f32 %v10108, %v10166
        %v10168 = vpop.f32.mrf.mxu0
        %v10169 = vadd.f32 %v10110, %v10168
        %10170 = vdwg.mxu0
        %v10171 = vadd.f32 %v9706, %v10122
        %v10172 = vadd.f32 %v9708, %v10124
        %v10173 = vadd.f32 %v9711, %v10127
        %v10174 = vadd.f32 %v9713, %v10129
        %v10175 = vadd.f32 %v9716, %v10132
        %v10176 = vadd.f32 %v9718, %v10134
        %v10177 = vadd.f32 %v9721, %v10137
        %v10178 = vadd.f32 %v9723, %v10139
        %v10179 = vadd.f32 %v9726, %v10142
        %v10180 = vadd.f32 %v9728, %v10144
        %v10181 = vadd.f32 %v9731, %v10147
        %v10182 = vadd.f32 %v9733, %v10149
        %v10183 = vadd.f32 %v9736, %v10152
        %v10184 = vadd.f32 %v9738, %v10154
        %v10185 = vadd.f32 %v9741, %v10157
        %v10186 = vadd.f32 %v9743, %v10159
        %v10187 = vadd.f32 %v9746, %v10162
        %v10188 = vadd.f32 %v9748, %v10164
        %v10189 = vadd.f32 %v9751, %v10167
        %v10190 = vadd.f32 %v9753, %v10169
        %s10191 = scalar_lea.vmem [#allocation7], 3
        %v10192 = vld [vmem:[%s10191] sm:$0x1]
        %v10194 = vperm.slane %v10192, 0
        %v10196 = vadd.f32 %v10171, %v10194
        %v10197 = vadd.f32 %v10172, %v10194
        %v10198 = vadd.f32 %v10173, %v10194
        %v10199 = vadd.f32 %v10174, %v10194
        %v10200 = vadd.f32 %v10175, %v10194
        %v10201 = vadd.f32 %v10176, %v10194
        %v10202 = vadd.f32 %v10177, %v10194
        %v10203 = vadd.f32 %v10178, %v10194
        %v10204 = vadd.f32 %v10179, %v10194
        %v10205 = vadd.f32 %v10180, %v10194
        %v10206 = vadd.f32 %v10181, %v10194
        %v10207 = vadd.f32 %v10182, %v10194
        %v10208 = vadd.f32 %v10183, %v10194
        %v10209 = vadd.f32 %v10184, %v10194
        %v10210 = vadd.f32 %v10185, %v10194
        %v10211 = vadd.f32 %v10186, %v10194
        %v10212 = vadd.f32 %v10187, %v10194
        %v10213 = vadd.f32 %v10188, %v10194
        %v10214 = vadd.f32 %v10189, %v10194
        %v10215 = vadd.f32 %v10190, %v10194
        %v10216 = vpack.c.bf16 %v10196, %v10196
        %v10217 = vpack.c.bf16 %v10197, %v10197
        %v10218 = vpack.c.bf16 %v10198, %v10198
        %v10219 = vpack.c.bf16 %v10199, %v10199
        %v10220 = vpack.c.bf16 %v10200, %v10200
        %v10221 = vpack.c.bf16 %v10201, %v10201
        %v10222 = vpack.c.bf16 %v10202, %v10202
        %v10223 = vpack.c.bf16 %v10203, %v10203
        %v10224 = vpack.c.bf16 %v10204, %v10204
        %v10225 = vpack.c.bf16 %v10205, %v10205
        %v10226 = vpack.c.bf16 %v10206, %v10206
        %v10227 = vpack.c.bf16 %v10207, %v10207
        %v10228 = vpack.c.bf16 %v10208, %v10208
        %v10229 = vpack.c.bf16 %v10209, %v10209
        %v10230 = vpack.c.bf16 %v10210, %v10210
        %v10231 = vpack.c.bf16 %v10211, %v10211
        %v10232 = vpack.c.bf16 %v10212, %v10212
        %v10233 = vpack.c.bf16 %v10213, %v10213
        %v10234 = vpack.c.bf16 %v10214, %v10214
        %v10235 = vpack.c.bf16 %v10215, %v10215
        %s10236 = scalar_lea.vmem [#allocation2], 80
        %10237 = vst [vmem:[%s10236 + $0x4] sm:$0xf] %v10216
        %10238 = vst [vmem:[%s10236 + $0x8] sm:$0xf] %v10217
        %10239 = vst [vmem:[%s10236 + $0x14] sm:$0xf] %v10218
        %10240 = vst [vmem:[%s10236 + $0x18] sm:$0xf] %v10219
        %10241 = vst [vmem:[%s10236 + $0x24] sm:$0xf] %v10220
        %10242 = vst [vmem:[%s10236 + $0x28] sm:$0xf] %v10221
        %10243 = vst [vmem:[%s10236 + $0x34] sm:$0xf] %v10222
        %10244 = vst [vmem:[%s10236 + $0x38] sm:$0xf] %v10223
        %10245 = vst [vmem:[%s10236 + $0x44] sm:$0xf] %v10224
        %10246 = vst [vmem:[%s10236 + $0x48] sm:$0xf] %v10225
        %10247 = vst [vmem:[%s10236 + $0x54] sm:$0xf] %v10226
        %10248 = vst [vmem:[%s10236 + $0x58] sm:$0xf] %v10227
        %10249 = vst [vmem:[%s10236 + $0x64] sm:$0xf] %v10228
        %10250 = vst [vmem:[%s10236 + $0x68] sm:$0xf] %v10229
        %10251 = vst [vmem:[%s10236 + $0x74] sm:$0xf] %v10230
        %10252 = vst [vmem:[%s10236 + $0x78] sm:$0xf] %v10231
        %10253 = vst [vmem:[%s10236 + $0x84] sm:$0xf] %v10232
        %10254 = vst [vmem:[%s10236 + $0x88] sm:$0xf] %v10233
        %10255 = vst [vmem:[%s10236 + $0x94] sm:$0xf] %v10234
        %10256 = vst [vmem:[%s10236 + $0x98] sm:$0xf] %v10235
        // Predicated region
        $region73: #{tpu_custom_call.1} parent=35 // pred_check
          %p10257 = pneg %p3200
        $region74: #{tpu_custom_call.1} parent=35 // pred_check_branch
          %10259 = sbr.rel (%p10257) target = $region76
        $region75: #{tpu_custom_call.1} parent=35 // pred_region
          %10260 = vst [vmem:[%s371 + $0x4] sm:$0xf] 0
          %10261 = vst [vmem:[%s371 + $0x8] sm:$0xf] 0
          %10262 = vst [vmem:[%s371 + $0x14] sm:$0xf] 0
          %10263 = vst [vmem:[%s371 + $0x18] sm:$0xf] 0
          %10264 = vst [vmem:[%s371 + $0x24] sm:$0xf] 0
          %10265 = vst [vmem:[%s371 + $0x28] sm:$0xf] 0
          %10266 = vst [vmem:[%s371 + $0x34] sm:$0xf] 0
          %10267 = vst [vmem:[%s371 + $0x38] sm:$0xf] 0
          %10268 = vst [vmem:[%s371 + $0x44] sm:$0xf] 0
          %10269 = vst [vmem:[%s371 + $0x48] sm:$0xf] 0
        $region76: #{tpu_custom_call.1} parent=35 // pred_fallthru
          _
        // Predicated region
        $region77: #{tpu_custom_call.1} parent=35 // pred_check
          %p10270 = pneg %p3215
        $region78: #{tpu_custom_call.1} parent=35 // pred_check_branch
          %10272 = sbr.rel (%p10270) target = $region80
        $region79: #{tpu_custom_call.1} parent=35 // pred_region
          %s10273 = scalar_lea.vmem [#allocation2], 224
          %10274 = vst [vmem:[%s10273 + $0x4] sm:$0xf] 0
          %10275 = vst [vmem:[%s10273 + $0x8] sm:$0xf] 0
          %10276 = vst [vmem:[%s10273 + $0x14] sm:$0xf] 0
          %10277 = vst [vmem:[%s10273 + $0x18] sm:$0xf] 0
          %10278 = vst [vmem:[%s10273 + $0x24] sm:$0xf] 0
          %10279 = vst [vmem:[%s10273 + $0x28] sm:$0xf] 0
          %10280 = vst [vmem:[%s10273 + $0x34] sm:$0xf] 0
          %10281 = vst [vmem:[%s10273 + $0x38] sm:$0xf] 0
          %10282 = vst [vmem:[%s10273 + $0x44] sm:$0xf] 0
          %10283 = vst [vmem:[%s10273 + $0x48] sm:$0xf] 0
        $region80: #{tpu_custom_call.1} parent=35 // pred_fallthru
          _
        %v10284 = vld [vmem:[%s10236] sm:$0xf]
        %v10285 = vld [vmem:[%s10236 + $0x4] sm:$0xf]
        %v10286 = vld [vmem:[%s10236 + $0x8] sm:$0xf]
        %v10287 = vld [vmem:[%s10236 + $0xc] sm:$0xf]
        %v10288 = vld [vmem:[%s10236 + $0x10] sm:$0xf]
        %v10289 = vld [vmem:[%s10236 + $0x14] sm:$0xf]
        %v10290 = vld [vmem:[%s10236 + $0x18] sm:$0xf]
        %v10291 = vld [vmem:[%s10236 + $0x1c] sm:$0xf]
        %v10292 = vld [vmem:[%s10236 + $0x20] sm:$0xf]
        %v10293 = vld [vmem:[%s10236 + $0x24] sm:$0xf]
        %v10294 = vld [vmem:[%s10236 + $0x28] sm:$0xf]
        %v10295 = vld [vmem:[%s10236 + $0x2c] sm:$0xf]
        %v10296 = vld [vmem:[%s10236 + $0x30] sm:$0xf]
        %v10297 = vld [vmem:[%s10236 + $0x34] sm:$0xf]
        %v10298 = vld [vmem:[%s10236 + $0x38] sm:$0xf]
        %v10299 = vld [vmem:[%s10236 + $0x3c] sm:$0xf]
        %v10300 = vld [vmem:[%s10236 + $0x40] sm:$0xf]
        %v10301 = vld [vmem:[%s10236 + $0x44] sm:$0xf]
        %v10302 = vld [vmem:[%s10236 + $0x48] sm:$0xf]
        %v10303 = vld [vmem:[%s10236 + $0x4c] sm:$0xf]
        %v10304 = vld [vmem:[%s10236 + $0x50] sm:$0xf]
        %v10305 = vld [vmem:[%s10236 + $0x54] sm:$0xf]
        %v10306 = vld [vmem:[%s10236 + $0x58] sm:$0xf]
        %v10307 = vld [vmem:[%s10236 + $0x5c] sm:$0xf]
        %v10308 = vld [vmem:[%s10236 + $0x60] sm:$0xf]
        %v10309 = vld [vmem:[%s10236 + $0x64] sm:$0xf]
        %v10310 = vld [vmem:[%s10236 + $0x68] sm:$0xf]
        %v10311 = vld [vmem:[%s10236 + $0x6c] sm:$0xf]
        %v10312 = vld [vmem:[%s10236 + $0x70] sm:$0xf]
        %v10313 = vld [vmem:[%s10236 + $0x74] sm:$0xf]
        %v10314 = vld [vmem:[%s10236 + $0x78] sm:$0xf]
        %v10315 = vld [vmem:[%s10236 + $0x7c] sm:$0xf]
        %v10316 = vld [vmem:[%s10236 + $0x80] sm:$0xf]
        %v10317 = vld [vmem:[%s10236 + $0x84] sm:$0xf]
        %v10318 = vld [vmem:[%s10236 + $0x88] sm:$0xf]
        %v10319 = vld [vmem:[%s10236 + $0x8c] sm:$0xf]
        %v10320 = vld [vmem:[%s10236 + $0x90] sm:$0xf]
        %v10321 = vld [vmem:[%s10236 + $0x94] sm:$0xf]
        %v10322 = vld [vmem:[%s10236 + $0x98] sm:$0xf]
        %v10323 = vld [vmem:[%s10236 + $0x9c] sm:$0xf]
        %v10354 = vunpack.c.l.b16 %v10284
        %v10355 = vunpack.c.l.b16 %v10285
        %v10356 = vunpack.c.l.b16 %v10286
        %v10357 = vunpack.c.l.b16 %v10288
        %v10358 = vunpack.c.l.b16 %v10289
        %v10359 = vunpack.c.l.b16 %v10290
        %v10360 = vunpack.c.l.b16 %v10292
        %v10361 = vunpack.c.l.b16 %v10293
        %v10362 = vunpack.c.l.b16 %v10294
        %v10363 = vunpack.c.l.b16 %v10296
        %v10364 = vunpack.c.l.b16 %v10297
        %v10365 = vunpack.c.l.b16 %v10298
        %v10366 = vunpack.c.l.b16 %v10300
        %v10367 = vunpack.c.l.b16 %v10301
        %v10368 = vunpack.c.l.b16 %v10302
        %v10369 = vunpack.c.l.b16 %v10304
        %v10370 = vunpack.c.l.b16 %v10305
        %v10371 = vunpack.c.l.b16 %v10306
        %v10372 = vunpack.c.l.b16 %v10308
        %v10373 = vunpack.c.l.b16 %v10309
        %v10374 = vunpack.c.l.b16 %v10310
        %v10375 = vunpack.c.l.b16 %v10312
        %v10376 = vunpack.c.l.b16 %v10313
        %v10377 = vunpack.c.l.b16 %v10314
        %v10378 = vunpack.c.l.b16 %v10316
        %v10379 = vunpack.c.l.b16 %v10317
        %v10380 = vunpack.c.l.b16 %v10318
        %v10381 = vunpack.c.l.b16 %v10320
        %v10382 = vunpack.c.l.b16 %v10321
        %v10383 = vunpack.c.l.b16 %v10322
        %v10384 = vpack.c.b16 %v10355, %v10354
        %v10385 = vpack.c.b16 %v10356, %v10356
        %v10386 = vpack.c.b16 %v10358, %v10357
        %v10387 = vpack.c.b16 %v10359, %v10359
        %v10388 = vpack.c.b16 %v10361, %v10360
        %v10389 = vpack.c.b16 %v10362, %v10362
        %v10390 = vpack.c.b16 %v10364, %v10363
        %v10391 = vpack.c.b16 %v10365, %v10365
        %v10392 = vpack.c.b16 %v10367, %v10366
        %v10393 = vpack.c.b16 %v10368, %v10368
        %v10394 = vpack.c.b16 %v10370, %v10369
        %v10395 = vpack.c.b16 %v10371, %v10371
        %v10396 = vpack.c.b16 %v10373, %v10372
        %v10397 = vpack.c.b16 %v10374, %v10374
        %v10398 = vpack.c.b16 %v10376, %v10375
        %v10399 = vpack.c.b16 %v10377, %v10377
        %v10400 = vpack.c.b16 %v10379, %v10378
        %v10401 = vpack.c.b16 %v10380, %v10380
        %v10402 = vpack.c.b16 %v10382, %v10381
        %v10403 = vpack.c.b16 %v10383, %v10383
        %v10404 = vpack.c.b16 %v10356, %v10355
        %v10405 = vpack.c.b16 %v10359, %v10358
        %v10406 = vpack.c.b16 %v10362, %v10361
        %v10407 = vpack.c.b16 %v10365, %v10364
        %v10408 = vpack.c.b16 %v10368, %v10367
        %v10409 = vpack.c.b16 %v10371, %v10370
        %v10410 = vpack.c.b16 %v10374, %v10373
        %v10411 = vpack.c.b16 %v10377, %v10376
        %v10412 = vpack.c.b16 %v10380, %v10379
        %v10413 = vpack.c.b16 %v10383, %v10382
        %v10415 = vshrl.u32 %v10404, 16
        %v10417 = vrot.slane %v10415, 4
        %v10418 = vshll.u32 %v10404, 16
        %v10420 = vrot.slane %v10418, 5
        %v10421 = vor.u32 %v10417, %v10420
        %v10423 = vshrl.u32 %v10405, 16
        %v10425 = vrot.slane %v10423, 4
        %v10426 = vshll.u32 %v10405, 16
        %v10428 = vrot.slane %v10426, 5
        %v10429 = vor.u32 %v10425, %v10428
        %v10431 = vshrl.u32 %v10406, 16
        %v10433 = vrot.slane %v10431, 4
        %v10434 = vshll.u32 %v10406, 16
        %v10436 = vrot.slane %v10434, 5
        %v10437 = vor.u32 %v10433, %v10436
        %v10439 = vshrl.u32 %v10407, 16
        %v10441 = vrot.slane %v10439, 4
        %v10442 = vshll.u32 %v10407, 16
        %v10444 = vrot.slane %v10442, 5
        %v10445 = vor.u32 %v10441, %v10444
        %v10447 = vshrl.u32 %v10408, 16
        %v10449 = vrot.slane %v10447, 4
        %v10450 = vshll.u32 %v10408, 16
        %v10452 = vrot.slane %v10450, 5
        %v10453 = vor.u32 %v10449, %v10452
        %v10455 = vshrl.u32 %v10409, 16
        %v10457 = vrot.slane %v10455, 4
        %v10458 = vshll.u32 %v10409, 16
        %v10460 = vrot.slane %v10458, 5
        %v10461 = vor.u32 %v10457, %v10460
        %v10463 = vshrl.u32 %v10410, 16
        %v10465 = vrot.slane %v10463, 4
        %v10466 = vshll.u32 %v10410, 16
        %v10468 = vrot.slane %v10466, 5
        %v10469 = vor.u32 %v10465, %v10468
        %v10471 = vshrl.u32 %v10411, 16
        %v10473 = vrot.slane %v10471, 4
        %v10474 = vshll.u32 %v10411, 16
        %v10476 = vrot.slane %v10474, 5
        %v10477 = vor.u32 %v10473, %v10476
        %v10479 = vshrl.u32 %v10412, 16
        %v10481 = vrot.slane %v10479, 4
        %v10482 = vshll.u32 %v10412, 16
        %v10484 = vrot.slane %v10482, 5
        %v10485 = vor.u32 %v10481, %v10484
        %v10487 = vshrl.u32 %v10413, 16
        %v10489 = vrot.slane %v10487, 4
        %v10490 = vshll.u32 %v10413, 16
        %v10492 = vrot.slane %v10490, 5
        %v10493 = vor.u32 %v10489, %v10492
        %v10504 = vunpack.c.l.b16 %v10287
        %v10505 = vunpack.c.l.b16 %v10291
        %v10506 = vunpack.c.l.b16 %v10295
        %v10507 = vunpack.c.l.b16 %v10299
        %v10508 = vunpack.c.l.b16 %v10303
        %v10509 = vunpack.c.l.b16 %v10307
        %v10510 = vunpack.c.l.b16 %v10311
        %v10511 = vunpack.c.l.b16 %v10315
        %v10512 = vunpack.c.l.b16 %v10319
        %v10513 = vunpack.c.l.b16 %v10323
        %v10514 = vpack.c.b16 %v10504, %v10504
        %v10515 = vpack.c.b16 %v10505, %v10505
        %v10516 = vpack.c.b16 %v10506, %v10506
        %v10517 = vpack.c.b16 %v10507, %v10507
        %v10518 = vpack.c.b16 %v10508, %v10508
        %v10519 = vpack.c.b16 %v10509, %v10509
        %v10520 = vpack.c.b16 %v10510, %v10510
        %v10521 = vpack.c.b16 %v10511, %v10511
        %v10522 = vpack.c.b16 %v10512, %v10512
        %v10523 = vpack.c.b16 %v10513, %v10513
        %v10524 = vrot.slane %v10404, 5
        %v10525 = vrot.slane %v10514, 5
        %v10526 = vsel %vm804, %v10524, %v10525
        %v10527 = vrot.slane %v10405, 5
        %v10528 = vrot.slane %v10515, 5
        %v10529 = vsel %vm804, %v10527, %v10528
        %v10530 = vrot.slane %v10406, 5
        %v10531 = vrot.slane %v10516, 5
        %v10532 = vsel %vm804, %v10530, %v10531
        %v10533 = vrot.slane %v10407, 5
        %v10534 = vrot.slane %v10517, 5
        %v10535 = vsel %vm804, %v10533, %v10534
        %v10536 = vrot.slane %v10408, 5
        %v10537 = vrot.slane %v10518, 5
        %v10538 = vsel %vm804, %v10536, %v10537
        %v10539 = vrot.slane %v10409, 5
        %v10540 = vrot.slane %v10519, 5
        %v10541 = vsel %vm804, %v10539, %v10540
        %v10542 = vrot.slane %v10410, 5
        %v10543 = vrot.slane %v10520, 5
        %v10544 = vsel %vm804, %v10542, %v10543
        %v10545 = vrot.slane %v10411, 5
        %v10546 = vrot.slane %v10521, 5
        %v10547 = vsel %vm804, %v10545, %v10546
        %v10548 = vrot.slane %v10412, 5
        %v10549 = vrot.slane %v10522, 5
        %v10550 = vsel %vm804, %v10548, %v10549
        %v10551 = vrot.slane %v10413, 5
        %v10552 = vrot.slane %v10523, 5
        %v10553 = vsel %vm804, %v10551, %v10552
        %v10555 = vshrl.u32 %v10384, 16
        %v10557 = vrot.slane %v10555, 3
        %v10558 = vshll.u32 %v10384, 16
        %v10560 = vrot.slane %v10558, 4
        %v10561 = vor.u32 %v10557, %v10560
        %v10563 = vshrl.u32 %v10385, 16
        %v10565 = vrot.slane %v10563, 3
        %v10566 = vshll.u32 %v10385, 16
        %v10568 = vrot.slane %v10566, 4
        %v10569 = vor.u32 %v10565, %v10568
        %v10570 = vsel %vm859, %v10561, %v10569
        %v10572 = vshrl.u32 %v10421, 16
        %v10574 = vrot.slane %v10572, 3
        %v10575 = vshll.u32 %v10421, 16
        %v10577 = vrot.slane %v10575, 4
        %v10578 = vor.u32 %v10574, %v10577
        %v10579 = vsel %vm859, %v10578, %v10578
        %v10581 = vshrl.u32 %v10524, 16
        %v10583 = vrot.slane %v10581, 3
        %v10584 = vshll.u32 %v10524, 16
        %v10586 = vrot.slane %v10584, 4
        %v10587 = vor.u32 %v10583, %v10586
        %v10589 = vshrl.u32 %v10526, 16
        %v10591 = vrot.slane %v10589, 3
        %v10592 = vshll.u32 %v10526, 16
        %v10594 = vrot.slane %v10592, 4
        %v10595 = vor.u32 %v10591, %v10594
        %v10596 = vsel %vm859, %v10587, %v10595
        %v10598 = vshrl.u32 %v10386, 16
        %v10600 = vrot.slane %v10598, 3
        %v10601 = vshll.u32 %v10386, 16
        %v10603 = vrot.slane %v10601, 4
        %v10604 = vor.u32 %v10600, %v10603
        %v10606 = vshrl.u32 %v10387, 16
        %v10608 = vrot.slane %v10606, 3
        %v10609 = vshll.u32 %v10387, 16
        %v10611 = vrot.slane %v10609, 4
        %v10612 = vor.u32 %v10608, %v10611
        %v10613 = vsel %vm859, %v10604, %v10612
        %v10615 = vshrl.u32 %v10429, 16
        %v10617 = vrot.slane %v10615, 3
        %v10618 = vshll.u32 %v10429, 16
        %v10620 = vrot.slane %v10618, 4
        %v10621 = vor.u32 %v10617, %v10620
        %v10622 = vsel %vm859, %v10621, %v10621
        %v10624 = vshrl.u32 %v10527, 16
        %v10626 = vrot.slane %v10624, 3
        %v10627 = vshll.u32 %v10527, 16
        %v10629 = vrot.slane %v10627, 4
        %v10630 = vor.u32 %v10626, %v10629
        %v10632 = vshrl.u32 %v10529, 16
        %v10634 = vrot.slane %v10632, 3
        %v10635 = vshll.u32 %v10529, 16
        %v10637 = vrot.slane %v10635, 4
        %v10638 = vor.u32 %v10634, %v10637
        %v10639 = vsel %vm859, %v10630, %v10638
        %v10641 = vshrl.u32 %v10388, 16
        %v10643 = vrot.slane %v10641, 3
        %v10644 = vshll.u32 %v10388, 16
        %v10646 = vrot.slane %v10644, 4
        %v10647 = vor.u32 %v10643, %v10646
        %v10649 = vshrl.u32 %v10389, 16
        %v10651 = vrot.slane %v10649, 3
        %v10652 = vshll.u32 %v10389, 16
        %v10654 = vrot.slane %v10652, 4
        %v10655 = vor.u32 %v10651, %v10654
        %v10656 = vsel %vm859, %v10647, %v10655
        %v10658 = vshrl.u32 %v10437, 16
        %v10660 = vrot.slane %v10658, 3
        %v10661 = vshll.u32 %v10437, 16
        %v10663 = vrot.slane %v10661, 4
        %v10664 = vor.u32 %v10660, %v10663
        %v10665 = vsel %vm859, %v10664, %v10664
        %v10667 = vshrl.u32 %v10530, 16
        %v10669 = vrot.slane %v10667, 3
        %v10670 = vshll.u32 %v10530, 16
        %v10672 = vrot.slane %v10670, 4
        %v10673 = vor.u32 %v10669, %v10672
        %v10675 = vshrl.u32 %v10532, 16
        %v10677 = vrot.slane %v10675, 3
        %v10678 = vshll.u32 %v10532, 16
        %v10680 = vrot.slane %v10678, 4
        %v10681 = vor.u32 %v10677, %v10680
        %v10682 = vsel %vm859, %v10673, %v10681
        %v10684 = vshrl.u32 %v10390, 16
        %v10686 = vrot.slane %v10684, 3
        %v10687 = vshll.u32 %v10390, 16
        %v10689 = vrot.slane %v10687, 4
        %v10690 = vor.u32 %v10686, %v10689
        %v10692 = vshrl.u32 %v10391, 16
        %v10694 = vrot.slane %v10692, 3
        %v10695 = vshll.u32 %v10391, 16
        %v10697 = vrot.slane %v10695, 4
        %v10698 = vor.u32 %v10694, %v10697
        %v10699 = vsel %vm859, %v10690, %v10698
        %v10701 = vshrl.u32 %v10445, 16
        %v10703 = vrot.slane %v10701, 3
        %v10704 = vshll.u32 %v10445, 16
        %v10706 = vrot.slane %v10704, 4
        %v10707 = vor.u32 %v10703, %v10706
        %v10708 = vsel %vm859, %v10707, %v10707
        %v10710 = vshrl.u32 %v10533, 16
        %v10712 = vrot.slane %v10710, 3
        %v10713 = vshll.u32 %v10533, 16
        %v10715 = vrot.slane %v10713, 4
        %v10716 = vor.u32 %v10712, %v10715
        %v10718 = vshrl.u32 %v10535, 16
        %v10720 = vrot.slane %v10718, 3
        %v10721 = vshll.u32 %v10535, 16
        %v10723 = vrot.slane %v10721, 4
        %v10724 = vor.u32 %v10720, %v10723
        %v10725 = vsel %vm859, %v10716, %v10724
        %v10727 = vshrl.u32 %v10392, 16
        %v10729 = vrot.slane %v10727, 3
        %v10730 = vshll.u32 %v10392, 16
        %v10732 = vrot.slane %v10730, 4
        %v10733 = vor.u32 %v10729, %v10732
        %v10735 = vshrl.u32 %v10393, 16
        %v10737 = vrot.slane %v10735, 3
        %v10738 = vshll.u32 %v10393, 16
        %v10740 = vrot.slane %v10738, 4
        %v10741 = vor.u32 %v10737, %v10740
        %v10742 = vsel %vm859, %v10733, %v10741
        %v10744 = vshrl.u32 %v10453, 16
        %v10746 = vrot.slane %v10744, 3
        %v10747 = vshll.u32 %v10453, 16
        %v10749 = vrot.slane %v10747, 4
        %v10750 = vor.u32 %v10746, %v10749
        %v10751 = vsel %vm859, %v10750, %v10750
        %v10753 = vshrl.u32 %v10536, 16
        %v10755 = vrot.slane %v10753, 3
        %v10756 = vshll.u32 %v10536, 16
        %v10758 = vrot.slane %v10756, 4
        %v10759 = vor.u32 %v10755, %v10758
        %v10761 = vshrl.u32 %v10538, 16
        %v10763 = vrot.slane %v10761, 3
        %v10764 = vshll.u32 %v10538, 16
        %v10766 = vrot.slane %v10764, 4
        %v10767 = vor.u32 %v10763, %v10766
        %v10768 = vsel %vm859, %v10759, %v10767
        %v10770 = vshrl.u32 %v10394, 16
        %v10772 = vrot.slane %v10770, 3
        %v10773 = vshll.u32 %v10394, 16
        %v10775 = vrot.slane %v10773, 4
        %v10776 = vor.u32 %v10772, %v10775
        %v10778 = vshrl.u32 %v10395, 16
        %v10780 = vrot.slane %v10778, 3
        %v10781 = vshll.u32 %v10395, 16
        %v10783 = vrot.slane %v10781, 4
        %v10784 = vor.u32 %v10780, %v10783
        %v10785 = vsel %vm859, %v10776, %v10784
        %v10787 = vshrl.u32 %v10461, 16
        %v10789 = vrot.slane %v10787, 3
        %v10790 = vshll.u32 %v10461, 16
        %v10792 = vrot.slane %v10790, 4
        %v10793 = vor.u32 %v10789, %v10792
        %v10794 = vsel %vm859, %v10793, %v10793
        %v10796 = vshrl.u32 %v10539, 16
        %v10798 = vrot.slane %v10796, 3
        %v10799 = vshll.u32 %v10539, 16
        %v10801 = vrot.slane %v10799, 4
        %v10802 = vor.u32 %v10798, %v10801
        %v10804 = vshrl.u32 %v10541, 16
        %v10806 = vrot.slane %v10804, 3
        %v10807 = vshll.u32 %v10541, 16
        %v10809 = vrot.slane %v10807, 4
        %v10810 = vor.u32 %v10806, %v10809
        %v10811 = vsel %vm859, %v10802, %v10810
        %v10813 = vshrl.u32 %v10396, 16
        %v10815 = vrot.slane %v10813, 3
        %v10816 = vshll.u32 %v10396, 16
        %v10818 = vrot.slane %v10816, 4
        %v10819 = vor.u32 %v10815, %v10818
        %v10821 = vshrl.u32 %v10397, 16
        %v10823 = vrot.slane %v10821, 3
        %v10824 = vshll.u32 %v10397, 16
        %v10826 = vrot.slane %v10824, 4
        %v10827 = vor.u32 %v10823, %v10826
        %v10828 = vsel %vm859, %v10819, %v10827
        %v10830 = vshrl.u32 %v10469, 16
        %v10832 = vrot.slane %v10830, 3
        %v10833 = vshll.u32 %v10469, 16
        %v10835 = vrot.slane %v10833, 4
        %v10836 = vor.u32 %v10832, %v10835
        %v10837 = vsel %vm859, %v10836, %v10836
        %v10839 = vshrl.u32 %v10542, 16
        %v10841 = vrot.slane %v10839, 3
        %v10842 = vshll.u32 %v10542, 16
        %v10844 = vrot.slane %v10842, 4
        %v10845 = vor.u32 %v10841, %v10844
        %v10847 = vshrl.u32 %v10544, 16
        %v10849 = vrot.slane %v10847, 3
        %v10850 = vshll.u32 %v10544, 16
        %v10852 = vrot.slane %v10850, 4
        %v10853 = vor.u32 %v10849, %v10852
        %v10854 = vsel %vm859, %v10845, %v10853
        %v10856 = vshrl.u32 %v10398, 16
        %v10858 = vrot.slane %v10856, 3
        %v10859 = vshll.u32 %v10398, 16
        %v10861 = vrot.slane %v10859, 4
        %v10862 = vor.u32 %v10858, %v10861
        %v10864 = vshrl.u32 %v10399, 16
        %v10866 = vrot.slane %v10864, 3
        %v10867 = vshll.u32 %v10399, 16
        %v10869 = vrot.slane %v10867, 4
        %v10870 = vor.u32 %v10866, %v10869
        %v10871 = vsel %vm859, %v10862, %v10870
        %v10873 = vshrl.u32 %v10477, 16
        %v10875 = vrot.slane %v10873, 3
        %v10876 = vshll.u32 %v10477, 16
        %v10878 = vrot.slane %v10876, 4
        %v10879 = vor.u32 %v10875, %v10878
        %v10880 = vsel %vm859, %v10879, %v10879
        %v10882 = vshrl.u32 %v10545, 16
        %v10884 = vrot.slane %v10882, 3
        %v10885 = vshll.u32 %v10545, 16
        %v10887 = vrot.slane %v10885, 4
        %v10888 = vor.u32 %v10884, %v10887
        %v10890 = vshrl.u32 %v10547, 16
        %v10892 = vrot.slane %v10890, 3
        %v10893 = vshll.u32 %v10547, 16
        %v10895 = vrot.slane %v10893, 4
        %v10896 = vor.u32 %v10892, %v10895
        %v10897 = vsel %vm859, %v10888, %v10896
        %v10922 = vld [vmem:[%s3] sm:$0xf]
        %v10923 = vld [vmem:[%s3 + $0x4] sm:$0xf]
        %v10924 = vld [vmem:[%s3 + $0x8] sm:$0xf]
        %v10925 = vld [vmem:[%s3 + $0xc] sm:$0xf]
        %v10926 = vld [vmem:[%s3 + $0x10] sm:$0xf]
        %v10927 = vld [vmem:[%s3 + $0x14] sm:$0xf]
        %v10928 = vld [vmem:[%s3 + $0x18] sm:$0xf]
        %v10929 = vld [vmem:[%s3 + $0x1c] sm:$0xf]
        %v10930 = vld [vmem:[%s3 + $0x20] sm:$0xf]
        %v10931 = vld [vmem:[%s3 + $0x24] sm:$0xf]
        %v10932 = vld [vmem:[%s3 + $0x28] sm:$0xf]
        %v10933 = vld [vmem:[%s3 + $0x2c] sm:$0xf]
        %v10934 = vld [vmem:[%s3 + $0x30] sm:$0xf]
        %v10935 = vld [vmem:[%s3 + $0x34] sm:$0xf]
        %v10936 = vld [vmem:[%s3 + $0x38] sm:$0xf]
        %v10937 = vld [vmem:[%s3 + $0x3c] sm:$0xf]
        %v10938 = vld [vmem:[%s3 + $0x40] sm:$0xf]
        %v10939 = vld [vmem:[%s3 + $0x44] sm:$0xf]
        %v10940 = vld [vmem:[%s3 + $0x48] sm:$0xf]
        %v10941 = vld [vmem:[%s3 + $0x4c] sm:$0xf]
        %v10942 = vld [vmem:[%s3 + $0x50] sm:$0xf]
        %v10943 = vld [vmem:[%s3 + $0x54] sm:$0xf]
        %v10944 = vld [vmem:[%s3 + $0x58] sm:$0xf]
        %v10945 = vld [vmem:[%s3 + $0x5c] sm:$0xf]
        %v10946 = vld [vmem:[%s3 + $0x60] sm:$0xf]
        %v10947 = vld [vmem:[%s3 + $0x64] sm:$0xf]
        %v10948 = vld [vmem:[%s3 + $0x68] sm:$0xf]
        %v10949 = vld [vmem:[%s3 + $0x6c] sm:$0xf]
        %v10950 = vld [vmem:[%s3 + $0x70] sm:$0xf]
        %v10951 = vld [vmem:[%s3 + $0x74] sm:$0xf]
        %v10952 = vld [vmem:[%s3 + $0x78] sm:$0xf]
        %v10953 = vld [vmem:[%s3 + $0x7c] sm:$0xf]
        %v10954 = vld [vmem:[%s3 + $0x80] sm:$0xf]
        %v10955 = vld [vmem:[%s3 + $0x84] sm:$0xf]
        %v10956 = vld [vmem:[%s3 + $0x88] sm:$0xf]
        %v10957 = vld [vmem:[%s3 + $0x8c] sm:$0xf]
        %v10958 = vld [vmem:[%s3 + $0x90] sm:$0xf]
        %v10959 = vld [vmem:[%s3 + $0x94] sm:$0xf]
        %v10960 = vld [vmem:[%s3 + $0x98] sm:$0xf]
        %v10961 = vld [vmem:[%s3 + $0x9c] sm:$0xf]
        %v10962 = vld [vmem:[%s3 + $0xa0] sm:$0xf]
        %v10963 = vld [vmem:[%s3 + $0xa4] sm:$0xf]
        %v10964 = vld [vmem:[%s3 + $0xa8] sm:$0xf]
        %v10965 = vld [vmem:[%s3 + $0xac] sm:$0xf]
        %v10966 = vld [vmem:[%s3 + $0xb0] sm:$0xf]
        %v10967 = vld [vmem:[%s3 + $0xb4] sm:$0xf]
        %v10968 = vld [vmem:[%s3 + $0xb8] sm:$0xf]
        %v10969 = vld [vmem:[%s3 + $0xbc] sm:$0xf]
        %v10971 = vshrl.u32 %v10400, 16
        %v10973 = vrot.slane %v10971, 3
        %v10974 = vshll.u32 %v10400, 16
        %v10976 = vrot.slane %v10974, 4
        %v10977 = vor.u32 %v10973, %v10976
        %v10979 = vshrl.u32 %v10401, 16
        %v10981 = vrot.slane %v10979, 3
        %v10982 = vshll.u32 %v10401, 16
        %v10984 = vrot.slane %v10982, 4
        %v10985 = vor.u32 %v10981, %v10984
        %v10986 = vsel %vm859, %v10977, %v10985
        %v10988 = vshrl.u32 %v10485, 16
        %v10990 = vrot.slane %v10988, 3
        %v10991 = vshll.u32 %v10485, 16
        %v10993 = vrot.slane %v10991, 4
        %v10994 = vor.u32 %v10990, %v10993
        %v10995 = vsel %vm859, %v10994, %v10994
        %v10997 = vshrl.u32 %v10548, 16
        %v10999 = vrot.slane %v10997, 3
        %v11000 = vshll.u32 %v10548, 16
        %v11002 = vrot.slane %v11000, 4
        %v11003 = vor.u32 %v10999, %v11002
        %v11005 = vshrl.u32 %v10550, 16
        %v11007 = vrot.slane %v11005, 3
        %v11008 = vshll.u32 %v10550, 16
        %v11010 = vrot.slane %v11008, 4
        %v11011 = vor.u32 %v11007, %v11010
        %v11012 = vsel %vm859, %v11003, %v11011
        %s11016 = scalar_lea.vmem %s3, 192
        %v11017 = vld [vmem:[%s11016] sm:$0xf]
        %v11018 = vld [vmem:[%s11016 + $0x4] sm:$0xf]
        %v11019 = vld [vmem:[%s11016 + $0x8] sm:$0xf]
        %v11020 = vld [vmem:[%s11016 + $0xc] sm:$0xf]
        %v11021 = vld [vmem:[%s11016 + $0x10] sm:$0xf]
        %v11022 = vld [vmem:[%s11016 + $0x14] sm:$0xf]
        %v11023 = vld [vmem:[%s11016 + $0x18] sm:$0xf]
        %v11024 = vld [vmem:[%s11016 + $0x1c] sm:$0xf]
        %v11025 = vld [vmem:[%s11016 + $0x20] sm:$0xf]
        %v11026 = vld [vmem:[%s11016 + $0x24] sm:$0xf]
        %v11027 = vld [vmem:[%s11016 + $0x28] sm:$0xf]
        %v11028 = vld [vmem:[%s11016 + $0x2c] sm:$0xf]
        %v11029 = vld [vmem:[%s11016 + $0x30] sm:$0xf]
        %v11030 = vld [vmem:[%s11016 + $0x34] sm:$0xf]
        %v11031 = vld [vmem:[%s11016 + $0x38] sm:$0xf]
        %v11032 = vld [vmem:[%s11016 + $0x3c] sm:$0xf]
        %v11033 = vld [vmem:[%s11016 + $0x40] sm:$0xf]
        %v11034 = vld [vmem:[%s11016 + $0x44] sm:$0xf]
        %v11035 = vld [vmem:[%s11016 + $0x48] sm:$0xf]
        %v11036 = vld [vmem:[%s11016 + $0x4c] sm:$0xf]
        %v11037 = vld [vmem:[%s11016 + $0x50] sm:$0xf]
        %v11038 = vld [vmem:[%s11016 + $0x54] sm:$0xf]
        %v11039 = vld [vmem:[%s11016 + $0x58] sm:$0xf]
        %v11040 = vld [vmem:[%s11016 + $0x5c] sm:$0xf]
        %v11041 = vld [vmem:[%s11016 + $0x60] sm:$0xf]
        %v11042 = vld [vmem:[%s11016 + $0x64] sm:$0xf]
        %v11043 = vld [vmem:[%s11016 + $0x68] sm:$0xf]
        %v11044 = vld [vmem:[%s11016 + $0x6c] sm:$0xf]
        %v11045 = vld [vmem:[%s11016 + $0x70] sm:$0xf]
        %v11046 = vld [vmem:[%s11016 + $0x74] sm:$0xf]
        %v11047 = vld [vmem:[%s11016 + $0x78] sm:$0xf]
        %v11048 = vld [vmem:[%s11016 + $0x7c] sm:$0xf]
        %v11049 = vld [vmem:[%s11016 + $0x80] sm:$0xf]
        %v11050 = vld [vmem:[%s11016 + $0x84] sm:$0xf]
        %v11051 = vld [vmem:[%s11016 + $0x88] sm:$0xf]
        %v11052 = vld [vmem:[%s11016 + $0x8c] sm:$0xf]
        %v11053 = vld [vmem:[%s11016 + $0x90] sm:$0xf]
        %v11054 = vld [vmem:[%s11016 + $0x94] sm:$0xf]
        %v11055 = vld [vmem:[%s11016 + $0x98] sm:$0xf]
        %v11056 = vld [vmem:[%s11016 + $0x9c] sm:$0xf]
        %v11057 = vld [vmem:[%s11016 + $0xa0] sm:$0xf]
        %v11058 = vld [vmem:[%s11016 + $0xa4] sm:$0xf]
        %v11059 = vld [vmem:[%s11016 + $0xa8] sm:$0xf]
        %v11060 = vld [vmem:[%s11016 + $0xac] sm:$0xf]
        %v11061 = vld [vmem:[%s11016 + $0xb0] sm:$0xf]
        %v11062 = vld [vmem:[%s11016 + $0xb4] sm:$0xf]
        %v11063 = vld [vmem:[%s11016 + $0xb8] sm:$0xf]
        %v11064 = vld [vmem:[%s11016 + $0xbc] sm:$0xf]
        %v11113 = vunpack.c.l.b16 %v11017
        %v11114 = vunpack.c.l.b16 %v11018
        %v11115 = vunpack.c.l.b16 %v11019
        %v11116 = vunpack.c.l.b16 %v11020
        %v11117 = vunpack.c.l.b16 %v11021
        %v11118 = vunpack.c.l.b16 %v11022
        %v11119 = vunpack.c.l.b16 %v11023
        %v11120 = vunpack.c.l.b16 %v11024
        %v11121 = vunpack.c.l.b16 %v11025
        %v11122 = vunpack.c.l.b16 %v11026
        %v11123 = vunpack.c.l.b16 %v11027
        %v11124 = vunpack.c.l.b16 %v11028
        %v11125 = vunpack.c.l.b16 %v11029
        %v11126 = vunpack.c.l.b16 %v11030
        %v11127 = vunpack.c.l.b16 %v11031
        %v11128 = vunpack.c.l.b16 %v11032
        %v11129 = vunpack.c.l.b16 %v11033
        %v11130 = vunpack.c.l.b16 %v11034
        %v11131 = vunpack.c.l.b16 %v11035
        %v11132 = vunpack.c.l.b16 %v11036
        %v11133 = vunpack.c.l.b16 %v11037
        %v11134 = vunpack.c.l.b16 %v11038
        %v11135 = vunpack.c.l.b16 %v11039
        %v11136 = vunpack.c.l.b16 %v11040
        %v11137 = vunpack.c.l.b16 %v11041
        %v11138 = vunpack.c.l.b16 %v11042
        %v11139 = vunpack.c.l.b16 %v11043
        %v11140 = vunpack.c.l.b16 %v11044
        %v11141 = vunpack.c.l.b16 %v11045
        %v11142 = vunpack.c.l.b16 %v11046
        %v11143 = vunpack.c.l.b16 %v11047
        %v11144 = vunpack.c.l.b16 %v11048
        %v11145 = vunpack.c.l.b16 %v11049
        %v11146 = vunpack.c.l.b16 %v11050
        %v11147 = vunpack.c.l.b16 %v11051
        %v11148 = vunpack.c.l.b16 %v11052
        %v11149 = vunpack.c.l.b16 %v11053
        %v11150 = vunpack.c.l.b16 %v11054
        %v11151 = vunpack.c.l.b16 %v11055
        %v11152 = vunpack.c.l.b16 %v11056
        %v11153 = vunpack.c.l.b16 %v11057
        %v11154 = vunpack.c.l.b16 %v11058
        %v11155 = vunpack.c.l.b16 %v11059
        %v11156 = vunpack.c.l.b16 %v11060
        %v11157 = vunpack.c.l.b16 %v11061
        %v11158 = vunpack.c.l.b16 %v11062
        %v11159 = vunpack.c.l.b16 %v11063
        %v11160 = vunpack.c.l.b16 %v11064
        %v11161 = vpack.c.b16 %v11114, %v11113
        %v11162 = vpack.c.b16 %v11116, %v11115
        %v11163 = vpack.c.b16 %v11118, %v11117
        %v11164 = vpack.c.b16 %v11120, %v11119
        %v11165 = vpack.c.b16 %v11122, %v11121
        %v11166 = vpack.c.b16 %v11124, %v11123
        %v11167 = vpack.c.b16 %v11126, %v11125
        %v11168 = vpack.c.b16 %v11128, %v11127
        %v11169 = vpack.c.b16 %v11130, %v11129
        %v11170 = vpack.c.b16 %v11132, %v11131
        %v11171 = vpack.c.b16 %v11134, %v11133
        %v11172 = vpack.c.b16 %v11136, %v11135
        %v11173 = vpack.c.b16 %v11138, %v11137
        %v11174 = vpack.c.b16 %v11140, %v11139
        %v11175 = vpack.c.b16 %v11142, %v11141
        %v11176 = vpack.c.b16 %v11144, %v11143
        %v11177 = vpack.c.b16 %v11146, %v11145
        %v11178 = vpack.c.b16 %v11148, %v11147
        %v11179 = vpack.c.b16 %v11150, %v11149
        %v11180 = vpack.c.b16 %v11152, %v11151
        %v11181 = vpack.c.b16 %v11154, %v11153
        %v11182 = vpack.c.b16 %v11156, %v11155
        %v11183 = vpack.c.b16 %v11158, %v11157
        %v11184 = vpack.c.b16 %v11160, %v11159
        %11209 = vmatpush.bf16.msra.mxu0 %v11168
        %11210 = vmatpush.bf16.msra.mxu0 %v11167
        %11211 = vmatpush.bf16.msra.mxu0 %v11166
        %11212 = vmatpush.bf16.msra.mxu0 %v11165
        %11213 = vmatpush.bf16.msra.mxu0 %v11164
        %11214 = vmatpush.bf16.msra.mxu0 %v11163
        %11215 = vmatpush.bf16.msra.mxu0 %v11162
        %11216 = vmatpush.bf16.msra.mxu0 %v11161
        %11217 = vmatmul.bf16.gmra.mxu0 %v10613
        %v11218 = vpop.f32.mrf.mxu0
        %v11219 = vadd.f32 0.0, %v11218
        %v11220 = vpop.f32.mrf.mxu0
        %v11221 = vadd.f32 0.0, %v11220
        %11222 = vmatmul.bf16.gmra.mxu0 %v10656
        %v11223 = vpop.f32.mrf.mxu0
        %v11224 = vadd.f32 0.0, %v11223
        %v11225 = vpop.f32.mrf.mxu0
        %v11226 = vadd.f32 0.0, %v11225
        %11227 = vmatmul.bf16.gmra.mxu0 %v10699
        %v11228 = vpop.f32.mrf.mxu0
        %v11229 = vadd.f32 0.0, %v11228
        %v11230 = vpop.f32.mrf.mxu0
        %v11231 = vadd.f32 0.0, %v11230
        %11232 = vmatmul.bf16.gmra.mxu0 %v10742
        %v11233 = vpop.f32.mrf.mxu0
        %v11234 = vadd.f32 0.0, %v11233
        %v11235 = vpop.f32.mrf.mxu0
        %v11236 = vadd.f32 0.0, %v11235
        %11237 = vmatmul.bf16.gmra.mxu0 %v10785
        %v11238 = vpop.f32.mrf.mxu0
        %v11239 = vadd.f32 0.0, %v11238
        %v11240 = vpop.f32.mrf.mxu0
        %v11241 = vadd.f32 0.0, %v11240
        %11242 = vmatmul.bf16.gmra.mxu0 %v10828
        %v11243 = vpop.f32.mrf.mxu0
        %v11244 = vadd.f32 0.0, %v11243
        %v11245 = vpop.f32.mrf.mxu0
        %v11246 = vadd.f32 0.0, %v11245
        %11247 = vmatmul.bf16.gmra.mxu0 %v10871
        %v11248 = vpop.f32.mrf.mxu0
        %v11249 = vadd.f32 0.0, %v11248
        %v11250 = vpop.f32.mrf.mxu0
        %v11251 = vadd.f32 0.0, %v11250
        %11252 = vmatmul.bf16.gmra.mxu0 %v10986
        %v11253 = vpop.f32.mrf.mxu0
        %v11254 = vadd.f32 0.0, %v11253
        %v11255 = vpop.f32.mrf.mxu0
        %v11256 = vadd.f32 0.0, %v11255
        %11257 = vdwg.mxu0
        %11258 = vmatpush.bf16.msra.mxu0 %v11176
        %11259 = vmatpush.bf16.msra.mxu0 %v11175
        %11260 = vmatpush.bf16.msra.mxu0 %v11174
        %11261 = vmatpush.bf16.msra.mxu0 %v11173
        %11262 = vmatpush.bf16.msra.mxu0 %v11172
        %11263 = vmatpush.bf16.msra.mxu0 %v11171
        %11264 = vmatpush.bf16.msra.mxu0 %v11170
        %11265 = vmatpush.bf16.msra.mxu0 %v11169
        %11266 = vmatmul.bf16.gmra.mxu0 %v10622
        %v11267 = vpop.f32.mrf.mxu0
        %v11268 = vadd.f32 %v11219, %v11267
        %v11269 = vpop.f32.mrf.mxu0
        %v11270 = vadd.f32 %v11221, %v11269
        %11271 = vmatmul.bf16.gmra.mxu0 %v10665
        %v11272 = vpop.f32.mrf.mxu0
        %v11273 = vadd.f32 %v11224, %v11272
        %v11274 = vpop.f32.mrf.mxu0
        %v11275 = vadd.f32 %v11226, %v11274
        %11276 = vmatmul.bf16.gmra.mxu0 %v10708
        %v11277 = vpop.f32.mrf.mxu0
        %v11278 = vadd.f32 %v11229, %v11277
        %v11279 = vpop.f32.mrf.mxu0
        %v11280 = vadd.f32 %v11231, %v11279
        %11281 = vmatmul.bf16.gmra.mxu0 %v10751
        %v11282 = vpop.f32.mrf.mxu0
        %v11283 = vadd.f32 %v11234, %v11282
        %v11284 = vpop.f32.mrf.mxu0
        %v11285 = vadd.f32 %v11236, %v11284
        %11286 = vmatmul.bf16.gmra.mxu0 %v10794
        %v11287 = vpop.f32.mrf.mxu0
        %v11288 = vadd.f32 %v11239, %v11287
        %v11289 = vpop.f32.mrf.mxu0
        %v11290 = vadd.f32 %v11241, %v11289
        %11291 = vmatmul.bf16.gmra.mxu0 %v10837
        %v11292 = vpop.f32.mrf.mxu0
        %v11293 = vadd.f32 %v11244, %v11292
        %v11294 = vpop.f32.mrf.mxu0
        %v11295 = vadd.f32 %v11246, %v11294
        %11296 = vmatmul.bf16.gmra.mxu0 %v10880
        %v11297 = vpop.f32.mrf.mxu0
        %v11298 = vadd.f32 %v11249, %v11297
        %v11299 = vpop.f32.mrf.mxu0
        %v11300 = vadd.f32 %v11251, %v11299
        %11301 = vmatmul.bf16.gmra.mxu0 %v10995
        %v11302 = vpop.f32.mrf.mxu0
        %v11303 = vadd.f32 %v11254, %v11302
        %v11304 = vpop.f32.mrf.mxu0
        %v11305 = vadd.f32 %v11256, %v11304
        %11306 = vdwg.mxu0
        %11307 = vmatpush.bf16.msra.mxu0 %v11184
        %11308 = vmatpush.bf16.msra.mxu0 %v11183
        %11309 = vmatpush.bf16.msra.mxu0 %v11182
        %11310 = vmatpush.bf16.msra.mxu0 %v11181
        %11311 = vmatpush.bf16.msra.mxu0 %v11180
        %11312 = vmatpush.bf16.msra.mxu0 %v11179
        %11313 = vmatpush.bf16.msra.mxu0 %v11178
        %11314 = vmatpush.bf16.msra.mxu0 %v11177
        %11315 = vmatmul.bf16.gmra.mxu0 %v10639
        %v11316 = vpop.f32.mrf.mxu0
        %v11317 = vadd.f32 %v11268, %v11316
        %v11318 = vpop.f32.mrf.mxu0
        %v11319 = vadd.f32 %v11270, %v11318
        %11320 = vmatmul.bf16.gmra.mxu0 %v10682
        %v11321 = vpop.f32.mrf.mxu0
        %v11322 = vadd.f32 %v11273, %v11321
        %v11323 = vpop.f32.mrf.mxu0
        %v11324 = vadd.f32 %v11275, %v11323
        %11325 = vmatmul.bf16.gmra.mxu0 %v10725
        %v11326 = vpop.f32.mrf.mxu0
        %v11327 = vadd.f32 %v11278, %v11326
        %v11328 = vpop.f32.mrf.mxu0
        %v11329 = vadd.f32 %v11280, %v11328
        %11330 = vmatmul.bf16.gmra.mxu0 %v10768
        %v11331 = vpop.f32.mrf.mxu0
        %v11332 = vadd.f32 %v11283, %v11331
        %v11333 = vpop.f32.mrf.mxu0
        %v11334 = vadd.f32 %v11285, %v11333
        %11335 = vmatmul.bf16.gmra.mxu0 %v10811
        %v11336 = vpop.f32.mrf.mxu0
        %v11337 = vadd.f32 %v11288, %v11336
        %v11338 = vpop.f32.mrf.mxu0
        %v11339 = vadd.f32 %v11290, %v11338
        %11340 = vmatmul.bf16.gmra.mxu0 %v10854
        %v11341 = vpop.f32.mrf.mxu0
        %v11342 = vadd.f32 %v11293, %v11341
        %v11343 = vpop.f32.mrf.mxu0
        %v11344 = vadd.f32 %v11295, %v11343
        %11345 = vmatmul.bf16.gmra.mxu0 %v10897
        %v11346 = vpop.f32.mrf.mxu0
        %v11347 = vadd.f32 %v11298, %v11346
        %v11348 = vpop.f32.mrf.mxu0
        %v11349 = vadd.f32 %v11300, %v11348
        %11350 = vmatmul.bf16.gmra.mxu0 %v11012
        %v11351 = vpop.f32.mrf.mxu0
        %v11352 = vadd.f32 %v11303, %v11351
        %v11353 = vpop.f32.mrf.mxu0
        %v11354 = vadd.f32 %v11305, %v11353
        %11355 = vdwg.mxu0
        %v11404 = vunpack.c.l.b16 %v10922
        %v11405 = vunpack.c.l.b16 %v10923
        %v11406 = vunpack.c.l.b16 %v10924
        %v11407 = vunpack.c.l.b16 %v10925
        %v11408 = vunpack.c.l.b16 %v10926
        %v11409 = vunpack.c.l.b16 %v10927
        %v11410 = vunpack.c.l.b16 %v10928
        %v11411 = vunpack.c.l.b16 %v10929
        %v11412 = vunpack.c.l.b16 %v10930
        %v11413 = vunpack.c.l.b16 %v10931
        %v11414 = vunpack.c.l.b16 %v10932
        %v11415 = vunpack.c.l.b16 %v10933
        %v11416 = vunpack.c.l.b16 %v10934
        %v11417 = vunpack.c.l.b16 %v10935
        %v11418 = vunpack.c.l.b16 %v10936
        %v11419 = vunpack.c.l.b16 %v10937
        %v11420 = vunpack.c.l.b16 %v10938
        %v11421 = vunpack.c.l.b16 %v10939
        %v11422 = vunpack.c.l.b16 %v10940
        %v11423 = vunpack.c.l.b16 %v10941
        %v11424 = vunpack.c.l.b16 %v10942
        %v11425 = vunpack.c.l.b16 %v10943
        %v11426 = vunpack.c.l.b16 %v10944
        %v11427 = vunpack.c.l.b16 %v10945
        %v11428 = vunpack.c.l.b16 %v10946
        %v11429 = vunpack.c.l.b16 %v10947
        %v11430 = vunpack.c.l.b16 %v10948
        %v11431 = vunpack.c.l.b16 %v10949
        %v11432 = vunpack.c.l.b16 %v10950
        %v11433 = vunpack.c.l.b16 %v10951
        %v11434 = vunpack.c.l.b16 %v10952
        %v11435 = vunpack.c.l.b16 %v10953
        %v11436 = vunpack.c.l.b16 %v10954
        %v11437 = vunpack.c.l.b16 %v10955
        %v11438 = vunpack.c.l.b16 %v10956
        %v11439 = vunpack.c.l.b16 %v10957
        %v11440 = vunpack.c.l.b16 %v10958
        %v11441 = vunpack.c.l.b16 %v10959
        %v11442 = vunpack.c.l.b16 %v10960
        %v11443 = vunpack.c.l.b16 %v10961
        %v11444 = vunpack.c.l.b16 %v10962
        %v11445 = vunpack.c.l.b16 %v10963
        %v11446 = vunpack.c.l.b16 %v10964
        %v11447 = vunpack.c.l.b16 %v10965
        %v11448 = vunpack.c.l.b16 %v10966
        %v11449 = vunpack.c.l.b16 %v10967
        %v11450 = vunpack.c.l.b16 %v10968
        %v11451 = vunpack.c.l.b16 %v10969
        %v11452 = vpack.c.b16 %v11405, %v11404
        %v11453 = vpack.c.b16 %v11407, %v11406
        %v11454 = vpack.c.b16 %v11409, %v11408
        %v11455 = vpack.c.b16 %v11411, %v11410
        %v11456 = vpack.c.b16 %v11413, %v11412
        %v11457 = vpack.c.b16 %v11415, %v11414
        %v11458 = vpack.c.b16 %v11417, %v11416
        %v11459 = vpack.c.b16 %v11419, %v11418
        %v11460 = vpack.c.b16 %v11421, %v11420
        %v11461 = vpack.c.b16 %v11423, %v11422
        %v11462 = vpack.c.b16 %v11425, %v11424
        %v11463 = vpack.c.b16 %v11427, %v11426
        %v11464 = vpack.c.b16 %v11429, %v11428
        %v11465 = vpack.c.b16 %v11431, %v11430
        %v11466 = vpack.c.b16 %v11433, %v11432
        %v11467 = vpack.c.b16 %v11435, %v11434
        %v11468 = vpack.c.b16 %v11437, %v11436
        %v11469 = vpack.c.b16 %v11439, %v11438
        %v11470 = vpack.c.b16 %v11441, %v11440
        %v11471 = vpack.c.b16 %v11443, %v11442
        %v11472 = vpack.c.b16 %v11445, %v11444
        %v11473 = vpack.c.b16 %v11447, %v11446
        %v11474 = vpack.c.b16 %v11449, %v11448
        %v11475 = vpack.c.b16 %v11451, %v11450
        %11500 = vmatpush.bf16.msra.mxu0 %v11459
        %11501 = vmatpush.bf16.msra.mxu0 %v11458
        %11502 = vmatpush.bf16.msra.mxu0 %v11457
        %11503 = vmatpush.bf16.msra.mxu0 %v11456
        %11504 = vmatpush.bf16.msra.mxu0 %v11455
        %11505 = vmatpush.bf16.msra.mxu0 %v11454
        %11506 = vmatpush.bf16.msra.mxu0 %v11453
        %11507 = vmatpush.bf16.msra.mxu0 %v11452
        %11508 = vmatmul.bf16.gmra.mxu0 %v10570
        %v11509 = vpop.f32.mrf.mxu0
        %v11510 = vadd.f32 %v11317, %v11509
        %v11511 = vpop.f32.mrf.mxu0
        %v11512 = vadd.f32 %v11319, %v11511
        %11513 = vmatmul.bf16.gmra.mxu0 %v10613
        %v11514 = vpop.f32.mrf.mxu0
        %v11515 = vadd.f32 %v11322, %v11514
        %v11516 = vpop.f32.mrf.mxu0
        %v11517 = vadd.f32 %v11324, %v11516
        %11518 = vmatmul.bf16.gmra.mxu0 %v10656
        %v11519 = vpop.f32.mrf.mxu0
        %v11520 = vadd.f32 %v11327, %v11519
        %v11521 = vpop.f32.mrf.mxu0
        %v11522 = vadd.f32 %v11329, %v11521
        %11523 = vmatmul.bf16.gmra.mxu0 %v10699
        %v11524 = vpop.f32.mrf.mxu0
        %v11525 = vadd.f32 %v11332, %v11524
        %v11526 = vpop.f32.mrf.mxu0
        %v11527 = vadd.f32 %v11334, %v11526
        %11528 = vmatmul.bf16.gmra.mxu0 %v10742
        %v11529 = vpop.f32.mrf.mxu0
        %v11530 = vadd.f32 %v11337, %v11529
        %v11531 = vpop.f32.mrf.mxu0
        %v11532 = vadd.f32 %v11339, %v11531
        %11533 = vmatmul.bf16.gmra.mxu0 %v10785
        %v11534 = vpop.f32.mrf.mxu0
        %v11535 = vadd.f32 %v11342, %v11534
        %v11536 = vpop.f32.mrf.mxu0
        %v11537 = vadd.f32 %v11344, %v11536
        %11538 = vmatmul.bf16.gmra.mxu0 %v10828
        %v11539 = vpop.f32.mrf.mxu0
        %v11540 = vadd.f32 %v11347, %v11539
        %v11541 = vpop.f32.mrf.mxu0
        %v11542 = vadd.f32 %v11349, %v11541
        %11543 = vmatmul.bf16.gmra.mxu0 %v10871
        %v11544 = vpop.f32.mrf.mxu0
        %v11545 = vadd.f32 %v11352, %v11544
        %v11546 = vpop.f32.mrf.mxu0
        %v11547 = vadd.f32 %v11354, %v11546
        %11548 = vdwg.mxu0
        %11549 = vmatpush.bf16.msra.mxu0 %v11467
        %11550 = vmatpush.bf16.msra.mxu0 %v11466
        %11551 = vmatpush.bf16.msra.mxu0 %v11465
        %11552 = vmatpush.bf16.msra.mxu0 %v11464
        %11553 = vmatpush.bf16.msra.mxu0 %v11463
        %11554 = vmatpush.bf16.msra.mxu0 %v11462
        %11555 = vmatpush.bf16.msra.mxu0 %v11461
        %11556 = vmatpush.bf16.msra.mxu0 %v11460
        %11557 = vmatmul.bf16.gmra.mxu0 %v10579
        %v11558 = vpop.f32.mrf.mxu0
        %v11559 = vadd.f32 %v11510, %v11558
        %v11560 = vpop.f32.mrf.mxu0
        %v11561 = vadd.f32 %v11512, %v11560
        %11562 = vmatmul.bf16.gmra.mxu0 %v10622
        %v11563 = vpop.f32.mrf.mxu0
        %v11564 = vadd.f32 %v11515, %v11563
        %v11565 = vpop.f32.mrf.mxu0
        %v11566 = vadd.f32 %v11517, %v11565
        %11567 = vmatmul.bf16.gmra.mxu0 %v10665
        %v11568 = vpop.f32.mrf.mxu0
        %v11569 = vadd.f32 %v11520, %v11568
        %v11570 = vpop.f32.mrf.mxu0
        %v11571 = vadd.f32 %v11522, %v11570
        %11572 = vmatmul.bf16.gmra.mxu0 %v10708
        %v11573 = vpop.f32.mrf.mxu0
        %v11574 = vadd.f32 %v11525, %v11573
        %v11575 = vpop.f32.mrf.mxu0
        %v11576 = vadd.f32 %v11527, %v11575
        %11577 = vmatmul.bf16.gmra.mxu0 %v10751
        %v11578 = vpop.f32.mrf.mxu0
        %v11579 = vadd.f32 %v11530, %v11578
        %v11580 = vpop.f32.mrf.mxu0
        %v11581 = vadd.f32 %v11532, %v11580
        %11582 = vmatmul.bf16.gmra.mxu0 %v10794
        %v11583 = vpop.f32.mrf.mxu0
        %v11584 = vadd.f32 %v11535, %v11583
        %v11585 = vpop.f32.mrf.mxu0
        %v11586 = vadd.f32 %v11537, %v11585
        %11587 = vmatmul.bf16.gmra.mxu0 %v10837
        %v11588 = vpop.f32.mrf.mxu0
        %v11589 = vadd.f32 %v11540, %v11588
        %v11590 = vpop.f32.mrf.mxu0
        %v11591 = vadd.f32 %v11542, %v11590
        %11592 = vmatmul.bf16.gmra.mxu0 %v10880
        %v11593 = vpop.f32.mrf.mxu0
        %v11594 = vadd.f32 %v11545, %v11593
        %v11595 = vpop.f32.mrf.mxu0
        %v11596 = vadd.f32 %v11547, %v11595
        %11597 = vdwg.mxu0
        %11598 = vmatpush.bf16.msra.mxu0 %v11475
        %11599 = vmatpush.bf16.msra.mxu0 %v11474
        %11600 = vmatpush.bf16.msra.mxu0 %v11473
        %11601 = vmatpush.bf16.msra.mxu0 %v11472
        %11602 = vmatpush.bf16.msra.mxu0 %v11471
        %11603 = vmatpush.bf16.msra.mxu0 %v11470
        %11604 = vmatpush.bf16.msra.mxu0 %v11469
        %11605 = vmatpush.bf16.msra.mxu0 %v11468
        %11606 = vmatmul.bf16.gmra.mxu0 %v10596
        %v11607 = vpop.f32.mrf.mxu0
        %v11608 = vadd.f32 %v11559, %v11607
        %v11609 = vpop.f32.mrf.mxu0
        %v11610 = vadd.f32 %v11561, %v11609
        %11611 = vmatmul.bf16.gmra.mxu0 %v10639
        %v11612 = vpop.f32.mrf.mxu0
        %v11613 = vadd.f32 %v11564, %v11612
        %v11614 = vpop.f32.mrf.mxu0
        %v11615 = vadd.f32 %v11566, %v11614
        %11616 = vmatmul.bf16.gmra.mxu0 %v10682
        %v11617 = vpop.f32.mrf.mxu0
        %v11618 = vadd.f32 %v11569, %v11617
        %v11619 = vpop.f32.mrf.mxu0
        %v11620 = vadd.f32 %v11571, %v11619
        %11621 = vmatmul.bf16.gmra.mxu0 %v10725
        %v11622 = vpop.f32.mrf.mxu0
        %v11623 = vadd.f32 %v11574, %v11622
        %v11624 = vpop.f32.mrf.mxu0
        %v11625 = vadd.f32 %v11576, %v11624
        %11626 = vmatmul.bf16.gmra.mxu0 %v10768
        %v11627 = vpop.f32.mrf.mxu0
        %v11628 = vadd.f32 %v11579, %v11627
        %v11629 = vpop.f32.mrf.mxu0
        %v11630 = vadd.f32 %v11581, %v11629
        %11631 = vmatmul.bf16.gmra.mxu0 %v10811
        %v11632 = vpop.f32.mrf.mxu0
        %v11633 = vadd.f32 %v11584, %v11632
        %v11634 = vpop.f32.mrf.mxu0
        %v11635 = vadd.f32 %v11586, %v11634
        %11636 = vmatmul.bf16.gmra.mxu0 %v10854
        %v11637 = vpop.f32.mrf.mxu0
        %v11638 = vadd.f32 %v11589, %v11637
        %v11639 = vpop.f32.mrf.mxu0
        %v11640 = vadd.f32 %v11591, %v11639
        %11641 = vmatmul.bf16.gmra.mxu0 %v10897
        %v11642 = vpop.f32.mrf.mxu0
        %v11643 = vadd.f32 %v11594, %v11642
        %v11644 = vpop.f32.mrf.mxu0
        %v11645 = vadd.f32 %v11596, %v11644
        %11646 = vdwg.mxu0
        %v11648 = vshrl.u32 %v10402, 16
        %v11650 = vrot.slane %v11648, 3
        %v11651 = vshll.u32 %v10402, 16
        %v11653 = vrot.slane %v11651, 4
        %v11654 = vor.u32 %v11650, %v11653
        %v11656 = vshrl.u32 %v10403, 16
        %v11658 = vrot.slane %v11656, 3
        %v11659 = vshll.u32 %v10403, 16
        %v11661 = vrot.slane %v11659, 4
        %v11662 = vor.u32 %v11658, %v11661
        %v11663 = vsel %vm859, %v11654, %v11662
        %v11665 = vshrl.u32 %v10493, 16
        %v11667 = vrot.slane %v11665, 3
        %v11668 = vshll.u32 %v10493, 16
        %v11670 = vrot.slane %v11668, 4
        %v11671 = vor.u32 %v11667, %v11670
        %v11672 = vsel %vm859, %v11671, %v11671
        %v11674 = vshrl.u32 %v10551, 16
        %v11676 = vrot.slane %v11674, 3
        %v11677 = vshll.u32 %v10551, 16
        %v11679 = vrot.slane %v11677, 4
        %v11680 = vor.u32 %v11676, %v11679
        %v11682 = vshrl.u32 %v10553, 16
        %v11684 = vrot.slane %v11682, 3
        %v11685 = vshll.u32 %v10553, 16
        %v11687 = vrot.slane %v11685, 4
        %v11688 = vor.u32 %v11684, %v11687
        %v11689 = vsel %vm859, %v11680, %v11688
        %s11693 = scalar_lea.vmem %s3, 384
        %v11694 = vld [vmem:[%s11693] sm:$0xf]
        %v11695 = vld [vmem:[%s11693 + $0x4] sm:$0xf]
        %v11696 = vld [vmem:[%s11693 + $0x8] sm:$0xf]
        %v11697 = vld [vmem:[%s11693 + $0xc] sm:$0xf]
        %v11698 = vld [vmem:[%s11693 + $0x10] sm:$0xf]
        %v11699 = vld [vmem:[%s11693 + $0x14] sm:$0xf]
        %v11700 = vld [vmem:[%s11693 + $0x18] sm:$0xf]
        %v11701 = vld [vmem:[%s11693 + $0x1c] sm:$0xf]
        %v11702 = vld [vmem:[%s11693 + $0x20] sm:$0xf]
        %v11703 = vld [vmem:[%s11693 + $0x24] sm:$0xf]
        %v11704 = vld [vmem:[%s11693 + $0x28] sm:$0xf]
        %v11705 = vld [vmem:[%s11693 + $0x2c] sm:$0xf]
        %v11706 = vld [vmem:[%s11693 + $0x30] sm:$0xf]
        %v11707 = vld [vmem:[%s11693 + $0x34] sm:$0xf]
        %v11708 = vld [vmem:[%s11693 + $0x38] sm:$0xf]
        %v11709 = vld [vmem:[%s11693 + $0x3c] sm:$0xf]
        %v11710 = vld [vmem:[%s11693 + $0x40] sm:$0xf]
        %v11711 = vld [vmem:[%s11693 + $0x44] sm:$0xf]
        %v11712 = vld [vmem:[%s11693 + $0x48] sm:$0xf]
        %v11713 = vld [vmem:[%s11693 + $0x4c] sm:$0xf]
        %v11714 = vld [vmem:[%s11693 + $0x50] sm:$0xf]
        %v11715 = vld [vmem:[%s11693 + $0x54] sm:$0xf]
        %v11716 = vld [vmem:[%s11693 + $0x58] sm:$0xf]
        %v11717 = vld [vmem:[%s11693 + $0x5c] sm:$0xf]
        %v11718 = vld [vmem:[%s11693 + $0x60] sm:$0xf]
        %v11719 = vld [vmem:[%s11693 + $0x64] sm:$0xf]
        %v11720 = vld [vmem:[%s11693 + $0x68] sm:$0xf]
        %v11721 = vld [vmem:[%s11693 + $0x6c] sm:$0xf]
        %v11722 = vld [vmem:[%s11693 + $0x70] sm:$0xf]
        %v11723 = vld [vmem:[%s11693 + $0x74] sm:$0xf]
        %v11724 = vld [vmem:[%s11693 + $0x78] sm:$0xf]
        %v11725 = vld [vmem:[%s11693 + $0x7c] sm:$0xf]
        %v11726 = vld [vmem:[%s11693 + $0x80] sm:$0xf]
        %v11727 = vld [vmem:[%s11693 + $0x84] sm:$0xf]
        %v11728 = vld [vmem:[%s11693 + $0x88] sm:$0xf]
        %v11729 = vld [vmem:[%s11693 + $0x8c] sm:$0xf]
        %v11730 = vld [vmem:[%s11693 + $0x90] sm:$0xf]
        %v11731 = vld [vmem:[%s11693 + $0x94] sm:$0xf]
        %v11732 = vld [vmem:[%s11693 + $0x98] sm:$0xf]
        %v11733 = vld [vmem:[%s11693 + $0x9c] sm:$0xf]
        %v11734 = vld [vmem:[%s11693 + $0xa0] sm:$0xf]
        %v11735 = vld [vmem:[%s11693 + $0xa4] sm:$0xf]
        %v11736 = vld [vmem:[%s11693 + $0xa8] sm:$0xf]
        %v11737 = vld [vmem:[%s11693 + $0xac] sm:$0xf]
        %v11738 = vld [vmem:[%s11693 + $0xb0] sm:$0xf]
        %v11739 = vld [vmem:[%s11693 + $0xb4] sm:$0xf]
        %v11740 = vld [vmem:[%s11693 + $0xb8] sm:$0xf]
        %v11741 = vld [vmem:[%s11693 + $0xbc] sm:$0xf]
        %v11790 = vunpack.c.l.b16 %v11694
        %v11791 = vunpack.c.l.b16 %v11695
        %v11792 = vunpack.c.l.b16 %v11696
        %v11793 = vunpack.c.l.b16 %v11697
        %v11794 = vunpack.c.l.b16 %v11698
        %v11795 = vunpack.c.l.b16 %v11699
        %v11796 = vunpack.c.l.b16 %v11700
        %v11797 = vunpack.c.l.b16 %v11701
        %v11798 = vunpack.c.l.b16 %v11702
        %v11799 = vunpack.c.l.b16 %v11703
        %v11800 = vunpack.c.l.b16 %v11704
        %v11801 = vunpack.c.l.b16 %v11705
        %v11802 = vunpack.c.l.b16 %v11706
        %v11803 = vunpack.c.l.b16 %v11707
        %v11804 = vunpack.c.l.b16 %v11708
        %v11805 = vunpack.c.l.b16 %v11709
        %v11806 = vunpack.c.l.b16 %v11710
        %v11807 = vunpack.c.l.b16 %v11711
        %v11808 = vunpack.c.l.b16 %v11712
        %v11809 = vunpack.c.l.b16 %v11713
        %v11810 = vunpack.c.l.b16 %v11714
        %v11811 = vunpack.c.l.b16 %v11715
        %v11812 = vunpack.c.l.b16 %v11716
        %v11813 = vunpack.c.l.b16 %v11717
        %v11814 = vunpack.c.l.b16 %v11718
        %v11815 = vunpack.c.l.b16 %v11719
        %v11816 = vunpack.c.l.b16 %v11720
        %v11817 = vunpack.c.l.b16 %v11721
        %v11818 = vunpack.c.l.b16 %v11722
        %v11819 = vunpack.c.l.b16 %v11723
        %v11820 = vunpack.c.l.b16 %v11724
        %v11821 = vunpack.c.l.b16 %v11725
        %v11822 = vunpack.c.l.b16 %v11726
        %v11823 = vunpack.c.l.b16 %v11727
        %v11824 = vunpack.c.l.b16 %v11728
        %v11825 = vunpack.c.l.b16 %v11729
        %v11826 = vunpack.c.l.b16 %v11730
        %v11827 = vunpack.c.l.b16 %v11731
        %v11828 = vunpack.c.l.b16 %v11732
        %v11829 = vunpack.c.l.b16 %v11733
        %v11830 = vunpack.c.l.b16 %v11734
        %v11831 = vunpack.c.l.b16 %v11735
        %v11832 = vunpack.c.l.b16 %v11736
        %v11833 = vunpack.c.l.b16 %v11737
        %v11834 = vunpack.c.l.b16 %v11738
        %v11835 = vunpack.c.l.b16 %v11739
        %v11836 = vunpack.c.l.b16 %v11740
        %v11837 = vunpack.c.l.b16 %v11741
        %v11838 = vpack.c.b16 %v11791, %v11790
        %v11839 = vpack.c.b16 %v11793, %v11792
        %v11840 = vpack.c.b16 %v11795, %v11794
        %v11841 = vpack.c.b16 %v11797, %v11796
        %v11842 = vpack.c.b16 %v11799, %v11798
        %v11843 = vpack.c.b16 %v11801, %v11800
        %v11844 = vpack.c.b16 %v11803, %v11802
        %v11845 = vpack.c.b16 %v11805, %v11804
        %v11846 = vpack.c.b16 %v11807, %v11806
        %v11847 = vpack.c.b16 %v11809, %v11808
        %v11848 = vpack.c.b16 %v11811, %v11810
        %v11849 = vpack.c.b16 %v11813, %v11812
        %v11850 = vpack.c.b16 %v11815, %v11814
        %v11851 = vpack.c.b16 %v11817, %v11816
        %v11852 = vpack.c.b16 %v11819, %v11818
        %v11853 = vpack.c.b16 %v11821, %v11820
        %v11854 = vpack.c.b16 %v11823, %v11822
        %v11855 = vpack.c.b16 %v11825, %v11824
        %v11856 = vpack.c.b16 %v11827, %v11826
        %v11857 = vpack.c.b16 %v11829, %v11828
        %v11858 = vpack.c.b16 %v11831, %v11830
        %v11859 = vpack.c.b16 %v11833, %v11832
        %v11860 = vpack.c.b16 %v11835, %v11834
        %v11861 = vpack.c.b16 %v11837, %v11836
        %11886 = vmatpush.bf16.msra.mxu0 %v11845
        %11887 = vmatpush.bf16.msra.mxu0 %v11844
        %11888 = vmatpush.bf16.msra.mxu0 %v11843
        %11889 = vmatpush.bf16.msra.mxu0 %v11842
        %11890 = vmatpush.bf16.msra.mxu0 %v11841
        %11891 = vmatpush.bf16.msra.mxu0 %v11840
        %11892 = vmatpush.bf16.msra.mxu0 %v11839
        %11893 = vmatpush.bf16.msra.mxu0 %v11838
        %11894 = vmatmul.bf16.gmra.mxu0 %v10656
        %v11895 = vpop.f32.mrf.mxu0
        %v11896 = vadd.f32 0.0, %v11895
        %v11897 = vpop.f32.mrf.mxu0
        %v11898 = vadd.f32 0.0, %v11897
        %11899 = vmatmul.bf16.gmra.mxu0 %v10699
        %v11900 = vpop.f32.mrf.mxu0
        %v11901 = vadd.f32 0.0, %v11900
        %v11902 = vpop.f32.mrf.mxu0
        %v11903 = vadd.f32 0.0, %v11902
        %11904 = vmatmul.bf16.gmra.mxu0 %v10742
        %v11905 = vpop.f32.mrf.mxu0
        %v11906 = vadd.f32 0.0, %v11905
        %v11907 = vpop.f32.mrf.mxu0
        %v11908 = vadd.f32 0.0, %v11907
        %11909 = vmatmul.bf16.gmra.mxu0 %v10785
        %v11910 = vpop.f32.mrf.mxu0
        %v11911 = vadd.f32 0.0, %v11910
        %v11912 = vpop.f32.mrf.mxu0
        %v11913 = vadd.f32 0.0, %v11912
        %11914 = vmatmul.bf16.gmra.mxu0 %v10828
        %v11915 = vpop.f32.mrf.mxu0
        %v11916 = vadd.f32 0.0, %v11915
        %v11917 = vpop.f32.mrf.mxu0
        %v11918 = vadd.f32 0.0, %v11917
        %11919 = vmatmul.bf16.gmra.mxu0 %v10871
        %v11920 = vpop.f32.mrf.mxu0
        %v11921 = vadd.f32 0.0, %v11920
        %v11922 = vpop.f32.mrf.mxu0
        %v11923 = vadd.f32 0.0, %v11922
        %11924 = vmatmul.bf16.gmra.mxu0 %v10986
        %v11925 = vpop.f32.mrf.mxu0
        %v11926 = vadd.f32 0.0, %v11925
        %v11927 = vpop.f32.mrf.mxu0
        %v11928 = vadd.f32 0.0, %v11927
        %11929 = vmatmul.bf16.gmra.mxu0 %v11663
        %v11930 = vpop.f32.mrf.mxu0
        %v11931 = vadd.f32 0.0, %v11930
        %v11932 = vpop.f32.mrf.mxu0
        %v11933 = vadd.f32 0.0, %v11932
        %11934 = vdwg.mxu0
        %11935 = vmatpush.bf16.msra.mxu0 %v11853
        %11936 = vmatpush.bf16.msra.mxu0 %v11852
        %11937 = vmatpush.bf16.msra.mxu0 %v11851
        %11938 = vmatpush.bf16.msra.mxu0 %v11850
        %11939 = vmatpush.bf16.msra.mxu0 %v11849
        %11940 = vmatpush.bf16.msra.mxu0 %v11848
        %11941 = vmatpush.bf16.msra.mxu0 %v11847
        %11942 = vmatpush.bf16.msra.mxu0 %v11846
        %11943 = vmatmul.bf16.gmra.mxu0 %v10665
        %v11944 = vpop.f32.mrf.mxu0
        %v11945 = vadd.f32 %v11896, %v11944
        %v11946 = vpop.f32.mrf.mxu0
        %v11947 = vadd.f32 %v11898, %v11946
        %11948 = vmatmul.bf16.gmra.mxu0 %v10708
        %v11949 = vpop.f32.mrf.mxu0
        %v11950 = vadd.f32 %v11901, %v11949
        %v11951 = vpop.f32.mrf.mxu0
        %v11952 = vadd.f32 %v11903, %v11951
        %11953 = vmatmul.bf16.gmra.mxu0 %v10751
        %v11954 = vpop.f32.mrf.mxu0
        %v11955 = vadd.f32 %v11906, %v11954
        %v11956 = vpop.f32.mrf.mxu0
        %v11957 = vadd.f32 %v11908, %v11956
        %11958 = vmatmul.bf16.gmra.mxu0 %v10794
        %v11959 = vpop.f32.mrf.mxu0
        %v11960 = vadd.f32 %v11911, %v11959
        %v11961 = vpop.f32.mrf.mxu0
        %v11962 = vadd.f32 %v11913, %v11961
        %11963 = vmatmul.bf16.gmra.mxu0 %v10837
        %v11964 = vpop.f32.mrf.mxu0
        %v11965 = vadd.f32 %v11916, %v11964
        %v11966 = vpop.f32.mrf.mxu0
        %v11967 = vadd.f32 %v11918, %v11966
        %11968 = vmatmul.bf16.gmra.mxu0 %v10880
        %v11969 = vpop.f32.mrf.mxu0
        %v11970 = vadd.f32 %v11921, %v11969
        %v11971 = vpop.f32.mrf.mxu0
        %v11972 = vadd.f32 %v11923, %v11971
        %11973 = vmatmul.bf16.gmra.mxu0 %v10995
        %v11974 = vpop.f32.mrf.mxu0
        %v11975 = vadd.f32 %v11926, %v11974
        %v11976 = vpop.f32.mrf.mxu0
        %v11977 = vadd.f32 %v11928, %v11976
        %11978 = vmatmul.bf16.gmra.mxu0 %v11672
        %v11979 = vpop.f32.mrf.mxu0
        %v11980 = vadd.f32 %v11931, %v11979
        %v11981 = vpop.f32.mrf.mxu0
        %v11982 = vadd.f32 %v11933, %v11981
        %11983 = vdwg.mxu0
        %11984 = vmatpush.bf16.msra.mxu0 %v11861
        %11985 = vmatpush.bf16.msra.mxu0 %v11860
        %11986 = vmatpush.bf16.msra.mxu0 %v11859
        %11987 = vmatpush.bf16.msra.mxu0 %v11858
        %11988 = vmatpush.bf16.msra.mxu0 %v11857
        %11989 = vmatpush.bf16.msra.mxu0 %v11856
        %11990 = vmatpush.bf16.msra.mxu0 %v11855
        %11991 = vmatpush.bf16.msra.mxu0 %v11854
        %11992 = vmatmul.bf16.gmra.mxu0 %v10682
        %v11993 = vpop.f32.mrf.mxu0
        %v11994 = vadd.f32 %v11945, %v11993
        %v11995 = vpop.f32.mrf.mxu0
        %v11996 = vadd.f32 %v11947, %v11995
        %11997 = vmatmul.bf16.gmra.mxu0 %v10725
        %v11998 = vpop.f32.mrf.mxu0
        %v11999 = vadd.f32 %v11950, %v11998
        %v12000 = vpop.f32.mrf.mxu0
        %v12001 = vadd.f32 %v11952, %v12000
        %12002 = vmatmul.bf16.gmra.mxu0 %v10768
        %v12003 = vpop.f32.mrf.mxu0
        %v12004 = vadd.f32 %v11955, %v12003
        %v12005 = vpop.f32.mrf.mxu0
        %v12006 = vadd.f32 %v11957, %v12005
        %12007 = vmatmul.bf16.gmra.mxu0 %v10811
        %v12008 = vpop.f32.mrf.mxu0
        %v12009 = vadd.f32 %v11960, %v12008
        %v12010 = vpop.f32.mrf.mxu0
        %v12011 = vadd.f32 %v11962, %v12010
        %12012 = vmatmul.bf16.gmra.mxu0 %v10854
        %v12013 = vpop.f32.mrf.mxu0
        %v12014 = vadd.f32 %v11965, %v12013
        %v12015 = vpop.f32.mrf.mxu0
        %v12016 = vadd.f32 %v11967, %v12015
        %12017 = vmatmul.bf16.gmra.mxu0 %v10897
        %v12018 = vpop.f32.mrf.mxu0
        %v12019 = vadd.f32 %v11970, %v12018
        %v12020 = vpop.f32.mrf.mxu0
        %v12021 = vadd.f32 %v11972, %v12020
        %12022 = vmatmul.bf16.gmra.mxu0 %v11012
        %v12023 = vpop.f32.mrf.mxu0
        %v12024 = vadd.f32 %v11975, %v12023
        %v12025 = vpop.f32.mrf.mxu0
        %v12026 = vadd.f32 %v11977, %v12025
        %12027 = vmatmul.bf16.gmra.mxu0 %v11689
        %v12028 = vpop.f32.mrf.mxu0
        %v12029 = vadd.f32 %v11980, %v12028
        %v12030 = vpop.f32.mrf.mxu0
        %v12031 = vadd.f32 %v11982, %v12030
        %12032 = vdwg.mxu0
        %v12033 = vadd.f32 %v11608, %v11994
        %v12034 = vadd.f32 %v11610, %v11996
        %v12035 = vadd.f32 %v11613, %v11999
        %v12036 = vadd.f32 %v11615, %v12001
        %v12037 = vadd.f32 %v11618, %v12004
        %v12038 = vadd.f32 %v11620, %v12006
        %v12039 = vadd.f32 %v11623, %v12009
        %v12040 = vadd.f32 %v11625, %v12011
        %v12041 = vadd.f32 %v11628, %v12014
        %v12042 = vadd.f32 %v11630, %v12016
        %v12043 = vadd.f32 %v11633, %v12019
        %v12044 = vadd.f32 %v11635, %v12021
        %v12045 = vadd.f32 %v11638, %v12024
        %v12046 = vadd.f32 %v11640, %v12026
        %v12047 = vadd.f32 %v11643, %v12029
        %v12048 = vadd.f32 %v11645, %v12031
        %v12049 = vld [vmem:[#allocation9] sm:$0x1]
        %v12051 = vperm.slane %v12049, 0
        %v12053 = vadd.f32 %v12033, %v12051
        %v12054 = vadd.f32 %v12034, %v12051
        %v12055 = vadd.f32 %v12035, %v12051
        %v12056 = vadd.f32 %v12036, %v12051
        %v12057 = vadd.f32 %v12037, %v12051
        %v12058 = vadd.f32 %v12038, %v12051
        %v12059 = vadd.f32 %v12039, %v12051
        %v12060 = vadd.f32 %v12040, %v12051
        %v12061 = vadd.f32 %v12041, %v12051
        %v12062 = vadd.f32 %v12042, %v12051
        %v12063 = vadd.f32 %v12043, %v12051
        %v12064 = vadd.f32 %v12044, %v12051
        %v12065 = vadd.f32 %v12045, %v12051
        %v12066 = vadd.f32 %v12046, %v12051
        %v12067 = vadd.f32 %v12047, %v12051
        %v12068 = vadd.f32 %v12048, %v12051
        %v12069 = vlaneseq
        %v12070 = vand.u32 %v12069, 127
        %vm12071 = vcmp.eq.s32.totalorder %v12070, 0
        %v12072 = vxor.u32 %v12053, 2147483648
        %v12073 = vxor.u32 %v12054, 2147483648
        %v12074 = vxor.u32 %v12055, 2147483648
        %v12075 = vxor.u32 %v12056, 2147483648
        %v12076 = vxor.u32 %v12057, 2147483648
        %v12077 = vxor.u32 %v12058, 2147483648
        %v12078 = vxor.u32 %v12059, 2147483648
        %v12079 = vxor.u32 %v12060, 2147483648
        %v12080 = vxor.u32 %v12061, 2147483648
        %v12081 = vxor.u32 %v12062, 2147483648
        %v12082 = vxor.u32 %v12063, 2147483648
        %v12083 = vxor.u32 %v12064, 2147483648
        %v12084 = vxor.u32 %v12065, 2147483648
        %v12085 = vxor.u32 %v12066, 2147483648
        %v12086 = vxor.u32 %v12067, 2147483648
        %v12087 = vxor.u32 %v12068, 2147483648
        %v12088 = vmul.f32 %v12072, 1.442695
        %v12089 = vpow.pop %v12088
        %v12090 = vmul.f32 %v12073, 1.442695
        %v12091 = vpow.pop %v12090
        %v12092 = vmul.f32 %v12074, 1.442695
        %v12093 = vpow.pop %v12092
        %v12094 = vmul.f32 %v12075, 1.442695
        %v12095 = vpow.pop %v12094
        %v12096 = vmul.f32 %v12076, 1.442695
        %v12097 = vpow.pop %v12096
        %v12098 = vmul.f32 %v12077, 1.442695
        %v12099 = vpow.pop %v12098
        %v12100 = vmul.f32 %v12078, 1.442695
        %v12101 = vpow.pop %v12100
        %v12102 = vmul.f32 %v12079, 1.442695
        %v12103 = vpow.pop %v12102
        %v12104 = vmul.f32 %v12080, 1.442695
        %v12105 = vpow.pop %v12104
        %v12106 = vmul.f32 %v12081, 1.442695
        %v12107 = vpow.pop %v12106
        %v12108 = vmul.f32 %v12082, 1.442695
        %v12109 = vpow.pop %v12108
        %v12110 = vmul.f32 %v12083, 1.442695
        %v12111 = vpow.pop %v12110
        %v12112 = vmul.f32 %v12084, 1.442695
        %v12113 = vpow.pop %v12112
        %v12114 = vmul.f32 %v12085, 1.442695
        %v12115 = vpow.pop %v12114
        %v12116 = vmul.f32 %v12086, 1.442695
        %v12117 = vpow.pop %v12116
        %v12118 = vmul.f32 %v12087, 1.442695
        %v12119 = vpow.pop %v12118
        %v12120 = vadd.f32 %v12089, 1.0
        %v12121 = vadd.f32 %v12091, 1.0
        %v12122 = vadd.f32 %v12093, 1.0
        %v12123 = vadd.f32 %v12095, 1.0
        %v12124 = vadd.f32 %v12097, 1.0
        %v12125 = vadd.f32 %v12099, 1.0
        %v12126 = vadd.f32 %v12101, 1.0
        %v12127 = vadd.f32 %v12103, 1.0
        %v12128 = vadd.f32 %v12105, 1.0
        %v12129 = vadd.f32 %v12107, 1.0
        %v12130 = vadd.f32 %v12109, 1.0
        %v12131 = vadd.f32 %v12111, 1.0
        %v12132 = vadd.f32 %v12113, 1.0
        %v12133 = vadd.f32 %v12115, 1.0
        %v12134 = vadd.f32 %v12117, 1.0
        %v12135 = vadd.f32 %v12119, 1.0
        %v12136 = vrcp.pop %v12120
        %v12137 = vmul.f32 %v12120, %v12136
        %v12138 = vsub.f32 1.0, %v12137
        %v12139 = vmul.f32 %v12136, %v12138
        %v12140 = vadd.f32 %v12136, %v12139
        %vm12141 = vweird.f32 %v12120
        %vm12142 = vweird.f32 %v12136
        %vm12143 = vmor %vm12141, %vm12142
        %v12144 = vsel %vm12143, %v12136, %v12140
        %v12145 = vand.u32 2147483647, %v12120
        %vm12146 = vcmp.eq.f32.partialorder %v12145, 8.507059e+37
        %v12147 = vand.u32 %v12120, 2147483648
        %v12148 = vor.u32 1.1754944e-38, %v12147
        %v12149 = vsel %vm12146, %v12148, %v12144
        %v12150 = vmul.f32 1.0, %v12149
        %v12151 = vrcp.pop %v12121
        %v12152 = vmul.f32 %v12121, %v12151
        %v12153 = vsub.f32 1.0, %v12152
        %v12154 = vmul.f32 %v12151, %v12153
        %v12155 = vadd.f32 %v12151, %v12154
        %vm12156 = vweird.f32 %v12121
        %vm12157 = vweird.f32 %v12151
        %vm12158 = vmor %vm12156, %vm12157
        %v12159 = vsel %vm12158, %v12151, %v12155
        %v12160 = vand.u32 2147483647, %v12121
        %vm12161 = vcmp.eq.f32.partialorder %v12160, 8.507059e+37
        %v12162 = vand.u32 %v12121, 2147483648
        %v12163 = vor.u32 1.1754944e-38, %v12162
        %v12164 = vsel %vm12161, %v12163, %v12159
        %v12165 = vmul.f32 1.0, %v12164
        %v12166 = vrcp.pop %v12122
        %v12167 = vmul.f32 %v12122, %v12166
        %v12168 = vsub.f32 1.0, %v12167
        %v12169 = vmul.f32 %v12166, %v12168
        %v12170 = vadd.f32 %v12166, %v12169
        %vm12171 = vweird.f32 %v12122
        %vm12172 = vweird.f32 %v12166
        %vm12173 = vmor %vm12171, %vm12172
        %v12174 = vsel %vm12173, %v12166, %v12170
        %v12175 = vand.u32 2147483647, %v12122
        %vm12176 = vcmp.eq.f32.partialorder %v12175, 8.507059e+37
        %v12177 = vand.u32 %v12122, 2147483648
        %v12178 = vor.u32 1.1754944e-38, %v12177
        %v12179 = vsel %vm12176, %v12178, %v12174
        %v12180 = vmul.f32 1.0, %v12179
        %v12181 = vrcp.pop %v12123
        %v12182 = vmul.f32 %v12123, %v12181
        %v12183 = vsub.f32 1.0, %v12182
        %v12184 = vmul.f32 %v12181, %v12183
        %v12185 = vadd.f32 %v12181, %v12184
        %vm12186 = vweird.f32 %v12123
        %vm12187 = vweird.f32 %v12181
        %vm12188 = vmor %vm12186, %vm12187
        %v12189 = vsel %vm12188, %v12181, %v12185
        %v12190 = vand.u32 2147483647, %v12123
        %vm12191 = vcmp.eq.f32.partialorder %v12190, 8.507059e+37
        %v12192 = vand.u32 %v12123, 2147483648
        %v12193 = vor.u32 1.1754944e-38, %v12192
        %v12194 = vsel %vm12191, %v12193, %v12189
        %v12195 = vmul.f32 1.0, %v12194
        %v12196 = vrcp.pop %v12124
        %v12197 = vmul.f32 %v12124, %v12196
        %v12198 = vsub.f32 1.0, %v12197
        %v12199 = vmul.f32 %v12196, %v12198
        %v12200 = vadd.f32 %v12196, %v12199
        %vm12201 = vweird.f32 %v12124
        %vm12202 = vweird.f32 %v12196
        %vm12203 = vmor %vm12201, %vm12202
        %v12204 = vsel %vm12203, %v12196, %v12200
        %v12205 = vand.u32 2147483647, %v12124
        %vm12206 = vcmp.eq.f32.partialorder %v12205, 8.507059e+37
        %v12207 = vand.u32 %v12124, 2147483648
        %v12208 = vor.u32 1.1754944e-38, %v12207
        %v12209 = vsel %vm12206, %v12208, %v12204
        %v12210 = vmul.f32 1.0, %v12209
        %v12211 = vrcp.pop %v12125
        %v12212 = vmul.f32 %v12125, %v12211
        %v12213 = vsub.f32 1.0, %v12212
        %v12214 = vmul.f32 %v12211, %v12213
        %v12215 = vadd.f32 %v12211, %v12214
        %vm12216 = vweird.f32 %v12125
        %vm12217 = vweird.f32 %v12211
        %vm12218 = vmor %vm12216, %vm12217
        %v12219 = vsel %vm12218, %v12211, %v12215
        %v12220 = vand.u32 2147483647, %v12125
        %vm12221 = vcmp.eq.f32.partialorder %v12220, 8.507059e+37
        %v12222 = vand.u32 %v12125, 2147483648
        %v12223 = vor.u32 1.1754944e-38, %v12222
        %v12224 = vsel %vm12221, %v12223, %v12219
        %v12225 = vmul.f32 1.0, %v12224
        %v12226 = vrcp.pop %v12126
        %v12227 = vmul.f32 %v12126, %v12226
        %v12228 = vsub.f32 1.0, %v12227
        %v12229 = vmul.f32 %v12226, %v12228
        %v12230 = vadd.f32 %v12226, %v12229
        %vm12231 = vweird.f32 %v12126
        %vm12232 = vweird.f32 %v12226
        %vm12233 = vmor %vm12231, %vm12232
        %v12234 = vsel %vm12233, %v12226, %v12230
        %v12235 = vand.u32 2147483647, %v12126
        %vm12236 = vcmp.eq.f32.partialorder %v12235, 8.507059e+37
        %v12237 = vand.u32 %v12126, 2147483648
        %v12238 = vor.u32 1.1754944e-38, %v12237
        %v12239 = vsel %vm12236, %v12238, %v12234
        %v12240 = vmul.f32 1.0, %v12239
        %v12241 = vrcp.pop %v12127
        %v12242 = vmul.f32 %v12127, %v12241
        %v12243 = vsub.f32 1.0, %v12242
        %v12244 = vmul.f32 %v12241, %v12243
        %v12245 = vadd.f32 %v12241, %v12244
        %vm12246 = vweird.f32 %v12127
        %vm12247 = vweird.f32 %v12241
        %vm12248 = vmor %vm12246, %vm12247
        %v12249 = vsel %vm12248, %v12241, %v12245
        %v12250 = vand.u32 2147483647, %v12127
        %vm12251 = vcmp.eq.f32.partialorder %v12250, 8.507059e+37
        %v12252 = vand.u32 %v12127, 2147483648
        %v12253 = vor.u32 1.1754944e-38, %v12252
        %v12254 = vsel %vm12251, %v12253, %v12249
        %v12255 = vmul.f32 1.0, %v12254
        %v12256 = vrcp.pop %v12128
        %v12257 = vmul.f32 %v12128, %v12256
        %v12258 = vsub.f32 1.0, %v12257
        %v12259 = vmul.f32 %v12256, %v12258
        %v12260 = vadd.f32 %v12256, %v12259
        %vm12261 = vweird.f32 %v12128
        %vm12262 = vweird.f32 %v12256
        %vm12263 = vmor %vm12261, %vm12262
        %v12264 = vsel %vm12263, %v12256, %v12260
        %v12265 = vand.u32 2147483647, %v12128
        %vm12266 = vcmp.eq.f32.partialorder %v12265, 8.507059e+37
        %v12267 = vand.u32 %v12128, 2147483648
        %v12268 = vor.u32 1.1754944e-38, %v12267
        %v12269 = vsel %vm12266, %v12268, %v12264
        %v12270 = vmul.f32 1.0, %v12269
        %v12271 = vrcp.pop %v12129
        %v12272 = vmul.f32 %v12129, %v12271
        %v12273 = vsub.f32 1.0, %v12272
        %v12274 = vmul.f32 %v12271, %v12273
        %v12275 = vadd.f32 %v12271, %v12274
        %vm12276 = vweird.f32 %v12129
        %vm12277 = vweird.f32 %v12271
        %vm12278 = vmor %vm12276, %vm12277
        %v12279 = vsel %vm12278, %v12271, %v12275
        %v12280 = vand.u32 2147483647, %v12129
        %vm12281 = vcmp.eq.f32.partialorder %v12280, 8.507059e+37
        %v12282 = vand.u32 %v12129, 2147483648
        %v12283 = vor.u32 1.1754944e-38, %v12282
        %v12284 = vsel %vm12281, %v12283, %v12279
        %v12285 = vmul.f32 1.0, %v12284
        %v12286 = vrcp.pop %v12130
        %v12287 = vmul.f32 %v12130, %v12286
        %v12288 = vsub.f32 1.0, %v12287
        %v12289 = vmul.f32 %v12286, %v12288
        %v12290 = vadd.f32 %v12286, %v12289
        %vm12291 = vweird.f32 %v12130
        %vm12292 = vweird.f32 %v12286
        %vm12293 = vmor %vm12291, %vm12292
        %v12294 = vsel %vm12293, %v12286, %v12290
        %v12295 = vand.u32 2147483647, %v12130
        %vm12296 = vcmp.eq.f32.partialorder %v12295, 8.507059e+37
        %v12297 = vand.u32 %v12130, 2147483648
        %v12298 = vor.u32 1.1754944e-38, %v12297
        %v12299 = vsel %vm12296, %v12298, %v12294
        %v12300 = vmul.f32 1.0, %v12299
        %v12301 = vrcp.pop %v12131
        %v12302 = vmul.f32 %v12131, %v12301
        %v12303 = vsub.f32 1.0, %v12302
        %v12304 = vmul.f32 %v12301, %v12303
        %v12305 = vadd.f32 %v12301, %v12304
        %vm12306 = vweird.f32 %v12131
        %vm12307 = vweird.f32 %v12301
        %vm12308 = vmor %vm12306, %vm12307
        %v12309 = vsel %vm12308, %v12301, %v12305
        %v12310 = vand.u32 2147483647, %v12131
        %vm12311 = vcmp.eq.f32.partialorder %v12310, 8.507059e+37
        %v12312 = vand.u32 %v12131, 2147483648
        %v12313 = vor.u32 1.1754944e-38, %v12312
        %v12314 = vsel %vm12311, %v12313, %v12309
        %v12315 = vmul.f32 1.0, %v12314
        %v12316 = vrcp.pop %v12132
        %v12317 = vmul.f32 %v12132, %v12316
        %v12318 = vsub.f32 1.0, %v12317
        %v12319 = vmul.f32 %v12316, %v12318
        %v12320 = vadd.f32 %v12316, %v12319
        %vm12321 = vweird.f32 %v12132
        %vm12322 = vweird.f32 %v12316
        %vm12323 = vmor %vm12321, %vm12322
        %v12324 = vsel %vm12323, %v12316, %v12320
        %v12325 = vand.u32 2147483647, %v12132
        %vm12326 = vcmp.eq.f32.partialorder %v12325, 8.507059e+37
        %v12327 = vand.u32 %v12132, 2147483648
        %v12328 = vor.u32 1.1754944e-38, %v12327
        %v12329 = vsel %vm12326, %v12328, %v12324
        %v12330 = vmul.f32 1.0, %v12329
        %v12331 = vrcp.pop %v12133
        %v12332 = vmul.f32 %v12133, %v12331
        %v12333 = vsub.f32 1.0, %v12332
        %v12334 = vmul.f32 %v12331, %v12333
        %v12335 = vadd.f32 %v12331, %v12334
        %vm12336 = vweird.f32 %v12133
        %vm12337 = vweird.f32 %v12331
        %vm12338 = vmor %vm12336, %vm12337
        %v12339 = vsel %vm12338, %v12331, %v12335
        %v12340 = vand.u32 2147483647, %v12133
        %vm12341 = vcmp.eq.f32.partialorder %v12340, 8.507059e+37
        %v12342 = vand.u32 %v12133, 2147483648
        %v12343 = vor.u32 1.1754944e-38, %v12342
        %v12344 = vsel %vm12341, %v12343, %v12339
        %v12345 = vmul.f32 1.0, %v12344
        %v12346 = vrcp.pop %v12134
        %v12347 = vmul.f32 %v12134, %v12346
        %v12348 = vsub.f32 1.0, %v12347
        %v12349 = vmul.f32 %v12346, %v12348
        %v12350 = vadd.f32 %v12346, %v12349
        %vm12351 = vweird.f32 %v12134
        %vm12352 = vweird.f32 %v12346
        %vm12353 = vmor %vm12351, %vm12352
        %v12354 = vsel %vm12353, %v12346, %v12350
        %v12355 = vand.u32 2147483647, %v12134
        %vm12356 = vcmp.eq.f32.partialorder %v12355, 8.507059e+37
        %v12357 = vand.u32 %v12134, 2147483648
        %v12358 = vor.u32 1.1754944e-38, %v12357
        %v12359 = vsel %vm12356, %v12358, %v12354
        %v12360 = vmul.f32 1.0, %v12359
        %v12361 = vrcp.pop %v12135
        %v12362 = vmul.f32 %v12135, %v12361
        %v12363 = vsub.f32 1.0, %v12362
        %v12364 = vmul.f32 %v12361, %v12363
        %v12365 = vadd.f32 %v12361, %v12364
        %vm12366 = vweird.f32 %v12135
        %vm12367 = vweird.f32 %v12361
        %vm12368 = vmor %vm12366, %vm12367
        %v12369 = vsel %vm12368, %v12361, %v12365
        %v12370 = vand.u32 2147483647, %v12135
        %vm12371 = vcmp.eq.f32.partialorder %v12370, 8.507059e+37
        %v12372 = vand.u32 %v12135, 2147483648
        %v12373 = vor.u32 1.1754944e-38, %v12372
        %v12374 = vsel %vm12371, %v12373, %v12369
        %v12375 = vmul.f32 1.0, %v12374
        %v12376 = vsel %vm12071, %v12150, %v12053
        %v12377 = vsel %vm12071, %v12165, %v12054
        %v12378 = vsel %vm12071, %v12180, %v12055
        %v12379 = vsel %vm12071, %v12195, %v12056
        %v12380 = vsel %vm12071, %v12210, %v12057
        %v12381 = vsel %vm12071, %v12225, %v12058
        %v12382 = vsel %vm12071, %v12240, %v12059
        %v12383 = vsel %vm12071, %v12255, %v12060
        %v12384 = vsel %vm12071, %v12270, %v12061
        %v12385 = vsel %vm12071, %v12285, %v12062
        %v12386 = vsel %vm12071, %v12300, %v12063
        %v12387 = vsel %vm12071, %v12315, %v12064
        %v12388 = vsel %vm12071, %v12330, %v12065
        %v12389 = vsel %vm12071, %v12345, %v12066
        %v12390 = vsel %vm12071, %v12360, %v12067
        %v12391 = vsel %vm12071, %v12375, %v12068
        %vm12392 = vcmask 64512
        %12393 = vst.msk [vmem:[%s250] sm:$0xff] %vm12392, %v12376
        %12394 = vst.msk [vmem:[%s250 + $0x8] sm:$0xff] %vm12392, %v12377
        %12395 = vst.msk [vmem:[%s250 + $0x10] sm:$0xff] %vm12392, %v12378
        %12396 = vst.msk [vmem:[%s250 + $0x18] sm:$0xff] %vm12392, %v12379
        %12397 = vst.msk [vmem:[%s250 + $0x20] sm:$0xff] %vm12392, %v12380
        %12398 = vst.msk [vmem:[%s250 + $0x28] sm:$0xff] %vm12392, %v12381
        %12399 = vst.msk [vmem:[%s250 + $0x30] sm:$0xff] %vm12392, %v12382
        %12400 = vst.msk [vmem:[%s250 + $0x38] sm:$0xff] %vm12392, %v12383
        %12401 = vst.msk [vmem:[%s250 + $0x40] sm:$0xff] %vm12392, %v12384
        %12402 = vst.msk [vmem:[%s250 + $0x48] sm:$0xff] %vm12392, %v12385
        %12403 = vst.msk [vmem:[%s250 + $0x50] sm:$0xff] %vm12392, %v12386
        %12404 = vst.msk [vmem:[%s250 + $0x58] sm:$0xff] %vm12392, %v12387
        %12405 = vst.msk [vmem:[%s250 + $0x60] sm:$0xff] %vm12392, %v12388
        %12406 = vst.msk [vmem:[%s250 + $0x68] sm:$0xff] %vm12392, %v12389
        %12407 = vst.msk [vmem:[%s250 + $0x70] sm:$0xff] %vm12392, %v12390
        %12408 = vst.msk [vmem:[%s250 + $0x78] sm:$0xff] %vm12392, %v12391
        %s12409 = smul.u32 8, %s23
        %p12410 = scmp.lt.s32.totalorder %s22, 1
        %s12411 = scalar_select %p12410, %s22, 1
        %p12412 = scmp.lt.s32.totalorder %s12409, 15
        %s12413 = scalar_select %p12412, %s12409, 15
        %s12414 = smul.addr %s12413, 2
        %s12415 = smul.addr %s12411, 32
        %s12416 = sadd.s32 %s12414, %s12415
        %s12417 = smul.addr %s12416, 8
        %s12418 = scalar_lea.vmem %s5, %s12417
        // Predicated region
        $region81: #{tpu_custom_call.1} parent=35 // pred_check
          %p12419 = pneg %p134
        $region82: #{tpu_custom_call.1} parent=35 // pred_check_branch
          %12421 = sbr.rel (%p12419) target = $region84
        $region83: #{tpu_custom_call.1} parent=35 // pred_region
          %s12422 = smul.u32 8, %s23
        $region84: #{tpu_custom_call.1} parent=35 // pred_fallthru
          _
      $region36: #{tpu_custom_call.1} parent=5 // pred_fallthru
        _
      %p12423 = scmp.le.s32.totalorder 2, %s13
      // Predicated region
      $region85: #{tpu_custom_call.1} parent=5 // pred_check
        %p12424 = pneg %p12423
      $region86: #{tpu_custom_call.1} parent=5 // pred_check_branch
        %12426 = sbr.rel (%p12424) target = $region88
      $region87: #{tpu_custom_call.1} parent=5 // pred_region
        %s12427 = ssub.s32 %s13, 2
        // Predicated region
        $region89: #{tpu_custom_call.1} parent=87 // pred_check
          %p12428 = pneg %p140
        $region90: #{tpu_custom_call.1} parent=87 // pred_check_branch
          %12430 = sbr.rel (%p12428) target = $region92
        $region91: #{tpu_custom_call.1} parent=87 // pred_region
          %s12431 = smul.u32 8, %s25
          %p12432 = scmp.lt.s32.totalorder %s24, 1
          %s12433 = scalar_select %p12432, %s24, 1
          %p12434 = scmp.lt.s32.totalorder %s12431, 15
          %s12435 = scalar_select %p12434, %s12431, 15
          %s12436 = smul.addr %s12435, 2
          %s12437 = smul.addr %s12433, 32
          %s12438 = sadd.s32 %s12436, %s12437
          %s12439 = smul.addr %s12438, 8
          %s12440 = scalar_lea.vmem %s5, %s12439
        $region92: #{tpu_custom_call.1} parent=87 // pred_fallthru
          _
      $region88: #{tpu_custom_call.1} parent=5 // pred_fallthru
        _
    $region6: #{tpu_custom_call.1} parent=1 // loop_footer
      %s17 = sadd.s32 1, %s13
    $region7: #{tpu_custom_call.1} parent=1 // loop_footer_branch
      %12 = sbr.rel target = $region3
    $region8: #{tpu_custom_call.1} parent=1 // loop_exit
      _
    %12441 = vsyncpa [#allocation6], 1
    %s12442 = scalar_lea.sflag [#allocation6], 1
    %12443 = vsyncpa %s12442, 1
    %12444 = vsyncpa [#allocation8], 1
  %12445 = vsyncmov [#allocation4]
  %s12446 = vpop.sfrf %12445
  %p12447 = scmp.eq.s32.totalorder %s12446, 0
  %p12448 = pneg %p12447
  %12450 = shalt.err (%p12448)

</llo_original>
